<compile_context>
chip_gen: v7x
topology: tpu7x:2x2x1
jax: 0.10.0
libtpu: 0.0.40
codegen_flags: <defaults>
</compile_context>

<pallas_src>
import functools

import jax
import jax.numpy as jnp
import numpy as np
from jax import lax
from jax.experimental import pallas as pl
from jax.experimental.pallas import tpu as pltpu


# ----------------------- kernel 1: hoisted input projection ------------------


def input_proj_kernel(emb_ref, w_ref, b_ref, gi_ref):
    """gi[t] = emb[t] @ [W_ih_fwd^T | W_ih_bwd^T] + folded biases  (lane-dense 6H)."""
    Tc, B, E = emb_ref.shape
    G = w_ref.shape[-1]                                   # 6H (both directions)
    x = emb_ref[...].reshape(Tc * B, E)                   # one big MXU matmul
    g = jnp.dot(x, w_ref[...], preferred_element_type=jnp.float32) + b_ref[...]
    gi_ref[...] = g.reshape(Tc, B, G).astype(gi_ref.dtype)


# --------------------- kernel 2: bidirectional GRU recurrence ----------------


def gru_recurrence_kernel(gi_ref, whh_ref, bhn_ref, out_ref, hlast_ref, h_sc):
    d = pl.program_id(0)                  # direction: 0 = forward, 1 = backward
    c = pl.program_id(1)                  # chunk index along this direction's walk
    Tc, B, H = out_ref.shape

    @pl.when(c == 0)
    def _init():
        h_sc[...] = jnp.zeros((B, H), jnp.float32)

    # Hoisted per-chunk constant (one vreg).  W_hh is NOT hoisted into vregs:
    # it is far larger than the register file, so the load stays inside the
    # loop and is streamed from VMEM by the MXU each step.
    bhn = jnp.broadcast_to(bhn_ref[...].astype(jnp.float32), (B, H))

    def step(j, h):
        # Forward walks the chunk front-to-back, backward back-to-front, so
        # both directions' outputs land in natural time order.
        idx = j + d * (Tc - 1 - 2 * j)
        gi = gi_ref[idx].astype(jnp.float32)              # (B, 3H), biases folded
        gh = jnp.dot(h.astype(whh_ref.dtype), whh_ref[...],
                     preferred_element_type=jnp.float32)  # only op on serial path
        r = jax.nn.sigmoid(gi[:, :H] + gh[:, :H])
        z = jax.nn.sigmoid(gi[:, H:2 * H] + gh[:, H:2 * H])
        n = jnp.tanh(gi[:, 2 * H:] + r * (gh[:, 2 * H:] + bhn))
        h = (1.0 - z) * n + z * h
        out_ref[idx] = h                  # direct write into the [T, B, 2H] output
        return h

    h = lax.fori_loop(0, Tc, step, h_sc[...], unroll=True)
    h_sc[...] = h

    # Written only on the final chunk; correctness relies on the chunk axis
    # being "arbitrary" (sequential) so this output block stays resident until
    # the grid ends.  Do not mark that axis "parallel".
    @pl.when(c == pl.num_programs(1) - 1)
    def _final():
        hlast_ref[...] = h


# --------------------- kernel 3 (tiny): tanh(fc(cat(hf, hb))) ----------------


def fc_kernel(hlast_ref, wfc_ref, bfc_ref, hidden_ref):
    acc = jnp.dot(hlast_ref[0], wfc_ref[0], preferred_element_type=jnp.float32)
    acc = acc + jnp.dot(hlast_ref[1], wfc_ref[1], preferred_element_type=jnp.float32)
    hidden_ref[...] = jnp.tanh(acc + bfc_ref[...])


# --------------------------------- helpers -----------------------------------


def _round_up(x, m):
    return (x + m - 1) // m * m


def _pad_gate_rows(w, H, Hp):
    """(3H, ...) -> (3Hp, ...): per-gate zero padding (gates stacked r, z, n)."""
    if H == Hp:
        return w
    out = jnp.zeros((3 * Hp,) + w.shape[1:], w.dtype)
    for g in range(3):
        out = out.at[g * Hp:g * Hp + H].set(w[g * H:(g + 1) * H])
    return out


def _pad_last(w, H, Hp):
    """(..., H) -> (..., Hp), zero padded."""
    if H == Hp:
        return w
    return jnp.pad(w, [(0, 0)] * (w.ndim - 1) + [(0, Hp - H)])


# ---------------------------------- wrapper ----------------------------------


def encoder_forward(src, params, *, time_chunk=16, compute_dtype=jnp.float32):
    """src: [T, B] int32 tokens. Returns (outputs [T, B, 2H], hidden [B, D])."""
    T, B = src.shape
    emb = params["emb"]
    E = emb.shape[1]
    H = params["w_ih_f"].shape[0] // 3
    D = params["w_fc"].shape[0]

    # --- TPU alignment: lane-align H, sublane-align B (gates everything else).
    sub = 8 if jnp.dtype(compute_dtype).itemsize == 4 else 16
    Hp = _round_up(H, 128)
    Bp = _round_up(B, sub)

    # --- time chunking: never fall back to Tc = 1; pad T instead and
    # neutralize padded steps by forcing z = 1 (h' = h) in both directions.
    Tc = max(1, min(time_chunk, T))
    Tp = _round_up(T, Tc)
    Nc = Tp // Tc

    # ---- glue: embedding gather (+ identity dropout, module in eval mode) ----
    # TODO(synk): training-mode nn.Dropout would need an in-kernel PRNG mask.
    src_p = src if Bp == B else jnp.pad(src, ((0, 0), (0, Bp - B)))
    embedded = jnp.take(emb, src_p, axis=0).astype(compute_dtype)   # [T, Bp, E]
    if Tp != T:
        embedded = jnp.pad(embedded, ((0, Tp - T), (0, 0), (0, 0)))

    # ---- weight prep: pad to Hp, fold biases, concat directions -------------
    def prep_dir(w_ih, w_hh, b_ih, b_hh):
        w_ih = _pad_gate_rows(w_ih, H, Hp)                       # (3Hp, E)
        w_hh = _pad_last(_pad_gate_rows(w_hh, H, Hp), H, Hp)     # (3Hp, Hp)
        b_ih = _pad_gate_rows(b_ih, H, Hp)
        b_hh = _pad_gate_rows(b_hh, H, Hp)
        # Fold b_ih and the (r, z) part of b_hh into the input projection;
        # only the n-gate hidden bias stays inside the r*(...) term.
        b_gi = b_ih + jnp.concatenate([b_hh[:2 * Hp], jnp.zeros((Hp,), b_hh.dtype)])
        return w_ih.T, w_hh.T, b_gi, b_hh[2 * Hp:]

    wif, whf, bgi_f, bhn_f = prep_dir(params["w_ih_f"], params["w_hh_f"],
                                      params["b_ih_f"], params["b_hh_f"])
    wib, whb, bgi_b, bhn_b = prep_dir(params["w_ih_b"], params["w_hh_b"],
                                      params["b_ih_b"], params["b_hh_b"])

    w_i = jnp.concatenate([wif, wib], axis=1).astype(compute_dtype)   # (E, 6Hp)
    b_i = jnp.concatenate([bgi_f, bgi_b]).reshape(1, 6 * Hp).astype(jnp.float32)
    w_h = jnp.stack([whf, whb]).astype(compute_dtype)                 # (2, Hp, 3Hp)
    b_hn = jnp.stack([bhn_f, bhn_b]).reshape(2, 1, Hp).astype(jnp.float32)

    w_fc = params["w_fc"]                                             # (D, 2H)
    pad_rows = lambda w: w if Hp == H else jnp.pad(w, ((0, Hp - H), (0, 0)))
    w_fc_d = jnp.stack([pad_rows(w_fc[:, :H].T),
                        pad_rows(w_fc[:, H:].T)])                     # (2, Hp, D)
    b_fc = params["b_fc"].reshape(1, D).astype(jnp.float32)

    # ---- kernel 1: input projection for all timesteps (one tiled matmul) ----
    gi = pl.pallas_call(
        input_proj_kernel,
        out_shape=jax.ShapeDtypeStruct((Tp, Bp, 6 * Hp), compute_dtype),
        grid=(Nc,),
        in_specs=[
            pl.BlockSpec((Tc, Bp, E), lambda c: (c, 0, 0)),
            pl.BlockSpec((E, 6 * Hp), lambda c: (0, 0)),
            pl.BlockSpec((1, 6 * Hp), lambda c: (0, 0)),
        ],
        out_specs=pl.BlockSpec((Tc, Bp, 6 * Hp), lambda c: (c, 0, 0)),
        compiler_params=pltpu.CompilerParams(dimension_semantics=("parallel",)),
    )(embedded, w_i, b_i)

    if Tp != T:
        big = jnp.asarray(30.0, gi.dtype)        # sigmoid(30) == 1.0 in f32
        gi = gi.at[T:, :, Hp:2 * Hp].set(big)    # forward z gate of padded steps
        gi = gi.at[T:, :, 4 * Hp:5 * Hp].set(big)  # backward z gate

    # ---- kernel 2: recurrence, writing [T, B, 2H] directly ------------------
    def chunk_time(d, c):        # fwd walks chunks 0..Nc-1, bwd walks Nc-1..0
        return c + d * (Nc - 1 - 2 * c)

    outputs_p, h_last = pl.pallas_call(
        gru_recurrence_kernel,
        out_shape=(
            jax.ShapeDtypeStruct((Tp, Bp, 2 * Hp), jnp.float32),
            jax.ShapeDtypeStruct((2, Bp, Hp), jnp.float32),
        ),
        grid=(2, Nc),
        in_specs=[
            pl.BlockSpec((Tc, Bp, 3 * Hp), lambda d, c: (chunk_time(d, c), 0, d)),
            pl.BlockSpec((None, Hp, 3 * Hp), lambda d, c: (d, 0, 0)),
            pl.BlockSpec((None, 1, Hp), lambda d, c: (d, 0, 0)),
        ],
        out_specs=(
            # direction d lands at lane offset d*Hp of the 2Hp axis (no
            # separate interleave pass over HBM anymore).
            pl.BlockSpec((Tc, Bp, Hp), lambda d, c: (chunk_time(d, c), 0, d)),
            pl.BlockSpec((None, Bp, Hp), lambda d, c: (d, 0, 0)),
        ),
        scratch_shapes=[pltpu.VMEM((Bp, Hp), jnp.float32)],   # carried h state
        compiler_params=pltpu.CompilerParams(
            dimension_semantics=("parallel", "arbitrary")),
    )(gi, w_h, b_hn)

    # ---- kernel 3 (tiny): hidden = tanh(fc(cat(h_fwd, h_bwd))) --------------
    hidden_p = pl.pallas_call(
        fc_kernel,
        out_shape=jax.ShapeDtypeStruct((Bp, D), jnp.float32),
        grid=(1,),
        in_specs=[
            pl.BlockSpec((2, Bp, Hp), lambda i: (0, 0, 0)),
            pl.BlockSpec((2, Hp, D), lambda i: (0, 0, 0)),
            pl.BlockSpec((1, D), lambda i: (0, 0)),
        ],
        out_specs=pl.BlockSpec((Bp, D), lambda i: (0, 0)),
    )(h_last, w_fc_d, b_fc)

    # ---- strip padding (no-ops at aligned shapes) ----------------------------
    outputs = outputs_p
    if Tp != T:
        outputs = outputs[:T]
    if Hp != H:
        outputs = jnp.concatenate([outputs[..., :H], outputs[..., Hp:Hp + H]],
                                  axis=-1)
    hidden = hidden_p
    if Bp != B:
        outputs = outputs[:, :B]
        hidden = hidden[:B]
    return outputs, hidden


# ----------------------------- pure-JAX reference ----------------------------


def _gru_cell_ref(x, h, w_ih, w_hh, b_ih, b_hh):
    H = h.shape[-1]
    gi = x @ w_ih.T + b_ih
    gh = h @ w_hh.T + b_hh
    r = jax.nn.sigmoid(gi[:, :H] + gh[:, :H])
    z = jax.nn.sigmoid(gi[:, H:2 * H] + gh[:, H:2 * H])
    n = jnp.tanh(gi[:, 2 * H:] + r * gh[:, 2 * H:])
    return (1.0 - z) * n + z * h


def encoder_forward_ref(src, params):
    T, B = src.shape
    H = params["w_ih_f"].shape[0] // 3
    embedded = jnp.take(params["emb"], src, axis=0)

    def step_f(h, x):
        h = _gru_cell_ref(x, h, params["w_ih_f"], params["w_hh_f"],
                          params["b_ih_f"], params["b_hh_f"])
        return h, h

    def step_b(h, x):
        h = _gru_cell_ref(x, h, params["w_ih_b"], params["w_hh_b"],
                          params["b_ih_b"], params["b_hh_b"])
        return h, h

    h0 = jnp.zeros((B, H), jnp.float32)
    hf, outs_f = lax.scan(step_f, h0, embedded)
    hb, outs_b = lax.scan(step_b, h0, embedded[::-1])
    outputs = jnp.concatenate([outs_f, outs_b[::-1]], axis=-1)
    hidden = jnp.tanh(jnp.concatenate([hf, hb], axis=1) @ params["w_fc"].T
                      + params["b_fc"])
    return outputs, hidden


# ---------------------------------- main --------------------------------------


def init_params(key, input_dim, emb_dim, enc_hid_dim, dec_hid_dim):
    ks = jax.random.split(key, 11)
    kg = 1.0 / np.sqrt(enc_hid_dim)
    kf = 1.0 / np.sqrt(2 * enc_hid_dim)
    u = lambda k, shape, s: jax.random.uniform(k, shape, jnp.float32, -s, s)
    return {
        "emb":    jax.random.normal(ks[0], (input_dim, emb_dim), jnp.float32),
        "w_ih_f": u(ks[1], (3 * enc_hid_dim, emb_dim), kg),
        "w_hh_f": u(ks[2], (3 * enc_hid_dim, enc_hid_dim), kg),
        "b_ih_f": u(ks[3], (3 * enc_hid_dim,), kg),
        "b_hh_f": u(ks[4], (3 * enc_hid_dim,), kg),
        "w_ih_b": u(ks[5], (3 * enc_hid_dim, emb_dim), kg),
        "w_hh_b": u(ks[6], (3 * enc_hid_dim, enc_hid_dim), kg),
        "b_ih_b": u(ks[7], (3 * enc_hid_dim,), kg),
        "b_hh_b": u(ks[8], (3 * enc_hid_dim,), kg),
        "w_fc":   u(ks[9], (dec_hid_dim, 2 * enc_hid_dim), kf),
        "b_fc":   u(ks[10], (dec_hid_dim,), kf),
    }


if __name__ == "__main__":
    # TPU-aligned small demo: H multiple of 128, B multiple of 8, T = 2 chunks.
    INPUT_DIM, EMB_DIM, ENC_HID, DEC_HID = 64, 32, 128, 128
    T, B = 32, 8

    key = jax.random.PRNGKey(0)
    kp, ks = jax.random.split(key)
    params = init_params(kp, INPUT_DIM, EMB_DIM, ENC_HID, DEC_HID)
    src = jax.random.randint(ks, (T, B), 0, INPUT_DIM, dtype=jnp.int32)

    outputs, hidden = jax.jit(encoder_forward)(src, params)
    jax.block_until_ready((outputs, hidden))

    outputs_ref, hidden_ref = encoder_forward_ref(src, params)
    np.testing.assert_allclose(np.asarray(outputs), np.asarray(outputs_ref),
                               rtol=2e-4, atol=2e-4)
    np.testing.assert_allclose(np.asarray(hidden), np.asarray(hidden_ref),
                               rtol=2e-4, atol=2e-4)

    print("KERNEL_OK")
</pallas_src>

<mosaic_0001>
module attributes {stable_mosaic.version = 11 : i64} {
  func.func @input_proj_kernel(%arg0: i32, %arg1: memref<16x8x32xf32, #tpu.memory_space<vmem>>, %arg2: memref<32x768xf32, #tpu.memory_space<vmem>>, %arg3: memref<1x768xf32, #tpu.memory_space<vmem>>, %arg4: memref<16x8x768xf32, #tpu.memory_space<vmem>>) attributes {dimension_semantics = [#tpu.dimension_semantics<parallel>], iteration_bounds = array<i64: 2>, scalar_prefetch = 0 : i64, scratch_operands = 0 : i64, tpu.core_type = #tpu.core_type<tc>, window_params = [{transform_indices = @transform_0, window_bounds = array<i64: 16, 8, 32>}, {pipeline_mode = #tpu.pipeline_mode<synchronous>, transform_indices = @transform_1, window_bounds = array<i64: 32, 768>}, {pipeline_mode = #tpu.pipeline_mode<synchronous>, transform_indices = @transform_2, window_bounds = array<i64: 1, 768>}, {transform_indices = @transform_3, window_bounds = array<i64: 16, 8, 768>}]} {
    %c0 = arith.constant 0 : index
    %c0_0 = arith.constant 0 : index
    %c0_1 = arith.constant 0 : index
    %0 = vector.load %arg1[%c0, %c0_0, %c0_1] : memref<16x8x32xf32, #tpu.memory_space<vmem>>, vector<16x8x32xf32>
    %1 = vector.shape_cast %0 : vector<16x8x32xf32> to vector<128x32xf32>
    %c0_2 = arith.constant 0 : index
    %c0_3 = arith.constant 0 : index
    %2 = vector.load %arg2[%c0_2, %c0_3] : memref<32x768xf32, #tpu.memory_space<vmem>>, vector<32x768xf32>
    %cst = arith.constant dense<0.000000e+00> : vector<128x768xf32>
    %3 = tpu.matmul %1, %2, %cst {dimension_numbers = #tpu.dot_dimension_numbers<[1], [0], [0], [1], [0, 0, 1, 1], [], []>} : vector<128x32xf32>, vector<32x768xf32>, vector<128x768xf32> -> vector<128x768xf32>
    %c0_4 = arith.constant 0 : index
    %c0_5 = arith.constant 0 : index
    %4 = vector.load %arg3[%c0_4, %c0_5] : memref<1x768xf32, #tpu.memory_space<vmem>>, vector<1x768xf32>
    %5 = vector.broadcast %4 : vector<1x768xf32> to vector<128x768xf32>
    %6 = arith.addf %3, %5 : vector<128x768xf32>
    %7 = vector.shape_cast %6 : vector<128x768xf32> to vector<16x8x768xf32>
    %c0_6 = arith.constant 0 : index
    %c0_7 = arith.constant 0 : index
    %c0_8 = arith.constant 0 : index
    %8 = vector.load %arg4[%c0_6, %c0_7, %c0_8] : memref<16x8x768xf32, #tpu.memory_space<vmem>>, vector<16x8x768xf32>
    tpu.vector_store %arg4[%c0_6, %c0_7, %c0_8], %7 {strides = array<i32>} : memref<16x8x768xf32, #tpu.memory_space<vmem>>, vector<16x8x768xf32>,
    return
  }
  func.func @transform_0(%arg0: i32) -> (i32, i32, i32) {
    %c0_i32 = arith.constant 0 : i32
    %c0_i32_0 = arith.constant 0 : i32
    %c0_i32_1 = arith.constant 0 : i32
    return %arg0, %c0_i32, %c0_i32_0 : i32, i32, i32
  }
  func.func @transform_1(%arg0: i32) -> (i32, i32) {
    %c0_i32 = arith.constant 0 : i32
    %c0_i32_0 = arith.constant 0 : i32
    %c0_i32_1 = arith.constant 0 : i32
    return %c0_i32, %c0_i32_0 : i32, i32
  }
  func.func @transform_2(%arg0: i32) -> (i32, i32) {
    %c0_i32 = arith.constant 0 : i32
    %c0_i32_0 = arith.constant 0 : i32
    %c0_i32_1 = arith.constant 0 : i32
    return %c0_i32, %c0_i32_0 : i32, i32
  }
  func.func @transform_3(%arg0: i32) -> (i32, i32, i32) {
    %c0_i32 = arith.constant 0 : i32
    %c0_i32_0 = arith.constant 0 : i32
    %c0_i32_1 = arith.constant 0 : i32
    return %arg0, %c0_i32, %c0_i32_0 : i32, i32, i32
  }
}

module attributes {stable_mosaic.version = 11 : i64} {
  func.func @gru_recurrence_kernel(%arg0: i32, %arg1: i32, %arg2: memref<16x8x384xf32, #tpu.memory_space<vmem>>, %arg3: memref<1x128x384xf32, #tpu.memory_space<vmem>>, %arg4: memref<1x1x128xf32, #tpu.memory_space<vmem>>, %arg5: memref<16x8x128xf32, #tpu.memory_space<vmem>>, %arg6: memref<1x8x128xf32, #tpu.memory_space<vmem>>, %arg7: memref<8x128xf32, #tpu.memory_space<vmem>>) attributes {dimension_semantics = [#tpu.dimension_semantics<parallel>, #tpu.dimension_semantics<arbitrary>], iteration_bounds = array<i64: 2, 2>, scalar_prefetch = 0 : i64, scratch_operands = 1 : i64, tpu.core_type = #tpu.core_type<tc>, window_params = [{transform_indices = @transform_0, window_bounds = array<i64: 16, 8, 384>}, {transform_indices = @transform_1, window_bounds = array<i64: 1, 128, 384>}, {transform_indices = @transform_2, window_bounds = array<i64: 1, 1, 128>}, {transform_indices = @transform_3, window_bounds = array<i64: 16, 8, 128>}, {transform_indices = @transform_4, window_bounds = array<i64: 1, 8, 128>}]} {
    %c0_i32 = arith.constant 0 : i32
    %0 = arith.cmpi eq, %arg1, %c0_i32 : i32
    %1 = arith.extui %0 : i1 to i32
    %c0_i32_0 = arith.constant 0 : i32
    %2 = arith.cmpi ne, %1, %c0_i32_0 : i32
    scf.if %2 {
      %cst_217 = arith.constant 0.000000e+00 : f32
      %668 = vector.broadcast %cst_217 : f32 to vector<8x128xf32>
      %c0_218 = arith.constant 0 : index
      %c0_219 = arith.constant 0 : index
      %669 = vector.load %arg7[%c0_218, %c0_219] : memref<8x128xf32, #tpu.memory_space<vmem>>, vector<8x128xf32>
      tpu.vector_store %arg7[%c0_218, %c0_219], %668 {strides = array<i32>} : memref<8x128xf32, #tpu.memory_space<vmem>>, vector<8x128xf32>,
    } else {
    }
    %c0 = arith.constant 0 : index
    %c0_1 = arith.constant 0 : index
    %c0_2 = arith.constant 0 : index
    %3 = vector.load %arg4[%c0, %c0_1, %c0_2] : memref<1x1x128xf32, #tpu.memory_space<vmem>>, vector<1x1x128xf32>
    %4 = vector.shape_cast %3 : vector<1x1x128xf32> to vector<1x128xf32>
    %5 = vector.shape_cast %4 : vector<1x128xf32> to vector<1x128xf32>
    %6 = vector.broadcast %5 : vector<1x128xf32> to vector<8x128xf32>
    %c0_3 = arith.constant 0 : index
    %c0_4 = arith.constant 0 : index
    %7 = vector.load %arg7[%c0_3, %c0_4] : memref<8x128xf32, #tpu.memory_space<vmem>>, vector<8x128xf32>
    %c0_i32_5 = arith.constant 0 : i32
    %c2_i32 = arith.constant 2 : i32
    %8 = arith.muli %c2_i32, %c0_i32_5 : i32
    %c15_i32 = arith.constant 15 : i32
    %9 = arith.subi %c15_i32, %8 : i32
    %10 = arith.muli %arg0, %9 : i32
    %11 = arith.addi %c0_i32_5, %10 : i32
    %12 = arith.index_cast %11 : i32 to index
    %c0_6 = arith.constant 0 : index
    %c0_7 = arith.constant 0 : index
    %13 = vector.load %arg2[%12, %c0_6, %c0_7] : memref<16x8x384xf32, #tpu.memory_space<vmem>>, vector<1x8x384xf32>
    %14 = vector.shape_cast %13 : vector<1x8x384xf32> to vector<8x384xf32>
    %c0_8 = arith.constant 0 : index
    %c0_9 = arith.constant 0 : index
    %c0_10 = arith.constant 0 : index
    %15 = vector.load %arg3[%c0_8, %c0_9, %c0_10] : memref<1x128x384xf32, #tpu.memory_space<vmem>>, vector<1x128x384xf32>
    %16 = vector.shape_cast %15 : vector<1x128x384xf32> to vector<128x384xf32>
    %cst = arith.constant dense<0.000000e+00> : vector<8x384xf32>
    %17 = tpu.matmul %7, %16, %cst {dimension_numbers = #tpu.dot_dimension_numbers<[1], [0], [0], [1], [0, 0, 1, 1], [], []>} : vector<8x128xf32>, vector<128x384xf32>, vector<8x384xf32> -> vector<8x384xf32>
    %18 = vector.extract_strided_slice %14 {offsets = [0, 0], sizes = [8, 128], strides = [1, 1]} : vector<8x384xf32> to vector<8x128xf32>
    %19 = vector.extract_strided_slice %17 {offsets = [0, 0], sizes = [8, 128], strides = [1, 1]} : vector<8x384xf32> to vector<8x128xf32>
    %20 = arith.addf %18, %19 : vector<8x128xf32>
    %21 = arith.negf %20 : vector<8x128xf32>
    %22 = math.exp %21 : vector<8x128xf32>
    %cst_11 = arith.constant 1.000000e+00 : f32
    %23 = vector.broadcast %cst_11 : f32 to vector<8x128xf32>
    %24 = arith.addf %23, %22 : vector<8x128xf32>
    %25 = arith.divf %23, %24 : vector<8x128xf32>
    %26 = vector.extract_strided_slice %14 {offsets = [0, 128], sizes = [8, 128], strides = [1, 1]} : vector<8x384xf32> to vector<8x128xf32>
    %27 = vector.extract_strided_slice %17 {offsets = [0, 128], sizes = [8, 128], strides = [1, 1]} : vector<8x384xf32> to vector<8x128xf32>
    %28 = arith.addf %26, %27 : vector<8x128xf32>
    %29 = arith.negf %28 : vector<8x128xf32>
    %30 = math.exp %29 : vector<8x128xf32>
    %cst_12 = arith.constant 1.000000e+00 : f32
    %31 = vector.broadcast %cst_12 : f32 to vector<8x128xf32>
    %32 = arith.addf %31, %30 : vector<8x128xf32>
    %33 = arith.divf %31, %32 : vector<8x128xf32>
    %34 = vector.extract_strided_slice %14 {offsets = [0, 256], sizes = [8, 128], strides = [1, 1]} : vector<8x384xf32> to vector<8x128xf32>
    %35 = vector.extract_strided_slice %17 {offsets = [0, 256], sizes = [8, 128], strides = [1, 1]} : vector<8x384xf32> to vector<8x128xf32>
    %36 = arith.addf %35, %6 : vector<8x128xf32>
    %37 = arith.mulf %25, %36 : vector<8x128xf32>
    %38 = arith.addf %34, %37 : vector<8x128xf32>
    %39 = math.tanh %38 : vector<8x128xf32>
    %cst_13 = arith.constant 1.000000e+00 : f32
    %40 = vector.broadcast %cst_13 : f32 to vector<8x128xf32>
    %41 = arith.subf %40, %33 : vector<8x128xf32>
    %42 = arith.mulf %41, %39 : vector<8x128xf32>
    %43 = arith.mulf %33, %7 : vector<8x128xf32>
    %44 = arith.addf %42, %43 : vector<8x128xf32>
    %45 = arith.index_cast %11 : i32 to index
    %c0_14 = arith.constant 0 : index
    %c0_15 = arith.constant 0 : index
    %46 = vector.load %arg5[%45, %c0_14, %c0_15] : memref<16x8x128xf32, #tpu.memory_space<vmem>>, vector<1x8x128xf32>
    %47 = vector.shape_cast %46 : vector<1x8x128xf32> to vector<8x128xf32>
    %48 = vector.shape_cast %44 : vector<8x128xf32> to vector<1x8x128xf32>
    tpu.vector_store %arg5[%45, %c0_14, %c0_15], %48 {strides = array<i32>} : memref<16x8x128xf32, #tpu.memory_space<vmem>>, vector<1x8x128xf32>,
    %c1_i32 = arith.constant 1 : i32
    %c2_i32_16 = arith.constant 2 : i32
    %49 = arith.muli %c2_i32_16, %c1_i32 : i32
    %c15_i32_17 = arith.constant 15 : i32
    %50 = arith.subi %c15_i32_17, %49 : i32
    %51 = arith.muli %arg0, %50 : i32
    %52 = arith.addi %c1_i32, %51 : i32
    %53 = arith.index_cast %52 : i32 to index
    %c0_18 = arith.constant 0 : index
    %c0_19 = arith.constant 0 : index
    %54 = vector.load %arg2[%53, %c0_18, %c0_19] : memref<16x8x384xf32, #tpu.memory_space<vmem>>, vector<1x8x384xf32>
    %55 = vector.shape_cast %54 : vector<1x8x384xf32> to vector<8x384xf32>
    %c0_20 = arith.constant 0 : index
    %c0_21 = arith.constant 0 : index
    %c0_22 = arith.constant 0 : index
    %56 = vector.load %arg3[%c0_20, %c0_21, %c0_22] : memref<1x128x384xf32, #tpu.memory_space<vmem>>, vector<1x128x384xf32>
    %57 = vector.shape_cast %56 : vector<1x128x384xf32> to vector<128x384xf32>
    %cst_23 = arith.constant dense<0.000000e+00> : vector<8x384xf32>
    %58 = tpu.matmul %44, %57, %cst_23 {dimension_numbers = #tpu.dot_dimension_numbers<[1], [0], [0], [1], [0, 0, 1, 1], [], []>} : vector<8x128xf32>, vector<128x384xf32>, vector<8x384xf32> -> vector<8x384xf32>
    %59 = vector.extract_strided_slice %55 {offsets = [0, 0], sizes = [8, 128], strides = [1, 1]} : vector<8x384xf32> to vector<8x128xf32>
    %60 = vector.extract_strided_slice %58 {offsets = [0, 0], sizes = [8, 128], strides = [1, 1]} : vector<8x384xf32> to vector<8x128xf32>
    %61 = arith.addf %59, %60 : vector<8x128xf32>
    %62 = arith.negf %61 : vector<8x128xf32>
    %63 = math.exp %62 : vector<8x128xf32>
    %cst_24 = arith.constant 1.000000e+00 : f32
    %64 = vector.broadcast %cst_24 : f32 to vector<8x128xf32>
    %65 = arith.addf %64, %63 : vector<8x128xf32>
    %66 = arith.divf %64, %65 : vector<8x128xf32>
    %67 = vector.extract_strided_slice %55 {offsets = [0, 128], sizes = [8, 128], strides = [1, 1]} : vector<8x384xf32> to vector<8x128xf32>
    %68 = vector.extract_strided_slice %58 {offsets = [0, 128], sizes = [8, 128], strides = [1, 1]} : vector<8x384xf32> to vector<8x128xf32>
    %69 = arith.addf %67, %68 : vector<8x128xf32>
    %70 = arith.negf %69 : vector<8x128xf32>
    %71 = math.exp %70 : vector<8x128xf32>
    %cst_25 = arith.constant 1.000000e+00 : f32
    %72 = vector.broadcast %cst_25 : f32 to vector<8x128xf32>
    %73 = arith.addf %72, %71 : vector<8x128xf32>
    %74 = arith.divf %72, %73 : vector<8x128xf32>
    %75 = vector.extract_strided_slice %55 {offsets = [0, 256], sizes = [8, 128], strides = [1, 1]} : vector<8x384xf32> to vector<8x128xf32>
    %76 = vector.extract_strided_slice %58 {offsets = [0, 256], sizes = [8, 128], strides = [1, 1]} : vector<8x384xf32> to vector<8x128xf32>
    %77 = arith.addf %76, %6 : vector<8x128xf32>
    %78 = arith.mulf %66, %77 : vector<8x128xf32>
    %79 = arith.addf %75, %78 : vector<8x128xf32>
    %80 = math.tanh %79 : vector<8x128xf32>
    %cst_26 = arith.constant 1.000000e+00 : f32
    %81 = vector.broadcast %cst_26 : f32 to vector<8x128xf32>
    %82 = arith.subf %81, %74 : vector<8x128xf32>
    %83 = arith.mulf %82, %80 : vector<8x128xf32>
    %84 = arith.mulf %74, %44 : vector<8x128xf32>
    %85 = arith.addf %83, %84 : vector<8x128xf32>
    %86 = arith.index_cast %52 : i32 to index
    %c0_27 = arith.constant 0 : index
    %c0_28 = arith.constant 0 : index
    %87 = vector.load %arg5[%86, %c0_27, %c0_28] : memref<16x8x128xf32, #tpu.memory_space<vmem>>, vector<1x8x128xf32>
    %88 = vector.shape_cast %87 : vector<1x8x128xf32> to vector<8x128xf32>
    %89 = vector.shape_cast %85 : vector<8x128xf32> to vector<1x8x128xf32>
    tpu.vector_store %arg5[%86, %c0_27, %c0_28], %89 {strides = array<i32>} : memref<16x8x128xf32, #tpu.memory_space<vmem>>, vector<1x8x128xf32>,
    %c2_i32_29 = arith.constant 2 : i32
    %c2_i32_30 = arith.constant 2 : i32
    %90 = arith.muli %c2_i32_30, %c2_i32_29 : i32
    %c15_i32_31 = arith.constant 15 : i32
    %91 = arith.subi %c15_i32_31, %90 : i32
    %92 = arith.muli %arg0, %91 : i32
    %93 = arith.addi %c2_i32_29, %92 : i32
    %94 = arith.index_cast %93 : i32 to index
    %c0_32 = arith.constant 0 : index
    %c0_33 = arith.constant 0 : index
    %95 = vector.load %arg2[%94, %c0_32, %c0_33] : memref<16x8x384xf32, #tpu.memory_space<vmem>>, vector<1x8x384xf32>
    %96 = vector.shape_cast %95 : vector<1x8x384xf32> to vector<8x384xf32>
    %c0_34 = arith.constant 0 : index
    %c0_35 = arith.constant 0 : index
    %c0_36 = arith.constant 0 : index
    %97 = vector.load %arg3[%c0_34, %c0_35, %c0_36] : memref<1x128x384xf32, #tpu.memory_space<vmem>>, vector<1x128x384xf32>
    %98 = vector.shape_cast %97 : vector<1x128x384xf32> to vector<128x384xf32>
    %cst_37 = arith.constant dense<0.000000e+00> : vector<8x384xf32>
    %99 = tpu.matmul %85, %98, %cst_37 {dimension_numbers = #tpu.dot_dimension_numbers<[1], [0], [0], [1], [0, 0, 1, 1], [], []>} : vector<8x128xf32>, vector<128x384xf32>, vector<8x384xf32> -> vector<8x384xf32>
    %100 = vector.extract_strided_slice %96 {offsets = [0, 0], sizes = [8, 128], strides = [1, 1]} : vector<8x384xf32> to vector<8x128xf32>
    %101 = vector.extract_strided_slice %99 {offsets = [0, 0], sizes = [8, 128], strides = [1, 1]} : vector<8x384xf32> to vector<8x128xf32>
    %102 = arith.addf %100, %101 : vector<8x128xf32>
    %103 = arith.negf %102 : vector<8x128xf32>
    %104 = math.exp %103 : vector<8x128xf32>
    %cst_38 = arith.constant 1.000000e+00 : f32
    %105 = vector.broadcast %cst_38 : f32 to vector<8x128xf32>
    %106 = arith.addf %105, %104 : vector<8x128xf32>
    %107 = arith.divf %105, %106 : vector<8x128xf32>
    %108 = vector.extract_strided_slice %96 {offsets = [0, 128], sizes = [8, 128], strides = [1, 1]} : vector<8x384xf32> to vector<8x128xf32>
    %109 = vector.extract_strided_slice %99 {offsets = [0, 128], sizes = [8, 128], strides = [1, 1]} : vector<8x384xf32> to vector<8x128xf32>
    %110 = arith.addf %108, %109 : vector<8x128xf32>
    %111 = arith.negf %110 : vector<8x128xf32>
    %112 = math.exp %111 : vector<8x128xf32>
    %cst_39 = arith.constant 1.000000e+00 : f32
    %113 = vector.broadcast %cst_39 : f32 to vector<8x128xf32>
    %114 = arith.addf %113, %112 : vector<8x128xf32>
    %115 = arith.divf %113, %114 : vector<8x128xf32>
    %116 = vector.extract_strided_slice %96 {offsets = [0, 256], sizes = [8, 128], strides = [1, 1]} : vector<8x384xf32> to vector<8x128xf32>
    %117 = vector.extract_strided_slice %99 {offsets = [0, 256], sizes = [8, 128], strides = [1, 1]} : vector<8x384xf32> to vector<8x128xf32>
    %118 = arith.addf %117, %6 : vector<8x128xf32>
    %119 = arith.mulf %107, %118 : vector<8x128xf32>
    %120 = arith.addf %116, %119 : vector<8x128xf32>
    %121 = math.tanh %120 : vector<8x128xf32>
    %cst_40 = arith.constant 1.000000e+00 : f32
    %122 = vector.broadcast %cst_40 : f32 to vector<8x128xf32>
    %123 = arith.subf %122, %115 : vector<8x128xf32>
    %124 = arith.mulf %123, %121 : vector<8x128xf32>
    %125 = arith.mulf %115, %85 : vector<8x128xf32>
    %126 = arith.addf %124, %125 : vector<8x128xf32>
    %127 = arith.index_cast %93 : i32 to index
    %c0_41 = arith.constant 0 : index
    %c0_42 = arith.constant 0 : index
    %128 = vector.load %arg5[%127, %c0_41, %c0_42] : memref<16x8x128xf32, #tpu.memory_space<vmem>>, vector<1x8x128xf32>
    %129 = vector.shape_cast %128 : vector<1x8x128xf32> to vector<8x128xf32>
    %130 = vector.shape_cast %126 : vector<8x128xf32> to vector<1x8x128xf32>
    tpu.vector_store %arg5[%127, %c0_41, %c0_42], %130 {strides = array<i32>} : memref<16x8x128xf32, #tpu.memory_space<vmem>>, vector<1x8x128xf32>,
    %c3_i32 = arith.constant 3 : i32
    %c2_i32_43 = arith.constant 2 : i32
    %131 = arith.muli %c2_i32_43, %c3_i32 : i32
    %c15_i32_44 = arith.constant 15 : i32
    %132 = arith.subi %c15_i32_44, %131 : i32
    %133 = arith.muli %arg0, %132 : i32
    %134 = arith.addi %c3_i32, %133 : i32
    %135 = arith.index_cast %134 : i32 to index
    %c0_45 = arith.constant 0 : index
    %c0_46 = arith.constant 0 : index
    %136 = vector.load %arg2[%135, %c0_45, %c0_46] : memref<16x8x384xf32, #tpu.memory_space<vmem>>, vector<1x8x384xf32>
    %137 = vector.shape_cast %136 : vector<1x8x384xf32> to vector<8x384xf32>
    %c0_47 = arith.constant 0 : index
    %c0_48 = arith.constant 0 : index
    %c0_49 = arith.constant 0 : index
    %138 = vector.load %arg3[%c0_47, %c0_48, %c0_49] : memref<1x128x384xf32, #tpu.memory_space<vmem>>, vector<1x128x384xf32>
    %139 = vector.shape_cast %138 : vector<1x128x384xf32> to vector<128x384xf32>
    %cst_50 = arith.constant dense<0.000000e+00> : vector<8x384xf32>
    %140 = tpu.matmul %126, %139, %cst_50 {dimension_numbers = #tpu.dot_dimension_numbers<[1], [0], [0], [1], [0, 0, 1, 1], [], []>} : vector<8x128xf32>, vector<128x384xf32>, vector<8x384xf32> -> vector<8x384xf32>
    %141 = vector.extract_strided_slice %137 {offsets = [0, 0], sizes = [8, 128], strides = [1, 1]} : vector<8x384xf32> to vector<8x128xf32>
    %142 = vector.extract_strided_slice %140 {offsets = [0, 0], sizes = [8, 128], strides = [1, 1]} : vector<8x384xf32> to vector<8x128xf32>
    %143 = arith.addf %141, %142 : vector<8x128xf32>
    %144 = arith.negf %143 : vector<8x128xf32>
    %145 = math.exp %144 : vector<8x128xf32>
    %cst_51 = arith.constant 1.000000e+00 : f32
    %146 = vector.broadcast %cst_51 : f32 to vector<8x128xf32>
    %147 = arith.addf %146, %145 : vector<8x128xf32>
    %148 = arith.divf %146, %147 : vector<8x128xf32>
    %149 = vector.extract_strided_slice %137 {offsets = [0, 128], sizes = [8, 128], strides = [1, 1]} : vector<8x384xf32> to vector<8x128xf32>
    %150 = vector.extract_strided_slice %140 {offsets = [0, 128], sizes = [8, 128], strides = [1, 1]} : vector<8x384xf32> to vector<8x128xf32>
    %151 = arith.addf %149, %150 : vector<8x128xf32>
    %152 = arith.negf %151 : vector<8x128xf32>
    %153 = math.exp %152 : vector<8x128xf32>
    %cst_52 = arith.constant 1.000000e+00 : f32
    %154 = vector.broadcast %cst_52 : f32 to vector<8x128xf32>
    %155 = arith.addf %154, %153 : vector<8x128xf32>
    %156 = arith.divf %154, %155 : vector<8x128xf32>
    %157 = vector.extract_strided_slice %137 {offsets = [0, 256], sizes = [8, 128], strides = [1, 1]} : vector<8x384xf32> to vector<8x128xf32>
    %158 = vector.extract_strided_slice %140 {offsets = [0, 256], sizes = [8, 128], strides = [1, 1]} : vector<8x384xf32> to vector<8x128xf32>
    %159 = arith.addf %158, %6 : vector<8x128xf32>
    %160 = arith.mulf %148, %159 : vector<8x128xf32>
    %161 = arith.addf %157, %160 : vector<8x128xf32>
    %162 = math.tanh %161 : vector<8x128xf32>
    %cst_53 = arith.constant 1.000000e+00 : f32
    %163 = vector.broadcast %cst_53 : f32 to vector<8x128xf32>
    %164 = arith.subf %163, %156 : vector<8x128xf32>
    %165 = arith.mulf %164, %162 : vector<8x128xf32>
    %166 = arith.mulf %156, %126 : vector<8x128xf32>
    %167 = arith.addf %165, %166 : vector<8x128xf32>
    %168 = arith.index_cast %134 : i32 to index
    %c0_54 = arith.constant 0 : index
    %c0_55 = arith.constant 0 : index
    %169 = vector.load %arg5[%168, %c0_54, %c0_55] : memref<16x8x128xf32, #tpu.memory_space<vmem>>, vector<1x8x128xf32>
    %170 = vector.shape_cast %169 : vector<1x8x128xf32> to vector<8x128xf32>
    %171 = vector.shape_cast %167 : vector<8x128xf32> to vector<1x8x128xf32>
    tpu.vector_store %arg5[%168, %c0_54, %c0_55], %171 {strides = array<i32>} : memref<16x8x128xf32, #tpu.memory_space<vmem>>, vector<1x8x128xf32>,
    %c4_i32 = arith.constant 4 : i32
    %c2_i32_56 = arith.constant 2 : i32
    %172 = arith.muli %c2_i32_56, %c4_i32 : i32
    %c15_i32_57 = arith.constant 15 : i32
    %173 = arith.subi %c15_i32_57, %172 : i32
    %174 = arith.muli %arg0, %173 : i32
    %175 = arith.addi %c4_i32, %174 : i32
    %176 = arith.index_cast %175 : i32 to index
    %c0_58 = arith.constant 0 : index
    %c0_59 = arith.constant 0 : index
    %177 = vector.load %arg2[%176, %c0_58, %c0_59] : memref<16x8x384xf32, #tpu.memory_space<vmem>>, vector<1x8x384xf32>
    %178 = vector.shape_cast %177 : vector<1x8x384xf32> to vector<8x384xf32>
    %c0_60 = arith.constant 0 : index
    %c0_61 = arith.constant 0 : index
    %c0_62 = arith.constant 0 : index
    %179 = vector.load %arg3[%c0_60, %c0_61, %c0_62] : memref<1x128x384xf32, #tpu.memory_space<vmem>>, vector<1x128x384xf32>
    %180 = vector.shape_cast %179 : vector<1x128x384xf32> to vector<128x384xf32>
    %cst_63 = arith.constant dense<0.000000e+00> : vector<8x384xf32>
    %181 = tpu.matmul %167, %180, %cst_63 {dimension_numbers = #tpu.dot_dimension_numbers<[1], [0], [0], [1], [0, 0, 1, 1], [], []>} : vector<8x128xf32>, vector<128x384xf32>, vector<8x384xf32> -> vector<8x384xf32>
    %182 = vector.extract_strided_slice %178 {offsets = [0, 0], sizes = [8, 128], strides = [1, 1]} : vector<8x384xf32> to vector<8x128xf32>
    %183 = vector.extract_strided_slice %181 {offsets = [0, 0], sizes = [8, 128], strides = [1, 1]} : vector<8x384xf32> to vector<8x128xf32>
    %184 = arith.addf %182, %183 : vector<8x128xf32>
    %185 = arith.negf %184 : vector<8x128xf32>
    %186 = math.exp %185 : vector<8x128xf32>
    %cst_64 = arith.constant 1.000000e+00 : f32
    %187 = vector.broadcast %cst_64 : f32 to vector<8x128xf32>
    %188 = arith.addf %187, %186 : vector<8x128xf32>
    %189 = arith.divf %187, %188 : vector<8x128xf32>
    %190 = vector.extract_strided_slice %178 {offsets = [0, 128], sizes = [8, 128], strides = [1, 1]} : vector<8x384xf32> to vector<8x128xf32>
    %191 = vector.extract_strided_slice %181 {offsets = [0, 128], sizes = [8, 128], strides = [1, 1]} : vector<8x384xf32> to vector<8x128xf32>
    %192 = arith.addf %190, %191 : vector<8x128xf32>
    %193 = arith.negf %192 : vector<8x128xf32>
    %194 = math.exp %193 : vector<8x128xf32>
    %cst_65 = arith.constant 1.000000e+00 : f32
    %195 = vector.broadcast %cst_65 : f32 to vector<8x128xf32>
    %196 = arith.addf %195, %194 : vector<8x128xf32>
    %197 = arith.divf %195, %196 : vector<8x128xf32>
    %198 = vector.extract_strided_slice %178 {offsets = [0, 256], sizes = [8, 128], strides = [1, 1]} : vector<8x384xf32> to vector<8x128xf32>
    %199 = vector.extract_strided_slice %181 {offsets = [0, 256], sizes = [8, 128], strides = [1, 1]} : vector<8x384xf32> to vector<8x128xf32>
    %200 = arith.addf %199, %6 : vector<8x128xf32>
    %201 = arith.mulf %189, %200 : vector<8x128xf32>
    %202 = arith.addf %198, %201 : vector<8x128xf32>
    %203 = math.tanh %202 : vector<8x128xf32>
    %cst_66 = arith.constant 1.000000e+00 : f32
    %204 = vector.broadcast %cst_66 : f32 to vector<8x128xf32>
    %205 = arith.subf %204, %197 : vector<8x128xf32>
    %206 = arith.mulf %205, %203 : vector<8x128xf32>
    %207 = arith.mulf %197, %167 : vector<8x128xf32>
    %208 = arith.addf %206, %207 : vector<8x128xf32>
    %209 = arith.index_cast %175 : i32 to index
    %c0_67 = arith.constant 0 : index
    %c0_68 = arith.constant 0 : index
    %210 = vector.load %arg5[%209, %c0_67, %c0_68] : memref<16x8x128xf32, #tpu.memory_space<vmem>>, vector<1x8x128xf32>
    %211 = vector.shape_cast %210 : vector<1x8x128xf32> to vector<8x128xf32>
    %212 = vector.shape_cast %208 : vector<8x128xf32> to vector<1x8x128xf32>
    tpu.vector_store %arg5[%209, %c0_67, %c0_68], %212 {strides = array<i32>} : memref<16x8x128xf32, #tpu.memory_space<vmem>>, vector<1x8x128xf32>,
    %c5_i32 = arith.constant 5 : i32
    %c2_i32_69 = arith.constant 2 : i32
    %213 = arith.muli %c2_i32_69, %c5_i32 : i32
    %c15_i32_70 = arith.constant 15 : i32
    %214 = arith.subi %c15_i32_70, %213 : i32
    %215 = arith.muli %arg0, %214 : i32
    %216 = arith.addi %c5_i32, %215 : i32
    %217 = arith.index_cast %216 : i32 to index
    %c0_71 = arith.constant 0 : index
    %c0_72 = arith.constant 0 : index
    %218 = vector.load %arg2[%217, %c0_71, %c0_72] : memref<16x8x384xf32, #tpu.memory_space<vmem>>, vector<1x8x384xf32>
    %219 = vector.shape_cast %218 : vector<1x8x384xf32> to vector<8x384xf32>
    %c0_73 = arith.constant 0 : index
    %c0_74 = arith.constant 0 : index
    %c0_75 = arith.constant 0 : index
    %220 = vector.load %arg3[%c0_73, %c0_74, %c0_75] : memref<1x128x384xf32, #tpu.memory_space<vmem>>, vector<1x128x384xf32>
    %221 = vector.shape_cast %220 : vector<1x128x384xf32> to vector<128x384xf32>
    %cst_76 = arith.constant dense<0.000000e+00> : vector<8x384xf32>
    %222 = tpu.matmul %208, %221, %cst_76 {dimension_numbers = #tpu.dot_dimension_numbers<[1], [0], [0], [1], [0, 0, 1, 1], [], []>} : vector<8x128xf32>, vector<128x384xf32>, vector<8x384xf32> -> vector<8x384xf32>
    %223 = vector.extract_strided_slice %219 {offsets = [0, 0], sizes = [8, 128], strides = [1, 1]} : vector<8x384xf32> to vector<8x128xf32>
    %224 = vector.extract_strided_slice %222 {offsets = [0, 0], sizes = [8, 128], strides = [1, 1]} : vector<8x384xf32> to vector<8x128xf32>
    %225 = arith.addf %223, %224 : vector<8x128xf32>
    %226 = arith.negf %225 : vector<8x128xf32>
    %227 = math.exp %226 : vector<8x128xf32>
    %cst_77 = arith.constant 1.000000e+00 : f32
    %228 = vector.broadcast %cst_77 : f32 to vector<8x128xf32>
    %229 = arith.addf %228, %227 : vector<8x128xf32>
    %230 = arith.divf %228, %229 : vector<8x128xf32>
    %231 = vector.extract_strided_slice %219 {offsets = [0, 128], sizes = [8, 128], strides = [1, 1]} : vector<8x384xf32> to vector<8x128xf32>
    %232 = vector.extract_strided_slice %222 {offsets = [0, 128], sizes = [8, 128], strides = [1, 1]} : vector<8x384xf32> to vector<8x128xf32>
    %233 = arith.addf %231, %232 : vector<8x128xf32>
    %234 = arith.negf %233 : vector<8x128xf32>
    %235 = math.exp %234 : vector<8x128xf32>
    %cst_78 = arith.constant 1.000000e+00 : f32
    %236 = vector.broadcast %cst_78 : f32 to vector<8x128xf32>
    %237 = arith.addf %236, %235 : vector<8x128xf32>
    %238 = arith.divf %236, %237 : vector<8x128xf32>
    %239 = vector.extract_strided_slice %219 {offsets = [0, 256], sizes = [8, 128], strides = [1, 1]} : vector<8x384xf32> to vector<8x128xf32>
    %240 = vector.extract_strided_slice %222 {offsets = [0, 256], sizes = [8, 128], strides = [1, 1]} : vector<8x384xf32> to vector<8x128xf32>
    %241 = arith.addf %240, %6 : vector<8x128xf32>
    %242 = arith.mulf %230, %241 : vector<8x128xf32>
    %243 = arith.addf %239, %242 : vector<8x128xf32>
    %244 = math.tanh %243 : vector<8x128xf32>
    %cst_79 = arith.constant 1.000000e+00 : f32
    %245 = vector.broadcast %cst_79 : f32 to vector<8x128xf32>
    %246 = arith.subf %245, %238 : vector<8x128xf32>
    %247 = arith.mulf %246, %244 : vector<8x128xf32>
    %248 = arith.mulf %238, %208 : vector<8x128xf32>
    %249 = arith.addf %247, %248 : vector<8x128xf32>
    %250 = arith.index_cast %216 : i32 to index
    %c0_80 = arith.constant 0 : index
    %c0_81 = arith.constant 0 : index
    %251 = vector.load %arg5[%250, %c0_80, %c0_81] : memref<16x8x128xf32, #tpu.memory_space<vmem>>, vector<1x8x128xf32>
    %252 = vector.shape_cast %251 : vector<1x8x128xf32> to vector<8x128xf32>
    %253 = vector.shape_cast %249 : vector<8x128xf32> to vector<1x8x128xf32>
    tpu.vector_store %arg5[%250, %c0_80, %c0_81], %253 {strides = array<i32>} : memref<16x8x128xf32, #tpu.memory_space<vmem>>, vector<1x8x128xf32>,
    %c6_i32 = arith.constant 6 : i32
    %c2_i32_82 = arith.constant 2 : i32
    %254 = arith.muli %c2_i32_82, %c6_i32 : i32
    %c15_i32_83 = arith.constant 15 : i32
    %255 = arith.subi %c15_i32_83, %254 : i32
    %256 = arith.muli %arg0, %255 : i32
    %257 = arith.addi %c6_i32, %256 : i32
    %258 = arith.index_cast %257 : i32 to index
    %c0_84 = arith.constant 0 : index
    %c0_85 = arith.constant 0 : index
    %259 = vector.load %arg2[%258, %c0_84, %c0_85] : memref<16x8x384xf32, #tpu.memory_space<vmem>>, vector<1x8x384xf32>
    %260 = vector.shape_cast %259 : vector<1x8x384xf32> to vector<8x384xf32>
    %c0_86 = arith.constant 0 : index
    %c0_87 = arith.constant 0 : index
    %c0_88 = arith.constant 0 : index
    %261 = vector.load %arg3[%c0_86, %c0_87, %c0_88] : memref<1x128x384xf32, #tpu.memory_space<vmem>>, vector<1x128x384xf32>
    %262 = vector.shape_cast %261 : vector<1x128x384xf32> to vector<128x384xf32>
    %cst_89 = arith.constant dense<0.000000e+00> : vector<8x384xf32>
    %263 = tpu.matmul %249, %262, %cst_89 {dimension_numbers = #tpu.dot_dimension_numbers<[1], [0], [0], [1], [0, 0, 1, 1], [], []>} : vector<8x128xf32>, vector<128x384xf32>, vector<8x384xf32> -> vector<8x384xf32>
    %264 = vector.extract_strided_slice %260 {offsets = [0, 0], sizes = [8, 128], strides = [1, 1]} : vector<8x384xf32> to vector<8x128xf32>
    %265 = vector.extract_strided_slice %263 {offsets = [0, 0], sizes = [8, 128], strides = [1, 1]} : vector<8x384xf32> to vector<8x128xf32>
    %266 = arith.addf %264, %265 : vector<8x128xf32>
    %267 = arith.negf %266 : vector<8x128xf32>
    %268 = math.exp %267 : vector<8x128xf32>
    %cst_90 = arith.constant 1.000000e+00 : f32
    %269 = vector.broadcast %cst_90 : f32 to vector<8x128xf32>
    %270 = arith.addf %269, %268 : vector<8x128xf32>
    %271 = arith.divf %269, %270 : vector<8x128xf32>
    %272 = vector.extract_strided_slice %260 {offsets = [0, 128], sizes = [8, 128], strides = [1, 1]} : vector<8x384xf32> to vector<8x128xf32>
    %273 = vector.extract_strided_slice %263 {offsets = [0, 128], sizes = [8, 128], strides = [1, 1]} : vector<8x384xf32> to vector<8x128xf32>
    %274 = arith.addf %272, %273 : vector<8x128xf32>
    %275 = arith.negf %274 : vector<8x128xf32>
    %276 = math.exp %275 : vector<8x128xf32>
    %cst_91 = arith.constant 1.000000e+00 : f32
    %277 = vector.broadcast %cst_91 : f32 to vector<8x128xf32>
    %278 = arith.addf %277, %276 : vector<8x128xf32>
    %279 = arith.divf %277, %278 : vector<8x128xf32>
    %280 = vector.extract_strided_slice %260 {offsets = [0, 256], sizes = [8, 128], strides = [1, 1]} : vector<8x384xf32> to vector<8x128xf32>
    %281 = vector.extract_strided_slice %263 {offsets = [0, 256], sizes = [8, 128], strides = [1, 1]} : vector<8x384xf32> to vector<8x128xf32>
    %282 = arith.addf %281, %6 : vector<8x128xf32>
    %283 = arith.mulf %271, %282 : vector<8x128xf32>
    %284 = arith.addf %280, %283 : vector<8x128xf32>
    %285 = math.tanh %284 : vector<8x128xf32>
    %cst_92 = arith.constant 1.000000e+00 : f32
    %286 = vector.broadcast %cst_92 : f32 to vector<8x128xf32>
    %287 = arith.subf %286, %279 : vector<8x128xf32>
    %288 = arith.mulf %287, %285 : vector<8x128xf32>
    %289 = arith.mulf %279, %249 : vector<8x128xf32>
    %290 = arith.addf %288, %289 : vector<8x128xf32>
    %291 = arith.index_cast %257 : i32 to index
    %c0_93 = arith.constant 0 : index
    %c0_94 = arith.constant 0 : index
    %292 = vector.load %arg5[%291, %c0_93, %c0_94] : memref<16x8x128xf32, #tpu.memory_space<vmem>>, vector<1x8x128xf32>
    %293 = vector.shape_cast %292 : vector<1x8x128xf32> to vector<8x128xf32>
    %294 = vector.shape_cast %290 : vector<8x128xf32> to vector<1x8x128xf32>
    tpu.vector_store %arg5[%291, %c0_93, %c0_94], %294 {strides = array<i32>} : memref<16x8x128xf32, #tpu.memory_space<vmem>>, vector<1x8x128xf32>,
    %c7_i32 = arith.constant 7 : i32
    %c2_i32_95 = arith.constant 2 : i32
    %295 = arith.muli %c2_i32_95, %c7_i32 : i32
    %c15_i32_96 = arith.constant 15 : i32
    %296 = arith.subi %c15_i32_96, %295 : i32
    %297 = arith.muli %arg0, %296 : i32
    %298 = arith.addi %c7_i32, %297 : i32
    %299 = arith.index_cast %298 : i32 to index
    %c0_97 = arith.constant 0 : index
    %c0_98 = arith.constant 0 : index
    %300 = vector.load %arg2[%299, %c0_97, %c0_98] : memref<16x8x384xf32, #tpu.memory_space<vmem>>, vector<1x8x384xf32>
    %301 = vector.shape_cast %300 : vector<1x8x384xf32> to vector<8x384xf32>
    %c0_99 = arith.constant 0 : index
    %c0_100 = arith.constant 0 : index
    %c0_101 = arith.constant 0 : index
    %302 = vector.load %arg3[%c0_99, %c0_100, %c0_101] : memref<1x128x384xf32, #tpu.memory_space<vmem>>, vector<1x128x384xf32>
    %303 = vector.shape_cast %302 : vector<1x128x384xf32> to vector<128x384xf32>
    %cst_102 = arith.constant dense<0.000000e+00> : vector<8x384xf32>
    %304 = tpu.matmul %290, %303, %cst_102 {dimension_numbers = #tpu.dot_dimension_numbers<[1], [0], [0], [1], [0, 0, 1, 1], [], []>} : vector<8x128xf32>, vector<128x384xf32>, vector<8x384xf32> -> vector<8x384xf32>
    %305 = vector.extract_strided_slice %301 {offsets = [0, 0], sizes = [8, 128], strides = [1, 1]} : vector<8x384xf32> to vector<8x128xf32>
    %306 = vector.extract_strided_slice %304 {offsets = [0, 0], sizes = [8, 128], strides = [1, 1]} : vector<8x384xf32> to vector<8x128xf32>
    %307 = arith.addf %305, %306 : vector<8x128xf32>
    %308 = arith.negf %307 : vector<8x128xf32>
    %309 = math.exp %308 : vector<8x128xf32>
    %cst_103 = arith.constant 1.000000e+00 : f32
    %310 = vector.broadcast %cst_103 : f32 to vector<8x128xf32>
    %311 = arith.addf %310, %309 : vector<8x128xf32>
    %312 = arith.divf %310, %311 : vector<8x128xf32>
    %313 = vector.extract_strided_slice %301 {offsets = [0, 128], sizes = [8, 128], strides = [1, 1]} : vector<8x384xf32> to vector<8x128xf32>
    %314 = vector.extract_strided_slice %304 {offsets = [0, 128], sizes = [8, 128], strides = [1, 1]} : vector<8x384xf32> to vector<8x128xf32>
    %315 = arith.addf %313, %314 : vector<8x128xf32>
    %316 = arith.negf %315 : vector<8x128xf32>
    %317 = math.exp %316 : vector<8x128xf32>
    %cst_104 = arith.constant 1.000000e+00 : f32
    %318 = vector.broadcast %cst_104 : f32 to vector<8x128xf32>
    %319 = arith.addf %318, %317 : vector<8x128xf32>
    %320 = arith.divf %318, %319 : vector<8x128xf32>
    %321 = vector.extract_strided_slice %301 {offsets = [0, 256], sizes = [8, 128], strides = [1, 1]} : vector<8x384xf32> to vector<8x128xf32>
    %322 = vector.extract_strided_slice %304 {offsets = [0, 256], sizes = [8, 128], strides = [1, 1]} : vector<8x384xf32> to vector<8x128xf32>
    %323 = arith.addf %322, %6 : vector<8x128xf32>
    %324 = arith.mulf %312, %323 : vector<8x128xf32>
    %325 = arith.addf %321, %324 : vector<8x128xf32>
    %326 = math.tanh %325 : vector<8x128xf32>
    %cst_105 = arith.constant 1.000000e+00 : f32
    %327 = vector.broadcast %cst_105 : f32 to vector<8x128xf32>
    %328 = arith.subf %327, %320 : vector<8x128xf32>
    %329 = arith.mulf %328, %326 : vector<8x128xf32>
    %330 = arith.mulf %320, %290 : vector<8x128xf32>
    %331 = arith.addf %329, %330 : vector<8x128xf32>
    %332 = arith.index_cast %298 : i32 to index
    %c0_106 = arith.constant 0 : index
    %c0_107 = arith.constant 0 : index
    %333 = vector.load %arg5[%332, %c0_106, %c0_107] : memref<16x8x128xf32, #tpu.memory_space<vmem>>, vector<1x8x128xf32>
    %334 = vector.shape_cast %333 : vector<1x8x128xf32> to vector<8x128xf32>
    %335 = vector.shape_cast %331 : vector<8x128xf32> to vector<1x8x128xf32>
    tpu.vector_store %arg5[%332, %c0_106, %c0_107], %335 {strides = array<i32>} : memref<16x8x128xf32, #tpu.memory_space<vmem>>, vector<1x8x128xf32>,
    %c8_i32 = arith.constant 8 : i32
    %c2_i32_108 = arith.constant 2 : i32
    %336 = arith.muli %c2_i32_108, %c8_i32 : i32
    %c15_i32_109 = arith.constant 15 : i32
    %337 = arith.subi %c15_i32_109, %336 : i32
    %338 = arith.muli %arg0, %337 : i32
    %339 = arith.addi %c8_i32, %338 : i32
    %340 = arith.index_cast %339 : i32 to index
    %c0_110 = arith.constant 0 : index
    %c0_111 = arith.constant 0 : index
    %341 = vector.load %arg2[%340, %c0_110, %c0_111] : memref<16x8x384xf32, #tpu.memory_space<vmem>>, vector<1x8x384xf32>
    %342 = vector.shape_cast %341 : vector<1x8x384xf32> to vector<8x384xf32>
    %c0_112 = arith.constant 0 : index
    %c0_113 = arith.constant 0 : index
    %c0_114 = arith.constant 0 : index
    %343 = vector.load %arg3[%c0_112, %c0_113, %c0_114] : memref<1x128x384xf32, #tpu.memory_space<vmem>>, vector<1x128x384xf32>
    %344 = vector.shape_cast %343 : vector<1x128x384xf32> to vector<128x384xf32>
    %cst_115 = arith.constant dense<0.000000e+00> : vector<8x384xf32>
    %345 = tpu.matmul %331, %344, %cst_115 {dimension_numbers = #tpu.dot_dimension_numbers<[1], [0], [0], [1], [0, 0, 1, 1], [], []>} : vector<8x128xf32>, vector<128x384xf32>, vector<8x384xf32> -> vector<8x384xf32>
    %346 = vector.extract_strided_slice %342 {offsets = [0, 0], sizes = [8, 128], strides = [1, 1]} : vector<8x384xf32> to vector<8x128xf32>
    %347 = vector.extract_strided_slice %345 {offsets = [0, 0], sizes = [8, 128], strides = [1, 1]} : vector<8x384xf32> to vector<8x128xf32>
    %348 = arith.addf %346, %347 : vector<8x128xf32>
    %349 = arith.negf %348 : vector<8x128xf32>
    %350 = math.exp %349 : vector<8x128xf32>
    %cst_116 = arith.constant 1.000000e+00 : f32
    %351 = vector.broadcast %cst_116 : f32 to vector<8x128xf32>
    %352 = arith.addf %351, %350 : vector<8x128xf32>
    %353 = arith.divf %351, %352 : vector<8x128xf32>
    %354 = vector.extract_strided_slice %342 {offsets = [0, 128], sizes = [8, 128], strides = [1, 1]} : vector<8x384xf32> to vector<8x128xf32>
    %355 = vector.extract_strided_slice %345 {offsets = [0, 128], sizes = [8, 128], strides = [1, 1]} : vector<8x384xf32> to vector<8x128xf32>
    %356 = arith.addf %354, %355 : vector<8x128xf32>
    %357 = arith.negf %356 : vector<8x128xf32>
    %358 = math.exp %357 : vector<8x128xf32>
    %cst_117 = arith.constant 1.000000e+00 : f32
    %359 = vector.broadcast %cst_117 : f32 to vector<8x128xf32>
    %360 = arith.addf %359, %358 : vector<8x128xf32>
    %361 = arith.divf %359, %360 : vector<8x128xf32>
    %362 = vector.extract_strided_slice %342 {offsets = [0, 256], sizes = [8, 128], strides = [1, 1]} : vector<8x384xf32> to vector<8x128xf32>
    %363 = vector.extract_strided_slice %345 {offsets = [0, 256], sizes = [8, 128], strides = [1, 1]} : vector<8x384xf32> to vector<8x128xf32>
    %364 = arith.addf %363, %6 : vector<8x128xf32>
    %365 = arith.mulf %353, %364 : vector<8x128xf32>
    %366 = arith.addf %362, %365 : vector<8x128xf32>
    %367 = math.tanh %366 : vector<8x128xf32>
    %cst_118 = arith.constant 1.000000e+00 : f32
    %368 = vector.broadcast %cst_118 : f32 to vector<8x128xf32>
    %369 = arith.subf %368, %361 : vector<8x128xf32>
    %370 = arith.mulf %369, %367 : vector<8x128xf32>
    %371 = arith.mulf %361, %331 : vector<8x128xf32>
    %372 = arith.addf %370, %371 : vector<8x128xf32>
    %373 = arith.index_cast %339 : i32 to index
    %c0_119 = arith.constant 0 : index
    %c0_120 = arith.constant 0 : index
    %374 = vector.load %arg5[%373, %c0_119, %c0_120] : memref<16x8x128xf32, #tpu.memory_space<vmem>>, vector<1x8x128xf32>
    %375 = vector.shape_cast %374 : vector<1x8x128xf32> to vector<8x128xf32>
    %376 = vector.shape_cast %372 : vector<8x128xf32> to vector<1x8x128xf32>
    tpu.vector_store %arg5[%373, %c0_119, %c0_120], %376 {strides = array<i32>} : memref<16x8x128xf32, #tpu.memory_space<vmem>>, vector<1x8x128xf32>,
    %c9_i32 = arith.constant 9 : i32
    %c2_i32_121 = arith.constant 2 : i32
    %377 = arith.muli %c2_i32_121, %c9_i32 : i32
    %c15_i32_122 = arith.constant 15 : i32
    %378 = arith.subi %c15_i32_122, %377 : i32
    %379 = arith.muli %arg0, %378 : i32
    %380 = arith.addi %c9_i32, %379 : i32
    %381 = arith.index_cast %380 : i32 to index
    %c0_123 = arith.constant 0 : index
    %c0_124 = arith.constant 0 : index
    %382 = vector.load %arg2[%381, %c0_123, %c0_124] : memref<16x8x384xf32, #tpu.memory_space<vmem>>, vector<1x8x384xf32>
    %383 = vector.shape_cast %382 : vector<1x8x384xf32> to vector<8x384xf32>
    %c0_125 = arith.constant 0 : index
    %c0_126 = arith.constant 0 : index
    %c0_127 = arith.constant 0 : index
    %384 = vector.load %arg3[%c0_125, %c0_126, %c0_127] : memref<1x128x384xf32, #tpu.memory_space<vmem>>, vector<1x128x384xf32>
    %385 = vector.shape_cast %384 : vector<1x128x384xf32> to vector<128x384xf32>
    %cst_128 = arith.constant dense<0.000000e+00> : vector<8x384xf32>
    %386 = tpu.matmul %372, %385, %cst_128 {dimension_numbers = #tpu.dot_dimension_numbers<[1], [0], [0], [1], [0, 0, 1, 1], [], []>} : vector<8x128xf32>, vector<128x384xf32>, vector<8x384xf32> -> vector<8x384xf32>
    %387 = vector.extract_strided_slice %383 {offsets = [0, 0], sizes = [8, 128], strides = [1, 1]} : vector<8x384xf32> to vector<8x128xf32>
    %388 = vector.extract_strided_slice %386 {offsets = [0, 0], sizes = [8, 128], strides = [1, 1]} : vector<8x384xf32> to vector<8x128xf32>
    %389 = arith.addf %387, %388 : vector<8x128xf32>
    %390 = arith.negf %389 : vector<8x128xf32>
    %391 = math.exp %390 : vector<8x128xf32>
    %cst_129 = arith.constant 1.000000e+00 : f32
    %392 = vector.broadcast %cst_129 : f32 to vector<8x128xf32>
    %393 = arith.addf %392, %391 : vector<8x128xf32>
    %394 = arith.divf %392, %393 : vector<8x128xf32>
    %395 = vector.extract_strided_slice %383 {offsets = [0, 128], sizes = [8, 128], strides = [1, 1]} : vector<8x384xf32> to vector<8x128xf32>
    %396 = vector.extract_strided_slice %386 {offsets = [0, 128], sizes = [8, 128], strides = [1, 1]} : vector<8x384xf32> to vector<8x128xf32>
    %397 = arith.addf %395, %396 : vector<8x128xf32>
    %398 = arith.negf %397 : vector<8x128xf32>
    %399 = math.exp %398 : vector<8x128xf32>
    %cst_130 = arith.constant 1.000000e+00 : f32
    %400 = vector.broadcast %cst_130 : f32 to vector<8x128xf32>
    %401 = arith.addf %400, %399 : vector<8x128xf32>
    %402 = arith.divf %400, %401 : vector<8x128xf32>
    %403 = vector.extract_strided_slice %383 {offsets = [0, 256], sizes = [8, 128], strides = [1, 1]} : vector<8x384xf32> to vector<8x128xf32>
    %404 = vector.extract_strided_slice %386 {offsets = [0, 256], sizes = [8, 128], strides = [1, 1]} : vector<8x384xf32> to vector<8x128xf32>
    %405 = arith.addf %404, %6 : vector<8x128xf32>
    %406 = arith.mulf %394, %405 : vector<8x128xf32>
    %407 = arith.addf %403, %406 : vector<8x128xf32>
    %408 = math.tanh %407 : vector<8x128xf32>
    %cst_131 = arith.constant 1.000000e+00 : f32
    %409 = vector.broadcast %cst_131 : f32 to vector<8x128xf32>
    %410 = arith.subf %409, %402 : vector<8x128xf32>
    %411 = arith.mulf %410, %408 : vector<8x128xf32>
    %412 = arith.mulf %402, %372 : vector<8x128xf32>
    %413 = arith.addf %411, %412 : vector<8x128xf32>
    %414 = arith.index_cast %380 : i32 to index
    %c0_132 = arith.constant 0 : index
    %c0_133 = arith.constant 0 : index
    %415 = vector.load %arg5[%414, %c0_132, %c0_133] : memref<16x8x128xf32, #tpu.memory_space<vmem>>, vector<1x8x128xf32>
    %416 = vector.shape_cast %415 : vector<1x8x128xf32> to vector<8x128xf32>
    %417 = vector.shape_cast %413 : vector<8x128xf32> to vector<1x8x128xf32>
    tpu.vector_store %arg5[%414, %c0_132, %c0_133], %417 {strides = array<i32>} : memref<16x8x128xf32, #tpu.memory_space<vmem>>, vector<1x8x128xf32>,
    %c10_i32 = arith.constant 10 : i32
    %c2_i32_134 = arith.constant 2 : i32
    %418 = arith.muli %c2_i32_134, %c10_i32 : i32
    %c15_i32_135 = arith.constant 15 : i32
    %419 = arith.subi %c15_i32_135, %418 : i32
    %420 = arith.muli %arg0, %419 : i32
    %421 = arith.addi %c10_i32, %420 : i32
    %422 = arith.index_cast %421 : i32 to index
    %c0_136 = arith.constant 0 : index
    %c0_137 = arith.constant 0 : index
    %423 = vector.load %arg2[%422, %c0_136, %c0_137] : memref<16x8x384xf32, #tpu.memory_space<vmem>>, vector<1x8x384xf32>
    %424 = vector.shape_cast %423 : vector<1x8x384xf32> to vector<8x384xf32>
    %c0_138 = arith.constant 0 : index
    %c0_139 = arith.constant 0 : index
    %c0_140 = arith.constant 0 : index
    %425 = vector.load %arg3[%c0_138, %c0_139, %c0_140] : memref<1x128x384xf32, #tpu.memory_space<vmem>>, vector<1x128x384xf32>
    %426 = vector.shape_cast %425 : vector<1x128x384xf32> to vector<128x384xf32>
    %cst_141 = arith.constant dense<0.000000e+00> : vector<8x384xf32>
    %427 = tpu.matmul %413, %426, %cst_141 {dimension_numbers = #tpu.dot_dimension_numbers<[1], [0], [0], [1], [0, 0, 1, 1], [], []>} : vector<8x128xf32>, vector<128x384xf32>, vector<8x384xf32> -> vector<8x384xf32>
    %428 = vector.extract_strided_slice %424 {offsets = [0, 0], sizes = [8, 128], strides = [1, 1]} : vector<8x384xf32> to vector<8x128xf32>
    %429 = vector.extract_strided_slice %427 {offsets = [0, 0], sizes = [8, 128], strides = [1, 1]} : vector<8x384xf32> to vector<8x128xf32>
    %430 = arith.addf %428, %429 : vector<8x128xf32>
    %431 = arith.negf %430 : vector<8x128xf32>
    %432 = math.exp %431 : vector<8x128xf32>
    %cst_142 = arith.constant 1.000000e+00 : f32
    %433 = vector.broadcast %cst_142 : f32 to vector<8x128xf32>
    %434 = arith.addf %433, %432 : vector<8x128xf32>
    %435 = arith.divf %433, %434 : vector<8x128xf32>
    %436 = vector.extract_strided_slice %424 {offsets = [0, 128], sizes = [8, 128], strides = [1, 1]} : vector<8x384xf32> to vector<8x128xf32>
    %437 = vector.extract_strided_slice %427 {offsets = [0, 128], sizes = [8, 128], strides = [1, 1]} : vector<8x384xf32> to vector<8x128xf32>
    %438 = arith.addf %436, %437 : vector<8x128xf32>
    %439 = arith.negf %438 : vector<8x128xf32>
    %440 = math.exp %439 : vector<8x128xf32>
    %cst_143 = arith.constant 1.000000e+00 : f32
    %441 = vector.broadcast %cst_143 : f32 to vector<8x128xf32>
    %442 = arith.addf %441, %440 : vector<8x128xf32>
    %443 = arith.divf %441, %442 : vector<8x128xf32>
    %444 = vector.extract_strided_slice %424 {offsets = [0, 256], sizes = [8, 128], strides = [1, 1]} : vector<8x384xf32> to vector<8x128xf32>
    %445 = vector.extract_strided_slice %427 {offsets = [0, 256], sizes = [8, 128], strides = [1, 1]} : vector<8x384xf32> to vector<8x128xf32>
    %446 = arith.addf %445, %6 : vector<8x128xf32>
    %447 = arith.mulf %435, %446 : vector<8x128xf32>
    %448 = arith.addf %444, %447 : vector<8x128xf32>
    %449 = math.tanh %448 : vector<8x128xf32>
    %cst_144 = arith.constant 1.000000e+00 : f32
    %450 = vector.broadcast %cst_144 : f32 to vector<8x128xf32>
    %451 = arith.subf %450, %443 : vector<8x128xf32>
    %452 = arith.mulf %451, %449 : vector<8x128xf32>
    %453 = arith.mulf %443, %413 : vector<8x128xf32>
    %454 = arith.addf %452, %453 : vector<8x128xf32>
    %455 = arith.index_cast %421 : i32 to index
    %c0_145 = arith.constant 0 : index
    %c0_146 = arith.constant 0 : index
    %456 = vector.load %arg5[%455, %c0_145, %c0_146] : memref<16x8x128xf32, #tpu.memory_space<vmem>>, vector<1x8x128xf32>
    %457 = vector.shape_cast %456 : vector<1x8x128xf32> to vector<8x128xf32>
    %458 = vector.shape_cast %454 : vector<8x128xf32> to vector<1x8x128xf32>
    tpu.vector_store %arg5[%455, %c0_145, %c0_146], %458 {strides = array<i32>} : memref<16x8x128xf32, #tpu.memory_space<vmem>>, vector<1x8x128xf32>,
    %c11_i32 = arith.constant 11 : i32
    %c2_i32_147 = arith.constant 2 : i32
    %459 = arith.muli %c2_i32_147, %c11_i32 : i32
    %c15_i32_148 = arith.constant 15 : i32
    %460 = arith.subi %c15_i32_148, %459 : i32
    %461 = arith.muli %arg0, %460 : i32
    %462 = arith.addi %c11_i32, %461 : i32
    %463 = arith.index_cast %462 : i32 to index
    %c0_149 = arith.constant 0 : index
    %c0_150 = arith.constant 0 : index
    %464 = vector.load %arg2[%463, %c0_149, %c0_150] : memref<16x8x384xf32, #tpu.memory_space<vmem>>, vector<1x8x384xf32>
    %465 = vector.shape_cast %464 : vector<1x8x384xf32> to vector<8x384xf32>
    %c0_151 = arith.constant 0 : index
    %c0_152 = arith.constant 0 : index
    %c0_153 = arith.constant 0 : index
    %466 = vector.load %arg3[%c0_151, %c0_152, %c0_153] : memref<1x128x384xf32, #tpu.memory_space<vmem>>, vector<1x128x384xf32>
    %467 = vector.shape_cast %466 : vector<1x128x384xf32> to vector<128x384xf32>
    %cst_154 = arith.constant dense<0.000000e+00> : vector<8x384xf32>
    %468 = tpu.matmul %454, %467, %cst_154 {dimension_numbers = #tpu.dot_dimension_numbers<[1], [0], [0], [1], [0, 0, 1, 1], [], []>} : vector<8x128xf32>, vector<128x384xf32>, vector<8x384xf32> -> vector<8x384xf32>
    %469 = vector.extract_strided_slice %465 {offsets = [0, 0], sizes = [8, 128], strides = [1, 1]} : vector<8x384xf32> to vector<8x128xf32>
    %470 = vector.extract_strided_slice %468 {offsets = [0, 0], sizes = [8, 128], strides = [1, 1]} : vector<8x384xf32> to vector<8x128xf32>
    %471 = arith.addf %469, %470 : vector<8x128xf32>
    %472 = arith.negf %471 : vector<8x128xf32>
    %473 = math.exp %472 : vector<8x128xf32>
    %cst_155 = arith.constant 1.000000e+00 : f32
    %474 = vector.broadcast %cst_155 : f32 to vector<8x128xf32>
    %475 = arith.addf %474, %473 : vector<8x128xf32>
    %476 = arith.divf %474, %475 : vector<8x128xf32>
    %477 = vector.extract_strided_slice %465 {offsets = [0, 128], sizes = [8, 128], strides = [1, 1]} : vector<8x384xf32> to vector<8x128xf32>
    %478 = vector.extract_strided_slice %468 {offsets = [0, 128], sizes = [8, 128], strides = [1, 1]} : vector<8x384xf32> to vector<8x128xf32>
    %479 = arith.addf %477, %478 : vector<8x128xf32>
    %480 = arith.negf %479 : vector<8x128xf32>
    %481 = math.exp %480 : vector<8x128xf32>
    %cst_156 = arith.constant 1.000000e+00 : f32
    %482 = vector.broadcast %cst_156 : f32 to vector<8x128xf32>
    %483 = arith.addf %482, %481 : vector<8x128xf32>
    %484 = arith.divf %482, %483 : vector<8x128xf32>
    %485 = vector.extract_strided_slice %465 {offsets = [0, 256], sizes = [8, 128], strides = [1, 1]} : vector<8x384xf32> to vector<8x128xf32>
    %486 = vector.extract_strided_slice %468 {offsets = [0, 256], sizes = [8, 128], strides = [1, 1]} : vector<8x384xf32> to vector<8x128xf32>
    %487 = arith.addf %486, %6 : vector<8x128xf32>
    %488 = arith.mulf %476, %487 : vector<8x128xf32>
    %489 = arith.addf %485, %488 : vector<8x128xf32>
    %490 = math.tanh %489 : vector<8x128xf32>
    %cst_157 = arith.constant 1.000000e+00 : f32
    %491 = vector.broadcast %cst_157 : f32 to vector<8x128xf32>
    %492 = arith.subf %491, %484 : vector<8x128xf32>
    %493 = arith.mulf %492, %490 : vector<8x128xf32>
    %494 = arith.mulf %484, %454 : vector<8x128xf32>
    %495 = arith.addf %493, %494 : vector<8x128xf32>
    %496 = arith.index_cast %462 : i32 to index
    %c0_158 = arith.constant 0 : index
    %c0_159 = arith.constant 0 : index
    %497 = vector.load %arg5[%496, %c0_158, %c0_159] : memref<16x8x128xf32, #tpu.memory_space<vmem>>, vector<1x8x128xf32>
    %498 = vector.shape_cast %497 : vector<1x8x128xf32> to vector<8x128xf32>
    %499 = vector.shape_cast %495 : vector<8x128xf32> to vector<1x8x128xf32>
    tpu.vector_store %arg5[%496, %c0_158, %c0_159], %499 {strides = array<i32>} : memref<16x8x128xf32, #tpu.memory_space<vmem>>, vector<1x8x128xf32>,
    %c12_i32 = arith.constant 12 : i32
    %c2_i32_160 = arith.constant 2 : i32
    %500 = arith.muli %c2_i32_160, %c12_i32 : i32
    %c15_i32_161 = arith.constant 15 : i32
    %501 = arith.subi %c15_i32_161, %500 : i32
    %502 = arith.muli %arg0, %501 : i32
    %503 = arith.addi %c12_i32, %502 : i32
    %504 = arith.index_cast %503 : i32 to index
    %c0_162 = arith.constant 0 : index
    %c0_163 = arith.constant 0 : index
    %505 = vector.load %arg2[%504, %c0_162, %c0_163] : memref<16x8x384xf32, #tpu.memory_space<vmem>>, vector<1x8x384xf32>
    %506 = vector.shape_cast %505 : vector<1x8x384xf32> to vector<8x384xf32>
    %c0_164 = arith.constant 0 : index
    %c0_165 = arith.constant 0 : index
    %c0_166 = arith.constant 0 : index
    %507 = vector.load %arg3[%c0_164, %c0_165, %c0_166] : memref<1x128x384xf32, #tpu.memory_space<vmem>>, vector<1x128x384xf32>
    %508 = vector.shape_cast %507 : vector<1x128x384xf32> to vector<128x384xf32>
    %cst_167 = arith.constant dense<0.000000e+00> : vector<8x384xf32>
    %509 = tpu.matmul %495, %508, %cst_167 {dimension_numbers = #tpu.dot_dimension_numbers<[1], [0], [0], [1], [0, 0, 1, 1], [], []>} : vector<8x128xf32>, vector<128x384xf32>, vector<8x384xf32> -> vector<8x384xf32>
    %510 = vector.extract_strided_slice %506 {offsets = [0, 0], sizes = [8, 128], strides = [1, 1]} : vector<8x384xf32> to vector<8x128xf32>
    %511 = vector.extract_strided_slice %509 {offsets = [0, 0], sizes = [8, 128], strides = [1, 1]} : vector<8x384xf32> to vector<8x128xf32>
    %512 = arith.addf %510, %511 : vector<8x128xf32>
    %513 = arith.negf %512 : vector<8x128xf32>
    %514 = math.exp %513 : vector<8x128xf32>
    %cst_168 = arith.constant 1.000000e+00 : f32
    %515 = vector.broadcast %cst_168 : f32 to vector<8x128xf32>
    %516 = arith.addf %515, %514 : vector<8x128xf32>
    %517 = arith.divf %515, %516 : vector<8x128xf32>
    %518 = vector.extract_strided_slice %506 {offsets = [0, 128], sizes = [8, 128], strides = [1, 1]} : vector<8x384xf32> to vector<8x128xf32>
    %519 = vector.extract_strided_slice %509 {offsets = [0, 128], sizes = [8, 128], strides = [1, 1]} : vector<8x384xf32> to vector<8x128xf32>
    %520 = arith.addf %518, %519 : vector<8x128xf32>
    %521 = arith.negf %520 : vector<8x128xf32>
    %522 = math.exp %521 : vector<8x128xf32>
    %cst_169 = arith.constant 1.000000e+00 : f32
    %523 = vector.broadcast %cst_169 : f32 to vector<8x128xf32>
    %524 = arith.addf %523, %522 : vector<8x128xf32>
    %525 = arith.divf %523, %524 : vector<8x128xf32>
    %526 = vector.extract_strided_slice %506 {offsets = [0, 256], sizes = [8, 128], strides = [1, 1]} : vector<8x384xf32> to vector<8x128xf32>
    %527 = vector.extract_strided_slice %509 {offsets = [0, 256], sizes = [8, 128], strides = [1, 1]} : vector<8x384xf32> to vector<8x128xf32>
    %528 = arith.addf %527, %6 : vector<8x128xf32>
    %529 = arith.mulf %517, %528 : vector<8x128xf32>
    %530 = arith.addf %526, %529 : vector<8x128xf32>
    %531 = math.tanh %530 : vector<8x128xf32>
    %cst_170 = arith.constant 1.000000e+00 : f32
    %532 = vector.broadcast %cst_170 : f32 to vector<8x128xf32>
    %533 = arith.subf %532, %525 : vector<8x128xf32>
    %534 = arith.mulf %533, %531 : vector<8x128xf32>
    %535 = arith.mulf %525, %495 : vector<8x128xf32>
    %536 = arith.addf %534, %535 : vector<8x128xf32>
    %537 = arith.index_cast %503 : i32 to index
    %c0_171 = arith.constant 0 : index
    %c0_172 = arith.constant 0 : index
    %538 = vector.load %arg5[%537, %c0_171, %c0_172] : memref<16x8x128xf32, #tpu.memory_space<vmem>>, vector<1x8x128xf32>
    %539 = vector.shape_cast %538 : vector<1x8x128xf32> to vector<8x128xf32>
    %540 = vector.shape_cast %536 : vector<8x128xf32> to vector<1x8x128xf32>
    tpu.vector_store %arg5[%537, %c0_171, %c0_172], %540 {strides = array<i32>} : memref<16x8x128xf32, #tpu.memory_space<vmem>>, vector<1x8x128xf32>,
    %c13_i32 = arith.constant 13 : i32
    %c2_i32_173 = arith.constant 2 : i32
    %541 = arith.muli %c2_i32_173, %c13_i32 : i32
    %c15_i32_174 = arith.constant 15 : i32
    %542 = arith.subi %c15_i32_174, %541 : i32
    %543 = arith.muli %arg0, %542 : i32
    %544 = arith.addi %c13_i32, %543 : i32
    %545 = arith.index_cast %544 : i32 to index
    %c0_175 = arith.constant 0 : index
    %c0_176 = arith.constant 0 : index
    %546 = vector.load %arg2[%545, %c0_175, %c0_176] : memref<16x8x384xf32, #tpu.memory_space<vmem>>, vector<1x8x384xf32>
    %547 = vector.shape_cast %546 : vector<1x8x384xf32> to vector<8x384xf32>
    %c0_177 = arith.constant 0 : index
    %c0_178 = arith.constant 0 : index
    %c0_179 = arith.constant 0 : index
    %548 = vector.load %arg3[%c0_177, %c0_178, %c0_179] : memref<1x128x384xf32, #tpu.memory_space<vmem>>, vector<1x128x384xf32>
    %549 = vector.shape_cast %548 : vector<1x128x384xf32> to vector<128x384xf32>
    %cst_180 = arith.constant dense<0.000000e+00> : vector<8x384xf32>
    %550 = tpu.matmul %536, %549, %cst_180 {dimension_numbers = #tpu.dot_dimension_numbers<[1], [0], [0], [1], [0, 0, 1, 1], [], []>} : vector<8x128xf32>, vector<128x384xf32>, vector<8x384xf32> -> vector<8x384xf32>
    %551 = vector.extract_strided_slice %547 {offsets = [0, 0], sizes = [8, 128], strides = [1, 1]} : vector<8x384xf32> to vector<8x128xf32>
    %552 = vector.extract_strided_slice %550 {offsets = [0, 0], sizes = [8, 128], strides = [1, 1]} : vector<8x384xf32> to vector<8x128xf32>
    %553 = arith.addf %551, %552 : vector<8x128xf32>
    %554 = arith.negf %553 : vector<8x128xf32>
    %555 = math.exp %554 : vector<8x128xf32>
    %cst_181 = arith.constant 1.000000e+00 : f32
    %556 = vector.broadcast %cst_181 : f32 to vector<8x128xf32>
    %557 = arith.addf %556, %555 : vector<8x128xf32>
    %558 = arith.divf %556, %557 : vector<8x128xf32>
    %559 = vector.extract_strided_slice %547 {offsets = [0, 128], sizes = [8, 128], strides = [1, 1]} : vector<8x384xf32> to vector<8x128xf32>
    %560 = vector.extract_strided_slice %550 {offsets = [0, 128], sizes = [8, 128], strides = [1, 1]} : vector<8x384xf32> to vector<8x128xf32>
    %561 = arith.addf %559, %560 : vector<8x128xf32>
    %562 = arith.negf %561 : vector<8x128xf32>
    %563 = math.exp %562 : vector<8x128xf32>
    %cst_182 = arith.constant 1.000000e+00 : f32
    %564 = vector.broadcast %cst_182 : f32 to vector<8x128xf32>
    %565 = arith.addf %564, %563 : vector<8x128xf32>
    %566 = arith.divf %564, %565 : vector<8x128xf32>
    %567 = vector.extract_strided_slice %547 {offsets = [0, 256], sizes = [8, 128], strides = [1, 1]} : vector<8x384xf32> to vector<8x128xf32>
    %568 = vector.extract_strided_slice %550 {offsets = [0, 256], sizes = [8, 128], strides = [1, 1]} : vector<8x384xf32> to vector<8x128xf32>
    %569 = arith.addf %568, %6 : vector<8x128xf32>
    %570 = arith.mulf %558, %569 : vector<8x128xf32>
    %571 = arith.addf %567, %570 : vector<8x128xf32>
    %572 = math.tanh %571 : vector<8x128xf32>
    %cst_183 = arith.constant 1.000000e+00 : f32
    %573 = vector.broadcast %cst_183 : f32 to vector<8x128xf32>
    %574 = arith.subf %573, %566 : vector<8x128xf32>
    %575 = arith.mulf %574, %572 : vector<8x128xf32>
    %576 = arith.mulf %566, %536 : vector<8x128xf32>
    %577 = arith.addf %575, %576 : vector<8x128xf32>
    %578 = arith.index_cast %544 : i32 to index
    %c0_184 = arith.constant 0 : index
    %c0_185 = arith.constant 0 : index
    %579 = vector.load %arg5[%578, %c0_184, %c0_185] : memref<16x8x128xf32, #tpu.memory_space<vmem>>, vector<1x8x128xf32>
    %580 = vector.shape_cast %579 : vector<1x8x128xf32> to vector<8x128xf32>
    %581 = vector.shape_cast %577 : vector<8x128xf32> to vector<1x8x128xf32>
    tpu.vector_store %arg5[%578, %c0_184, %c0_185], %581 {strides = array<i32>} : memref<16x8x128xf32, #tpu.memory_space<vmem>>, vector<1x8x128xf32>,
    %c14_i32 = arith.constant 14 : i32
    %c2_i32_186 = arith.constant 2 : i32
    %582 = arith.muli %c2_i32_186, %c14_i32 : i32
    %c15_i32_187 = arith.constant 15 : i32
    %583 = arith.subi %c15_i32_187, %582 : i32
    %584 = arith.muli %arg0, %583 : i32
    %585 = arith.addi %c14_i32, %584 : i32
    %586 = arith.index_cast %585 : i32 to index
    %c0_188 = arith.constant 0 : index
    %c0_189 = arith.constant 0 : index
    %587 = vector.load %arg2[%586, %c0_188, %c0_189] : memref<16x8x384xf32, #tpu.memory_space<vmem>>, vector<1x8x384xf32>
    %588 = vector.shape_cast %587 : vector<1x8x384xf32> to vector<8x384xf32>
    %c0_190 = arith.constant 0 : index
    %c0_191 = arith.constant 0 : index
    %c0_192 = arith.constant 0 : index
    %589 = vector.load %arg3[%c0_190, %c0_191, %c0_192] : memref<1x128x384xf32, #tpu.memory_space<vmem>>, vector<1x128x384xf32>
    %590 = vector.shape_cast %589 : vector<1x128x384xf32> to vector<128x384xf32>
    %cst_193 = arith.constant dense<0.000000e+00> : vector<8x384xf32>
    %591 = tpu.matmul %577, %590, %cst_193 {dimension_numbers = #tpu.dot_dimension_numbers<[1], [0], [0], [1], [0, 0, 1, 1], [], []>} : vector<8x128xf32>, vector<128x384xf32>, vector<8x384xf32> -> vector<8x384xf32>
    %592 = vector.extract_strided_slice %588 {offsets = [0, 0], sizes = [8, 128], strides = [1, 1]} : vector<8x384xf32> to vector<8x128xf32>
    %593 = vector.extract_strided_slice %591 {offsets = [0, 0], sizes = [8, 128], strides = [1, 1]} : vector<8x384xf32> to vector<8x128xf32>
    %594 = arith.addf %592, %593 : vector<8x128xf32>
    %595 = arith.negf %594 : vector<8x128xf32>
    %596 = math.exp %595 : vector<8x128xf32>
    %cst_194 = arith.constant 1.000000e+00 : f32
    %597 = vector.broadcast %cst_194 : f32 to vector<8x128xf32>
    %598 = arith.addf %597, %596 : vector<8x128xf32>
    %599 = arith.divf %597, %598 : vector<8x128xf32>
    %600 = vector.extract_strided_slice %588 {offsets = [0, 128], sizes = [8, 128], strides = [1, 1]} : vector<8x384xf32> to vector<8x128xf32>
    %601 = vector.extract_strided_slice %591 {offsets = [0, 128], sizes = [8, 128], strides = [1, 1]} : vector<8x384xf32> to vector<8x128xf32>
    %602 = arith.addf %600, %601 : vector<8x128xf32>
    %603 = arith.negf %602 : vector<8x128xf32>
    %604 = math.exp %603 : vector<8x128xf32>
    %cst_195 = arith.constant 1.000000e+00 : f32
    %605 = vector.broadcast %cst_195 : f32 to vector<8x128xf32>
    %606 = arith.addf %605, %604 : vector<8x128xf32>
    %607 = arith.divf %605, %606 : vector<8x128xf32>
    %608 = vector.extract_strided_slice %588 {offsets = [0, 256], sizes = [8, 128], strides = [1, 1]} : vector<8x384xf32> to vector<8x128xf32>
    %609 = vector.extract_strided_slice %591 {offsets = [0, 256], sizes = [8, 128], strides = [1, 1]} : vector<8x384xf32> to vector<8x128xf32>
    %610 = arith.addf %609, %6 : vector<8x128xf32>
    %611 = arith.mulf %599, %610 : vector<8x128xf32>
    %612 = arith.addf %608, %611 : vector<8x128xf32>
    %613 = math.tanh %612 : vector<8x128xf32>
    %cst_196 = arith.constant 1.000000e+00 : f32
    %614 = vector.broadcast %cst_196 : f32 to vector<8x128xf32>
    %615 = arith.subf %614, %607 : vector<8x128xf32>
    %616 = arith.mulf %615, %613 : vector<8x128xf32>
    %617 = arith.mulf %607, %577 : vector<8x128xf32>
    %618 = arith.addf %616, %617 : vector<8x128xf32>
    %619 = arith.index_cast %585 : i32 to index
    %c0_197 = arith.constant 0 : index
    %c0_198 = arith.constant 0 : index
    %620 = vector.load %arg5[%619, %c0_197, %c0_198] : memref<16x8x128xf32, #tpu.memory_space<vmem>>, vector<1x8x128xf32>
    %621 = vector.shape_cast %620 : vector<1x8x128xf32> to vector<8x128xf32>
    %622 = vector.shape_cast %618 : vector<8x128xf32> to vector<1x8x128xf32>
    tpu.vector_store %arg5[%619, %c0_197, %c0_198], %622 {strides = array<i32>} : memref<16x8x128xf32, #tpu.memory_space<vmem>>, vector<1x8x128xf32>,
    %c15_i32_199 = arith.constant 15 : i32
    %c2_i32_200 = arith.constant 2 : i32
    %623 = arith.muli %c2_i32_200, %c15_i32_199 : i32
    %c15_i32_201 = arith.constant 15 : i32
    %624 = arith.subi %c15_i32_201, %623 : i32
    %625 = arith.muli %arg0, %624 : i32
    %626 = arith.addi %c15_i32_199, %625 : i32
    %627 = arith.index_cast %626 : i32 to index
    %c0_202 = arith.constant 0 : index
    %c0_203 = arith.constant 0 : index
    %628 = vector.load %arg2[%627, %c0_202, %c0_203] : memref<16x8x384xf32, #tpu.memory_space<vmem>>, vector<1x8x384xf32>
    %629 = vector.shape_cast %628 : vector<1x8x384xf32> to vector<8x384xf32>
    %c0_204 = arith.constant 0 : index
    %c0_205 = arith.constant 0 : index
    %c0_206 = arith.constant 0 : index
    %630 = vector.load %arg3[%c0_204, %c0_205, %c0_206] : memref<1x128x384xf32, #tpu.memory_space<vmem>>, vector<1x128x384xf32>
    %631 = vector.shape_cast %630 : vector<1x128x384xf32> to vector<128x384xf32>
    %cst_207 = arith.constant dense<0.000000e+00> : vector<8x384xf32>
    %632 = tpu.matmul %618, %631, %cst_207 {dimension_numbers = #tpu.dot_dimension_numbers<[1], [0], [0], [1], [0, 0, 1, 1], [], []>} : vector<8x128xf32>, vector<128x384xf32>, vector<8x384xf32> -> vector<8x384xf32>
    %633 = vector.extract_strided_slice %629 {offsets = [0, 0], sizes = [8, 128], strides = [1, 1]} : vector<8x384xf32> to vector<8x128xf32>
    %634 = vector.extract_strided_slice %632 {offsets = [0, 0], sizes = [8, 128], strides = [1, 1]} : vector<8x384xf32> to vector<8x128xf32>
    %635 = arith.addf %633, %634 : vector<8x128xf32>
    %636 = arith.negf %635 : vector<8x128xf32>
    %637 = math.exp %636 : vector<8x128xf32>
    %cst_208 = arith.constant 1.000000e+00 : f32
    %638 = vector.broadcast %cst_208 : f32 to vector<8x128xf32>
    %639 = arith.addf %638, %637 : vector<8x128xf32>
    %640 = arith.divf %638, %639 : vector<8x128xf32>
    %641 = vector.extract_strided_slice %629 {offsets = [0, 128], sizes = [8, 128], strides = [1, 1]} : vector<8x384xf32> to vector<8x128xf32>
    %642 = vector.extract_strided_slice %632 {offsets = [0, 128], sizes = [8, 128], strides = [1, 1]} : vector<8x384xf32> to vector<8x128xf32>
    %643 = arith.addf %641, %642 : vector<8x128xf32>
    %644 = arith.negf %643 : vector<8x128xf32>
    %645 = math.exp %644 : vector<8x128xf32>
    %cst_209 = arith.constant 1.000000e+00 : f32
    %646 = vector.broadcast %cst_209 : f32 to vector<8x128xf32>
    %647 = arith.addf %646, %645 : vector<8x128xf32>
    %648 = arith.divf %646, %647 : vector<8x128xf32>
    %649 = vector.extract_strided_slice %629 {offsets = [0, 256], sizes = [8, 128], strides = [1, 1]} : vector<8x384xf32> to vector<8x128xf32>
    %650 = vector.extract_strided_slice %632 {offsets = [0, 256], sizes = [8, 128], strides = [1, 1]} : vector<8x384xf32> to vector<8x128xf32>
    %651 = arith.addf %650, %6 : vector<8x128xf32>
    %652 = arith.mulf %640, %651 : vector<8x128xf32>
    %653 = arith.addf %649, %652 : vector<8x128xf32>
    %654 = math.tanh %653 : vector<8x128xf32>
    %cst_210 = arith.constant 1.000000e+00 : f32
    %655 = vector.broadcast %cst_210 : f32 to vector<8x128xf32>
    %656 = arith.subf %655, %648 : vector<8x128xf32>
    %657 = arith.mulf %656, %654 : vector<8x128xf32>
    %658 = arith.mulf %648, %618 : vector<8x128xf32>
    %659 = arith.addf %657, %658 : vector<8x128xf32>
    %660 = arith.index_cast %626 : i32 to index
    %c0_211 = arith.constant 0 : index
    %c0_212 = arith.constant 0 : index
    %661 = vector.load %arg5[%660, %c0_211, %c0_212] : memref<16x8x128xf32, #tpu.memory_space<vmem>>, vector<1x8x128xf32>
    %662 = vector.shape_cast %661 : vector<1x8x128xf32> to vector<8x128xf32>
    %663 = vector.shape_cast %659 : vector<8x128xf32> to vector<1x8x128xf32>
    tpu.vector_store %arg5[%660, %c0_211, %c0_212], %663 {strides = array<i32>} : memref<16x8x128xf32, #tpu.memory_space<vmem>>, vector<1x8x128xf32>,
    %c16_i32 = arith.constant 16 : i32
    %c0_213 = arith.constant 0 : index
    %c0_214 = arith.constant 0 : index
    %664 = vector.load %arg7[%c0_213, %c0_214] : memref<8x128xf32, #tpu.memory_space<vmem>>, vector<8x128xf32>
    tpu.vector_store %arg7[%c0_213, %c0_214], %659 {strides = array<i32>} : memref<8x128xf32, #tpu.memory_space<vmem>>, vector<8x128xf32>,
    %c1_i32_215 = arith.constant 1 : i32
    %665 = arith.cmpi eq, %arg1, %c1_i32_215 : i32
    %666 = arith.extui %665 : i1 to i32
    %c0_i32_216 = arith.constant 0 : i32
    %667 = arith.cmpi ne, %666, %c0_i32_216 : i32
    scf.if %667 {
      %c0_217 = arith.constant 0 : index
      %c0_218 = arith.constant 0 : index
      %c0_219 = arith.constant 0 : index
      %668 = vector.load %arg6[%c0_217, %c0_218, %c0_219] : memref<1x8x128xf32, #tpu.memory_space<vmem>>, vector<1x8x128xf32>
      %669 = vector.shape_cast %668 : vector<1x8x128xf32> to vector<8x128xf32>
      %670 = vector.shape_cast %659 : vector<8x128xf32> to vector<1x8x128xf32>
      tpu.vector_store %arg6[%c0_217, %c0_218, %c0_219], %670 {strides = array<i32>} : memref<1x8x128xf32, #tpu.memory_space<vmem>>, vector<1x8x128xf32>,
    } else {
    }
    return
  }
  func.func @transform_0(%arg0: i32, %arg1: i32) -> (i32, i32, i32) {
    %c2_i32 = arith.constant 2 : i32
    %0 = arith.muli %c2_i32, %arg1 : i32
    %c1_i32 = arith.constant 1 : i32
    %1 = arith.subi %c1_i32, %0 : i32
    %2 = arith.muli %arg0, %1 : i32
    %3 = arith.addi %arg1, %2 : i32
    %c0_i32 = arith.constant 0 : i32
    %c0_i32_0 = arith.constant 0 : i32
    return %3, %c0_i32, %arg0 : i32, i32, i32
  }
  func.func @transform_1(%arg0: i32, %arg1: i32) -> (i32, i32, i32) {
    %c0_i32 = arith.constant 0 : i32
    %c0_i32_0 = arith.constant 0 : i32
    %c0_i32_1 = arith.constant 0 : i32
    return %arg0, %c0_i32, %c0_i32_0 : i32, i32, i32
  }
  func.func @transform_2(%arg0: i32, %arg1: i32) -> (i32, i32, i32) {
    %c0_i32 = arith.constant 0 : i32
    %c0_i32_0 = arith.constant 0 : i32
    %c0_i32_1 = arith.constant 0 : i32
    return %arg0, %c0_i32, %c0_i32_0 : i32, i32, i32
  }
  func.func @transform_3(%arg0: i32, %arg1: i32) -> (i32, i32, i32) {
    %c2_i32 = arith.constant 2 : i32
    %0 = arith.muli %c2_i32, %arg1 : i32
    %c1_i32 = arith.constant 1 : i32
    %1 = arith.subi %c1_i32, %0 : i32
    %2 = arith.muli %arg0, %1 : i32
    %3 = arith.addi %arg1, %2 : i32
    %c0_i32 = arith.constant 0 : i32
    %c0_i32_0 = arith.constant 0 : i32
    return %3, %c0_i32, %arg0 : i32, i32, i32
  }
  func.func @transform_4(%arg0: i32, %arg1: i32) -> (i32, i32, i32) {
    %c0_i32 = arith.constant 0 : i32
    %c0_i32_0 = arith.constant 0 : i32
    %c0_i32_1 = arith.constant 0 : i32
    return %arg0, %c0_i32, %c0_i32_0 : i32, i32, i32
  }
}

module attributes {stable_mosaic.version = 11 : i64} {
  func.func @fc_kernel(%arg0: i32, %arg1: memref<2x8x128xf32, #tpu.memory_space<vmem>>, %arg2: memref<2x128x128xf32, #tpu.memory_space<vmem>>, %arg3: memref<1x128xf32, #tpu.memory_space<vmem>>, %arg4: memref<8x128xf32, #tpu.memory_space<vmem>>) attributes {dimension_semantics = [#tpu.dimension_semantics<arbitrary>], iteration_bounds = array<i64: 1>, scalar_prefetch = 0 : i64, scratch_operands = 0 : i64, tpu.core_type = #tpu.core_type<tc>, window_params = [{pipeline_mode = #tpu.pipeline_mode<synchronous>, transform_indices = @transform_0, window_bounds = array<i64: 2, 8, 128>}, {pipeline_mode = #tpu.pipeline_mode<synchronous>, transform_indices = @transform_1, window_bounds = array<i64: 2, 128, 128>}, {pipeline_mode = #tpu.pipeline_mode<synchronous>, transform_indices = @transform_2, window_bounds = array<i64: 1, 128>}, {pipeline_mode = #tpu.pipeline_mode<synchronous>, transform_indices = @transform_3, window_bounds = array<i64: 8, 128>}]} {
    %c0 = arith.constant 0 : index
    %c0_0 = arith.constant 0 : index
    %c0_1 = arith.constant 0 : index
    %0 = vector.load %arg1[%c0, %c0_0, %c0_1] : memref<2x8x128xf32, #tpu.memory_space<vmem>>, vector<1x8x128xf32>
    %1 = vector.shape_cast %0 : vector<1x8x128xf32> to vector<8x128xf32>
    %c0_2 = arith.constant 0 : index
    %c0_3 = arith.constant 0 : index
    %c0_4 = arith.constant 0 : index
    %2 = vector.load %arg2[%c0_2, %c0_3, %c0_4] : memref<2x128x128xf32, #tpu.memory_space<vmem>>, vector<1x128x128xf32>
    %3 = vector.shape_cast %2 : vector<1x128x128xf32> to vector<128x128xf32>
    %cst = arith.constant dense<0.000000e+00> : vector<8x128xf32>
    %4 = tpu.matmul %1, %3, %cst {dimension_numbers = #tpu.dot_dimension_numbers<[1], [0], [0], [1], [0, 0, 1, 1], [], []>} : vector<8x128xf32>, vector<128x128xf32>, vector<8x128xf32> -> vector<8x128xf32>
    %c1 = arith.constant 1 : index
    %c0_5 = arith.constant 0 : index
    %c0_6 = arith.constant 0 : index
    %5 = vector.load %arg1[%c1, %c0_5, %c0_6] : memref<2x8x128xf32, #tpu.memory_space<vmem>>, vector<1x8x128xf32>
    %6 = vector.shape_cast %5 : vector<1x8x128xf32> to vector<8x128xf32>
    %c1_7 = arith.constant 1 : index
    %c0_8 = arith.constant 0 : index
    %c0_9 = arith.constant 0 : index
    %7 = vector.load %arg2[%c1_7, %c0_8, %c0_9] : memref<2x128x128xf32, #tpu.memory_space<vmem>>, vector<1x128x128xf32>
    %8 = vector.shape_cast %7 : vector<1x128x128xf32> to vector<128x128xf32>
    %cst_10 = arith.constant dense<0.000000e+00> : vector<8x128xf32>
    %9 = tpu.matmul %6, %8, %cst_10 {dimension_numbers = #tpu.dot_dimension_numbers<[1], [0], [0], [1], [0, 0, 1, 1], [], []>} : vector<8x128xf32>, vector<128x128xf32>, vector<8x128xf32> -> vector<8x128xf32>
    %10 = arith.addf %4, %9 : vector<8x128xf32>
    %c0_11 = arith.constant 0 : index
    %c0_12 = arith.constant 0 : index
    %11 = vector.load %arg3[%c0_11, %c0_12] : memref<1x128xf32, #tpu.memory_space<vmem>>, vector<1x128xf32>
    %12 = vector.broadcast %11 : vector<1x128xf32> to vector<8x128xf32>
    %13 = arith.addf %10, %12 : vector<8x128xf32>
    %14 = math.tanh %13 : vector<8x128xf32>
    %c0_13 = arith.constant 0 : index
    %c0_14 = arith.constant 0 : index
    %15 = vector.load %arg4[%c0_13, %c0_14] : memref<8x128xf32, #tpu.memory_space<vmem>>, vector<8x128xf32>
    tpu.vector_store %arg4[%c0_13, %c0_14], %14 {strides = array<i32>} : memref<8x128xf32, #tpu.memory_space<vmem>>, vector<8x128xf32>,
    return
  }
  func.func @transform_0(%arg0: i32) -> (i32, i32, i32) {
    %c0_i32 = arith.constant 0 : i32
    %c0_i32_0 = arith.constant 0 : i32
    %c0_i32_1 = arith.constant 0 : i32
    %c0_i32_2 = arith.constant 0 : i32
    return %c0_i32, %c0_i32_0, %c0_i32_1 : i32, i32, i32
  }
  func.func @transform_1(%arg0: i32) -> (i32, i32, i32) {
    %c0_i32 = arith.constant 0 : i32
    %c0_i32_0 = arith.constant 0 : i32
    %c0_i32_1 = arith.constant 0 : i32
    %c0_i32_2 = arith.constant 0 : i32
    return %c0_i32, %c0_i32_0, %c0_i32_1 : i32, i32, i32
  }
  func.func @transform_2(%arg0: i32) -> (i32, i32) {
    %c0_i32 = arith.constant 0 : i32
    %c0_i32_0 = arith.constant 0 : i32
    %c0_i32_1 = arith.constant 0 : i32
    return %c0_i32, %c0_i32_0 : i32, i32
  }
  func.func @transform_3(%arg0: i32) -> (i32, i32) {
    %c0_i32 = arith.constant 0 : i32
    %c0_i32_0 = arith.constant 0 : i32
    %c0_i32_1 = arith.constant 0 : i32
    return %c0_i32, %c0_i32_0 : i32, i32
  }
}

</mosaic_0001>

<llo_original>
// kernel: encoder_forward.3
$region0: #{encoder_forward.3}
  #allocation0 [shape = 'u32[]', space=smem, size = 0x4, offset = 0x4, fixed_abs, tag = 'smem constant byte address 0x4 - core index']
  #allocation1 [shape = 'u32[144,128]{1,0:T(1,128)}', space=vmem, size = 0x12000, scoped, tag = 'internal scratch']
  %s0 = inlined_call_operand.vmem [shape: f32[32,8,32], index: 0, kind: input, shape index: {}]
  %s1 = inlined_call_operand.vmem [shape: f32[32,768], index: 1, kind: input, shape index: {}]
  %s2 = inlined_call_operand.vmem [shape: f32[1,768], index: 2, kind: input, shape index: {}]
  %s3 = inlined_call_operand.vmem [shape: f32[32,8,768], index: 3, kind: output, shape index: {}]
  %s4 = sld [smem:[#allocation0]]
  $region45: #{encoder_forward.3} parent=0
    _
  %s6 = ssub.s32 1, %s4
  %s7 = scalar_select 0, %s6, %s4
  loop: start=0, step=1, limit=4
  $region2: #{encoder_forward.3} parent=0 // loop_pre_header
    _
  $region3: #{encoder_forward.3} parent=0 // loop_header
    %s9 = sphi 0, %s13
    %p10 = scmp.ge.s32.totalorder %s9, 4
    %s19 = sphi 0, %s21
    %s22 = sphi 0, %s19
    %s23 = sphi 0, %s22
    %s39 = sphi 0, %s23
    %s43 = sphi 0, %s43
    %s45 = sphi 0, %s43
    %s46 = sphi 0, %s45
    %s60 = sphi 0, %s46
    %s64 = sphi 0, %s64
    %s66 = sphi 0, %s64
    %s67 = sphi 0, %s66
    %s81 = sphi 0, %s67
    %s87 = sphi 0, %s89
    %s90 = sphi 0, %s87
    %s91 = sphi 0, %s90
    %s107 = sphi 0, %s91
  $region4: #{encoder_forward.3} parent=0 // loop_header_branch
    %12 = sbr.rel (%p10) target = $region8
  $region5: #{encoder_forward.3} parent=0 // loop_body
    %s14 = ssub.s32 %s9, 1
    %s15 = ssub.s32 %s9, 2
    %s16 = sadd.s32 %s9, 1
    %s17 = ssub.s32 %s9, %s16
    %p18 = scmp.eq.s32.totalorder %s17, 0
    %s20 = sadd.s32 %s19, 1
    %s21 = scalar_select %p18, %s19, %s20
    %p24 = pneg %p18
    %p25 = scmp.eq.s32.totalorder %s9, 1
    %p26 = por %p24, %p25
    %p27 = scmp.ne.s32.totalorder %s19, %s22
    %p28 = scmp.eq.s32.totalorder %s9, 0
    %p29 = por %p27, %p28
    %p30 = scmp.ne.s32.totalorder %s19, %s22
    %p31 = scmp.eq.s32.totalorder %s14, 1
    %p32 = por %p30, %p31
    %p33 = scmp.ne.s32.totalorder %s22, %s23
    %p34 = scmp.eq.s32.totalorder %s14, 0
    %p35 = por %p33, %p34
    %p36 = scmp.ne.s32.totalorder %s22, %s23
    %p37 = scmp.eq.s32.totalorder %s15, 1
    %p38 = por %p36, %p37
    %p40 = scmp.ne.s32.totalorder %s23, %s39
    %p41 = scmp.eq.s32.totalorder %s15, 0
    %p42 = por %p40, %p41
    %s44 = sadd.s32 %s43, 1
    %p47 = scmp.eq.s32.totalorder %s9, 1
    %p48 = scmp.ne.s32.totalorder %s43, %s45
    %p49 = scmp.eq.s32.totalorder %s9, 0
    %p50 = por %p48, %p49
    %p51 = scmp.ne.s32.totalorder %s43, %s45
    %p52 = scmp.eq.s32.totalorder %s14, 1
    %p53 = por %p51, %p52
    %p54 = scmp.ne.s32.totalorder %s45, %s46
    %p55 = scmp.eq.s32.totalorder %s14, 0
    %p56 = por %p54, %p55
    %p57 = scmp.ne.s32.totalorder %s45, %s46
    %p58 = scmp.eq.s32.totalorder %s15, 1
    %p59 = por %p57, %p58
    %p61 = scmp.ne.s32.totalorder %s46, %s60
    %p62 = scmp.eq.s32.totalorder %s15, 0
    %p63 = por %p61, %p62
    %s65 = sadd.s32 %s64, 1
    %p68 = scmp.eq.s32.totalorder %s9, 1
    %p69 = scmp.ne.s32.totalorder %s64, %s66
    %p70 = scmp.eq.s32.totalorder %s9, 0
    %p71 = por %p69, %p70
    %p72 = scmp.ne.s32.totalorder %s64, %s66
    %p73 = scmp.eq.s32.totalorder %s14, 1
    %p74 = por %p72, %p73
    %p75 = scmp.ne.s32.totalorder %s66, %s67
    %p76 = scmp.eq.s32.totalorder %s14, 0
    %p77 = por %p75, %p76
    %p78 = scmp.ne.s32.totalorder %s66, %s67
    %p79 = scmp.eq.s32.totalorder %s15, 1
    %p80 = por %p78, %p79
    %p82 = scmp.ne.s32.totalorder %s67, %s81
    %p83 = scmp.eq.s32.totalorder %s15, 0
    %p84 = por %p82, %p83
    %s85 = ssub.s32 %s9, %s16
    %p86 = scmp.eq.s32.totalorder %s85, 0
    %s88 = sadd.s32 %s87, 1
    %s89 = scalar_select %p86, %s87, %s88
    %p92 = pneg %p86
    %p93 = scmp.eq.s32.totalorder %s9, 1
    %p94 = por %p92, %p93
    %p95 = scmp.ne.s32.totalorder %s87, %s90
    %p96 = scmp.eq.s32.totalorder %s9, 0
    %p97 = por %p95, %p96
    %p98 = scmp.ne.s32.totalorder %s87, %s90
    %p99 = scmp.eq.s32.totalorder %s14, 1
    %p100 = por %p98, %p99
    %p101 = scmp.ne.s32.totalorder %s90, %s91
    %p102 = scmp.eq.s32.totalorder %s14, 0
    %p103 = por %p101, %p102
    %p104 = scmp.ne.s32.totalorder %s90, %s91
    %p105 = scmp.eq.s32.totalorder %s15, 1
    %p106 = por %p104, %p105
    %p108 = scmp.ne.s32.totalorder %s91, %s107
    %p109 = scmp.eq.s32.totalorder %s15, 0
    %p110 = por %p108, %p109
    %p111 = scmp.le.s32.totalorder 1, %s9
    %p112 = scmp.lt.s32.totalorder %s9, 3
    %p113 = pnand %p111, %p112
    %p114 = pneg %p113
    // Predicated region
    $region9: #{encoder_forward.3} parent=5 // pred_check
      _
    $region10: #{encoder_forward.3} parent=5 // pred_check_branch
      %116 = sbr.rel (%p113) target = $region12
    $region11: #{encoder_forward.3} parent=5 // pred_region
      %s117 = ssub.s32 %s9, 1
      // Predicated region
      $region13: #{encoder_forward.3} parent=11 // pred_check
        %p118 = pneg %p56
      $region14: #{encoder_forward.3} parent=11 // pred_check_branch
        %120 = sbr.rel (%p118) target = $region16
      $region15: #{encoder_forward.3} parent=11 // pred_region
        _
      $region16: #{encoder_forward.3} parent=11 // pred_fallthru
        _
      // Predicated region
      $region17: #{encoder_forward.3} parent=11 // pred_check
        %p121 = pneg %p77
      $region18: #{encoder_forward.3} parent=11 // pred_check_branch
        %123 = sbr.rel (%p121) target = $region20
      $region19: #{encoder_forward.3} parent=11 // pred_region
        _
      $region20: #{encoder_forward.3} parent=11 // pred_fallthru
        _
    $region12: #{encoder_forward.3} parent=5 // pred_fallthru
      _
    %p124 = scmp.lt.s32.totalorder %s9, 2
    // Predicated region
    $region21: #{encoder_forward.3} parent=5 // pred_check
      %p125 = pneg %p124
    $region22: #{encoder_forward.3} parent=5 // pred_check_branch
      %127 = sbr.rel (%p125) target = $region24
    $region23: #{encoder_forward.3} parent=5 // pred_region
      // Predicated region
      $region25: #{encoder_forward.3} parent=23 // pred_check
        %p128 = pneg %p29
      $region26: #{encoder_forward.3} parent=23 // pred_check_branch
        %130 = sbr.rel (%p128) target = $region28
      $region27: #{encoder_forward.3} parent=23 // pred_region
        %s131 = smul.u32 16, %s9
        %p132 = scmp.lt.s32.totalorder %s131, 31
        %s133 = scalar_select %p132, %s131, 31
        %s134 = smul.addr %s133, 8
        %s135 = scalar_lea.vmem %s0, %s134
        %s136 = smul.u32 16, %s9
      $region28: #{encoder_forward.3} parent=23 // pred_fallthru
        _
    $region24: #{encoder_forward.3} parent=5 // pred_fallthru
      _
    %p137 = scmp.le.s32.totalorder 1, %s9
    %p138 = scmp.lt.s32.totalorder %s9, 3
    %p139 = pnand %p137, %p138
    %p140 = pneg %p139
    // Predicated region
    $region29: #{encoder_forward.3} parent=5 // pred_check
      _
    $region30: #{encoder_forward.3} parent=5 // pred_check_branch
      %142 = sbr.rel (%p139) target = $region32
    $region31: #{encoder_forward.3} parent=5 // pred_region
      %s143 = ssub.s32 %s9, 1
      %s144 = smul.u32 16, %s14
      %p145 = scmp.lt.s32.totalorder %s144, 31
      %s146 = scalar_select %p145, %s144, 31
      %s147 = smul.addr %s146, 8
      %s148 = scalar_lea.vmem %s0, %s147
      %p149 = pneg %p35
      %p150 = pneg %p32
      %p151 = pneg %p56
      %p152 = pneg %p53
      %p153 = pneg %p77
      %p154 = pneg %p74
      %p155 = pneg %p103
      %p156 = pneg %p100
      %s157 = smul.u32 16, %s14
      %p158 = scmp.lt.s32.totalorder %s157, 31
      %s159 = scalar_select %p158, %s157, 31
      %s160 = smul.addr %s159, 6
      %s161 = smul.addr %s160, 8
      %s162 = scalar_lea.vmem %s3, %s161
      %s163 = smul.u32 16, %s14
      %p164 = scmp.lt.s32.totalorder %s163, 31
      %s165 = scalar_select %p164, %s163, 31
      %s166 = smul.addr %s165, 8
      %s167 = scalar_lea.vmem %s0, %s166
      %s168 = smul.u32 16, %s14
      %s169 = smul.u32 16, %s14
      %p170 = scmp.lt.s32.totalorder %s169, 31
      %s171 = scalar_select %p170, %s169, 31
      %s172 = smul.addr %s171, 6
      %s173 = smul.addr %s172, 8
      %s174 = scalar_lea.vmem %s3, %s173
      %s175 = smul.u32 16, %s14
      %v176 = vld [vmem:[%s167] sm:$0xff]
      %v177 = vld [vmem:[%s167 + $0x8] sm:$0xff]
      %v178 = vld [vmem:[%s167 + $0x10] sm:$0xff]
      %v179 = vld [vmem:[%s167 + $0x18] sm:$0xff]
      %v180 = vld [vmem:[%s167 + $0x20] sm:$0xff]
      %v181 = vld [vmem:[%s167 + $0x28] sm:$0xff]
      %v182 = vld [vmem:[%s167 + $0x30] sm:$0xff]
      %v183 = vld [vmem:[%s167 + $0x38] sm:$0xff]
      %v184 = vld [vmem:[%s167 + $0x40] sm:$0xff]
      %v185 = vld [vmem:[%s167 + $0x48] sm:$0xff]
      %v186 = vld [vmem:[%s167 + $0x50] sm:$0xff]
      %v187 = vld [vmem:[%s167 + $0x58] sm:$0xff]
      %v188 = vld [vmem:[%s167 + $0x60] sm:$0xff]
      %v189 = vld [vmem:[%s167 + $0x68] sm:$0xff]
      %v190 = vld [vmem:[%s167 + $0x70] sm:$0xff]
      %v191 = vld [vmem:[%s167 + $0x78] sm:$0xff]
      %v192 = vld [vmem:[%s1] sm:$0xff]
      %v193 = vld [vmem:[%s1 + $0x8] sm:$0xff]
      %v194 = vld [vmem:[%s1 + $0x10] sm:$0xff]
      %v195 = vld [vmem:[%s1 + $0x18] sm:$0xff]
      %v196 = vld [vmem:[%s1 + $0x20] sm:$0xff]
      %v197 = vld [vmem:[%s1 + $0x28] sm:$0xff]
      %v198 = vld [vmem:[%s1 + $0x30] sm:$0xff]
      %v199 = vld [vmem:[%s1 + $0x38] sm:$0xff]
      %v200 = vld [vmem:[%s1 + $0x40] sm:$0xff]
      %v201 = vld [vmem:[%s1 + $0x48] sm:$0xff]
      %v202 = vld [vmem:[%s1 + $0x50] sm:$0xff]
      %v203 = vld [vmem:[%s1 + $0x58] sm:$0xff]
      %v204 = vld [vmem:[%s1 + $0x60] sm:$0xff]
      %v205 = vld [vmem:[%s1 + $0x68] sm:$0xff]
      %v206 = vld [vmem:[%s1 + $0x70] sm:$0xff]
      %v207 = vld [vmem:[%s1 + $0x78] sm:$0xff]
      %v208 = vld [vmem:[%s1 + $0x80] sm:$0xff]
      %v209 = vld [vmem:[%s1 + $0x88] sm:$0xff]
      %v210 = vld [vmem:[%s1 + $0x90] sm:$0xff]
      %v211 = vld [vmem:[%s1 + $0x98] sm:$0xff]
      %v212 = vld [vmem:[%s1 + $0xa0] sm:$0xff]
      %v213 = vld [vmem:[%s1 + $0xa8] sm:$0xff]
      %v214 = vld [vmem:[%s1 + $0xb0] sm:$0xff]
      %v215 = vld [vmem:[%s1 + $0xb8] sm:$0xff]
      %v216 = vld [vmem:[%s2] sm:$0x3f]
      %v218 = vlaneseq
      %v219 = vshrl.u32 %v218, 7
      %v220 = vsub.s32 0, %v219
      %v221 = vrot.slane %v216, %v220
      %v222 = vlaneseq
      %v223 = vshrl.u32 %v222, 7
      %v224 = vsub.s32 1, %v223
      %v225 = vrot.slane %v216, %v224
      %v226 = vlaneseq
      %v227 = vshrl.u32 %v226, 7
      %v228 = vsub.s32 2, %v227
      %v229 = vrot.slane %v216, %v228
      %v230 = vlaneseq
      %v231 = vshrl.u32 %v230, 7
      %v232 = vsub.s32 3, %v231
      %v233 = vrot.slane %v216, %v232
      %v234 = vlaneseq
      %v235 = vshrl.u32 %v234, 7
      %v236 = vsub.s32 4, %v235
      %v237 = vrot.slane %v216, %v236
      %v238 = vlaneseq
      %v239 = vshrl.u32 %v238, 7
      %v240 = vsub.s32 5, %v239
      %v241 = vrot.slane %v216, %v240
      %vm248 = vcmask 261120
      %v250 = vsel %vm248, %v176, 0
      %v253 = vsel %vm248, %v177, 0
      %v256 = vsel %vm248, %v178, 0
      %v259 = vsel %vm248, %v179, 0
      %v262 = vsel %vm248, %v180, 0
      %v265 = vsel %vm248, %v181, 0
      %v268 = vsel %vm248, %v182, 0
      %v271 = vsel %vm248, %v183, 0
      %v274 = vsel %vm248, %v184, 0
      %v277 = vsel %vm248, %v185, 0
      %v280 = vsel %vm248, %v186, 0
      %v283 = vsel %vm248, %v187, 0
      %v286 = vsel %vm248, %v188, 0
      %v289 = vsel %vm248, %v189, 0
      %v292 = vsel %vm248, %v190, 0
      %v295 = vsel %vm248, %v191, 0
      %297 = vmatprep.subr.mxu0 %v193
      %298 = vmatpush1.msra.mxu0 %v192
      %299 = vmatprep.subr.mxu0 %v199
      %300 = vmatpush1.msra.mxu0 %v198
      %301 = vmatprep.subr.mxu0 %v205
      %302 = vmatpush1.msra.mxu0 %v204
      %303 = vmatprep.subr.mxu0 %v211
      %304 = vmatpush1.msra.mxu0 %v210
      %305 = vmatprep.subr.mxu0 0.0
      %306 = vmatpush1.msra.mxu0 0.0
      %307 = vmatprep.subr.mxu0 0.0
      %308 = vmatpush1.msra.mxu0 0.0
      %309 = vmatprep.subr.mxu0 0.0
      %310 = vmatpush1.msra.mxu0 0.0
      %311 = vmatprep.subr.mxu0 0.0
      %312 = vmatpush1.msra.mxu0 0.0
      %313 = vmatprep.subr.mxu0 0.0
      %314 = vmatpush1.msra.mxu0 0.0
      %315 = vmatprep.subr.mxu0 0.0
      %316 = vmatpush1.msra.mxu0 0.0
      %317 = vmatprep.subr.mxu0 0.0
      %318 = vmatpush1.msra.mxu0 0.0
      %319 = vmatprep.subr.mxu0 0.0
      %320 = vmatpush1.msra.mxu0 0.0
      %321 = vmatprep.subr.mxu0 0.0
      %322 = vmatpush1.msra.mxu0 0.0
      %323 = vmatprep.subr.mxu0 0.0
      %324 = vmatpush1.msra.mxu0 0.0
      %325 = vmatprep.subr.mxu0 0.0
      %326 = vmatpush1.msra.mxu0 0.0
      %327 = vmatprep.subr.mxu0 0.0
      %328 = vmatpush1.msra.mxu0 0.0
      %329 = vmatprep.subr.mxu0 0.0
      %330 = vmatpush1.msra.mxu0 0.0
      %331 = vmatprep.subr.mxu0 0.0
      %332 = vmatpush1.msra.mxu0 0.0
      %333 = vmatprep.subr.mxu0 0.0
      %334 = vmatpush1.msra.mxu0 0.0
      %335 = vmatprep.subr.mxu0 0.0
      %336 = vmatpush1.msra.mxu0 0.0
      %337 = vmatprep.subr.mxu0 0.0
      %338 = vmatpush1.msra.mxu0 0.0
      %339 = vmatprep.subr.mxu0 0.0
      %340 = vmatpush1.msra.mxu0 0.0
      %341 = vmatprep.subr.mxu0 0.0
      %342 = vmatpush1.msra.mxu0 0.0
      %343 = vmatprep.subr.mxu0 0.0
      %344 = vmatpush1.msra.mxu0 0.0
      %345 = vmatprep.subr.mxu0 0.0
      %346 = vmatpush1.msra.mxu0 0.0
      %347 = vmatprep.subr.mxu0 0.0
      %348 = vmatpush1.msra.mxu0 0.0
      %349 = vmatprep.subr.mxu0 0.0
      %350 = vmatpush1.msra.mxu0 0.0
      %351 = vmatprep.subr.mxu0 0.0
      %352 = vmatpush1.msra.mxu0 0.0
      %353 = vmatprep.subr.mxu0 0.0
      %354 = vmatpush1.msra.mxu0 0.0
      %355 = vmatprep.subr.mxu0 0.0
      %356 = vmatpush1.msra.mxu0 0.0
      %357 = vmatprep.subr.mxu0 0.0
      %358 = vmatpush1.msra.mxu0 0.0
      %359 = vmatprep.subr.mxu0 0.0
      %360 = vmatpush1.msra.mxu0 0.0
      %361 = vmatprep.mubr.f32.mxu0 0.0
      %362 = vmatmul.mubr.f32.gmra.mrb[0].mxu0 %v250
      %v363 = vpop.f32.mrb[0].mxu0
      %v364 = vadd.f32 %v221, %v363
      %v365 = vpop.f32.mrb[0].mxu0
      %v366 = vadd.f32 %v225, %v365
      %367 = vmatprep.mubr.f32.mxu0 0.0
      %368 = vmatmul.mubr.f32.gmra.mrb[0].mxu0 %v253
      %v369 = vpop.f32.mrb[0].mxu0
      %v370 = vadd.f32 %v221, %v369
      %v371 = vpop.f32.mrb[0].mxu0
      %v372 = vadd.f32 %v225, %v371
      %373 = vmatprep.mubr.f32.mxu0 0.0
      %374 = vmatmul.mubr.f32.gmra.mrb[0].mxu0 %v256
      %v375 = vpop.f32.mrb[0].mxu0
      %v376 = vadd.f32 %v221, %v375
      %v377 = vpop.f32.mrb[0].mxu0
      %v378 = vadd.f32 %v225, %v377
      %379 = vmatprep.mubr.f32.mxu0 0.0
      %380 = vmatmul.mubr.f32.gmra.mrb[0].mxu0 %v259
      %v381 = vpop.f32.mrb[0].mxu0
      %v382 = vadd.f32 %v221, %v381
      %v383 = vpop.f32.mrb[0].mxu0
      %v384 = vadd.f32 %v225, %v383
      %385 = vmatprep.mubr.f32.mxu0 0.0
      %386 = vmatmul.mubr.f32.gmra.mrb[0].mxu0 %v262
      %v387 = vpop.f32.mrb[0].mxu0
      %v388 = vadd.f32 %v221, %v387
      %v389 = vpop.f32.mrb[0].mxu0
      %v390 = vadd.f32 %v225, %v389
      %391 = vmatprep.mubr.f32.mxu0 0.0
      %392 = vmatmul.mubr.f32.gmra.mrb[0].mxu0 %v265
      %v393 = vpop.f32.mrb[0].mxu0
      %v394 = vadd.f32 %v221, %v393
      %v395 = vpop.f32.mrb[0].mxu0
      %v396 = vadd.f32 %v225, %v395
      %397 = vmatprep.mubr.f32.mxu0 0.0
      %398 = vmatmul.mubr.f32.gmra.mrb[0].mxu0 %v268
      %v399 = vpop.f32.mrb[0].mxu0
      %v400 = vadd.f32 %v221, %v399
      %v401 = vpop.f32.mrb[0].mxu0
      %v402 = vadd.f32 %v225, %v401
      %403 = vmatprep.mubr.f32.mxu0 0.0
      %404 = vmatmul.mubr.f32.gmra.mrb[0].mxu0 %v271
      %v405 = vpop.f32.mrb[0].mxu0
      %v406 = vadd.f32 %v221, %v405
      %v407 = vpop.f32.mrb[0].mxu0
      %v408 = vadd.f32 %v225, %v407
      %409 = vmatprep.mubr.f32.mxu0 0.0
      %410 = vmatmul.mubr.f32.gmra.mrb[0].mxu0 %v274
      %v411 = vpop.f32.mrb[0].mxu0
      %v412 = vadd.f32 %v221, %v411
      %v413 = vpop.f32.mrb[0].mxu0
      %v414 = vadd.f32 %v225, %v413
      %415 = vmatprep.mubr.f32.mxu0 0.0
      %416 = vmatmul.mubr.f32.gmra.mrb[0].mxu0 %v277
      %v417 = vpop.f32.mrb[0].mxu0
      %v418 = vadd.f32 %v221, %v417
      %v419 = vpop.f32.mrb[0].mxu0
      %v420 = vadd.f32 %v225, %v419
      %421 = vmatprep.mubr.f32.mxu0 0.0
      %422 = vmatmul.mubr.f32.gmra.mrb[0].mxu0 %v280
      %v423 = vpop.f32.mrb[0].mxu0
      %v424 = vadd.f32 %v221, %v423
      %v425 = vpop.f32.mrb[0].mxu0
      %v426 = vadd.f32 %v225, %v425
      %427 = vmatprep.mubr.f32.mxu0 0.0
      %428 = vmatmul.mubr.f32.gmra.mrb[0].mxu0 %v283
      %v429 = vpop.f32.mrb[0].mxu0
      %v430 = vadd.f32 %v221, %v429
      %v431 = vpop.f32.mrb[0].mxu0
      %v432 = vadd.f32 %v225, %v431
      %433 = vmatprep.mubr.f32.mxu0 0.0
      %434 = vmatmul.mubr.f32.gmra.mrb[0].mxu0 %v286
      %v435 = vpop.f32.mrb[0].mxu0
      %v436 = vadd.f32 %v221, %v435
      %v437 = vpop.f32.mrb[0].mxu0
      %v438 = vadd.f32 %v225, %v437
      %439 = vmatprep.mubr.f32.mxu0 0.0
      %440 = vmatmul.mubr.f32.gmra.mrb[0].mxu0 %v289
      %v441 = vpop.f32.mrb[0].mxu0
      %v442 = vadd.f32 %v221, %v441
      %v443 = vpop.f32.mrb[0].mxu0
      %v444 = vadd.f32 %v225, %v443
      %445 = vmatprep.mubr.f32.mxu0 0.0
      %446 = vmatmul.mubr.f32.gmra.mrb[0].mxu0 %v292
      %v447 = vpop.f32.mrb[0].mxu0
      %v448 = vadd.f32 %v221, %v447
      %v449 = vpop.f32.mrb[0].mxu0
      %v450 = vadd.f32 %v225, %v449
      %451 = vmatprep.mubr.f32.mxu0 0.0
      %452 = vmatmul.mubr.f32.gmra.mrb[0].mxu0 %v295
      %v453 = vpop.f32.mrb[0].mxu0
      %v454 = vadd.f32 %v221, %v453
      %v455 = vpop.f32.mrb[0].mxu0
      %v456 = vadd.f32 %v225, %v455
      %457 = vdwg.mxu0
      %458 = vmatprep.subr.mxu0 %v195
      %459 = vmatpush1.msra.mxu0 %v194
      %460 = vmatprep.subr.mxu0 %v201
      %461 = vmatpush1.msra.mxu0 %v200
      %462 = vmatprep.subr.mxu0 %v207
      %463 = vmatpush1.msra.mxu0 %v206
      %464 = vmatprep.subr.mxu0 %v213
      %465 = vmatpush1.msra.mxu0 %v212
      %466 = vmatprep.subr.mxu0 0.0
      %467 = vmatpush1.msra.mxu0 0.0
      %468 = vmatprep.subr.mxu0 0.0
      %469 = vmatpush1.msra.mxu0 0.0
      %470 = vmatprep.subr.mxu0 0.0
      %471 = vmatpush1.msra.mxu0 0.0
      %472 = vmatprep.subr.mxu0 0.0
      %473 = vmatpush1.msra.mxu0 0.0
      %474 = vmatprep.subr.mxu0 0.0
      %475 = vmatpush1.msra.mxu0 0.0
      %476 = vmatprep.subr.mxu0 0.0
      %477 = vmatpush1.msra.mxu0 0.0
      %478 = vmatprep.subr.mxu0 0.0
      %479 = vmatpush1.msra.mxu0 0.0
      %480 = vmatprep.subr.mxu0 0.0
      %481 = vmatpush1.msra.mxu0 0.0
      %482 = vmatprep.subr.mxu0 0.0
      %483 = vmatpush1.msra.mxu0 0.0
      %484 = vmatprep.subr.mxu0 0.0
      %485 = vmatpush1.msra.mxu0 0.0
      %486 = vmatprep.subr.mxu0 0.0
      %487 = vmatpush1.msra.mxu0 0.0
      %488 = vmatprep.subr.mxu0 0.0
      %489 = vmatpush1.msra.mxu0 0.0
      %490 = vmatprep.subr.mxu0 0.0
      %491 = vmatpush1.msra.mxu0 0.0
      %492 = vmatprep.subr.mxu0 0.0
      %493 = vmatpush1.msra.mxu0 0.0
      %494 = vmatprep.subr.mxu0 0.0
      %495 = vmatpush1.msra.mxu0 0.0
      %496 = vmatprep.subr.mxu0 0.0
      %497 = vmatpush1.msra.mxu0 0.0
      %498 = vmatprep.subr.mxu0 0.0
      %499 = vmatpush1.msra.mxu0 0.0
      %500 = vmatprep.subr.mxu0 0.0
      %501 = vmatpush1.msra.mxu0 0.0
      %502 = vmatprep.subr.mxu0 0.0
      %503 = vmatpush1.msra.mxu0 0.0
      %504 = vmatprep.subr.mxu0 0.0
      %505 = vmatpush1.msra.mxu0 0.0
      %506 = vmatprep.subr.mxu0 0.0
      %507 = vmatpush1.msra.mxu0 0.0
      %508 = vmatprep.subr.mxu0 0.0
      %509 = vmatpush1.msra.mxu0 0.0
      %510 = vmatprep.subr.mxu0 0.0
      %511 = vmatpush1.msra.mxu0 0.0
      %512 = vmatprep.subr.mxu0 0.0
      %513 = vmatpush1.msra.mxu0 0.0
      %514 = vmatprep.subr.mxu0 0.0
      %515 = vmatpush1.msra.mxu0 0.0
      %516 = vmatprep.subr.mxu0 0.0
      %517 = vmatpush1.msra.mxu0 0.0
      %518 = vmatprep.subr.mxu0 0.0
      %519 = vmatpush1.msra.mxu0 0.0
      %520 = vmatprep.subr.mxu0 0.0
      %521 = vmatpush1.msra.mxu0 0.0
      %522 = vmatprep.mubr.f32.mxu0 0.0
      %523 = vmatmul.mubr.f32.gmra.mrb[0].mxu0 %v250
      %v524 = vpop.f32.mrb[0].mxu0
      %v525 = vadd.f32 %v229, %v524
      %v526 = vpop.f32.mrb[0].mxu0
      %v527 = vadd.f32 %v233, %v526
      %528 = vmatprep.mubr.f32.mxu0 0.0
      %529 = vmatmul.mubr.f32.gmra.mrb[0].mxu0 %v253
      %v530 = vpop.f32.mrb[0].mxu0
      %v531 = vadd.f32 %v229, %v530
      %v532 = vpop.f32.mrb[0].mxu0
      %v533 = vadd.f32 %v233, %v532
      %534 = vmatprep.mubr.f32.mxu0 0.0
      %535 = vmatmul.mubr.f32.gmra.mrb[0].mxu0 %v256
      %v536 = vpop.f32.mrb[0].mxu0
      %v537 = vadd.f32 %v229, %v536
      %v538 = vpop.f32.mrb[0].mxu0
      %v539 = vadd.f32 %v233, %v538
      %540 = vmatprep.mubr.f32.mxu0 0.0
      %541 = vmatmul.mubr.f32.gmra.mrb[0].mxu0 %v259
      %v542 = vpop.f32.mrb[0].mxu0
      %v543 = vadd.f32 %v229, %v542
      %v544 = vpop.f32.mrb[0].mxu0
      %v545 = vadd.f32 %v233, %v544
      %546 = vmatprep.mubr.f32.mxu0 0.0
      %547 = vmatmul.mubr.f32.gmra.mrb[0].mxu0 %v262
      %v548 = vpop.f32.mrb[0].mxu0
      %v549 = vadd.f32 %v229, %v548
      %v550 = vpop.f32.mrb[0].mxu0
      %v551 = vadd.f32 %v233, %v550
      %552 = vmatprep.mubr.f32.mxu0 0.0
      %553 = vmatmul.mubr.f32.gmra.mrb[0].mxu0 %v265
      %v554 = vpop.f32.mrb[0].mxu0
      %v555 = vadd.f32 %v229, %v554
      %v556 = vpop.f32.mrb[0].mxu0
      %v557 = vadd.f32 %v233, %v556
      %558 = vmatprep.mubr.f32.mxu0 0.0
      %559 = vmatmul.mubr.f32.gmra.mrb[0].mxu0 %v268
      %v560 = vpop.f32.mrb[0].mxu0
      %v561 = vadd.f32 %v229, %v560
      %v562 = vpop.f32.mrb[0].mxu0
      %v563 = vadd.f32 %v233, %v562
      %564 = vmatprep.mubr.f32.mxu0 0.0
      %565 = vmatmul.mubr.f32.gmra.mrb[0].mxu0 %v271
      %v566 = vpop.f32.mrb[0].mxu0
      %v567 = vadd.f32 %v229, %v566
      %v568 = vpop.f32.mrb[0].mxu0
      %v569 = vadd.f32 %v233, %v568
      %570 = vmatprep.mubr.f32.mxu0 0.0
      %571 = vmatmul.mubr.f32.gmra.mrb[0].mxu0 %v274
      %v572 = vpop.f32.mrb[0].mxu0
      %v573 = vadd.f32 %v229, %v572
      %v574 = vpop.f32.mrb[0].mxu0
      %v575 = vadd.f32 %v233, %v574
      %576 = vmatprep.mubr.f32.mxu0 0.0
      %577 = vmatmul.mubr.f32.gmra.mrb[0].mxu0 %v277
      %v578 = vpop.f32.mrb[0].mxu0
      %v579 = vadd.f32 %v229, %v578
      %v580 = vpop.f32.mrb[0].mxu0
      %v581 = vadd.f32 %v233, %v580
      %582 = vmatprep.mubr.f32.mxu0 0.0
      %583 = vmatmul.mubr.f32.gmra.mrb[0].mxu0 %v280
      %v584 = vpop.f32.mrb[0].mxu0
      %v585 = vadd.f32 %v229, %v584
      %v586 = vpop.f32.mrb[0].mxu0
      %v587 = vadd.f32 %v233, %v586
      %588 = vmatprep.mubr.f32.mxu0 0.0
      %589 = vmatmul.mubr.f32.gmra.mrb[0].mxu0 %v283
      %v590 = vpop.f32.mrb[0].mxu0
      %v591 = vadd.f32 %v229, %v590
      %v592 = vpop.f32.mrb[0].mxu0
      %v593 = vadd.f32 %v233, %v592
      %594 = vmatprep.mubr.f32.mxu0 0.0
      %595 = vmatmul.mubr.f32.gmra.mrb[0].mxu0 %v286
      %v596 = vpop.f32.mrb[0].mxu0
      %v597 = vadd.f32 %v229, %v596
      %v598 = vpop.f32.mrb[0].mxu0
      %v599 = vadd.f32 %v233, %v598
      %600 = vmatprep.mubr.f32.mxu0 0.0
      %601 = vmatmul.mubr.f32.gmra.mrb[0].mxu0 %v289
      %v602 = vpop.f32.mrb[0].mxu0
      %v603 = vadd.f32 %v229, %v602
      %v604 = vpop.f32.mrb[0].mxu0
      %v605 = vadd.f32 %v233, %v604
      %606 = vmatprep.mubr.f32.mxu0 0.0
      %607 = vmatmul.mubr.f32.gmra.mrb[0].mxu0 %v292
      %v608 = vpop.f32.mrb[0].mxu0
      %v609 = vadd.f32 %v229, %v608
      %v610 = vpop.f32.mrb[0].mxu0
      %v611 = vadd.f32 %v233, %v610
      %612 = vmatprep.mubr.f32.mxu0 0.0
      %613 = vmatmul.mubr.f32.gmra.mrb[0].mxu0 %v295
      %v614 = vpop.f32.mrb[0].mxu0
      %v615 = vadd.f32 %v229, %v614
      %v616 = vpop.f32.mrb[0].mxu0
      %v617 = vadd.f32 %v233, %v616
      %618 = vdwg.mxu0
      %619 = vmatprep.subr.mxu0 %v197
      %620 = vmatpush1.msra.mxu0 %v196
      %621 = vmatprep.subr.mxu0 %v203
      %622 = vmatpush1.msra.mxu0 %v202
      %623 = vmatprep.subr.mxu0 %v209
      %624 = vmatpush1.msra.mxu0 %v208
      %625 = vmatprep.subr.mxu0 %v215
      %626 = vmatpush1.msra.mxu0 %v214
      %627 = vmatprep.subr.mxu0 0.0
      %628 = vmatpush1.msra.mxu0 0.0
      %629 = vmatprep.subr.mxu0 0.0
      %630 = vmatpush1.msra.mxu0 0.0
      %631 = vmatprep.subr.mxu0 0.0
      %632 = vmatpush1.msra.mxu0 0.0
      %633 = vmatprep.subr.mxu0 0.0
      %634 = vmatpush1.msra.mxu0 0.0
      %635 = vmatprep.subr.mxu0 0.0
      %636 = vmatpush1.msra.mxu0 0.0
      %637 = vmatprep.subr.mxu0 0.0
      %638 = vmatpush1.msra.mxu0 0.0
      %639 = vmatprep.subr.mxu0 0.0
      %640 = vmatpush1.msra.mxu0 0.0
      %641 = vmatprep.subr.mxu0 0.0
      %642 = vmatpush1.msra.mxu0 0.0
      %643 = vmatprep.subr.mxu0 0.0
      %644 = vmatpush1.msra.mxu0 0.0
      %645 = vmatprep.subr.mxu0 0.0
      %646 = vmatpush1.msra.mxu0 0.0
      %647 = vmatprep.subr.mxu0 0.0
      %648 = vmatpush1.msra.mxu0 0.0
      %649 = vmatprep.subr.mxu0 0.0
      %650 = vmatpush1.msra.mxu0 0.0
      %651 = vmatprep.subr.mxu0 0.0
      %652 = vmatpush1.msra.mxu0 0.0
      %653 = vmatprep.subr.mxu0 0.0
      %654 = vmatpush1.msra.mxu0 0.0
      %655 = vmatprep.subr.mxu0 0.0
      %656 = vmatpush1.msra.mxu0 0.0
      %657 = vmatprep.subr.mxu0 0.0
      %658 = vmatpush1.msra.mxu0 0.0
      %659 = vmatprep.subr.mxu0 0.0
      %660 = vmatpush1.msra.mxu0 0.0
      %661 = vmatprep.subr.mxu0 0.0
      %662 = vmatpush1.msra.mxu0 0.0
      %663 = vmatprep.subr.mxu0 0.0
      %664 = vmatpush1.msra.mxu0 0.0
      %665 = vmatprep.subr.mxu0 0.0
      %666 = vmatpush1.msra.mxu0 0.0
      %667 = vmatprep.subr.mxu0 0.0
      %668 = vmatpush1.msra.mxu0 0.0
      %669 = vmatprep.subr.mxu0 0.0
      %670 = vmatpush1.msra.mxu0 0.0
      %671 = vmatprep.subr.mxu0 0.0
      %672 = vmatpush1.msra.mxu0 0.0
      %673 = vmatprep.subr.mxu0 0.0
      %674 = vmatpush1.msra.mxu0 0.0
      %675 = vmatprep.subr.mxu0 0.0
      %676 = vmatpush1.msra.mxu0 0.0
      %677 = vmatprep.subr.mxu0 0.0
      %678 = vmatpush1.msra.mxu0 0.0
      %679 = vmatprep.subr.mxu0 0.0
      %680 = vmatpush1.msra.mxu0 0.0
      %681 = vmatprep.subr.mxu0 0.0
      %682 = vmatpush1.msra.mxu0 0.0
      %683 = vmatprep.mubr.f32.mxu0 0.0
      %684 = vmatmul.mubr.f32.gmra.mrb[0].mxu0 %v250
      %v685 = vpop.f32.mrb[0].mxu0
      %v686 = vadd.f32 %v237, %v685
      %v687 = vpop.f32.mrb[0].mxu0
      %v688 = vadd.f32 %v241, %v687
      %689 = vmatprep.mubr.f32.mxu0 0.0
      %690 = vmatmul.mubr.f32.gmra.mrb[0].mxu0 %v253
      %v691 = vpop.f32.mrb[0].mxu0
      %v692 = vadd.f32 %v237, %v691
      %v693 = vpop.f32.mrb[0].mxu0
      %v694 = vadd.f32 %v241, %v693
      %695 = vmatprep.mubr.f32.mxu0 0.0
      %696 = vmatmul.mubr.f32.gmra.mrb[0].mxu0 %v256
      %v697 = vpop.f32.mrb[0].mxu0
      %v698 = vadd.f32 %v237, %v697
      %v699 = vpop.f32.mrb[0].mxu0
      %v700 = vadd.f32 %v241, %v699
      %701 = vmatprep.mubr.f32.mxu0 0.0
      %702 = vmatmul.mubr.f32.gmra.mrb[0].mxu0 %v259
      %v703 = vpop.f32.mrb[0].mxu0
      %v704 = vadd.f32 %v237, %v703
      %v705 = vpop.f32.mrb[0].mxu0
      %v706 = vadd.f32 %v241, %v705
      %707 = vmatprep.mubr.f32.mxu0 0.0
      %708 = vmatmul.mubr.f32.gmra.mrb[0].mxu0 %v262
      %v709 = vpop.f32.mrb[0].mxu0
      %v710 = vadd.f32 %v237, %v709
      %v711 = vpop.f32.mrb[0].mxu0
      %v712 = vadd.f32 %v241, %v711
      %713 = vmatprep.mubr.f32.mxu0 0.0
      %714 = vmatmul.mubr.f32.gmra.mrb[0].mxu0 %v265
      %v715 = vpop.f32.mrb[0].mxu0
      %v716 = vadd.f32 %v237, %v715
      %v717 = vpop.f32.mrb[0].mxu0
      %v718 = vadd.f32 %v241, %v717
      %719 = vmatprep.mubr.f32.mxu0 0.0
      %720 = vmatmul.mubr.f32.gmra.mrb[0].mxu0 %v268
      %v721 = vpop.f32.mrb[0].mxu0
      %v722 = vadd.f32 %v237, %v721
      %v723 = vpop.f32.mrb[0].mxu0
      %v724 = vadd.f32 %v241, %v723
      %725 = vmatprep.mubr.f32.mxu0 0.0
      %726 = vmatmul.mubr.f32.gmra.mrb[0].mxu0 %v271
      %v727 = vpop.f32.mrb[0].mxu0
      %v728 = vadd.f32 %v237, %v727
      %v729 = vpop.f32.mrb[0].mxu0
      %v730 = vadd.f32 %v241, %v729
      %731 = vmatprep.mubr.f32.mxu0 0.0
      %732 = vmatmul.mubr.f32.gmra.mrb[0].mxu0 %v274
      %v733 = vpop.f32.mrb[0].mxu0
      %v734 = vadd.f32 %v237, %v733
      %v735 = vpop.f32.mrb[0].mxu0
      %v736 = vadd.f32 %v241, %v735
      %737 = vmatprep.mubr.f32.mxu0 0.0
      %738 = vmatmul.mubr.f32.gmra.mrb[0].mxu0 %v277
      %v739 = vpop.f32.mrb[0].mxu0
      %v740 = vadd.f32 %v237, %v739
      %v741 = vpop.f32.mrb[0].mxu0
      %v742 = vadd.f32 %v241, %v741
      %743 = vmatprep.mubr.f32.mxu0 0.0
      %744 = vmatmul.mubr.f32.gmra.mrb[0].mxu0 %v280
      %v745 = vpop.f32.mrb[0].mxu0
      %v746 = vadd.f32 %v237, %v745
      %v747 = vpop.f32.mrb[0].mxu0
      %v748 = vadd.f32 %v241, %v747
      %749 = vmatprep.mubr.f32.mxu0 0.0
      %750 = vmatmul.mubr.f32.gmra.mrb[0].mxu0 %v283
      %v751 = vpop.f32.mrb[0].mxu0
      %v752 = vadd.f32 %v237, %v751
      %v753 = vpop.f32.mrb[0].mxu0
      %v754 = vadd.f32 %v241, %v753
      %755 = vmatprep.mubr.f32.mxu0 0.0
      %756 = vmatmul.mubr.f32.gmra.mrb[0].mxu0 %v286
      %v757 = vpop.f32.mrb[0].mxu0
      %v758 = vadd.f32 %v237, %v757
      %v759 = vpop.f32.mrb[0].mxu0
      %v760 = vadd.f32 %v241, %v759
      %761 = vmatprep.mubr.f32.mxu0 0.0
      %762 = vmatmul.mubr.f32.gmra.mrb[0].mxu0 %v289
      %v763 = vpop.f32.mrb[0].mxu0
      %v764 = vadd.f32 %v237, %v763
      %v765 = vpop.f32.mrb[0].mxu0
      %v766 = vadd.f32 %v241, %v765
      %767 = vmatprep.mubr.f32.mxu0 0.0
      %768 = vmatmul.mubr.f32.gmra.mrb[0].mxu0 %v292
      %v769 = vpop.f32.mrb[0].mxu0
      %v770 = vadd.f32 %v237, %v769
      %v771 = vpop.f32.mrb[0].mxu0
      %v772 = vadd.f32 %v241, %v771
      %773 = vmatprep.mubr.f32.mxu0 0.0
      %774 = vmatmul.mubr.f32.gmra.mrb[0].mxu0 %v295
      %v775 = vpop.f32.mrb[0].mxu0
      %v776 = vadd.f32 %v237, %v775
      %v777 = vpop.f32.mrb[0].mxu0
      %v778 = vadd.f32 %v241, %v777
      %779 = vdwg.mxu0
      %780 = vst [vmem:[%s174] sm:$0xff] %v364
      %781 = vst [vmem:[%s174 + $0x8] sm:$0xff] %v366
      %782 = vst [vmem:[%s174 + $0x10] sm:$0xff] %v525
      %783 = vst [vmem:[%s174 + $0x18] sm:$0xff] %v527
      %784 = vst [vmem:[%s174 + $0x20] sm:$0xff] %v686
      %785 = vst [vmem:[%s174 + $0x28] sm:$0xff] %v688
      %786 = vst [vmem:[%s174 + $0x30] sm:$0xff] %v370
      %787 = vst [vmem:[%s174 + $0x38] sm:$0xff] %v372
      %788 = vst [vmem:[%s174 + $0x40] sm:$0xff] %v531
      %789 = vst [vmem:[%s174 + $0x48] sm:$0xff] %v533
      %790 = vst [vmem:[%s174 + $0x50] sm:$0xff] %v692
      %791 = vst [vmem:[%s174 + $0x58] sm:$0xff] %v694
      %792 = vst [vmem:[%s174 + $0x60] sm:$0xff] %v376
      %793 = vst [vmem:[%s174 + $0x68] sm:$0xff] %v378
      %794 = vst [vmem:[%s174 + $0x70] sm:$0xff] %v537
      %795 = vst [vmem:[%s174 + $0x78] sm:$0xff] %v539
      %796 = vst [vmem:[%s174 + $0x80] sm:$0xff] %v698
      %797 = vst [vmem:[%s174 + $0x88] sm:$0xff] %v700
      %798 = vst [vmem:[%s174 + $0x90] sm:$0xff] %v382
      %799 = vst [vmem:[%s174 + $0x98] sm:$0xff] %v384
      %800 = vst [vmem:[%s174 + $0xa0] sm:$0xff] %v543
      %801 = vst [vmem:[%s174 + $0xa8] sm:$0xff] %v545
      %802 = vst [vmem:[%s174 + $0xb0] sm:$0xff] %v704
      %803 = vst [vmem:[%s174 + $0xb8] sm:$0xff] %v706
      %804 = vst [vmem:[%s174 + $0xc0] sm:$0xff] %v388
      %805 = vst [vmem:[%s174 + $0xc8] sm:$0xff] %v390
      %806 = vst [vmem:[%s174 + $0xd0] sm:$0xff] %v549
      %807 = vst [vmem:[%s174 + $0xd8] sm:$0xff] %v551
      %808 = vst [vmem:[%s174 + $0xe0] sm:$0xff] %v710
      %809 = vst [vmem:[%s174 + $0xe8] sm:$0xff] %v712
      %810 = vst [vmem:[%s174 + $0xf0] sm:$0xff] %v394
      %811 = vst [vmem:[%s174 + $0xf8] sm:$0xff] %v396
      %812 = vst [vmem:[%s174 + $0x100] sm:$0xff] %v555
      %813 = vst [vmem:[%s174 + $0x108] sm:$0xff] %v557
      %814 = vst [vmem:[%s174 + $0x110] sm:$0xff] %v716
      %815 = vst [vmem:[%s174 + $0x118] sm:$0xff] %v718
      %816 = vst [vmem:[%s174 + $0x120] sm:$0xff] %v400
      %817 = vst [vmem:[%s174 + $0x128] sm:$0xff] %v402
      %818 = vst [vmem:[%s174 + $0x130] sm:$0xff] %v561
      %819 = vst [vmem:[%s174 + $0x138] sm:$0xff] %v563
      %820 = vst [vmem:[%s174 + $0x140] sm:$0xff] %v722
      %821 = vst [vmem:[%s174 + $0x148] sm:$0xff] %v724
      %822 = vst [vmem:[%s174 + $0x150] sm:$0xff] %v406
      %823 = vst [vmem:[%s174 + $0x158] sm:$0xff] %v408
      %824 = vst [vmem:[%s174 + $0x160] sm:$0xff] %v567
      %825 = vst [vmem:[%s174 + $0x168] sm:$0xff] %v569
      %826 = vst [vmem:[%s174 + $0x170] sm:$0xff] %v728
      %827 = vst [vmem:[%s174 + $0x178] sm:$0xff] %v730
      %828 = vst [vmem:[%s174 + $0x180] sm:$0xff] %v412
      %829 = vst [vmem:[%s174 + $0x188] sm:$0xff] %v414
      %830 = vst [vmem:[%s174 + $0x190] sm:$0xff] %v573
      %831 = vst [vmem:[%s174 + $0x198] sm:$0xff] %v575
      %832 = vst [vmem:[%s174 + $0x1a0] sm:$0xff] %v734
      %833 = vst [vmem:[%s174 + $0x1a8] sm:$0xff] %v736
      %834 = vst [vmem:[%s174 + $0x1b0] sm:$0xff] %v418
      %835 = vst [vmem:[%s174 + $0x1b8] sm:$0xff] %v420
      %836 = vst [vmem:[%s174 + $0x1c0] sm:$0xff] %v579
      %837 = vst [vmem:[%s174 + $0x1c8] sm:$0xff] %v581
      %838 = vst [vmem:[%s174 + $0x1d0] sm:$0xff] %v740
      %839 = vst [vmem:[%s174 + $0x1d8] sm:$0xff] %v742
      %840 = vst [vmem:[%s174 + $0x1e0] sm:$0xff] %v424
      %841 = vst [vmem:[%s174 + $0x1e8] sm:$0xff] %v426
      %842 = vst [vmem:[%s174 + $0x1f0] sm:$0xff] %v585
      %843 = vst [vmem:[%s174 + $0x1f8] sm:$0xff] %v587
      %844 = vst [vmem:[%s174 + $0x200] sm:$0xff] %v746
      %845 = vst [vmem:[%s174 + $0x208] sm:$0xff] %v748
      %846 = vst [vmem:[%s174 + $0x210] sm:$0xff] %v430
      %847 = vst [vmem:[%s174 + $0x218] sm:$0xff] %v432
      %848 = vst [vmem:[%s174 + $0x220] sm:$0xff] %v591
      %849 = vst [vmem:[%s174 + $0x228] sm:$0xff] %v593
      %850 = vst [vmem:[%s174 + $0x230] sm:$0xff] %v752
      %851 = vst [vmem:[%s174 + $0x238] sm:$0xff] %v754
      %852 = vst [vmem:[%s174 + $0x240] sm:$0xff] %v436
      %853 = vst [vmem:[%s174 + $0x248] sm:$0xff] %v438
      %854 = vst [vmem:[%s174 + $0x250] sm:$0xff] %v597
      %855 = vst [vmem:[%s174 + $0x258] sm:$0xff] %v599
      %856 = vst [vmem:[%s174 + $0x260] sm:$0xff] %v758
      %857 = vst [vmem:[%s174 + $0x268] sm:$0xff] %v760
      %858 = vst [vmem:[%s174 + $0x270] sm:$0xff] %v442
      %859 = vst [vmem:[%s174 + $0x278] sm:$0xff] %v444
      %860 = vst [vmem:[%s174 + $0x280] sm:$0xff] %v603
      %861 = vst [vmem:[%s174 + $0x288] sm:$0xff] %v605
      %862 = vst [vmem:[%s174 + $0x290] sm:$0xff] %v764
      %863 = vst [vmem:[%s174 + $0x298] sm:$0xff] %v766
      %864 = vst [vmem:[%s174 + $0x2a0] sm:$0xff] %v448
      %865 = vst [vmem:[%s174 + $0x2a8] sm:$0xff] %v450
      %866 = vst [vmem:[%s174 + $0x2b0] sm:$0xff] %v609
      %867 = vst [vmem:[%s174 + $0x2b8] sm:$0xff] %v611
      %868 = vst [vmem:[%s174 + $0x2c0] sm:$0xff] %v770
      %869 = vst [vmem:[%s174 + $0x2c8] sm:$0xff] %v772
      %870 = vst [vmem:[%s174 + $0x2d0] sm:$0xff] %v454
      %871 = vst [vmem:[%s174 + $0x2d8] sm:$0xff] %v456
      %872 = vst [vmem:[%s174 + $0x2e0] sm:$0xff] %v615
      %873 = vst [vmem:[%s174 + $0x2e8] sm:$0xff] %v617
      %874 = vst [vmem:[%s174 + $0x2f0] sm:$0xff] %v776
      %875 = vst [vmem:[%s174 + $0x2f8] sm:$0xff] %v778
      %s876 = smul.u32 16, %s14
      %p877 = scmp.lt.s32.totalorder %s876, 31
      %s878 = scalar_select %p877, %s876, 31
      %s879 = smul.addr %s878, 6
      %s880 = smul.addr %s879, 8
      %s881 = scalar_lea.vmem %s3, %s880
      // Predicated region
      $region33: #{encoder_forward.3} parent=31 // pred_check
        %p882 = pneg %p100
      $region34: #{encoder_forward.3} parent=31 // pred_check_branch
        %884 = sbr.rel (%p882) target = $region36
      $region35: #{encoder_forward.3} parent=31 // pred_region
        %s885 = smul.u32 16, %s14
      $region36: #{encoder_forward.3} parent=31 // pred_fallthru
        _
    $region32: #{encoder_forward.3} parent=5 // pred_fallthru
      _
    %p886 = scmp.le.s32.totalorder 2, %s9
    // Predicated region
    $region37: #{encoder_forward.3} parent=5 // pred_check
      %p887 = pneg %p886
    $region38: #{encoder_forward.3} parent=5 // pred_check_branch
      %889 = sbr.rel (%p887) target = $region40
    $region39: #{encoder_forward.3} parent=5 // pred_region
      %s890 = ssub.s32 %s9, 2
      // Predicated region
      $region41: #{encoder_forward.3} parent=39 // pred_check
        %p891 = pneg %p106
      $region42: #{encoder_forward.3} parent=39 // pred_check_branch
        %893 = sbr.rel (%p891) target = $region44
      $region43: #{encoder_forward.3} parent=39 // pred_region
        %s894 = smul.u32 16, %s15
        %p895 = scmp.lt.s32.totalorder %s894, 31
        %s896 = scalar_select %p895, %s894, 31
        %s897 = smul.addr %s896, 6
        %s898 = smul.addr %s897, 8
        %s899 = scalar_lea.vmem %s3, %s898
      $region44: #{encoder_forward.3} parent=39 // pred_fallthru
        _
    $region40: #{encoder_forward.3} parent=5 // pred_fallthru
      _
  $region6: #{encoder_forward.3} parent=0 // loop_footer
    %s13 = sadd.s32 1, %s9
  $region7: #{encoder_forward.3} parent=0 // loop_footer_branch
    %8 = sbr.rel target = $region3
  $region8: #{encoder_forward.3} parent=0 // loop_exit
    _

// kernel: encoder_forward.5
$region0: #{encoder_forward.5}
  #allocation0 [shape = 'u32[]', space=smem, size = 0x4, offset = 0x4, fixed_abs, tag = 'smem constant byte address 0x4 - core index']
  #allocation1 [shape = 'u32[144,128]{1,0:T(1,128)}', space=vmem, size = 0x12000, scoped, tag = 'internal scratch']
  %s0 = inlined_call_operand.vmem [shape: f32[2,8,128], index: 0, kind: input, shape index: {}]
  %s1 = inlined_call_operand.vmem [shape: f32[2,128,128], index: 1, kind: input, shape index: {}]
  %s2 = inlined_call_operand.vmem [shape: f32[1,128], index: 2, kind: input, shape index: {}]
  %s3 = inlined_call_operand.hbm [shape: f32[8,128], index: 3, kind: output, shape index: {}]
  %s4 = sld [smem:[#allocation0]]
  $region22: #{encoder_forward.5} parent=0
    _
  %s6 = ssub.s32 1, %s4
  %s7 = scalar_select 0, %s6, %s4
  $region1: #{encoder_forward.5} parent=0
    #allocation2 [shape = 'u8[4096]{0}', space=vmem, size = 0x1000, scoped, tag = 'output window, operand 0, single buffered']
    #allocation3 [shape = 's32[1]{0}', space=sflag, size = 0x4, scoped, tag = 'scoped memory for encoder_forward.5']
    %8 = vsyncpa [#allocation3], 0
    // Predicated region
    $region2: #{encoder_forward.5} parent=1 // pred_check
      _
    $region3: #{encoder_forward.5} parent=1 // pred_check_branch
      %10 = sbr.rel (0) target = $region5
    $region4: #{encoder_forward.5} parent=1 // pred_region
      _
    $region5: #{encoder_forward.5} parent=1 // pred_fallthru
      _
    // Predicated region
    $region6: #{encoder_forward.5} parent=1 // pred_check
      _
    $region7: #{encoder_forward.5} parent=1 // pred_check_branch
      %12 = sbr.rel (0) target = $region9
    $region8: #{encoder_forward.5} parent=1 // pred_region
      _
    $region9: #{encoder_forward.5} parent=1 // pred_fallthru
      _
    // Predicated region
    $region10: #{encoder_forward.5} parent=1 // pred_check
      _
    $region11: #{encoder_forward.5} parent=1 // pred_check_branch
      %14 = sbr.rel (0) target = $region13
    $region12: #{encoder_forward.5} parent=1 // pred_region
      _
    $region13: #{encoder_forward.5} parent=1 // pred_fallthru
      _
    %v15 = vld [vmem:[%s0] sm:$0xff]
    %v16 = vld [vmem:[%s1] sm:$0xff]
    %v17 = vld [vmem:[%s1 + $0x8] sm:$0xff]
    %v18 = vld [vmem:[%s1 + $0x10] sm:$0xff]
    %v19 = vld [vmem:[%s1 + $0x18] sm:$0xff]
    %v20 = vld [vmem:[%s1 + $0x20] sm:$0xff]
    %v21 = vld [vmem:[%s1 + $0x28] sm:$0xff]
    %v22 = vld [vmem:[%s1 + $0x30] sm:$0xff]
    %v23 = vld [vmem:[%s1 + $0x38] sm:$0xff]
    %v24 = vld [vmem:[%s1 + $0x40] sm:$0xff]
    %v25 = vld [vmem:[%s1 + $0x48] sm:$0xff]
    %v26 = vld [vmem:[%s1 + $0x50] sm:$0xff]
    %v27 = vld [vmem:[%s1 + $0x58] sm:$0xff]
    %v28 = vld [vmem:[%s1 + $0x60] sm:$0xff]
    %v29 = vld [vmem:[%s1 + $0x68] sm:$0xff]
    %v30 = vld [vmem:[%s1 + $0x70] sm:$0xff]
    %v31 = vld [vmem:[%s1 + $0x78] sm:$0xff]
    %s32 = scalar_lea.vmem %s0, 8
    %v33 = vld [vmem:[%s32] sm:$0xff]
    %s34 = scalar_lea.vmem %s1, 128
    %v35 = vld [vmem:[%s34] sm:$0xff]
    %v36 = vld [vmem:[%s34 + $0x8] sm:$0xff]
    %v37 = vld [vmem:[%s34 + $0x10] sm:$0xff]
    %v38 = vld [vmem:[%s34 + $0x18] sm:$0xff]
    %v39 = vld [vmem:[%s34 + $0x20] sm:$0xff]
    %v40 = vld [vmem:[%s34 + $0x28] sm:$0xff]
    %v41 = vld [vmem:[%s34 + $0x30] sm:$0xff]
    %v42 = vld [vmem:[%s34 + $0x38] sm:$0xff]
    %v43 = vld [vmem:[%s34 + $0x40] sm:$0xff]
    %v44 = vld [vmem:[%s34 + $0x48] sm:$0xff]
    %v45 = vld [vmem:[%s34 + $0x50] sm:$0xff]
    %v46 = vld [vmem:[%s34 + $0x58] sm:$0xff]
    %v47 = vld [vmem:[%s34 + $0x60] sm:$0xff]
    %v48 = vld [vmem:[%s34 + $0x68] sm:$0xff]
    %v49 = vld [vmem:[%s34 + $0x70] sm:$0xff]
    %v50 = vld [vmem:[%s34 + $0x78] sm:$0xff]
    %51 = vmatprep.subr.mxu0 0.0
    %52 = vmatpush1.msra.mxu0 %v35
    %53 = vmatprep.subr.mxu0 0.0
    %54 = vmatpush1.msra.mxu0 %v36
    %55 = vmatprep.subr.mxu0 0.0
    %56 = vmatpush1.msra.mxu0 %v37
    %57 = vmatprep.subr.mxu0 0.0
    %58 = vmatpush1.msra.mxu0 %v38
    %59 = vmatprep.subr.mxu0 0.0
    %60 = vmatpush1.msra.mxu0 %v39
    %61 = vmatprep.subr.mxu0 0.0
    %62 = vmatpush1.msra.mxu0 %v40
    %63 = vmatprep.subr.mxu0 0.0
    %64 = vmatpush1.msra.mxu0 %v41
    %65 = vmatprep.subr.mxu0 0.0
    %66 = vmatpush1.msra.mxu0 %v42
    %67 = vmatprep.subr.mxu0 0.0
    %68 = vmatpush1.msra.mxu0 %v43
    %69 = vmatprep.subr.mxu0 0.0
    %70 = vmatpush1.msra.mxu0 %v44
    %71 = vmatprep.subr.mxu0 0.0
    %72 = vmatpush1.msra.mxu0 %v45
    %73 = vmatprep.subr.mxu0 0.0
    %74 = vmatpush1.msra.mxu0 %v46
    %75 = vmatprep.subr.mxu0 0.0
    %76 = vmatpush1.msra.mxu0 %v47
    %77 = vmatprep.subr.mxu0 0.0
    %78 = vmatpush1.msra.mxu0 %v48
    %79 = vmatprep.subr.mxu0 0.0
    %80 = vmatpush1.msra.mxu0 %v49
    %81 = vmatprep.subr.mxu0 0.0
    %82 = vmatpush1.msra.mxu0 %v50
    %83 = vmatprep.subr.mxu0 0.0
    %84 = vmatpush1.msra.mxu0 0.0
    %85 = vmatprep.subr.mxu0 0.0
    %86 = vmatpush1.msra.mxu0 0.0
    %87 = vmatprep.subr.mxu0 0.0
    %88 = vmatpush1.msra.mxu0 0.0
    %89 = vmatprep.subr.mxu0 0.0
    %90 = vmatpush1.msra.mxu0 0.0
    %91 = vmatprep.subr.mxu0 0.0
    %92 = vmatpush1.msra.mxu0 0.0
    %93 = vmatprep.subr.mxu0 0.0
    %94 = vmatpush1.msra.mxu0 0.0
    %95 = vmatprep.subr.mxu0 0.0
    %96 = vmatpush1.msra.mxu0 0.0
    %97 = vmatprep.subr.mxu0 0.0
    %98 = vmatpush1.msra.mxu0 0.0
    %99 = vmatprep.subr.mxu0 0.0
    %100 = vmatpush1.msra.mxu0 0.0
    %101 = vmatprep.subr.mxu0 0.0
    %102 = vmatpush1.msra.mxu0 0.0
    %103 = vmatprep.subr.mxu0 0.0
    %104 = vmatpush1.msra.mxu0 0.0
    %105 = vmatprep.subr.mxu0 0.0
    %106 = vmatpush1.msra.mxu0 0.0
    %107 = vmatprep.subr.mxu0 0.0
    %108 = vmatpush1.msra.mxu0 0.0
    %109 = vmatprep.subr.mxu0 0.0
    %110 = vmatpush1.msra.mxu0 0.0
    %111 = vmatprep.subr.mxu0 0.0
    %112 = vmatpush1.msra.mxu0 0.0
    %113 = vmatprep.subr.mxu0 0.0
    %114 = vmatpush1.msra.mxu0 0.0
    %115 = vmatprep.mubr.f32.mxu0 0.0
    %116 = vmatmul.mubr.f32.gmra.mrb[0].mxu0 %v33
    %v117 = vpop.f32.mrb[0].mxu0
    %v118 = vadd.f32 0.0, %v117
    %v119 = vpop.f32.mrb[0].mxu0
    %120 = vdwg.mxu0
    %121 = vmatprep.subr.mxu0 0.0
    %122 = vmatpush1.msra.mxu0 %v16
    %123 = vmatprep.subr.mxu0 0.0
    %124 = vmatpush1.msra.mxu0 %v17
    %125 = vmatprep.subr.mxu0 0.0
    %126 = vmatpush1.msra.mxu0 %v18
    %127 = vmatprep.subr.mxu0 0.0
    %128 = vmatpush1.msra.mxu0 %v19
    %129 = vmatprep.subr.mxu0 0.0
    %130 = vmatpush1.msra.mxu0 %v20
    %131 = vmatprep.subr.mxu0 0.0
    %132 = vmatpush1.msra.mxu0 %v21
    %133 = vmatprep.subr.mxu0 0.0
    %134 = vmatpush1.msra.mxu0 %v22
    %135 = vmatprep.subr.mxu0 0.0
    %136 = vmatpush1.msra.mxu0 %v23
    %137 = vmatprep.subr.mxu0 0.0
    %138 = vmatpush1.msra.mxu0 %v24
    %139 = vmatprep.subr.mxu0 0.0
    %140 = vmatpush1.msra.mxu0 %v25
    %141 = vmatprep.subr.mxu0 0.0
    %142 = vmatpush1.msra.mxu0 %v26
    %143 = vmatprep.subr.mxu0 0.0
    %144 = vmatpush1.msra.mxu0 %v27
    %145 = vmatprep.subr.mxu0 0.0
    %146 = vmatpush1.msra.mxu0 %v28
    %147 = vmatprep.subr.mxu0 0.0
    %148 = vmatpush1.msra.mxu0 %v29
    %149 = vmatprep.subr.mxu0 0.0
    %150 = vmatpush1.msra.mxu0 %v30
    %151 = vmatprep.subr.mxu0 0.0
    %152 = vmatpush1.msra.mxu0 %v31
    %153 = vmatprep.subr.mxu0 0.0
    %154 = vmatpush1.msra.mxu0 0.0
    %155 = vmatprep.subr.mxu0 0.0
    %156 = vmatpush1.msra.mxu0 0.0
    %157 = vmatprep.subr.mxu0 0.0
    %158 = vmatpush1.msra.mxu0 0.0
    %159 = vmatprep.subr.mxu0 0.0
    %160 = vmatpush1.msra.mxu0 0.0
    %161 = vmatprep.subr.mxu0 0.0
    %162 = vmatpush1.msra.mxu0 0.0
    %163 = vmatprep.subr.mxu0 0.0
    %164 = vmatpush1.msra.mxu0 0.0
    %165 = vmatprep.subr.mxu0 0.0
    %166 = vmatpush1.msra.mxu0 0.0
    %167 = vmatprep.subr.mxu0 0.0
    %168 = vmatpush1.msra.mxu0 0.0
    %169 = vmatprep.subr.mxu0 0.0
    %170 = vmatpush1.msra.mxu0 0.0
    %171 = vmatprep.subr.mxu0 0.0
    %172 = vmatpush1.msra.mxu0 0.0
    %173 = vmatprep.subr.mxu0 0.0
    %174 = vmatpush1.msra.mxu0 0.0
    %175 = vmatprep.subr.mxu0 0.0
    %176 = vmatpush1.msra.mxu0 0.0
    %177 = vmatprep.subr.mxu0 0.0
    %178 = vmatpush1.msra.mxu0 0.0
    %179 = vmatprep.subr.mxu0 0.0
    %180 = vmatpush1.msra.mxu0 0.0
    %181 = vmatprep.subr.mxu0 0.0
    %182 = vmatpush1.msra.mxu0 0.0
    %183 = vmatprep.subr.mxu0 0.0
    %184 = vmatpush1.msra.mxu0 0.0
    %185 = vmatprep.mubr.f32.mxu0 0.0
    %186 = vmatmul.mubr.f32.gmra.mrb[0].mxu0 %v15
    %v187 = vpop.f32.mrb[0].mxu0
    %v188 = vadd.f32 %v118, %v187
    %v189 = vpop.f32.mrb[0].mxu0
    %190 = vdwg.mxu0
    %v191 = vld [vmem:[%s2] sm:$0x1]
    %v193 = vlaneseq
    %v194 = vshrl.u32 %v193, 7
    %v195 = vsub.s32 0, %v194
    %v196 = vrot.slane %v191, %v195
    %v198 = vadd.f32 %v188, %v196
    %v199 = vtanh.pop %v198
    %200 = vst [vmem:[#allocation2] sm:$0xff] %v199
    // Predicated region
    $region14: #{encoder_forward.5} parent=1 // pred_check
      _
    $region15: #{encoder_forward.5} parent=1 // pred_check_branch
      %202 = sbr.rel (0) target = $region17
    $region16: #{encoder_forward.5} parent=1 // pred_region
      %s204 = ssub.s32 128, 128
      %205 = vsyncadd [#allocation3], %s204
      %s207 = sshll.u32 [#allocation2], 4
      %s208 = int_to_ptr.vmem [resolvable:$true] %s207
      %210 = dma.vmem_to_hbm [thread:$0]  %s208, 128, %s3, [#allocation3]
    $region17: #{encoder_forward.5} parent=1 // pred_fallthru
      _
    // Predicated region
    $region18: #{encoder_forward.5} parent=1 // pred_check
      _
    $region19: #{encoder_forward.5} parent=1 // pred_check_branch
      %212 = sbr.rel (0) target = $region21
    $region20: #{encoder_forward.5} parent=1 // pred_region
      %213 = dma.done [#allocation3], 128
    $region21: #{encoder_forward.5} parent=1 // pred_fallthru
      _
    %214 = vsyncpa [#allocation3], 1

// kernel: encoder_forward.4
$region0: #{encoder_forward.4}
  #allocation0 [shape = 'u32[]', space=smem, size = 0x4, offset = 0x4, fixed_abs, tag = 'smem constant byte address 0x4 - core index']
  #allocation1 [shape = 'u32[144,128]{1,0:T(1,128)}', space=vmem, size = 0x12000, scoped, tag = 'internal scratch']
  #allocation2 [shape = 'f32[8,128]{1,0:T(8,128)}', space=vmem, size = 0x1000, scoped, tag = 'scratch operand']
  %s0 = inlined_call_operand.vmem [shape: f32[32,8,768], index: 0, kind: input, shape index: {}]
  %s1 = inlined_call_operand.vmem [shape: f32[2,128,384], index: 1, kind: input, shape index: {}]
  %s2 = inlined_call_operand.vmem [shape: f32[2,1,128], index: 2, kind: input, shape index: {}]
  %s3 = inlined_call_operand.hbm [shape: f32[32,8,256], index: 3, kind: output, shape index: {0}]
  %s4 = inlined_call_operand.vmem [shape: f32[2,8,128], index: 4, kind: output, shape index: {1}]
  %5 = xla_tuple %s3, %s4
  %s6 = sld [smem:[#allocation0]]
  $region84: #{encoder_forward.4} parent=0
    _
  %s8 = ssub.s32 1, %s6
  %s9 = scalar_select 0, %s8, %s6
  $region1: #{encoder_forward.4} parent=0
    #allocation3 [shape = 'u8[393216]{0}', space=vmem, size = 0x60000, scoped, tag = 'input window, operand 0']
    #allocation4 [shape = 'u8[131072]{0}', space=vmem, size = 0x20000, scoped, tag = 'output window, operand 0']
    #allocation5 [shape = 's32[2]{0}', space=sflag, size = 0x8, scoped, tag = 'scoped memory for encoder_forward.4']
    %10 = vsyncpa [#allocation5], 0
    %s11 = scalar_lea.sflag [#allocation5], 1
    %12 = vsyncpa %s11, 0
    loop: start=0, step=1, limit=6
    $region2: #{encoder_forward.4} parent=1 // loop_pre_header
      _
    $region3: #{encoder_forward.4} parent=1 // loop_header
      %s14 = sphi 0, %s18
      %p15 = scmp.ge.s32.totalorder %s14, 6
      %s21 = sphi 0, %s33
      %s22 = sphi 0, %s29
      %s23 = sphi 0, %s21
      %s24 = sphi 0, %s22
      %s25 = sphi 0, %s23
      %s26 = sphi 0, %s24
      %s46 = sphi 0, %s48
      %s49 = sphi 0, %s46
      %s50 = sphi 0, %s49
      %s66 = sphi 0, %s50
      %s72 = sphi 0, %s74
      %s75 = sphi 0, %s72
      %s76 = sphi 0, %s75
      %s92 = sphi 0, %s76
      %s98 = sphi 0, %s100
      %s101 = sphi 0, %s98
      %s102 = sphi 0, %s101
      %s118 = sphi 0, %s102
      %s134 = sphi 0, %s136
      %s137 = sphi 0, %s134
      %s138 = sphi 0, %s137
      %s154 = sphi 0, %s138
      %s160 = sphi 0, %s162
      %s163 = sphi 0, %s160
      %s164 = sphi 0, %s163
      %s180 = sphi 0, %s164
    $region4: #{encoder_forward.4} parent=1 // loop_header_branch
      %17 = sbr.rel (%p15) target = $region8
    $region5: #{encoder_forward.4} parent=1 // loop_body
      %s19 = ssub.s32 %s14, 1
      %s20 = ssub.s32 %s14, 2
      %s27 = sadd.s32 1, %s22
      %p28 = scmp.ge.s32.totalorder %s27, 2
      %s29 = scalar_select %p28, 0, %s27
      %s30 = sadd.s32 1, %s21
      %s31 = scalar_select %p28, %s30, %s21
      %p32 = scmp.ge.s32.totalorder %s31, 2
      %s33 = scalar_select %p32, 0, %s31
      %s34 = smul.u32 %s22, 2
      %s35 = ssub.s32 1, %s34
      %s36 = smul.u32 %s21, %s35
      %s37 = sadd.s32 %s22, %s36
      %s38 = smul.u32 %s29, 2
      %s39 = ssub.s32 1, %s38
      %s40 = smul.u32 %s33, %s39
      %s41 = sadd.s32 %s29, %s40
      %s42 = ssub.s32 %s37, %s41
      %s43 = ssub.s32 %s21, %s33
      %s44 = sor.u32 %s42, %s43
      %p45 = scmp.eq.s32.totalorder %s44, 0
      %s47 = sadd.s32 %s46, 1
      %s48 = scalar_select %p45, %s46, %s47
      %p51 = pneg %p45
      %p52 = scmp.eq.s32.totalorder %s14, 3
      %p53 = por %p51, %p52
      %p54 = scmp.ne.s32.totalorder %s46, %s49
      %p55 = scmp.eq.s32.totalorder %s14, 0
      %p56 = por %p54, %p55
      %p57 = scmp.ne.s32.totalorder %s46, %s49
      %p58 = scmp.eq.s32.totalorder %s19, 3
      %p59 = por %p57, %p58
      %p60 = scmp.ne.s32.totalorder %s49, %s50
      %p61 = scmp.eq.s32.totalorder %s19, 0
      %p62 = por %p60, %p61
      %p63 = scmp.ne.s32.totalorder %s49, %s50
      %p64 = scmp.eq.s32.totalorder %s20, 3
      %p65 = por %p63, %p64
      %p67 = scmp.ne.s32.totalorder %s50, %s66
      %p68 = scmp.eq.s32.totalorder %s20, 0
      %p69 = por %p67, %p68
      %s70 = ssub.s32 %s21, %s33
      %p71 = scmp.eq.s32.totalorder %s70, 0
      %s73 = sadd.s32 %s72, 1
      %s74 = scalar_select %p71, %s72, %s73
      %p77 = pneg %p71
      %p78 = scmp.eq.s32.totalorder %s14, 3
      %p79 = por %p77, %p78
      %p80 = scmp.ne.s32.totalorder %s72, %s75
      %p81 = scmp.eq.s32.totalorder %s14, 0
      %p82 = por %p80, %p81
      %p83 = scmp.ne.s32.totalorder %s72, %s75
      %p84 = scmp.eq.s32.totalorder %s19, 3
      %p85 = por %p83, %p84
      %p86 = scmp.ne.s32.totalorder %s75, %s76
      %p87 = scmp.eq.s32.totalorder %s19, 0
      %p88 = por %p86, %p87
      %p89 = scmp.ne.s32.totalorder %s75, %s76
      %p90 = scmp.eq.s32.totalorder %s20, 3
      %p91 = por %p89, %p90
      %p93 = scmp.ne.s32.totalorder %s76, %s92
      %p94 = scmp.eq.s32.totalorder %s20, 0
      %p95 = por %p93, %p94
      %s96 = ssub.s32 %s21, %s33
      %p97 = scmp.eq.s32.totalorder %s96, 0
      %s99 = sadd.s32 %s98, 1
      %s100 = scalar_select %p97, %s98, %s99
      %p103 = pneg %p97
      %p104 = scmp.eq.s32.totalorder %s14, 3
      %p105 = por %p103, %p104
      %p106 = scmp.ne.s32.totalorder %s98, %s101
      %p107 = scmp.eq.s32.totalorder %s14, 0
      %p108 = por %p106, %p107
      %p109 = scmp.ne.s32.totalorder %s98, %s101
      %p110 = scmp.eq.s32.totalorder %s19, 3
      %p111 = por %p109, %p110
      %p112 = scmp.ne.s32.totalorder %s101, %s102
      %p113 = scmp.eq.s32.totalorder %s19, 0
      %p114 = por %p112, %p113
      %p115 = scmp.ne.s32.totalorder %s101, %s102
      %p116 = scmp.eq.s32.totalorder %s20, 3
      %p117 = por %p115, %p116
      %p119 = scmp.ne.s32.totalorder %s102, %s118
      %p120 = scmp.eq.s32.totalorder %s20, 0
      %p121 = por %p119, %p120
      %s122 = smul.u32 %s22, 2
      %s123 = ssub.s32 1, %s122
      %s124 = smul.u32 %s21, %s123
      %s125 = sadd.s32 %s22, %s124
      %s126 = smul.u32 %s29, 2
      %s127 = ssub.s32 1, %s126
      %s128 = smul.u32 %s33, %s127
      %s129 = sadd.s32 %s29, %s128
      %s130 = ssub.s32 %s125, %s129
      %s131 = ssub.s32 %s21, %s33
      %s132 = sor.u32 %s130, %s131
      %p133 = scmp.eq.s32.totalorder %s132, 0
      %s135 = sadd.s32 %s134, 1
      %s136 = scalar_select %p133, %s134, %s135
      %p139 = pneg %p133
      %p140 = scmp.eq.s32.totalorder %s14, 3
      %p141 = por %p139, %p140
      %p142 = scmp.ne.s32.totalorder %s134, %s137
      %p143 = scmp.eq.s32.totalorder %s14, 0
      %p144 = por %p142, %p143
      %p145 = scmp.ne.s32.totalorder %s134, %s137
      %p146 = scmp.eq.s32.totalorder %s19, 3
      %p147 = por %p145, %p146
      %p148 = scmp.ne.s32.totalorder %s137, %s138
      %p149 = scmp.eq.s32.totalorder %s19, 0
      %p150 = por %p148, %p149
      %p151 = scmp.ne.s32.totalorder %s137, %s138
      %p152 = scmp.eq.s32.totalorder %s20, 3
      %p153 = por %p151, %p152
      %p155 = scmp.ne.s32.totalorder %s138, %s154
      %p156 = scmp.eq.s32.totalorder %s20, 0
      %p157 = por %p155, %p156
      %s158 = ssub.s32 %s21, %s33
      %p159 = scmp.eq.s32.totalorder %s158, 0
      %s161 = sadd.s32 %s160, 1
      %s162 = scalar_select %p159, %s160, %s161
      %p165 = pneg %p159
      %p166 = scmp.eq.s32.totalorder %s14, 3
      %p167 = por %p165, %p166
      %p168 = scmp.ne.s32.totalorder %s160, %s163
      %p169 = scmp.eq.s32.totalorder %s14, 0
      %p170 = por %p168, %p169
      %p171 = scmp.ne.s32.totalorder %s160, %s163
      %p172 = scmp.eq.s32.totalorder %s19, 3
      %p173 = por %p171, %p172
      %p174 = scmp.ne.s32.totalorder %s163, %s164
      %p175 = scmp.eq.s32.totalorder %s19, 0
      %p176 = por %p174, %p175
      %p177 = scmp.ne.s32.totalorder %s163, %s164
      %p178 = scmp.eq.s32.totalorder %s20, 3
      %p179 = por %p177, %p178
      %p181 = scmp.ne.s32.totalorder %s164, %s180
      %p182 = scmp.eq.s32.totalorder %s20, 0
      %p183 = por %p181, %p182
      %p184 = scmp.le.s32.totalorder 1, %s14
      %p185 = scmp.lt.s32.totalorder %s14, 5
      %p186 = pnand %p184, %p185
      %p187 = pneg %p186
      // Predicated region
      $region9: #{encoder_forward.4} parent=5 // pred_check
        _
      $region10: #{encoder_forward.4} parent=5 // pred_check_branch
        %189 = sbr.rel (%p186) target = $region12
      $region11: #{encoder_forward.4} parent=5 // pred_region
        %s190 = ssub.s32 %s14, 1
      $region12: #{encoder_forward.4} parent=5 // pred_fallthru
        _
      %p191 = scmp.lt.s32.totalorder %s14, 4
      // Predicated region
      $region13: #{encoder_forward.4} parent=5 // pred_check
        %p192 = pneg %p191
      $region14: #{encoder_forward.4} parent=5 // pred_check_branch
        %194 = sbr.rel (%p192) target = $region16
      $region15: #{encoder_forward.4} parent=5 // pred_region
        // Predicated region
        $region17: #{encoder_forward.4} parent=15 // pred_check
          %p195 = pneg %p56
        $region18: #{encoder_forward.4} parent=15 // pred_check_branch
          %197 = sbr.rel (%p195) target = $region20
        $region19: #{encoder_forward.4} parent=15 // pred_region
          %s198 = sand.u32 %s46, 1
          %s199 = sand.u32 %s46, 1
          %s200 = smul.addr %s199, 384
          %s201 = scalar_lea.vmem [#allocation3], %s200
          %s202 = smul.u32 %s22, 2
          %s203 = ssub.s32 1, %s202
          %s204 = smul.u32 %s21, %s203
          %s205 = sadd.s32 %s22, %s204
          %s206 = smul.u32 16, %s205
          %s207 = smul.u32 3, %s21
          %s208 = smul.addr %s206, 6
          %s209 = sadd.s32 %s207, %s208
          %s210 = smul.addr %s209, 8
          %s211 = scalar_lea.vmem %s0, %s210
          // Predicated region
          $region21: #{encoder_forward.4} parent=19 // pred_check
            _
          $region22: #{encoder_forward.4} parent=19 // pred_check_branch
            %213 = sbr.rel (0) target = $region24
          $region23: #{encoder_forward.4} parent=19 // pred_region
            // Predicated region
            $region25: #{encoder_forward.4} parent=23 // pred_check
              _
            $region26: #{encoder_forward.4} parent=23 // pred_check_branch
              %215 = sbr.rel (0) target = $region28
            $region27: #{encoder_forward.4} parent=23 // pred_region
              loop: start=0, step=1, limit=1
              $region29: #{encoder_forward.4} parent=27 // loop_pre_header
                _
              $region30: #{encoder_forward.4} parent=27 // loop_header
                %s217 = sphi 0, %s221
                %p218 = scmp.ge.s32.totalorder %s217, 1
                %s222 = sphi %s211, %s211
                %s223 = sphi %s201, %s201
              $region31: #{encoder_forward.4} parent=27 // loop_header_branch
                %220 = sbr.rel (%p218) target = $region35
              $region32: #{encoder_forward.4} parent=27 // loop_body
                %v224 = vld [vmem:[%s222] sm:$0xff]
                %225 = vst [vmem:[%s223] sm:$0xff] %v224
                %v226 = vld [vmem:[%s222 + $0x8] sm:$0xff]
                %227 = vst [vmem:[%s223 + $0x8] sm:$0xff] %v226
                %v228 = vld [vmem:[%s222 + $0x10] sm:$0xff]
                %229 = vst [vmem:[%s223 + $0x10] sm:$0xff] %v228
                %v230 = vld [vmem:[%s222 + $0x30] sm:$0xff]
                %231 = vst [vmem:[%s223 + $0x18] sm:$0xff] %v230
                %v232 = vld [vmem:[%s222 + $0x38] sm:$0xff]
                %233 = vst [vmem:[%s223 + $0x20] sm:$0xff] %v232
                %v234 = vld [vmem:[%s222 + $0x40] sm:$0xff]
                %235 = vst [vmem:[%s223 + $0x28] sm:$0xff] %v234
                %v236 = vld [vmem:[%s222 + $0x60] sm:$0xff]
                %237 = vst [vmem:[%s223 + $0x30] sm:$0xff] %v236
                %v238 = vld [vmem:[%s222 + $0x68] sm:$0xff]
                %239 = vst [vmem:[%s223 + $0x38] sm:$0xff] %v238
                %v240 = vld [vmem:[%s222 + $0x70] sm:$0xff]
                %241 = vst [vmem:[%s223 + $0x40] sm:$0xff] %v240
                %v242 = vld [vmem:[%s222 + $0x90] sm:$0xff]
                %243 = vst [vmem:[%s223 + $0x48] sm:$0xff] %v242
                %v244 = vld [vmem:[%s222 + $0x98] sm:$0xff]
                %245 = vst [vmem:[%s223 + $0x50] sm:$0xff] %v244
                %v246 = vld [vmem:[%s222 + $0xa0] sm:$0xff]
                %247 = vst [vmem:[%s223 + $0x58] sm:$0xff] %v246
                %v248 = vld [vmem:[%s222 + $0xc0] sm:$0xff]
                %249 = vst [vmem:[%s223 + $0x60] sm:$0xff] %v248
                %v250 = vld [vmem:[%s222 + $0xc8] sm:$0xff]
                %251 = vst [vmem:[%s223 + $0x68] sm:$0xff] %v250
                %v252 = vld [vmem:[%s222 + $0xd0] sm:$0xff]
                %253 = vst [vmem:[%s223 + $0x70] sm:$0xff] %v252
                %v254 = vld [vmem:[%s222 + $0xf0] sm:$0xff]
                %255 = vst [vmem:[%s223 + $0x78] sm:$0xff] %v254
                %v256 = vld [vmem:[%s222 + $0xf8] sm:$0xff]
                %257 = vst [vmem:[%s223 + $0x80] sm:$0xff] %v256
                %v258 = vld [vmem:[%s222 + $0x100] sm:$0xff]
                %259 = vst [vmem:[%s223 + $0x88] sm:$0xff] %v258
                %v260 = vld [vmem:[%s222 + $0x120] sm:$0xff]
                %261 = vst [vmem:[%s223 + $0x90] sm:$0xff] %v260
                %v262 = vld [vmem:[%s222 + $0x128] sm:$0xff]
                %263 = vst [vmem:[%s223 + $0x98] sm:$0xff] %v262
                %v264 = vld [vmem:[%s222 + $0x130] sm:$0xff]
                %265 = vst [vmem:[%s223 + $0xa0] sm:$0xff] %v264
                %v266 = vld [vmem:[%s222 + $0x150] sm:$0xff]
                %267 = vst [vmem:[%s223 + $0xa8] sm:$0xff] %v266
                %v268 = vld [vmem:[%s222 + $0x158] sm:$0xff]
                %269 = vst [vmem:[%s223 + $0xb0] sm:$0xff] %v268
                %v270 = vld [vmem:[%s222 + $0x160] sm:$0xff]
                %271 = vst [vmem:[%s223 + $0xb8] sm:$0xff] %v270
                %v272 = vld [vmem:[%s222 + $0x180] sm:$0xff]
                %273 = vst [vmem:[%s223 + $0xc0] sm:$0xff] %v272
                %v274 = vld [vmem:[%s222 + $0x188] sm:$0xff]
                %275 = vst [vmem:[%s223 + $0xc8] sm:$0xff] %v274
                %v276 = vld [vmem:[%s222 + $0x190] sm:$0xff]
                %277 = vst [vmem:[%s223 + $0xd0] sm:$0xff] %v276
                %v278 = vld [vmem:[%s222 + $0x1b0] sm:$0xff]
                %279 = vst [vmem:[%s223 + $0xd8] sm:$0xff] %v278
                %v280 = vld [vmem:[%s222 + $0x1b8] sm:$0xff]
                %281 = vst [vmem:[%s223 + $0xe0] sm:$0xff] %v280
                %v282 = vld [vmem:[%s222 + $0x1c0] sm:$0xff]
                %283 = vst [vmem:[%s223 + $0xe8] sm:$0xff] %v282
                %v284 = vld [vmem:[%s222 + $0x1e0] sm:$0xff]
                %285 = vst [vmem:[%s223 + $0xf0] sm:$0xff] %v284
                %v286 = vld [vmem:[%s222 + $0x1e8] sm:$0xff]
                %287 = vst [vmem:[%s223 + $0xf8] sm:$0xff] %v286
                %v288 = vld [vmem:[%s222 + $0x1f0] sm:$0xff]
                %289 = vst [vmem:[%s223 + $0x100] sm:$0xff] %v288
                %v290 = vld [vmem:[%s222 + $0x210] sm:$0xff]
                %291 = vst [vmem:[%s223 + $0x108] sm:$0xff] %v290
                %v292 = vld [vmem:[%s222 + $0x218] sm:$0xff]
                %293 = vst [vmem:[%s223 + $0x110] sm:$0xff] %v292
                %v294 = vld [vmem:[%s222 + $0x220] sm:$0xff]
                %295 = vst [vmem:[%s223 + $0x118] sm:$0xff] %v294
                %v296 = vld [vmem:[%s222 + $0x240] sm:$0xff]
                %297 = vst [vmem:[%s223 + $0x120] sm:$0xff] %v296
                %v298 = vld [vmem:[%s222 + $0x248] sm:$0xff]
                %299 = vst [vmem:[%s223 + $0x128] sm:$0xff] %v298
                %v300 = vld [vmem:[%s222 + $0x250] sm:$0xff]
                %301 = vst [vmem:[%s223 + $0x130] sm:$0xff] %v300
                %v302 = vld [vmem:[%s222 + $0x270] sm:$0xff]
                %303 = vst [vmem:[%s223 + $0x138] sm:$0xff] %v302
                %v304 = vld [vmem:[%s222 + $0x278] sm:$0xff]
                %305 = vst [vmem:[%s223 + $0x140] sm:$0xff] %v304
                %v306 = vld [vmem:[%s222 + $0x280] sm:$0xff]
                %307 = vst [vmem:[%s223 + $0x148] sm:$0xff] %v306
                %v308 = vld [vmem:[%s222 + $0x2a0] sm:$0xff]
                %309 = vst [vmem:[%s223 + $0x150] sm:$0xff] %v308
                %v310 = vld [vmem:[%s222 + $0x2a8] sm:$0xff]
                %311 = vst [vmem:[%s223 + $0x158] sm:$0xff] %v310
                %v312 = vld [vmem:[%s222 + $0x2b0] sm:$0xff]
                %313 = vst [vmem:[%s223 + $0x160] sm:$0xff] %v312
                %v314 = vld [vmem:[%s222 + $0x2d0] sm:$0xff]
                %315 = vst [vmem:[%s223 + $0x168] sm:$0xff] %v314
                %v316 = vld [vmem:[%s222 + $0x2d8] sm:$0xff]
                %317 = vst [vmem:[%s223 + $0x170] sm:$0xff] %v316
                %v318 = vld [vmem:[%s222 + $0x2e0] sm:$0xff]
                %319 = vst [vmem:[%s223 + $0x178] sm:$0xff] %v318
              $region33: #{encoder_forward.4} parent=27 // loop_footer
                %s221 = sadd.s32 1, %s217
              $region34: #{encoder_forward.4} parent=27 // loop_footer_branch
                %216 = sbr.rel target = $region30
              $region35: #{encoder_forward.4} parent=27 // loop_exit
                _
            $region28: #{encoder_forward.4} parent=23 // pred_fallthru
              _
            // Predicated region
            $region36: #{encoder_forward.4} parent=23 // pred_check
              _
            $region37: #{encoder_forward.4} parent=23 // pred_check_branch
              %321 = sbr.rel target = $region39
            $region38: #{encoder_forward.4} parent=23 // pred_region
              _
            $region39: #{encoder_forward.4} parent=23 // pred_fallthru
              _
          $region24: #{encoder_forward.4} parent=19 // pred_fallthru
            _
          %322 = vnop
        $region20: #{encoder_forward.4} parent=15 // pred_fallthru
          _
        // Predicated region
        $region40: #{encoder_forward.4} parent=15 // pred_check
          %p323 = pneg %p82
        $region41: #{encoder_forward.4} parent=15 // pred_check_branch
          %325 = sbr.rel (%p323) target = $region43
        $region42: #{encoder_forward.4} parent=15 // pred_region
          %p326 = scmp.lt.s32.totalorder %s21, 1
          %s327 = scalar_select %p326, %s21, 1
          %s328 = smul.addr %s327, 48
          %s329 = smul.addr %s328, 8
          %s330 = scalar_lea.vmem %s1, %s329
        $region43: #{encoder_forward.4} parent=15 // pred_fallthru
          _
        // Predicated region
        $region44: #{encoder_forward.4} parent=15 // pred_check
          %p331 = pneg %p108
        $region45: #{encoder_forward.4} parent=15 // pred_check_branch
          %333 = sbr.rel (%p331) target = $region47
        $region46: #{encoder_forward.4} parent=15 // pred_region
          %p334 = scmp.lt.s32.totalorder %s21, 1
          %s335 = scalar_select %p334, %s21, 1
          %s336 = scalar_lea.vmem %s2, %s335
        $region47: #{encoder_forward.4} parent=15 // pred_fallthru
          _
      $region16: #{encoder_forward.4} parent=5 // pred_fallthru
        _
      %p337 = scmp.le.s32.totalorder 1, %s14
      %p338 = scmp.lt.s32.totalorder %s14, 5
      %p339 = pnand %p337, %p338
      %p340 = pneg %p339
      // Predicated region
      $region48: #{encoder_forward.4} parent=5 // pred_check
        _
      $region49: #{encoder_forward.4} parent=5 // pred_check_branch
        %342 = sbr.rel (%p339) target = $region51
      $region50: #{encoder_forward.4} parent=5 // pred_region
        %s343 = ssub.s32 %s14, 1
        %s344 = sand.u32 %s49, 1
        %s345 = sand.u32 %s49, 1
        %s346 = smul.addr %s345, 384
        %s347 = scalar_lea.vmem [#allocation3], %s346
        // Predicated region
        $region52: #{encoder_forward.4} parent=50 // pred_check
          %p348 = pneg %p62
        $region53: #{encoder_forward.4} parent=50 // pred_check_branch
          %350 = sbr.rel (%p348) target = $region55
        $region54: #{encoder_forward.4} parent=50 // pred_region
          _
        $region55: #{encoder_forward.4} parent=50 // pred_fallthru
          _
        %s351 = sand.u32 %s49, 1
        %s352 = sand.u32 %s49, 1
        %s353 = smul.addr %s352, 384
        %s354 = scalar_lea.vmem [#allocation3], %s353
        %p355 = pneg %p62
        %p356 = pneg %p59
        %p357 = scmp.lt.s32.totalorder %s23, 1
        %s358 = scalar_select %p357, %s23, 1
        %s359 = smul.addr %s358, 48
        %s360 = smul.addr %s359, 8
        %s361 = scalar_lea.vmem %s1, %s360
        %p362 = pneg %p88
        %p363 = pneg %p85
        %p364 = scmp.lt.s32.totalorder %s23, 1
        %s365 = scalar_select %p364, %s23, 1
        %s366 = scalar_lea.vmem %s2, %s365
        %p367 = pneg %p114
        %p368 = pneg %p111
        %p369 = pneg %p150
        %p370 = pneg %p147
        %s371 = sand.u32 %s137, 1
        %s372 = scalar_lea.sflag [#allocation5], %s371
        %s373 = sand.u32 %s137, 1
        %s374 = smul.addr %s373, 128
        %s375 = scalar_lea.vmem [#allocation4], %s374
        %p376 = pneg %p176
        %p377 = pneg %p173
        %p378 = scmp.lt.s32.totalorder %s23, 1
        %s379 = scalar_select %p378, %s23, 1
        %s380 = smul.addr %s379, 8
        %s381 = scalar_lea.vmem %s4, %s380
        %s382 = smul.u32 %s24, 2
        %s383 = ssub.s32 1, %s382
        %s384 = smul.u32 %s23, %s383
        %s385 = sadd.s32 %s24, %s384
        %s386 = smul.u32 16, %s385
        %s387 = smul.u32 3, %s23
        %p388 = scmp.lt.s32.totalorder %s23, 1
        %s389 = scalar_select %p388, %s23, 1
        %s390 = smul.addr %s389, 48
        %s391 = smul.addr %s390, 8
        %s392 = scalar_lea.vmem %s1, %s391
        %p393 = scmp.lt.s32.totalorder %s23, 1
        %s394 = scalar_select %p393, %s23, 1
        %s395 = scalar_lea.vmem %s2, %s394
        %s396 = smul.u32 %s24, 2
        %s397 = ssub.s32 1, %s396
        %s398 = smul.u32 %s23, %s397
        %s399 = sadd.s32 %s24, %s398
        %s400 = smul.u32 16, %s399
        %p401 = scmp.lt.s32.totalorder %s23, 1
        %s402 = scalar_select %p401, %s23, 1
        %s403 = smul.addr %s402, 8
        %s404 = scalar_lea.vmem %s4, %s403
        %p405 = scmp.eq.s32.totalorder %s24, 0
        // Predicated region
        $region56: #{encoder_forward.4} parent=50 // pred_check
          %p406 = pneg %p405
        $region57: #{encoder_forward.4} parent=50 // pred_check_branch
          %408 = sbr.rel (%p406) target = $region59
        $region58: #{encoder_forward.4} parent=50 // pred_region
          %409 = vst [vmem:[#allocation2] sm:$0xff] 0.0
        $region59: #{encoder_forward.4} parent=50 // pred_fallthru
          _
        %v410 = vld [vmem:[%s395] sm:$0x1]
        %v412 = vlaneseq
        %v413 = vshrl.u32 %v412, 7
        %v414 = vsub.s32 0, %v413
        %v415 = vrot.slane %v410, %v414
        %v417 = vld [vmem:[#allocation2] sm:$0xff]
        %s418 = smul.u32 %s23, 15
        %s419 = smul.u32 %s418, 3
        %s420 = smul.addr %s419, 8
        %s421 = scalar_lea.vmem %s347, %s420 [#allocation3]
        %v422 = vld [vmem:[%s421] sm:$0xff]
        %v423 = vld [vmem:[%s421 + $0x8] sm:$0xff]
        %v424 = vld [vmem:[%s421 + $0x10] sm:$0xff]
        %v425 = vld [vmem:[%s392] sm:$0xff]
        %v426 = vld [vmem:[%s392 + $0x8] sm:$0xff]
        %v427 = vld [vmem:[%s392 + $0x10] sm:$0xff]
        %v428 = vld [vmem:[%s392 + $0x18] sm:$0xff]
        %v429 = vld [vmem:[%s392 + $0x20] sm:$0xff]
        %v430 = vld [vmem:[%s392 + $0x28] sm:$0xff]
        %v431 = vld [vmem:[%s392 + $0x30] sm:$0xff]
        %v432 = vld [vmem:[%s392 + $0x38] sm:$0xff]
        %v433 = vld [vmem:[%s392 + $0x40] sm:$0xff]
        %v434 = vld [vmem:[%s392 + $0x48] sm:$0xff]
        %v435 = vld [vmem:[%s392 + $0x50] sm:$0xff]
        %v436 = vld [vmem:[%s392 + $0x58] sm:$0xff]
        %v437 = vld [vmem:[%s392 + $0x60] sm:$0xff]
        %v438 = vld [vmem:[%s392 + $0x68] sm:$0xff]
        %v439 = vld [vmem:[%s392 + $0x70] sm:$0xff]
        %v440 = vld [vmem:[%s392 + $0x78] sm:$0xff]
        %v441 = vld [vmem:[%s392 + $0x80] sm:$0xff]
        %v442 = vld [vmem:[%s392 + $0x88] sm:$0xff]
        %v443 = vld [vmem:[%s392 + $0x90] sm:$0xff]
        %v444 = vld [vmem:[%s392 + $0x98] sm:$0xff]
        %v445 = vld [vmem:[%s392 + $0xa0] sm:$0xff]
        %v446 = vld [vmem:[%s392 + $0xa8] sm:$0xff]
        %v447 = vld [vmem:[%s392 + $0xb0] sm:$0xff]
        %v448 = vld [vmem:[%s392 + $0xb8] sm:$0xff]
        %v449 = vld [vmem:[%s392 + $0xc0] sm:$0xff]
        %v450 = vld [vmem:[%s392 + $0xc8] sm:$0xff]
        %v451 = vld [vmem:[%s392 + $0xd0] sm:$0xff]
        %v452 = vld [vmem:[%s392 + $0xd8] sm:$0xff]
        %v453 = vld [vmem:[%s392 + $0xe0] sm:$0xff]
        %v454 = vld [vmem:[%s392 + $0xe8] sm:$0xff]
        %v455 = vld [vmem:[%s392 + $0xf0] sm:$0xff]
        %v456 = vld [vmem:[%s392 + $0xf8] sm:$0xff]
        %v457 = vld [vmem:[%s392 + $0x100] sm:$0xff]
        %v458 = vld [vmem:[%s392 + $0x108] sm:$0xff]
        %v459 = vld [vmem:[%s392 + $0x110] sm:$0xff]
        %v460 = vld [vmem:[%s392 + $0x118] sm:$0xff]
        %v461 = vld [vmem:[%s392 + $0x120] sm:$0xff]
        %v462 = vld [vmem:[%s392 + $0x128] sm:$0xff]
        %v463 = vld [vmem:[%s392 + $0x130] sm:$0xff]
        %v464 = vld [vmem:[%s392 + $0x138] sm:$0xff]
        %v465 = vld [vmem:[%s392 + $0x140] sm:$0xff]
        %v466 = vld [vmem:[%s392 + $0x148] sm:$0xff]
        %v467 = vld [vmem:[%s392 + $0x150] sm:$0xff]
        %v468 = vld [vmem:[%s392 + $0x158] sm:$0xff]
        %v469 = vld [vmem:[%s392 + $0x160] sm:$0xff]
        %v470 = vld [vmem:[%s392 + $0x168] sm:$0xff]
        %v471 = vld [vmem:[%s392 + $0x170] sm:$0xff]
        %v472 = vld [vmem:[%s392 + $0x178] sm:$0xff]
        %473 = vmatprep.subr.mxu0 %v426
        %474 = vmatpush1.msra.mxu0 %v425
        %475 = vmatprep.subr.mxu0 %v429
        %476 = vmatpush1.msra.mxu0 %v428
        %477 = vmatprep.subr.mxu0 %v432
        %478 = vmatpush1.msra.mxu0 %v431
        %479 = vmatprep.subr.mxu0 %v435
        %480 = vmatpush1.msra.mxu0 %v434
        %481 = vmatprep.subr.mxu0 %v438
        %482 = vmatpush1.msra.mxu0 %v437
        %483 = vmatprep.subr.mxu0 %v441
        %484 = vmatpush1.msra.mxu0 %v440
        %485 = vmatprep.subr.mxu0 %v444
        %486 = vmatpush1.msra.mxu0 %v443
        %487 = vmatprep.subr.mxu0 %v447
        %488 = vmatpush1.msra.mxu0 %v446
        %489 = vmatprep.subr.mxu0 %v450
        %490 = vmatpush1.msra.mxu0 %v449
        %491 = vmatprep.subr.mxu0 %v453
        %492 = vmatpush1.msra.mxu0 %v452
        %493 = vmatprep.subr.mxu0 %v456
        %494 = vmatpush1.msra.mxu0 %v455
        %495 = vmatprep.subr.mxu0 %v459
        %496 = vmatpush1.msra.mxu0 %v458
        %497 = vmatprep.subr.mxu0 %v462
        %498 = vmatpush1.msra.mxu0 %v461
        %499 = vmatprep.subr.mxu0 %v465
        %500 = vmatpush1.msra.mxu0 %v464
        %501 = vmatprep.subr.mxu0 %v468
        %502 = vmatpush1.msra.mxu0 %v467
        %503 = vmatprep.subr.mxu0 %v471
        %504 = vmatpush1.msra.mxu0 %v470
        %505 = vmatprep.subr.mxu0 0.0
        %506 = vmatpush1.msra.mxu0 0.0
        %507 = vmatprep.subr.mxu0 0.0
        %508 = vmatpush1.msra.mxu0 0.0
        %509 = vmatprep.subr.mxu0 0.0
        %510 = vmatpush1.msra.mxu0 0.0
        %511 = vmatprep.subr.mxu0 0.0
        %512 = vmatpush1.msra.mxu0 0.0
        %513 = vmatprep.subr.mxu0 0.0
        %514 = vmatpush1.msra.mxu0 0.0
        %515 = vmatprep.subr.mxu0 0.0
        %516 = vmatpush1.msra.mxu0 0.0
        %517 = vmatprep.subr.mxu0 0.0
        %518 = vmatpush1.msra.mxu0 0.0
        %519 = vmatprep.subr.mxu0 0.0
        %520 = vmatpush1.msra.mxu0 0.0
        %521 = vmatprep.subr.mxu0 0.0
        %522 = vmatpush1.msra.mxu0 0.0
        %523 = vmatprep.subr.mxu0 0.0
        %524 = vmatpush1.msra.mxu0 0.0
        %525 = vmatprep.subr.mxu0 0.0
        %526 = vmatpush1.msra.mxu0 0.0
        %527 = vmatprep.subr.mxu0 0.0
        %528 = vmatpush1.msra.mxu0 0.0
        %529 = vmatprep.subr.mxu0 0.0
        %530 = vmatpush1.msra.mxu0 0.0
        %531 = vmatprep.subr.mxu0 0.0
        %532 = vmatpush1.msra.mxu0 0.0
        %533 = vmatprep.subr.mxu0 0.0
        %534 = vmatpush1.msra.mxu0 0.0
        %535 = vmatprep.subr.mxu0 0.0
        %536 = vmatpush1.msra.mxu0 0.0
        %537 = vmatprep.mubr.f32.mxu0 0.0
        %538 = vmatmul.mubr.f32.gmra.mrb[0].mxu0 %v417
        %v539 = vpop.f32.mrb[0].mxu0
        %v540 = vadd.f32 0.0, %v539
        %v541 = vpop.f32.mrb[0].mxu0
        %v542 = vadd.f32 0.0, %v541
        %543 = vdwg.mxu0
        %544 = vmatprep.subr.mxu0 0.0
        %545 = vmatpush1.msra.mxu0 %v427
        %546 = vmatprep.subr.mxu0 0.0
        %547 = vmatpush1.msra.mxu0 %v430
        %548 = vmatprep.subr.mxu0 0.0
        %549 = vmatpush1.msra.mxu0 %v433
        %550 = vmatprep.subr.mxu0 0.0
        %551 = vmatpush1.msra.mxu0 %v436
        %552 = vmatprep.subr.mxu0 0.0
        %553 = vmatpush1.msra.mxu0 %v439
        %554 = vmatprep.subr.mxu0 0.0
        %555 = vmatpush1.msra.mxu0 %v442
        %556 = vmatprep.subr.mxu0 0.0
        %557 = vmatpush1.msra.mxu0 %v445
        %558 = vmatprep.subr.mxu0 0.0
        %559 = vmatpush1.msra.mxu0 %v448
        %560 = vmatprep.subr.mxu0 0.0
        %561 = vmatpush1.msra.mxu0 %v451
        %562 = vmatprep.subr.mxu0 0.0
        %563 = vmatpush1.msra.mxu0 %v454
        %564 = vmatprep.subr.mxu0 0.0
        %565 = vmatpush1.msra.mxu0 %v457
        %566 = vmatprep.subr.mxu0 0.0
        %567 = vmatpush1.msra.mxu0 %v460
        %568 = vmatprep.subr.mxu0 0.0
        %569 = vmatpush1.msra.mxu0 %v463
        %570 = vmatprep.subr.mxu0 0.0
        %571 = vmatpush1.msra.mxu0 %v466
        %572 = vmatprep.subr.mxu0 0.0
        %573 = vmatpush1.msra.mxu0 %v469
        %574 = vmatprep.subr.mxu0 0.0
        %575 = vmatpush1.msra.mxu0 %v472
        %576 = vmatprep.subr.mxu0 0.0
        %577 = vmatpush1.msra.mxu0 0.0
        %578 = vmatprep.subr.mxu0 0.0
        %579 = vmatpush1.msra.mxu0 0.0
        %580 = vmatprep.subr.mxu0 0.0
        %581 = vmatpush1.msra.mxu0 0.0
        %582 = vmatprep.subr.mxu0 0.0
        %583 = vmatpush1.msra.mxu0 0.0
        %584 = vmatprep.subr.mxu0 0.0
        %585 = vmatpush1.msra.mxu0 0.0
        %586 = vmatprep.subr.mxu0 0.0
        %587 = vmatpush1.msra.mxu0 0.0
        %588 = vmatprep.subr.mxu0 0.0
        %589 = vmatpush1.msra.mxu0 0.0
        %590 = vmatprep.subr.mxu0 0.0
        %591 = vmatpush1.msra.mxu0 0.0
        %592 = vmatprep.subr.mxu0 0.0
        %593 = vmatpush1.msra.mxu0 0.0
        %594 = vmatprep.subr.mxu0 0.0
        %595 = vmatpush1.msra.mxu0 0.0
        %596 = vmatprep.subr.mxu0 0.0
        %597 = vmatpush1.msra.mxu0 0.0
        %598 = vmatprep.subr.mxu0 0.0
        %599 = vmatpush1.msra.mxu0 0.0
        %600 = vmatprep.subr.mxu0 0.0
        %601 = vmatpush1.msra.mxu0 0.0
        %602 = vmatprep.subr.mxu0 0.0
        %603 = vmatpush1.msra.mxu0 0.0
        %604 = vmatprep.subr.mxu0 0.0
        %605 = vmatpush1.msra.mxu0 0.0
        %606 = vmatprep.subr.mxu0 0.0
        %607 = vmatpush1.msra.mxu0 0.0
        %608 = vmatprep.mubr.f32.mxu0 0.0
        %609 = vmatmul.mubr.f32.gmra.mrb[0].mxu0 %v417
        %v610 = vpop.f32.mrb[0].mxu0
        %v611 = vadd.f32 0.0, %v610
        %v612 = vpop.f32.mrb[0].mxu0
        %613 = vdwg.mxu0
        %v614 = vadd.f32 %v422, %v540
        %v615 = vxor.u32 %v614, 2147483648
        %v616 = vmul.f32 %v615, 1.442695
        %v617 = vpow.pop %v616
        %v618 = vadd.f32 %v617, 1.0
        %v619 = vrcp.pop %v618
        %v620 = vmul.f32 1.0, %v619
        %v621 = vadd.f32 %v423, %v542
        %v622 = vxor.u32 %v621, 2147483648
        %v623 = vmul.f32 %v622, 1.442695
        %v624 = vpow.pop %v623
        %v625 = vadd.f32 %v624, 1.0
        %v626 = vrcp.pop %v625
        %v627 = vmul.f32 1.0, %v626
        %v628 = vadd.f32 %v611, %v415
        %v629 = vmul.f32 %v620, %v628
        %v630 = vadd.f32 %v424, %v629
        %v631 = vtanh.pop %v630
        %v632 = vsub.f32 1.0, %v627
        %v633 = vmul.f32 %v632, %v631
        %v634 = vmul.f32 %v627, %v417
        %v635 = vadd.f32 %v633, %v634
        %s636 = smul.u32 %s418, 8
        %s637 = scalar_lea.vmem %s375, %s636 [#allocation4]
        %638 = vst [vmem:[%s637] sm:$0xff] %v635
        %s639 = smul.u32 %s23, 13
        %s640 = sadd.s32 %s639, 1
        %s641 = smul.u32 %s640, 3
        %s642 = smul.addr %s641, 8
        %s643 = scalar_lea.vmem %s347, %s642 [#allocation3]
        %v644 = vld [vmem:[%s643] sm:$0xff]
        %v645 = vld [vmem:[%s643 + $0x8] sm:$0xff]
        %v646 = vld [vmem:[%s643 + $0x10] sm:$0xff]
        %v647 = vld [vmem:[%s392] sm:$0xff]
        %v648 = vld [vmem:[%s392 + $0x8] sm:$0xff]
        %v649 = vld [vmem:[%s392 + $0x10] sm:$0xff]
        %v650 = vld [vmem:[%s392 + $0x18] sm:$0xff]
        %v651 = vld [vmem:[%s392 + $0x20] sm:$0xff]
        %v652 = vld [vmem:[%s392 + $0x28] sm:$0xff]
        %v653 = vld [vmem:[%s392 + $0x30] sm:$0xff]
        %v654 = vld [vmem:[%s392 + $0x38] sm:$0xff]
        %v655 = vld [vmem:[%s392 + $0x40] sm:$0xff]
        %v656 = vld [vmem:[%s392 + $0x48] sm:$0xff]
        %v657 = vld [vmem:[%s392 + $0x50] sm:$0xff]
        %v658 = vld [vmem:[%s392 + $0x58] sm:$0xff]
        %v659 = vld [vmem:[%s392 + $0x60] sm:$0xff]
        %v660 = vld [vmem:[%s392 + $0x68] sm:$0xff]
        %v661 = vld [vmem:[%s392 + $0x70] sm:$0xff]
        %v662 = vld [vmem:[%s392 + $0x78] sm:$0xff]
        %v663 = vld [vmem:[%s392 + $0x80] sm:$0xff]
        %v664 = vld [vmem:[%s392 + $0x88] sm:$0xff]
        %v665 = vld [vmem:[%s392 + $0x90] sm:$0xff]
        %v666 = vld [vmem:[%s392 + $0x98] sm:$0xff]
        %v667 = vld [vmem:[%s392 + $0xa0] sm:$0xff]
        %v668 = vld [vmem:[%s392 + $0xa8] sm:$0xff]
        %v669 = vld [vmem:[%s392 + $0xb0] sm:$0xff]
        %v670 = vld [vmem:[%s392 + $0xb8] sm:$0xff]
        %v671 = vld [vmem:[%s392 + $0xc0] sm:$0xff]
        %v672 = vld [vmem:[%s392 + $0xc8] sm:$0xff]
        %v673 = vld [vmem:[%s392 + $0xd0] sm:$0xff]
        %v674 = vld [vmem:[%s392 + $0xd8] sm:$0xff]
        %v675 = vld [vmem:[%s392 + $0xe0] sm:$0xff]
        %v676 = vld [vmem:[%s392 + $0xe8] sm:$0xff]
        %v677 = vld [vmem:[%s392 + $0xf0] sm:$0xff]
        %v678 = vld [vmem:[%s392 + $0xf8] sm:$0xff]
        %v679 = vld [vmem:[%s392 + $0x100] sm:$0xff]
        %v680 = vld [vmem:[%s392 + $0x108] sm:$0xff]
        %v681 = vld [vmem:[%s392 + $0x110] sm:$0xff]
        %v682 = vld [vmem:[%s392 + $0x118] sm:$0xff]
        %v683 = vld [vmem:[%s392 + $0x120] sm:$0xff]
        %v684 = vld [vmem:[%s392 + $0x128] sm:$0xff]
        %v685 = vld [vmem:[%s392 + $0x130] sm:$0xff]
        %v686 = vld [vmem:[%s392 + $0x138] sm:$0xff]
        %v687 = vld [vmem:[%s392 + $0x140] sm:$0xff]
        %v688 = vld [vmem:[%s392 + $0x148] sm:$0xff]
        %v689 = vld [vmem:[%s392 + $0x150] sm:$0xff]
        %v690 = vld [vmem:[%s392 + $0x158] sm:$0xff]
        %v691 = vld [vmem:[%s392 + $0x160] sm:$0xff]
        %v692 = vld [vmem:[%s392 + $0x168] sm:$0xff]
        %v693 = vld [vmem:[%s392 + $0x170] sm:$0xff]
        %v694 = vld [vmem:[%s392 + $0x178] sm:$0xff]
        %695 = vmatprep.subr.mxu0 %v648
        %696 = vmatpush1.msra.mxu0 %v647
        %697 = vmatprep.subr.mxu0 %v651
        %698 = vmatpush1.msra.mxu0 %v650
        %699 = vmatprep.subr.mxu0 %v654
        %700 = vmatpush1.msra.mxu0 %v653
        %701 = vmatprep.subr.mxu0 %v657
        %702 = vmatpush1.msra.mxu0 %v656
        %703 = vmatprep.subr.mxu0 %v660
        %704 = vmatpush1.msra.mxu0 %v659
        %705 = vmatprep.subr.mxu0 %v663
        %706 = vmatpush1.msra.mxu0 %v662
        %707 = vmatprep.subr.mxu0 %v666
        %708 = vmatpush1.msra.mxu0 %v665
        %709 = vmatprep.subr.mxu0 %v669
        %710 = vmatpush1.msra.mxu0 %v668
        %711 = vmatprep.subr.mxu0 %v672
        %712 = vmatpush1.msra.mxu0 %v671
        %713 = vmatprep.subr.mxu0 %v675
        %714 = vmatpush1.msra.mxu0 %v674
        %715 = vmatprep.subr.mxu0 %v678
        %716 = vmatpush1.msra.mxu0 %v677
        %717 = vmatprep.subr.mxu0 %v681
        %718 = vmatpush1.msra.mxu0 %v680
        %719 = vmatprep.subr.mxu0 %v684
        %720 = vmatpush1.msra.mxu0 %v683
        %721 = vmatprep.subr.mxu0 %v687
        %722 = vmatpush1.msra.mxu0 %v686
        %723 = vmatprep.subr.mxu0 %v690
        %724 = vmatpush1.msra.mxu0 %v689
        %725 = vmatprep.subr.mxu0 %v693
        %726 = vmatpush1.msra.mxu0 %v692
        %727 = vmatprep.subr.mxu0 0.0
        %728 = vmatpush1.msra.mxu0 0.0
        %729 = vmatprep.subr.mxu0 0.0
        %730 = vmatpush1.msra.mxu0 0.0
        %731 = vmatprep.subr.mxu0 0.0
        %732 = vmatpush1.msra.mxu0 0.0
        %733 = vmatprep.subr.mxu0 0.0
        %734 = vmatpush1.msra.mxu0 0.0
        %735 = vmatprep.subr.mxu0 0.0
        %736 = vmatpush1.msra.mxu0 0.0
        %737 = vmatprep.subr.mxu0 0.0
        %738 = vmatpush1.msra.mxu0 0.0
        %739 = vmatprep.subr.mxu0 0.0
        %740 = vmatpush1.msra.mxu0 0.0
        %741 = vmatprep.subr.mxu0 0.0
        %742 = vmatpush1.msra.mxu0 0.0
        %743 = vmatprep.subr.mxu0 0.0
        %744 = vmatpush1.msra.mxu0 0.0
        %745 = vmatprep.subr.mxu0 0.0
        %746 = vmatpush1.msra.mxu0 0.0
        %747 = vmatprep.subr.mxu0 0.0
        %748 = vmatpush1.msra.mxu0 0.0
        %749 = vmatprep.subr.mxu0 0.0
        %750 = vmatpush1.msra.mxu0 0.0
        %751 = vmatprep.subr.mxu0 0.0
        %752 = vmatpush1.msra.mxu0 0.0
        %753 = vmatprep.subr.mxu0 0.0
        %754 = vmatpush1.msra.mxu0 0.0
        %755 = vmatprep.subr.mxu0 0.0
        %756 = vmatpush1.msra.mxu0 0.0
        %757 = vmatprep.subr.mxu0 0.0
        %758 = vmatpush1.msra.mxu0 0.0
        %759 = vmatprep.mubr.f32.mxu0 0.0
        %760 = vmatmul.mubr.f32.gmra.mrb[0].mxu0 %v635
        %v761 = vpop.f32.mrb[0].mxu0
        %v762 = vadd.f32 0.0, %v761
        %v763 = vpop.f32.mrb[0].mxu0
        %v764 = vadd.f32 0.0, %v763
        %765 = vdwg.mxu0
        %766 = vmatprep.subr.mxu0 0.0
        %767 = vmatpush1.msra.mxu0 %v649
        %768 = vmatprep.subr.mxu0 0.0
        %769 = vmatpush1.msra.mxu0 %v652
        %770 = vmatprep.subr.mxu0 0.0
        %771 = vmatpush1.msra.mxu0 %v655
        %772 = vmatprep.subr.mxu0 0.0
        %773 = vmatpush1.msra.mxu0 %v658
        %774 = vmatprep.subr.mxu0 0.0
        %775 = vmatpush1.msra.mxu0 %v661
        %776 = vmatprep.subr.mxu0 0.0
        %777 = vmatpush1.msra.mxu0 %v664
        %778 = vmatprep.subr.mxu0 0.0
        %779 = vmatpush1.msra.mxu0 %v667
        %780 = vmatprep.subr.mxu0 0.0
        %781 = vmatpush1.msra.mxu0 %v670
        %782 = vmatprep.subr.mxu0 0.0
        %783 = vmatpush1.msra.mxu0 %v673
        %784 = vmatprep.subr.mxu0 0.0
        %785 = vmatpush1.msra.mxu0 %v676
        %786 = vmatprep.subr.mxu0 0.0
        %787 = vmatpush1.msra.mxu0 %v679
        %788 = vmatprep.subr.mxu0 0.0
        %789 = vmatpush1.msra.mxu0 %v682
        %790 = vmatprep.subr.mxu0 0.0
        %791 = vmatpush1.msra.mxu0 %v685
        %792 = vmatprep.subr.mxu0 0.0
        %793 = vmatpush1.msra.mxu0 %v688
        %794 = vmatprep.subr.mxu0 0.0
        %795 = vmatpush1.msra.mxu0 %v691
        %796 = vmatprep.subr.mxu0 0.0
        %797 = vmatpush1.msra.mxu0 %v694
        %798 = vmatprep.subr.mxu0 0.0
        %799 = vmatpush1.msra.mxu0 0.0
        %800 = vmatprep.subr.mxu0 0.0
        %801 = vmatpush1.msra.mxu0 0.0
        %802 = vmatprep.subr.mxu0 0.0
        %803 = vmatpush1.msra.mxu0 0.0
        %804 = vmatprep.subr.mxu0 0.0
        %805 = vmatpush1.msra.mxu0 0.0
        %806 = vmatprep.subr.mxu0 0.0
        %807 = vmatpush1.msra.mxu0 0.0
        %808 = vmatprep.subr.mxu0 0.0
        %809 = vmatpush1.msra.mxu0 0.0
        %810 = vmatprep.subr.mxu0 0.0
        %811 = vmatpush1.msra.mxu0 0.0
        %812 = vmatprep.subr.mxu0 0.0
        %813 = vmatpush1.msra.mxu0 0.0
        %814 = vmatprep.subr.mxu0 0.0
        %815 = vmatpush1.msra.mxu0 0.0
        %816 = vmatprep.subr.mxu0 0.0
        %817 = vmatpush1.msra.mxu0 0.0
        %818 = vmatprep.subr.mxu0 0.0
        %819 = vmatpush1.msra.mxu0 0.0
        %820 = vmatprep.subr.mxu0 0.0
        %821 = vmatpush1.msra.mxu0 0.0
        %822 = vmatprep.subr.mxu0 0.0
        %823 = vmatpush1.msra.mxu0 0.0
        %824 = vmatprep.subr.mxu0 0.0
        %825 = vmatpush1.msra.mxu0 0.0
        %826 = vmatprep.subr.mxu0 0.0
        %827 = vmatpush1.msra.mxu0 0.0
        %828 = vmatprep.subr.mxu0 0.0
        %829 = vmatpush1.msra.mxu0 0.0
        %830 = vmatprep.mubr.f32.mxu0 0.0
        %831 = vmatmul.mubr.f32.gmra.mrb[0].mxu0 %v635
        %v832 = vpop.f32.mrb[0].mxu0
        %v833 = vadd.f32 0.0, %v832
        %v834 = vpop.f32.mrb[0].mxu0
        %835 = vdwg.mxu0
        %v836 = vadd.f32 %v644, %v762
        %v837 = vxor.u32 %v836, 2147483648
        %v838 = vmul.f32 %v837, 1.442695
        %v839 = vpow.pop %v838
        %v840 = vadd.f32 %v839, 1.0
        %v841 = vrcp.pop %v840
        %v842 = vmul.f32 1.0, %v841
        %v843 = vadd.f32 %v645, %v764
        %v844 = vxor.u32 %v843, 2147483648
        %v845 = vmul.f32 %v844, 1.442695
        %v846 = vpow.pop %v845
        %v847 = vadd.f32 %v846, 1.0
        %v848 = vrcp.pop %v847
        %v849 = vmul.f32 1.0, %v848
        %v850 = vadd.f32 %v833, %v415
        %v851 = vmul.f32 %v842, %v850
        %v852 = vadd.f32 %v646, %v851
        %v853 = vtanh.pop %v852
        %v854 = vsub.f32 1.0, %v849
        %v855 = vmul.f32 %v854, %v853
        %v856 = vmul.f32 %v849, %v635
        %v857 = vadd.f32 %v855, %v856
        %s858 = smul.u32 %s640, 8
        %s859 = scalar_lea.vmem %s375, %s858 [#allocation4]
        %860 = vst [vmem:[%s859] sm:$0xff] %v857
        %s861 = smul.u32 %s23, 11
        %s862 = sadd.s32 %s861, 2
        %s863 = smul.u32 %s862, 3
        %s864 = smul.addr %s863, 8
        %s865 = scalar_lea.vmem %s347, %s864 [#allocation3]
        %v866 = vld [vmem:[%s865] sm:$0xff]
        %v867 = vld [vmem:[%s865 + $0x8] sm:$0xff]
        %v868 = vld [vmem:[%s865 + $0x10] sm:$0xff]
        %v869 = vld [vmem:[%s392] sm:$0xff]
        %v870 = vld [vmem:[%s392 + $0x8] sm:$0xff]
        %v871 = vld [vmem:[%s392 + $0x10] sm:$0xff]
        %v872 = vld [vmem:[%s392 + $0x18] sm:$0xff]
        %v873 = vld [vmem:[%s392 + $0x20] sm:$0xff]
        %v874 = vld [vmem:[%s392 + $0x28] sm:$0xff]
        %v875 = vld [vmem:[%s392 + $0x30] sm:$0xff]
        %v876 = vld [vmem:[%s392 + $0x38] sm:$0xff]
        %v877 = vld [vmem:[%s392 + $0x40] sm:$0xff]
        %v878 = vld [vmem:[%s392 + $0x48] sm:$0xff]
        %v879 = vld [vmem:[%s392 + $0x50] sm:$0xff]
        %v880 = vld [vmem:[%s392 + $0x58] sm:$0xff]
        %v881 = vld [vmem:[%s392 + $0x60] sm:$0xff]
        %v882 = vld [vmem:[%s392 + $0x68] sm:$0xff]
        %v883 = vld [vmem:[%s392 + $0x70] sm:$0xff]
        %v884 = vld [vmem:[%s392 + $0x78] sm:$0xff]
        %v885 = vld [vmem:[%s392 + $0x80] sm:$0xff]
        %v886 = vld [vmem:[%s392 + $0x88] sm:$0xff]
        %v887 = vld [vmem:[%s392 + $0x90] sm:$0xff]
        %v888 = vld [vmem:[%s392 + $0x98] sm:$0xff]
        %v889 = vld [vmem:[%s392 + $0xa0] sm:$0xff]
        %v890 = vld [vmem:[%s392 + $0xa8] sm:$0xff]
        %v891 = vld [vmem:[%s392 + $0xb0] sm:$0xff]
        %v892 = vld [vmem:[%s392 + $0xb8] sm:$0xff]
        %v893 = vld [vmem:[%s392 + $0xc0] sm:$0xff]
        %v894 = vld [vmem:[%s392 + $0xc8] sm:$0xff]
        %v895 = vld [vmem:[%s392 + $0xd0] sm:$0xff]
        %v896 = vld [vmem:[%s392 + $0xd8] sm:$0xff]
        %v897 = vld [vmem:[%s392 + $0xe0] sm:$0xff]
        %v898 = vld [vmem:[%s392 + $0xe8] sm:$0xff]
        %v899 = vld [vmem:[%s392 + $0xf0] sm:$0xff]
        %v900 = vld [vmem:[%s392 + $0xf8] sm:$0xff]
        %v901 = vld [vmem:[%s392 + $0x100] sm:$0xff]
        %v902 = vld [vmem:[%s392 + $0x108] sm:$0xff]
        %v903 = vld [vmem:[%s392 + $0x110] sm:$0xff]
        %v904 = vld [vmem:[%s392 + $0x118] sm:$0xff]
        %v905 = vld [vmem:[%s392 + $0x120] sm:$0xff]
        %v906 = vld [vmem:[%s392 + $0x128] sm:$0xff]
        %v907 = vld [vmem:[%s392 + $0x130] sm:$0xff]
        %v908 = vld [vmem:[%s392 + $0x138] sm:$0xff]
        %v909 = vld [vmem:[%s392 + $0x140] sm:$0xff]
        %v910 = vld [vmem:[%s392 + $0x148] sm:$0xff]
        %v911 = vld [vmem:[%s392 + $0x150] sm:$0xff]
        %v912 = vld [vmem:[%s392 + $0x158] sm:$0xff]
        %v913 = vld [vmem:[%s392 + $0x160] sm:$0xff]
        %v914 = vld [vmem:[%s392 + $0x168] sm:$0xff]
        %v915 = vld [vmem:[%s392 + $0x170] sm:$0xff]
        %v916 = vld [vmem:[%s392 + $0x178] sm:$0xff]
        %917 = vmatprep.subr.mxu0 %v870
        %918 = vmatpush1.msra.mxu0 %v869
        %919 = vmatprep.subr.mxu0 %v873
        %920 = vmatpush1.msra.mxu0 %v872
        %921 = vmatprep.subr.mxu0 %v876
        %922 = vmatpush1.msra.mxu0 %v875
        %923 = vmatprep.subr.mxu0 %v879
        %924 = vmatpush1.msra.mxu0 %v878
        %925 = vmatprep.subr.mxu0 %v882
        %926 = vmatpush1.msra.mxu0 %v881
        %927 = vmatprep.subr.mxu0 %v885
        %928 = vmatpush1.msra.mxu0 %v884
        %929 = vmatprep.subr.mxu0 %v888
        %930 = vmatpush1.msra.mxu0 %v887
        %931 = vmatprep.subr.mxu0 %v891
        %932 = vmatpush1.msra.mxu0 %v890
        %933 = vmatprep.subr.mxu0 %v894
        %934 = vmatpush1.msra.mxu0 %v893
        %935 = vmatprep.subr.mxu0 %v897
        %936 = vmatpush1.msra.mxu0 %v896
        %937 = vmatprep.subr.mxu0 %v900
        %938 = vmatpush1.msra.mxu0 %v899
        %939 = vmatprep.subr.mxu0 %v903
        %940 = vmatpush1.msra.mxu0 %v902
        %941 = vmatprep.subr.mxu0 %v906
        %942 = vmatpush1.msra.mxu0 %v905
        %943 = vmatprep.subr.mxu0 %v909
        %944 = vmatpush1.msra.mxu0 %v908
        %945 = vmatprep.subr.mxu0 %v912
        %946 = vmatpush1.msra.mxu0 %v911
        %947 = vmatprep.subr.mxu0 %v915
        %948 = vmatpush1.msra.mxu0 %v914
        %949 = vmatprep.subr.mxu0 0.0
        %950 = vmatpush1.msra.mxu0 0.0
        %951 = vmatprep.subr.mxu0 0.0
        %952 = vmatpush1.msra.mxu0 0.0
        %953 = vmatprep.subr.mxu0 0.0
        %954 = vmatpush1.msra.mxu0 0.0
        %955 = vmatprep.subr.mxu0 0.0
        %956 = vmatpush1.msra.mxu0 0.0
        %957 = vmatprep.subr.mxu0 0.0
        %958 = vmatpush1.msra.mxu0 0.0
        %959 = vmatprep.subr.mxu0 0.0
        %960 = vmatpush1.msra.mxu0 0.0
        %961 = vmatprep.subr.mxu0 0.0
        %962 = vmatpush1.msra.mxu0 0.0
        %963 = vmatprep.subr.mxu0 0.0
        %964 = vmatpush1.msra.mxu0 0.0
        %965 = vmatprep.subr.mxu0 0.0
        %966 = vmatpush1.msra.mxu0 0.0
        %967 = vmatprep.subr.mxu0 0.0
        %968 = vmatpush1.msra.mxu0 0.0
        %969 = vmatprep.subr.mxu0 0.0
        %970 = vmatpush1.msra.mxu0 0.0
        %971 = vmatprep.subr.mxu0 0.0
        %972 = vmatpush1.msra.mxu0 0.0
        %973 = vmatprep.subr.mxu0 0.0
        %974 = vmatpush1.msra.mxu0 0.0
        %975 = vmatprep.subr.mxu0 0.0
        %976 = vmatpush1.msra.mxu0 0.0
        %977 = vmatprep.subr.mxu0 0.0
        %978 = vmatpush1.msra.mxu0 0.0
        %979 = vmatprep.subr.mxu0 0.0
        %980 = vmatpush1.msra.mxu0 0.0
        %981 = vmatprep.mubr.f32.mxu0 0.0
        %982 = vmatmul.mubr.f32.gmra.mrb[0].mxu0 %v857
        %v983 = vpop.f32.mrb[0].mxu0
        %v984 = vadd.f32 0.0, %v983
        %v985 = vpop.f32.mrb[0].mxu0
        %v986 = vadd.f32 0.0, %v985
        %987 = vdwg.mxu0
        %988 = vmatprep.subr.mxu0 0.0
        %989 = vmatpush1.msra.mxu0 %v871
        %990 = vmatprep.subr.mxu0 0.0
        %991 = vmatpush1.msra.mxu0 %v874
        %992 = vmatprep.subr.mxu0 0.0
        %993 = vmatpush1.msra.mxu0 %v877
        %994 = vmatprep.subr.mxu0 0.0
        %995 = vmatpush1.msra.mxu0 %v880
        %996 = vmatprep.subr.mxu0 0.0
        %997 = vmatpush1.msra.mxu0 %v883
        %998 = vmatprep.subr.mxu0 0.0
        %999 = vmatpush1.msra.mxu0 %v886
        %1000 = vmatprep.subr.mxu0 0.0
        %1001 = vmatpush1.msra.mxu0 %v889
        %1002 = vmatprep.subr.mxu0 0.0
        %1003 = vmatpush1.msra.mxu0 %v892
        %1004 = vmatprep.subr.mxu0 0.0
        %1005 = vmatpush1.msra.mxu0 %v895
        %1006 = vmatprep.subr.mxu0 0.0
        %1007 = vmatpush1.msra.mxu0 %v898
        %1008 = vmatprep.subr.mxu0 0.0
        %1009 = vmatpush1.msra.mxu0 %v901
        %1010 = vmatprep.subr.mxu0 0.0
        %1011 = vmatpush1.msra.mxu0 %v904
        %1012 = vmatprep.subr.mxu0 0.0
        %1013 = vmatpush1.msra.mxu0 %v907
        %1014 = vmatprep.subr.mxu0 0.0
        %1015 = vmatpush1.msra.mxu0 %v910
        %1016 = vmatprep.subr.mxu0 0.0
        %1017 = vmatpush1.msra.mxu0 %v913
        %1018 = vmatprep.subr.mxu0 0.0
        %1019 = vmatpush1.msra.mxu0 %v916
        %1020 = vmatprep.subr.mxu0 0.0
        %1021 = vmatpush1.msra.mxu0 0.0
        %1022 = vmatprep.subr.mxu0 0.0
        %1023 = vmatpush1.msra.mxu0 0.0
        %1024 = vmatprep.subr.mxu0 0.0
        %1025 = vmatpush1.msra.mxu0 0.0
        %1026 = vmatprep.subr.mxu0 0.0
        %1027 = vmatpush1.msra.mxu0 0.0
        %1028 = vmatprep.subr.mxu0 0.0
        %1029 = vmatpush1.msra.mxu0 0.0
        %1030 = vmatprep.subr.mxu0 0.0
        %1031 = vmatpush1.msra.mxu0 0.0
        %1032 = vmatprep.subr.mxu0 0.0
        %1033 = vmatpush1.msra.mxu0 0.0
        %1034 = vmatprep.subr.mxu0 0.0
        %1035 = vmatpush1.msra.mxu0 0.0
        %1036 = vmatprep.subr.mxu0 0.0
        %1037 = vmatpush1.msra.mxu0 0.0
        %1038 = vmatprep.subr.mxu0 0.0
        %1039 = vmatpush1.msra.mxu0 0.0
        %1040 = vmatprep.subr.mxu0 0.0
        %1041 = vmatpush1.msra.mxu0 0.0
        %1042 = vmatprep.subr.mxu0 0.0
        %1043 = vmatpush1.msra.mxu0 0.0
        %1044 = vmatprep.subr.mxu0 0.0
        %1045 = vmatpush1.msra.mxu0 0.0
        %1046 = vmatprep.subr.mxu0 0.0
        %1047 = vmatpush1.msra.mxu0 0.0
        %1048 = vmatprep.subr.mxu0 0.0
        %1049 = vmatpush1.msra.mxu0 0.0
        %1050 = vmatprep.subr.mxu0 0.0
        %1051 = vmatpush1.msra.mxu0 0.0
        %1052 = vmatprep.mubr.f32.mxu0 0.0
        %1053 = vmatmul.mubr.f32.gmra.mrb[0].mxu0 %v857
        %v1054 = vpop.f32.mrb[0].mxu0
        %v1055 = vadd.f32 0.0, %v1054
        %v1056 = vpop.f32.mrb[0].mxu0
        %1057 = vdwg.mxu0
        %v1058 = vadd.f32 %v866, %v984
        %v1059 = vxor.u32 %v1058, 2147483648
        %v1060 = vmul.f32 %v1059, 1.442695
        %v1061 = vpow.pop %v1060
        %v1062 = vadd.f32 %v1061, 1.0
        %v1063 = vrcp.pop %v1062
        %v1064 = vmul.f32 1.0, %v1063
        %v1065 = vadd.f32 %v867, %v986
        %v1066 = vxor.u32 %v1065, 2147483648
        %v1067 = vmul.f32 %v1066, 1.442695
        %v1068 = vpow.pop %v1067
        %v1069 = vadd.f32 %v1068, 1.0
        %v1070 = vrcp.pop %v1069
        %v1071 = vmul.f32 1.0, %v1070
        %v1072 = vadd.f32 %v1055, %v415
        %v1073 = vmul.f32 %v1064, %v1072
        %v1074 = vadd.f32 %v868, %v1073
        %v1075 = vtanh.pop %v1074
        %v1076 = vsub.f32 1.0, %v1071
        %v1077 = vmul.f32 %v1076, %v1075
        %v1078 = vmul.f32 %v1071, %v857
        %v1079 = vadd.f32 %v1077, %v1078
        %s1080 = smul.u32 %s862, 8
        %s1081 = scalar_lea.vmem %s375, %s1080 [#allocation4]
        %1082 = vst [vmem:[%s1081] sm:$0xff] %v1079
        %s1083 = smul.u32 %s23, 9
        %s1084 = sadd.s32 %s1083, 3
        %s1085 = smul.u32 %s1084, 3
        %s1086 = smul.addr %s1085, 8
        %s1087 = scalar_lea.vmem %s347, %s1086 [#allocation3]
        %v1088 = vld [vmem:[%s1087] sm:$0xff]
        %v1089 = vld [vmem:[%s1087 + $0x8] sm:$0xff]
        %v1090 = vld [vmem:[%s1087 + $0x10] sm:$0xff]
        %v1091 = vld [vmem:[%s392] sm:$0xff]
        %v1092 = vld [vmem:[%s392 + $0x8] sm:$0xff]
        %v1093 = vld [vmem:[%s392 + $0x10] sm:$0xff]
        %v1094 = vld [vmem:[%s392 + $0x18] sm:$0xff]
        %v1095 = vld [vmem:[%s392 + $0x20] sm:$0xff]
        %v1096 = vld [vmem:[%s392 + $0x28] sm:$0xff]
        %v1097 = vld [vmem:[%s392 + $0x30] sm:$0xff]
        %v1098 = vld [vmem:[%s392 + $0x38] sm:$0xff]
        %v1099 = vld [vmem:[%s392 + $0x40] sm:$0xff]
        %v1100 = vld [vmem:[%s392 + $0x48] sm:$0xff]
        %v1101 = vld [vmem:[%s392 + $0x50] sm:$0xff]
        %v1102 = vld [vmem:[%s392 + $0x58] sm:$0xff]
        %v1103 = vld [vmem:[%s392 + $0x60] sm:$0xff]
        %v1104 = vld [vmem:[%s392 + $0x68] sm:$0xff]
        %v1105 = vld [vmem:[%s392 + $0x70] sm:$0xff]
        %v1106 = vld [vmem:[%s392 + $0x78] sm:$0xff]
        %v1107 = vld [vmem:[%s392 + $0x80] sm:$0xff]
        %v1108 = vld [vmem:[%s392 + $0x88] sm:$0xff]
        %v1109 = vld [vmem:[%s392 + $0x90] sm:$0xff]
        %v1110 = vld [vmem:[%s392 + $0x98] sm:$0xff]
        %v1111 = vld [vmem:[%s392 + $0xa0] sm:$0xff]
        %v1112 = vld [vmem:[%s392 + $0xa8] sm:$0xff]
        %v1113 = vld [vmem:[%s392 + $0xb0] sm:$0xff]
        %v1114 = vld [vmem:[%s392 + $0xb8] sm:$0xff]
        %v1115 = vld [vmem:[%s392 + $0xc0] sm:$0xff]
        %v1116 = vld [vmem:[%s392 + $0xc8] sm:$0xff]
        %v1117 = vld [vmem:[%s392 + $0xd0] sm:$0xff]
        %v1118 = vld [vmem:[%s392 + $0xd8] sm:$0xff]
        %v1119 = vld [vmem:[%s392 + $0xe0] sm:$0xff]
        %v1120 = vld [vmem:[%s392 + $0xe8] sm:$0xff]
        %v1121 = vld [vmem:[%s392 + $0xf0] sm:$0xff]
        %v1122 = vld [vmem:[%s392 + $0xf8] sm:$0xff]
        %v1123 = vld [vmem:[%s392 + $0x100] sm:$0xff]
        %v1124 = vld [vmem:[%s392 + $0x108] sm:$0xff]
        %v1125 = vld [vmem:[%s392 + $0x110] sm:$0xff]
        %v1126 = vld [vmem:[%s392 + $0x118] sm:$0xff]
        %v1127 = vld [vmem:[%s392 + $0x120] sm:$0xff]
        %v1128 = vld [vmem:[%s392 + $0x128] sm:$0xff]
        %v1129 = vld [vmem:[%s392 + $0x130] sm:$0xff]
        %v1130 = vld [vmem:[%s392 + $0x138] sm:$0xff]
        %v1131 = vld [vmem:[%s392 + $0x140] sm:$0xff]
        %v1132 = vld [vmem:[%s392 + $0x148] sm:$0xff]
        %v1133 = vld [vmem:[%s392 + $0x150] sm:$0xff]
        %v1134 = vld [vmem:[%s392 + $0x158] sm:$0xff]
        %v1135 = vld [vmem:[%s392 + $0x160] sm:$0xff]
        %v1136 = vld [vmem:[%s392 + $0x168] sm:$0xff]
        %v1137 = vld [vmem:[%s392 + $0x170] sm:$0xff]
        %v1138 = vld [vmem:[%s392 + $0x178] sm:$0xff]
        %1139 = vmatprep.subr.mxu0 %v1092
        %1140 = vmatpush1.msra.mxu0 %v1091
        %1141 = vmatprep.subr.mxu0 %v1095
        %1142 = vmatpush1.msra.mxu0 %v1094
        %1143 = vmatprep.subr.mxu0 %v1098
        %1144 = vmatpush1.msra.mxu0 %v1097
        %1145 = vmatprep.subr.mxu0 %v1101
        %1146 = vmatpush1.msra.mxu0 %v1100
        %1147 = vmatprep.subr.mxu0 %v1104
        %1148 = vmatpush1.msra.mxu0 %v1103
        %1149 = vmatprep.subr.mxu0 %v1107
        %1150 = vmatpush1.msra.mxu0 %v1106
        %1151 = vmatprep.subr.mxu0 %v1110
        %1152 = vmatpush1.msra.mxu0 %v1109
        %1153 = vmatprep.subr.mxu0 %v1113
        %1154 = vmatpush1.msra.mxu0 %v1112
        %1155 = vmatprep.subr.mxu0 %v1116
        %1156 = vmatpush1.msra.mxu0 %v1115
        %1157 = vmatprep.subr.mxu0 %v1119
        %1158 = vmatpush1.msra.mxu0 %v1118
        %1159 = vmatprep.subr.mxu0 %v1122
        %1160 = vmatpush1.msra.mxu0 %v1121
        %1161 = vmatprep.subr.mxu0 %v1125
        %1162 = vmatpush1.msra.mxu0 %v1124
        %1163 = vmatprep.subr.mxu0 %v1128
        %1164 = vmatpush1.msra.mxu0 %v1127
        %1165 = vmatprep.subr.mxu0 %v1131
        %1166 = vmatpush1.msra.mxu0 %v1130
        %1167 = vmatprep.subr.mxu0 %v1134
        %1168 = vmatpush1.msra.mxu0 %v1133
        %1169 = vmatprep.subr.mxu0 %v1137
        %1170 = vmatpush1.msra.mxu0 %v1136
        %1171 = vmatprep.subr.mxu0 0.0
        %1172 = vmatpush1.msra.mxu0 0.0
        %1173 = vmatprep.subr.mxu0 0.0
        %1174 = vmatpush1.msra.mxu0 0.0
        %1175 = vmatprep.subr.mxu0 0.0
        %1176 = vmatpush1.msra.mxu0 0.0
        %1177 = vmatprep.subr.mxu0 0.0
        %1178 = vmatpush1.msra.mxu0 0.0
        %1179 = vmatprep.subr.mxu0 0.0
        %1180 = vmatpush1.msra.mxu0 0.0
        %1181 = vmatprep.subr.mxu0 0.0
        %1182 = vmatpush1.msra.mxu0 0.0
        %1183 = vmatprep.subr.mxu0 0.0
        %1184 = vmatpush1.msra.mxu0 0.0
        %1185 = vmatprep.subr.mxu0 0.0
        %1186 = vmatpush1.msra.mxu0 0.0
        %1187 = vmatprep.subr.mxu0 0.0
        %1188 = vmatpush1.msra.mxu0 0.0
        %1189 = vmatprep.subr.mxu0 0.0
        %1190 = vmatpush1.msra.mxu0 0.0
        %1191 = vmatprep.subr.mxu0 0.0
        %1192 = vmatpush1.msra.mxu0 0.0
        %1193 = vmatprep.subr.mxu0 0.0
        %1194 = vmatpush1.msra.mxu0 0.0
        %1195 = vmatprep.subr.mxu0 0.0
        %1196 = vmatpush1.msra.mxu0 0.0
        %1197 = vmatprep.subr.mxu0 0.0
        %1198 = vmatpush1.msra.mxu0 0.0
        %1199 = vmatprep.subr.mxu0 0.0
        %1200 = vmatpush1.msra.mxu0 0.0
        %1201 = vmatprep.subr.mxu0 0.0
        %1202 = vmatpush1.msra.mxu0 0.0
        %1203 = vmatprep.mubr.f32.mxu0 0.0
        %1204 = vmatmul.mubr.f32.gmra.mrb[0].mxu0 %v1079
        %v1205 = vpop.f32.mrb[0].mxu0
        %v1206 = vadd.f32 0.0, %v1205
        %v1207 = vpop.f32.mrb[0].mxu0
        %v1208 = vadd.f32 0.0, %v1207
        %1209 = vdwg.mxu0
        %1210 = vmatprep.subr.mxu0 0.0
        %1211 = vmatpush1.msra.mxu0 %v1093
        %1212 = vmatprep.subr.mxu0 0.0
        %1213 = vmatpush1.msra.mxu0 %v1096
        %1214 = vmatprep.subr.mxu0 0.0
        %1215 = vmatpush1.msra.mxu0 %v1099
        %1216 = vmatprep.subr.mxu0 0.0
        %1217 = vmatpush1.msra.mxu0 %v1102
        %1218 = vmatprep.subr.mxu0 0.0
        %1219 = vmatpush1.msra.mxu0 %v1105
        %1220 = vmatprep.subr.mxu0 0.0
        %1221 = vmatpush1.msra.mxu0 %v1108
        %1222 = vmatprep.subr.mxu0 0.0
        %1223 = vmatpush1.msra.mxu0 %v1111
        %1224 = vmatprep.subr.mxu0 0.0
        %1225 = vmatpush1.msra.mxu0 %v1114
        %1226 = vmatprep.subr.mxu0 0.0
        %1227 = vmatpush1.msra.mxu0 %v1117
        %1228 = vmatprep.subr.mxu0 0.0
        %1229 = vmatpush1.msra.mxu0 %v1120
        %1230 = vmatprep.subr.mxu0 0.0
        %1231 = vmatpush1.msra.mxu0 %v1123
        %1232 = vmatprep.subr.mxu0 0.0
        %1233 = vmatpush1.msra.mxu0 %v1126
        %1234 = vmatprep.subr.mxu0 0.0
        %1235 = vmatpush1.msra.mxu0 %v1129
        %1236 = vmatprep.subr.mxu0 0.0
        %1237 = vmatpush1.msra.mxu0 %v1132
        %1238 = vmatprep.subr.mxu0 0.0
        %1239 = vmatpush1.msra.mxu0 %v1135
        %1240 = vmatprep.subr.mxu0 0.0
        %1241 = vmatpush1.msra.mxu0 %v1138
        %1242 = vmatprep.subr.mxu0 0.0
        %1243 = vmatpush1.msra.mxu0 0.0
        %1244 = vmatprep.subr.mxu0 0.0
        %1245 = vmatpush1.msra.mxu0 0.0
        %1246 = vmatprep.subr.mxu0 0.0
        %1247 = vmatpush1.msra.mxu0 0.0
        %1248 = vmatprep.subr.mxu0 0.0
        %1249 = vmatpush1.msra.mxu0 0.0
        %1250 = vmatprep.subr.mxu0 0.0
        %1251 = vmatpush1.msra.mxu0 0.0
        %1252 = vmatprep.subr.mxu0 0.0
        %1253 = vmatpush1.msra.mxu0 0.0
        %1254 = vmatprep.subr.mxu0 0.0
        %1255 = vmatpush1.msra.mxu0 0.0
        %1256 = vmatprep.subr.mxu0 0.0
        %1257 = vmatpush1.msra.mxu0 0.0
        %1258 = vmatprep.subr.mxu0 0.0
        %1259 = vmatpush1.msra.mxu0 0.0
        %1260 = vmatprep.subr.mxu0 0.0
        %1261 = vmatpush1.msra.mxu0 0.0
        %1262 = vmatprep.subr.mxu0 0.0
        %1263 = vmatpush1.msra.mxu0 0.0
        %1264 = vmatprep.subr.mxu0 0.0
        %1265 = vmatpush1.msra.mxu0 0.0
        %1266 = vmatprep.subr.mxu0 0.0
        %1267 = vmatpush1.msra.mxu0 0.0
        %1268 = vmatprep.subr.mxu0 0.0
        %1269 = vmatpush1.msra.mxu0 0.0
        %1270 = vmatprep.subr.mxu0 0.0
        %1271 = vmatpush1.msra.mxu0 0.0
        %1272 = vmatprep.subr.mxu0 0.0
        %1273 = vmatpush1.msra.mxu0 0.0
        %1274 = vmatprep.mubr.f32.mxu0 0.0
        %1275 = vmatmul.mubr.f32.gmra.mrb[0].mxu0 %v1079
        %v1276 = vpop.f32.mrb[0].mxu0
        %v1277 = vadd.f32 0.0, %v1276
        %v1278 = vpop.f32.mrb[0].mxu0
        %1279 = vdwg.mxu0
        %v1280 = vadd.f32 %v1088, %v1206
        %v1281 = vxor.u32 %v1280, 2147483648
        %v1282 = vmul.f32 %v1281, 1.442695
        %v1283 = vpow.pop %v1282
        %v1284 = vadd.f32 %v1283, 1.0
        %v1285 = vrcp.pop %v1284
        %v1286 = vmul.f32 1.0, %v1285
        %v1287 = vadd.f32 %v1089, %v1208
        %v1288 = vxor.u32 %v1287, 2147483648
        %v1289 = vmul.f32 %v1288, 1.442695
        %v1290 = vpow.pop %v1289
        %v1291 = vadd.f32 %v1290, 1.0
        %v1292 = vrcp.pop %v1291
        %v1293 = vmul.f32 1.0, %v1292
        %v1294 = vadd.f32 %v1277, %v415
        %v1295 = vmul.f32 %v1286, %v1294
        %v1296 = vadd.f32 %v1090, %v1295
        %v1297 = vtanh.pop %v1296
        %v1298 = vsub.f32 1.0, %v1293
        %v1299 = vmul.f32 %v1298, %v1297
        %v1300 = vmul.f32 %v1293, %v1079
        %v1301 = vadd.f32 %v1299, %v1300
        %s1302 = smul.u32 %s1084, 8
        %s1303 = scalar_lea.vmem %s375, %s1302 [#allocation4]
        %1304 = vst [vmem:[%s1303] sm:$0xff] %v1301
        %s1305 = smul.u32 %s23, 7
        %s1306 = sadd.s32 %s1305, 4
        %s1307 = smul.u32 %s1306, 3
        %s1308 = smul.addr %s1307, 8
        %s1309 = scalar_lea.vmem %s347, %s1308 [#allocation3]
        %v1310 = vld [vmem:[%s1309] sm:$0xff]
        %v1311 = vld [vmem:[%s1309 + $0x8] sm:$0xff]
        %v1312 = vld [vmem:[%s1309 + $0x10] sm:$0xff]
        %v1313 = vld [vmem:[%s392] sm:$0xff]
        %v1314 = vld [vmem:[%s392 + $0x8] sm:$0xff]
        %v1315 = vld [vmem:[%s392 + $0x10] sm:$0xff]
        %v1316 = vld [vmem:[%s392 + $0x18] sm:$0xff]
        %v1317 = vld [vmem:[%s392 + $0x20] sm:$0xff]
        %v1318 = vld [vmem:[%s392 + $0x28] sm:$0xff]
        %v1319 = vld [vmem:[%s392 + $0x30] sm:$0xff]
        %v1320 = vld [vmem:[%s392 + $0x38] sm:$0xff]
        %v1321 = vld [vmem:[%s392 + $0x40] sm:$0xff]
        %v1322 = vld [vmem:[%s392 + $0x48] sm:$0xff]
        %v1323 = vld [vmem:[%s392 + $0x50] sm:$0xff]
        %v1324 = vld [vmem:[%s392 + $0x58] sm:$0xff]
        %v1325 = vld [vmem:[%s392 + $0x60] sm:$0xff]
        %v1326 = vld [vmem:[%s392 + $0x68] sm:$0xff]
        %v1327 = vld [vmem:[%s392 + $0x70] sm:$0xff]
        %v1328 = vld [vmem:[%s392 + $0x78] sm:$0xff]
        %v1329 = vld [vmem:[%s392 + $0x80] sm:$0xff]
        %v1330 = vld [vmem:[%s392 + $0x88] sm:$0xff]
        %v1331 = vld [vmem:[%s392 + $0x90] sm:$0xff]
        %v1332 = vld [vmem:[%s392 + $0x98] sm:$0xff]
        %v1333 = vld [vmem:[%s392 + $0xa0] sm:$0xff]
        %v1334 = vld [vmem:[%s392 + $0xa8] sm:$0xff]
        %v1335 = vld [vmem:[%s392 + $0xb0] sm:$0xff]
        %v1336 = vld [vmem:[%s392 + $0xb8] sm:$0xff]
        %v1337 = vld [vmem:[%s392 + $0xc0] sm:$0xff]
        %v1338 = vld [vmem:[%s392 + $0xc8] sm:$0xff]
        %v1339 = vld [vmem:[%s392 + $0xd0] sm:$0xff]
        %v1340 = vld [vmem:[%s392 + $0xd8] sm:$0xff]
        %v1341 = vld [vmem:[%s392 + $0xe0] sm:$0xff]
        %v1342 = vld [vmem:[%s392 + $0xe8] sm:$0xff]
        %v1343 = vld [vmem:[%s392 + $0xf0] sm:$0xff]
        %v1344 = vld [vmem:[%s392 + $0xf8] sm:$0xff]
        %v1345 = vld [vmem:[%s392 + $0x100] sm:$0xff]
        %v1346 = vld [vmem:[%s392 + $0x108] sm:$0xff]
        %v1347 = vld [vmem:[%s392 + $0x110] sm:$0xff]
        %v1348 = vld [vmem:[%s392 + $0x118] sm:$0xff]
        %v1349 = vld [vmem:[%s392 + $0x120] sm:$0xff]
        %v1350 = vld [vmem:[%s392 + $0x128] sm:$0xff]
        %v1351 = vld [vmem:[%s392 + $0x130] sm:$0xff]
        %v1352 = vld [vmem:[%s392 + $0x138] sm:$0xff]
        %v1353 = vld [vmem:[%s392 + $0x140] sm:$0xff]
        %v1354 = vld [vmem:[%s392 + $0x148] sm:$0xff]
        %v1355 = vld [vmem:[%s392 + $0x150] sm:$0xff]
        %v1356 = vld [vmem:[%s392 + $0x158] sm:$0xff]
        %v1357 = vld [vmem:[%s392 + $0x160] sm:$0xff]
        %v1358 = vld [vmem:[%s392 + $0x168] sm:$0xff]
        %v1359 = vld [vmem:[%s392 + $0x170] sm:$0xff]
        %v1360 = vld [vmem:[%s392 + $0x178] sm:$0xff]
        %1361 = vmatprep.subr.mxu0 %v1314
        %1362 = vmatpush1.msra.mxu0 %v1313
        %1363 = vmatprep.subr.mxu0 %v1317
        %1364 = vmatpush1.msra.mxu0 %v1316
        %1365 = vmatprep.subr.mxu0 %v1320
        %1366 = vmatpush1.msra.mxu0 %v1319
        %1367 = vmatprep.subr.mxu0 %v1323
        %1368 = vmatpush1.msra.mxu0 %v1322
        %1369 = vmatprep.subr.mxu0 %v1326
        %1370 = vmatpush1.msra.mxu0 %v1325
        %1371 = vmatprep.subr.mxu0 %v1329
        %1372 = vmatpush1.msra.mxu0 %v1328
        %1373 = vmatprep.subr.mxu0 %v1332
        %1374 = vmatpush1.msra.mxu0 %v1331
        %1375 = vmatprep.subr.mxu0 %v1335
        %1376 = vmatpush1.msra.mxu0 %v1334
        %1377 = vmatprep.subr.mxu0 %v1338
        %1378 = vmatpush1.msra.mxu0 %v1337
        %1379 = vmatprep.subr.mxu0 %v1341
        %1380 = vmatpush1.msra.mxu0 %v1340
        %1381 = vmatprep.subr.mxu0 %v1344
        %1382 = vmatpush1.msra.mxu0 %v1343
        %1383 = vmatprep.subr.mxu0 %v1347
        %1384 = vmatpush1.msra.mxu0 %v1346
        %1385 = vmatprep.subr.mxu0 %v1350
        %1386 = vmatpush1.msra.mxu0 %v1349
        %1387 = vmatprep.subr.mxu0 %v1353
        %1388 = vmatpush1.msra.mxu0 %v1352
        %1389 = vmatprep.subr.mxu0 %v1356
        %1390 = vmatpush1.msra.mxu0 %v1355
        %1391 = vmatprep.subr.mxu0 %v1359
        %1392 = vmatpush1.msra.mxu0 %v1358
        %1393 = vmatprep.subr.mxu0 0.0
        %1394 = vmatpush1.msra.mxu0 0.0
        %1395 = vmatprep.subr.mxu0 0.0
        %1396 = vmatpush1.msra.mxu0 0.0
        %1397 = vmatprep.subr.mxu0 0.0
        %1398 = vmatpush1.msra.mxu0 0.0
        %1399 = vmatprep.subr.mxu0 0.0
        %1400 = vmatpush1.msra.mxu0 0.0
        %1401 = vmatprep.subr.mxu0 0.0
        %1402 = vmatpush1.msra.mxu0 0.0
        %1403 = vmatprep.subr.mxu0 0.0
        %1404 = vmatpush1.msra.mxu0 0.0
        %1405 = vmatprep.subr.mxu0 0.0
        %1406 = vmatpush1.msra.mxu0 0.0
        %1407 = vmatprep.subr.mxu0 0.0
        %1408 = vmatpush1.msra.mxu0 0.0
        %1409 = vmatprep.subr.mxu0 0.0
        %1410 = vmatpush1.msra.mxu0 0.0
        %1411 = vmatprep.subr.mxu0 0.0
        %1412 = vmatpush1.msra.mxu0 0.0
        %1413 = vmatprep.subr.mxu0 0.0
        %1414 = vmatpush1.msra.mxu0 0.0
        %1415 = vmatprep.subr.mxu0 0.0
        %1416 = vmatpush1.msra.mxu0 0.0
        %1417 = vmatprep.subr.mxu0 0.0
        %1418 = vmatpush1.msra.mxu0 0.0
        %1419 = vmatprep.subr.mxu0 0.0
        %1420 = vmatpush1.msra.mxu0 0.0
        %1421 = vmatprep.subr.mxu0 0.0
        %1422 = vmatpush1.msra.mxu0 0.0
        %1423 = vmatprep.subr.mxu0 0.0
        %1424 = vmatpush1.msra.mxu0 0.0
        %1425 = vmatprep.mubr.f32.mxu0 0.0
        %1426 = vmatmul.mubr.f32.gmra.mrb[0].mxu0 %v1301
        %v1427 = vpop.f32.mrb[0].mxu0
        %v1428 = vadd.f32 0.0, %v1427
        %v1429 = vpop.f32.mrb[0].mxu0
        %v1430 = vadd.f32 0.0, %v1429
        %1431 = vdwg.mxu0
        %1432 = vmatprep.subr.mxu0 0.0
        %1433 = vmatpush1.msra.mxu0 %v1315
        %1434 = vmatprep.subr.mxu0 0.0
        %1435 = vmatpush1.msra.mxu0 %v1318
        %1436 = vmatprep.subr.mxu0 0.0
        %1437 = vmatpush1.msra.mxu0 %v1321
        %1438 = vmatprep.subr.mxu0 0.0
        %1439 = vmatpush1.msra.mxu0 %v1324
        %1440 = vmatprep.subr.mxu0 0.0
        %1441 = vmatpush1.msra.mxu0 %v1327
        %1442 = vmatprep.subr.mxu0 0.0
        %1443 = vmatpush1.msra.mxu0 %v1330
        %1444 = vmatprep.subr.mxu0 0.0
        %1445 = vmatpush1.msra.mxu0 %v1333
        %1446 = vmatprep.subr.mxu0 0.0
        %1447 = vmatpush1.msra.mxu0 %v1336
        %1448 = vmatprep.subr.mxu0 0.0
        %1449 = vmatpush1.msra.mxu0 %v1339
        %1450 = vmatprep.subr.mxu0 0.0
        %1451 = vmatpush1.msra.mxu0 %v1342
        %1452 = vmatprep.subr.mxu0 0.0
        %1453 = vmatpush1.msra.mxu0 %v1345
        %1454 = vmatprep.subr.mxu0 0.0
        %1455 = vmatpush1.msra.mxu0 %v1348
        %1456 = vmatprep.subr.mxu0 0.0
        %1457 = vmatpush1.msra.mxu0 %v1351
        %1458 = vmatprep.subr.mxu0 0.0
        %1459 = vmatpush1.msra.mxu0 %v1354
        %1460 = vmatprep.subr.mxu0 0.0
        %1461 = vmatpush1.msra.mxu0 %v1357
        %1462 = vmatprep.subr.mxu0 0.0
        %1463 = vmatpush1.msra.mxu0 %v1360
        %1464 = vmatprep.subr.mxu0 0.0
        %1465 = vmatpush1.msra.mxu0 0.0
        %1466 = vmatprep.subr.mxu0 0.0
        %1467 = vmatpush1.msra.mxu0 0.0
        %1468 = vmatprep.subr.mxu0 0.0
        %1469 = vmatpush1.msra.mxu0 0.0
        %1470 = vmatprep.subr.mxu0 0.0
        %1471 = vmatpush1.msra.mxu0 0.0
        %1472 = vmatprep.subr.mxu0 0.0
        %1473 = vmatpush1.msra.mxu0 0.0
        %1474 = vmatprep.subr.mxu0 0.0
        %1475 = vmatpush1.msra.mxu0 0.0
        %1476 = vmatprep.subr.mxu0 0.0
        %1477 = vmatpush1.msra.mxu0 0.0
        %1478 = vmatprep.subr.mxu0 0.0
        %1479 = vmatpush1.msra.mxu0 0.0
        %1480 = vmatprep.subr.mxu0 0.0
        %1481 = vmatpush1.msra.mxu0 0.0
        %1482 = vmatprep.subr.mxu0 0.0
        %1483 = vmatpush1.msra.mxu0 0.0
        %1484 = vmatprep.subr.mxu0 0.0
        %1485 = vmatpush1.msra.mxu0 0.0
        %1486 = vmatprep.subr.mxu0 0.0
        %1487 = vmatpush1.msra.mxu0 0.0
        %1488 = vmatprep.subr.mxu0 0.0
        %1489 = vmatpush1.msra.mxu0 0.0
        %1490 = vmatprep.subr.mxu0 0.0
        %1491 = vmatpush1.msra.mxu0 0.0
        %1492 = vmatprep.subr.mxu0 0.0
        %1493 = vmatpush1.msra.mxu0 0.0
        %1494 = vmatprep.subr.mxu0 0.0
        %1495 = vmatpush1.msra.mxu0 0.0
        %1496 = vmatprep.mubr.f32.mxu0 0.0
        %1497 = vmatmul.mubr.f32.gmra.mrb[0].mxu0 %v1301
        %v1498 = vpop.f32.mrb[0].mxu0
        %v1499 = vadd.f32 0.0, %v1498
        %v1500 = vpop.f32.mrb[0].mxu0
        %1501 = vdwg.mxu0
        %v1502 = vadd.f32 %v1310, %v1428
        %v1503 = vxor.u32 %v1502, 2147483648
        %v1504 = vmul.f32 %v1503, 1.442695
        %v1505 = vpow.pop %v1504
        %v1506 = vadd.f32 %v1505, 1.0
        %v1507 = vrcp.pop %v1506
        %v1508 = vmul.f32 1.0, %v1507
        %v1509 = vadd.f32 %v1311, %v1430
        %v1510 = vxor.u32 %v1509, 2147483648
        %v1511 = vmul.f32 %v1510, 1.442695
        %v1512 = vpow.pop %v1511
        %v1513 = vadd.f32 %v1512, 1.0
        %v1514 = vrcp.pop %v1513
        %v1515 = vmul.f32 1.0, %v1514
        %v1516 = vadd.f32 %v1499, %v415
        %v1517 = vmul.f32 %v1508, %v1516
        %v1518 = vadd.f32 %v1312, %v1517
        %v1519 = vtanh.pop %v1518
        %v1520 = vsub.f32 1.0, %v1515
        %v1521 = vmul.f32 %v1520, %v1519
        %v1522 = vmul.f32 %v1515, %v1301
        %v1523 = vadd.f32 %v1521, %v1522
        %s1524 = smul.u32 %s1306, 8
        %s1525 = scalar_lea.vmem %s375, %s1524 [#allocation4]
        %1526 = vst [vmem:[%s1525] sm:$0xff] %v1523
        %s1527 = smul.u32 %s23, 5
        %s1528 = sadd.s32 %s1527, 5
        %s1529 = smul.u32 %s1528, 3
        %s1530 = smul.addr %s1529, 8
        %s1531 = scalar_lea.vmem %s347, %s1530 [#allocation3]
        %v1532 = vld [vmem:[%s1531] sm:$0xff]
        %v1533 = vld [vmem:[%s1531 + $0x8] sm:$0xff]
        %v1534 = vld [vmem:[%s1531 + $0x10] sm:$0xff]
        %v1535 = vld [vmem:[%s392] sm:$0xff]
        %v1536 = vld [vmem:[%s392 + $0x8] sm:$0xff]
        %v1537 = vld [vmem:[%s392 + $0x10] sm:$0xff]
        %v1538 = vld [vmem:[%s392 + $0x18] sm:$0xff]
        %v1539 = vld [vmem:[%s392 + $0x20] sm:$0xff]
        %v1540 = vld [vmem:[%s392 + $0x28] sm:$0xff]
        %v1541 = vld [vmem:[%s392 + $0x30] sm:$0xff]
        %v1542 = vld [vmem:[%s392 + $0x38] sm:$0xff]
        %v1543 = vld [vmem:[%s392 + $0x40] sm:$0xff]
        %v1544 = vld [vmem:[%s392 + $0x48] sm:$0xff]
        %v1545 = vld [vmem:[%s392 + $0x50] sm:$0xff]
        %v1546 = vld [vmem:[%s392 + $0x58] sm:$0xff]
        %v1547 = vld [vmem:[%s392 + $0x60] sm:$0xff]
        %v1548 = vld [vmem:[%s392 + $0x68] sm:$0xff]
        %v1549 = vld [vmem:[%s392 + $0x70] sm:$0xff]
        %v1550 = vld [vmem:[%s392 + $0x78] sm:$0xff]
        %v1551 = vld [vmem:[%s392 + $0x80] sm:$0xff]
        %v1552 = vld [vmem:[%s392 + $0x88] sm:$0xff]
        %v1553 = vld [vmem:[%s392 + $0x90] sm:$0xff]
        %v1554 = vld [vmem:[%s392 + $0x98] sm:$0xff]
        %v1555 = vld [vmem:[%s392 + $0xa0] sm:$0xff]
        %v1556 = vld [vmem:[%s392 + $0xa8] sm:$0xff]
        %v1557 = vld [vmem:[%s392 + $0xb0] sm:$0xff]
        %v1558 = vld [vmem:[%s392 + $0xb8] sm:$0xff]
        %v1559 = vld [vmem:[%s392 + $0xc0] sm:$0xff]
        %v1560 = vld [vmem:[%s392 + $0xc8] sm:$0xff]
        %v1561 = vld [vmem:[%s392 + $0xd0] sm:$0xff]
        %v1562 = vld [vmem:[%s392 + $0xd8] sm:$0xff]
        %v1563 = vld [vmem:[%s392 + $0xe0] sm:$0xff]
        %v1564 = vld [vmem:[%s392 + $0xe8] sm:$0xff]
        %v1565 = vld [vmem:[%s392 + $0xf0] sm:$0xff]
        %v1566 = vld [vmem:[%s392 + $0xf8] sm:$0xff]
        %v1567 = vld [vmem:[%s392 + $0x100] sm:$0xff]
        %v1568 = vld [vmem:[%s392 + $0x108] sm:$0xff]
        %v1569 = vld [vmem:[%s392 + $0x110] sm:$0xff]
        %v1570 = vld [vmem:[%s392 + $0x118] sm:$0xff]
        %v1571 = vld [vmem:[%s392 + $0x120] sm:$0xff]
        %v1572 = vld [vmem:[%s392 + $0x128] sm:$0xff]
        %v1573 = vld [vmem:[%s392 + $0x130] sm:$0xff]
        %v1574 = vld [vmem:[%s392 + $0x138] sm:$0xff]
        %v1575 = vld [vmem:[%s392 + $0x140] sm:$0xff]
        %v1576 = vld [vmem:[%s392 + $0x148] sm:$0xff]
        %v1577 = vld [vmem:[%s392 + $0x150] sm:$0xff]
        %v1578 = vld [vmem:[%s392 + $0x158] sm:$0xff]
        %v1579 = vld [vmem:[%s392 + $0x160] sm:$0xff]
        %v1580 = vld [vmem:[%s392 + $0x168] sm:$0xff]
        %v1581 = vld [vmem:[%s392 + $0x170] sm:$0xff]
        %v1582 = vld [vmem:[%s392 + $0x178] sm:$0xff]
        %1583 = vmatprep.subr.mxu0 %v1536
        %1584 = vmatpush1.msra.mxu0 %v1535
        %1585 = vmatprep.subr.mxu0 %v1539
        %1586 = vmatpush1.msra.mxu0 %v1538
        %1587 = vmatprep.subr.mxu0 %v1542
        %1588 = vmatpush1.msra.mxu0 %v1541
        %1589 = vmatprep.subr.mxu0 %v1545
        %1590 = vmatpush1.msra.mxu0 %v1544
        %1591 = vmatprep.subr.mxu0 %v1548
        %1592 = vmatpush1.msra.mxu0 %v1547
        %1593 = vmatprep.subr.mxu0 %v1551
        %1594 = vmatpush1.msra.mxu0 %v1550
        %1595 = vmatprep.subr.mxu0 %v1554
        %1596 = vmatpush1.msra.mxu0 %v1553
        %1597 = vmatprep.subr.mxu0 %v1557
        %1598 = vmatpush1.msra.mxu0 %v1556
        %1599 = vmatprep.subr.mxu0 %v1560
        %1600 = vmatpush1.msra.mxu0 %v1559
        %1601 = vmatprep.subr.mxu0 %v1563
        %1602 = vmatpush1.msra.mxu0 %v1562
        %1603 = vmatprep.subr.mxu0 %v1566
        %1604 = vmatpush1.msra.mxu0 %v1565
        %1605 = vmatprep.subr.mxu0 %v1569
        %1606 = vmatpush1.msra.mxu0 %v1568
        %1607 = vmatprep.subr.mxu0 %v1572
        %1608 = vmatpush1.msra.mxu0 %v1571
        %1609 = vmatprep.subr.mxu0 %v1575
        %1610 = vmatpush1.msra.mxu0 %v1574
        %1611 = vmatprep.subr.mxu0 %v1578
        %1612 = vmatpush1.msra.mxu0 %v1577
        %1613 = vmatprep.subr.mxu0 %v1581
        %1614 = vmatpush1.msra.mxu0 %v1580
        %1615 = vmatprep.subr.mxu0 0.0
        %1616 = vmatpush1.msra.mxu0 0.0
        %1617 = vmatprep.subr.mxu0 0.0
        %1618 = vmatpush1.msra.mxu0 0.0
        %1619 = vmatprep.subr.mxu0 0.0
        %1620 = vmatpush1.msra.mxu0 0.0
        %1621 = vmatprep.subr.mxu0 0.0
        %1622 = vmatpush1.msra.mxu0 0.0
        %1623 = vmatprep.subr.mxu0 0.0
        %1624 = vmatpush1.msra.mxu0 0.0
        %1625 = vmatprep.subr.mxu0 0.0
        %1626 = vmatpush1.msra.mxu0 0.0
        %1627 = vmatprep.subr.mxu0 0.0
        %1628 = vmatpush1.msra.mxu0 0.0
        %1629 = vmatprep.subr.mxu0 0.0
        %1630 = vmatpush1.msra.mxu0 0.0
        %1631 = vmatprep.subr.mxu0 0.0
        %1632 = vmatpush1.msra.mxu0 0.0
        %1633 = vmatprep.subr.mxu0 0.0
        %1634 = vmatpush1.msra.mxu0 0.0
        %1635 = vmatprep.subr.mxu0 0.0
        %1636 = vmatpush1.msra.mxu0 0.0
        %1637 = vmatprep.subr.mxu0 0.0
        %1638 = vmatpush1.msra.mxu0 0.0
        %1639 = vmatprep.subr.mxu0 0.0
        %1640 = vmatpush1.msra.mxu0 0.0
        %1641 = vmatprep.subr.mxu0 0.0
        %1642 = vmatpush1.msra.mxu0 0.0
        %1643 = vmatprep.subr.mxu0 0.0
        %1644 = vmatpush1.msra.mxu0 0.0
        %1645 = vmatprep.subr.mxu0 0.0
        %1646 = vmatpush1.msra.mxu0 0.0
        %1647 = vmatprep.mubr.f32.mxu0 0.0
        %1648 = vmatmul.mubr.f32.gmra.mrb[0].mxu0 %v1523
        %v1649 = vpop.f32.mrb[0].mxu0
        %v1650 = vadd.f32 0.0, %v1649
        %v1651 = vpop.f32.mrb[0].mxu0
        %v1652 = vadd.f32 0.0, %v1651
        %1653 = vdwg.mxu0
        %1654 = vmatprep.subr.mxu0 0.0
        %1655 = vmatpush1.msra.mxu0 %v1537
        %1656 = vmatprep.subr.mxu0 0.0
        %1657 = vmatpush1.msra.mxu0 %v1540
        %1658 = vmatprep.subr.mxu0 0.0
        %1659 = vmatpush1.msra.mxu0 %v1543
        %1660 = vmatprep.subr.mxu0 0.0
        %1661 = vmatpush1.msra.mxu0 %v1546
        %1662 = vmatprep.subr.mxu0 0.0
        %1663 = vmatpush1.msra.mxu0 %v1549
        %1664 = vmatprep.subr.mxu0 0.0
        %1665 = vmatpush1.msra.mxu0 %v1552
        %1666 = vmatprep.subr.mxu0 0.0
        %1667 = vmatpush1.msra.mxu0 %v1555
        %1668 = vmatprep.subr.mxu0 0.0
        %1669 = vmatpush1.msra.mxu0 %v1558
        %1670 = vmatprep.subr.mxu0 0.0
        %1671 = vmatpush1.msra.mxu0 %v1561
        %1672 = vmatprep.subr.mxu0 0.0
        %1673 = vmatpush1.msra.mxu0 %v1564
        %1674 = vmatprep.subr.mxu0 0.0
        %1675 = vmatpush1.msra.mxu0 %v1567
        %1676 = vmatprep.subr.mxu0 0.0
        %1677 = vmatpush1.msra.mxu0 %v1570
        %1678 = vmatprep.subr.mxu0 0.0
        %1679 = vmatpush1.msra.mxu0 %v1573
        %1680 = vmatprep.subr.mxu0 0.0
        %1681 = vmatpush1.msra.mxu0 %v1576
        %1682 = vmatprep.subr.mxu0 0.0
        %1683 = vmatpush1.msra.mxu0 %v1579
        %1684 = vmatprep.subr.mxu0 0.0
        %1685 = vmatpush1.msra.mxu0 %v1582
        %1686 = vmatprep.subr.mxu0 0.0
        %1687 = vmatpush1.msra.mxu0 0.0
        %1688 = vmatprep.subr.mxu0 0.0
        %1689 = vmatpush1.msra.mxu0 0.0
        %1690 = vmatprep.subr.mxu0 0.0
        %1691 = vmatpush1.msra.mxu0 0.0
        %1692 = vmatprep.subr.mxu0 0.0
        %1693 = vmatpush1.msra.mxu0 0.0
        %1694 = vmatprep.subr.mxu0 0.0
        %1695 = vmatpush1.msra.mxu0 0.0
        %1696 = vmatprep.subr.mxu0 0.0
        %1697 = vmatpush1.msra.mxu0 0.0
        %1698 = vmatprep.subr.mxu0 0.0
        %1699 = vmatpush1.msra.mxu0 0.0
        %1700 = vmatprep.subr.mxu0 0.0
        %1701 = vmatpush1.msra.mxu0 0.0
        %1702 = vmatprep.subr.mxu0 0.0
        %1703 = vmatpush1.msra.mxu0 0.0
        %1704 = vmatprep.subr.mxu0 0.0
        %1705 = vmatpush1.msra.mxu0 0.0
        %1706 = vmatprep.subr.mxu0 0.0
        %1707 = vmatpush1.msra.mxu0 0.0
        %1708 = vmatprep.subr.mxu0 0.0
        %1709 = vmatpush1.msra.mxu0 0.0
        %1710 = vmatprep.subr.mxu0 0.0
        %1711 = vmatpush1.msra.mxu0 0.0
        %1712 = vmatprep.subr.mxu0 0.0
        %1713 = vmatpush1.msra.mxu0 0.0
        %1714 = vmatprep.subr.mxu0 0.0
        %1715 = vmatpush1.msra.mxu0 0.0
        %1716 = vmatprep.subr.mxu0 0.0
        %1717 = vmatpush1.msra.mxu0 0.0
        %1718 = vmatprep.mubr.f32.mxu0 0.0
        %1719 = vmatmul.mubr.f32.gmra.mrb[0].mxu0 %v1523
        %v1720 = vpop.f32.mrb[0].mxu0
        %v1721 = vadd.f32 0.0, %v1720
        %v1722 = vpop.f32.mrb[0].mxu0
        %1723 = vdwg.mxu0
        %v1724 = vadd.f32 %v1532, %v1650
        %v1725 = vxor.u32 %v1724, 2147483648
        %v1726 = vmul.f32 %v1725, 1.442695
        %v1727 = vpow.pop %v1726
        %v1728 = vadd.f32 %v1727, 1.0
        %v1729 = vrcp.pop %v1728
        %v1730 = vmul.f32 1.0, %v1729
        %v1731 = vadd.f32 %v1533, %v1652
        %v1732 = vxor.u32 %v1731, 2147483648
        %v1733 = vmul.f32 %v1732, 1.442695
        %v1734 = vpow.pop %v1733
        %v1735 = vadd.f32 %v1734, 1.0
        %v1736 = vrcp.pop %v1735
        %v1737 = vmul.f32 1.0, %v1736
        %v1738 = vadd.f32 %v1721, %v415
        %v1739 = vmul.f32 %v1730, %v1738
        %v1740 = vadd.f32 %v1534, %v1739
        %v1741 = vtanh.pop %v1740
        %v1742 = vsub.f32 1.0, %v1737
        %v1743 = vmul.f32 %v1742, %v1741
        %v1744 = vmul.f32 %v1737, %v1523
        %v1745 = vadd.f32 %v1743, %v1744
        %s1746 = smul.u32 %s1528, 8
        %s1747 = scalar_lea.vmem %s375, %s1746 [#allocation4]
        %1748 = vst [vmem:[%s1747] sm:$0xff] %v1745
        %s1749 = smul.u32 %s23, 3
        %s1750 = sadd.s32 %s1749, 6
        %s1751 = smul.u32 %s1750, 3
        %s1752 = smul.addr %s1751, 8
        %s1753 = scalar_lea.vmem %s347, %s1752 [#allocation3]
        %v1754 = vld [vmem:[%s1753] sm:$0xff]
        %v1755 = vld [vmem:[%s1753 + $0x8] sm:$0xff]
        %v1756 = vld [vmem:[%s1753 + $0x10] sm:$0xff]
        %v1757 = vld [vmem:[%s392] sm:$0xff]
        %v1758 = vld [vmem:[%s392 + $0x8] sm:$0xff]
        %v1759 = vld [vmem:[%s392 + $0x10] sm:$0xff]
        %v1760 = vld [vmem:[%s392 + $0x18] sm:$0xff]
        %v1761 = vld [vmem:[%s392 + $0x20] sm:$0xff]
        %v1762 = vld [vmem:[%s392 + $0x28] sm:$0xff]
        %v1763 = vld [vmem:[%s392 + $0x30] sm:$0xff]
        %v1764 = vld [vmem:[%s392 + $0x38] sm:$0xff]
        %v1765 = vld [vmem:[%s392 + $0x40] sm:$0xff]
        %v1766 = vld [vmem:[%s392 + $0x48] sm:$0xff]
        %v1767 = vld [vmem:[%s392 + $0x50] sm:$0xff]
        %v1768 = vld [vmem:[%s392 + $0x58] sm:$0xff]
        %v1769 = vld [vmem:[%s392 + $0x60] sm:$0xff]
        %v1770 = vld [vmem:[%s392 + $0x68] sm:$0xff]
        %v1771 = vld [vmem:[%s392 + $0x70] sm:$0xff]
        %v1772 = vld [vmem:[%s392 + $0x78] sm:$0xff]
        %v1773 = vld [vmem:[%s392 + $0x80] sm:$0xff]
        %v1774 = vld [vmem:[%s392 + $0x88] sm:$0xff]
        %v1775 = vld [vmem:[%s392 + $0x90] sm:$0xff]
        %v1776 = vld [vmem:[%s392 + $0x98] sm:$0xff]
        %v1777 = vld [vmem:[%s392 + $0xa0] sm:$0xff]
        %v1778 = vld [vmem:[%s392 + $0xa8] sm:$0xff]
        %v1779 = vld [vmem:[%s392 + $0xb0] sm:$0xff]
        %v1780 = vld [vmem:[%s392 + $0xb8] sm:$0xff]
        %v1781 = vld [vmem:[%s392 + $0xc0] sm:$0xff]
        %v1782 = vld [vmem:[%s392 + $0xc8] sm:$0xff]
        %v1783 = vld [vmem:[%s392 + $0xd0] sm:$0xff]
        %v1784 = vld [vmem:[%s392 + $0xd8] sm:$0xff]
        %v1785 = vld [vmem:[%s392 + $0xe0] sm:$0xff]
        %v1786 = vld [vmem:[%s392 + $0xe8] sm:$0xff]
        %v1787 = vld [vmem:[%s392 + $0xf0] sm:$0xff]
        %v1788 = vld [vmem:[%s392 + $0xf8] sm:$0xff]
        %v1789 = vld [vmem:[%s392 + $0x100] sm:$0xff]
        %v1790 = vld [vmem:[%s392 + $0x108] sm:$0xff]
        %v1791 = vld [vmem:[%s392 + $0x110] sm:$0xff]
        %v1792 = vld [vmem:[%s392 + $0x118] sm:$0xff]
        %v1793 = vld [vmem:[%s392 + $0x120] sm:$0xff]
        %v1794 = vld [vmem:[%s392 + $0x128] sm:$0xff]
        %v1795 = vld [vmem:[%s392 + $0x130] sm:$0xff]
        %v1796 = vld [vmem:[%s392 + $0x138] sm:$0xff]
        %v1797 = vld [vmem:[%s392 + $0x140] sm:$0xff]
        %v1798 = vld [vmem:[%s392 + $0x148] sm:$0xff]
        %v1799 = vld [vmem:[%s392 + $0x150] sm:$0xff]
        %v1800 = vld [vmem:[%s392 + $0x158] sm:$0xff]
        %v1801 = vld [vmem:[%s392 + $0x160] sm:$0xff]
        %v1802 = vld [vmem:[%s392 + $0x168] sm:$0xff]
        %v1803 = vld [vmem:[%s392 + $0x170] sm:$0xff]
        %v1804 = vld [vmem:[%s392 + $0x178] sm:$0xff]
        %1805 = vmatprep.subr.mxu0 %v1758
        %1806 = vmatpush1.msra.mxu0 %v1757
        %1807 = vmatprep.subr.mxu0 %v1761
        %1808 = vmatpush1.msra.mxu0 %v1760
        %1809 = vmatprep.subr.mxu0 %v1764
        %1810 = vmatpush1.msra.mxu0 %v1763
        %1811 = vmatprep.subr.mxu0 %v1767
        %1812 = vmatpush1.msra.mxu0 %v1766
        %1813 = vmatprep.subr.mxu0 %v1770
        %1814 = vmatpush1.msra.mxu0 %v1769
        %1815 = vmatprep.subr.mxu0 %v1773
        %1816 = vmatpush1.msra.mxu0 %v1772
        %1817 = vmatprep.subr.mxu0 %v1776
        %1818 = vmatpush1.msra.mxu0 %v1775
        %1819 = vmatprep.subr.mxu0 %v1779
        %1820 = vmatpush1.msra.mxu0 %v1778
        %1821 = vmatprep.subr.mxu0 %v1782
        %1822 = vmatpush1.msra.mxu0 %v1781
        %1823 = vmatprep.subr.mxu0 %v1785
        %1824 = vmatpush1.msra.mxu0 %v1784
        %1825 = vmatprep.subr.mxu0 %v1788
        %1826 = vmatpush1.msra.mxu0 %v1787
        %1827 = vmatprep.subr.mxu0 %v1791
        %1828 = vmatpush1.msra.mxu0 %v1790
        %1829 = vmatprep.subr.mxu0 %v1794
        %1830 = vmatpush1.msra.mxu0 %v1793
        %1831 = vmatprep.subr.mxu0 %v1797
        %1832 = vmatpush1.msra.mxu0 %v1796
        %1833 = vmatprep.subr.mxu0 %v1800
        %1834 = vmatpush1.msra.mxu0 %v1799
        %1835 = vmatprep.subr.mxu0 %v1803
        %1836 = vmatpush1.msra.mxu0 %v1802
        %1837 = vmatprep.subr.mxu0 0.0
        %1838 = vmatpush1.msra.mxu0 0.0
        %1839 = vmatprep.subr.mxu0 0.0
        %1840 = vmatpush1.msra.mxu0 0.0
        %1841 = vmatprep.subr.mxu0 0.0
        %1842 = vmatpush1.msra.mxu0 0.0
        %1843 = vmatprep.subr.mxu0 0.0
        %1844 = vmatpush1.msra.mxu0 0.0
        %1845 = vmatprep.subr.mxu0 0.0
        %1846 = vmatpush1.msra.mxu0 0.0
        %1847 = vmatprep.subr.mxu0 0.0
        %1848 = vmatpush1.msra.mxu0 0.0
        %1849 = vmatprep.subr.mxu0 0.0
        %1850 = vmatpush1.msra.mxu0 0.0
        %1851 = vmatprep.subr.mxu0 0.0
        %1852 = vmatpush1.msra.mxu0 0.0
        %1853 = vmatprep.subr.mxu0 0.0
        %1854 = vmatpush1.msra.mxu0 0.0
        %1855 = vmatprep.subr.mxu0 0.0
        %1856 = vmatpush1.msra.mxu0 0.0
        %1857 = vmatprep.subr.mxu0 0.0
        %1858 = vmatpush1.msra.mxu0 0.0
        %1859 = vmatprep.subr.mxu0 0.0
        %1860 = vmatpush1.msra.mxu0 0.0
        %1861 = vmatprep.subr.mxu0 0.0
        %1862 = vmatpush1.msra.mxu0 0.0
        %1863 = vmatprep.subr.mxu0 0.0
        %1864 = vmatpush1.msra.mxu0 0.0
        %1865 = vmatprep.subr.mxu0 0.0
        %1866 = vmatpush1.msra.mxu0 0.0
        %1867 = vmatprep.subr.mxu0 0.0
        %1868 = vmatpush1.msra.mxu0 0.0
        %1869 = vmatprep.mubr.f32.mxu0 0.0
        %1870 = vmatmul.mubr.f32.gmra.mrb[0].mxu0 %v1745
        %v1871 = vpop.f32.mrb[0].mxu0
        %v1872 = vadd.f32 0.0, %v1871
        %v1873 = vpop.f32.mrb[0].mxu0
        %v1874 = vadd.f32 0.0, %v1873
        %1875 = vdwg.mxu0
        %1876 = vmatprep.subr.mxu0 0.0
        %1877 = vmatpush1.msra.mxu0 %v1759
        %1878 = vmatprep.subr.mxu0 0.0
        %1879 = vmatpush1.msra.mxu0 %v1762
        %1880 = vmatprep.subr.mxu0 0.0
        %1881 = vmatpush1.msra.mxu0 %v1765
        %1882 = vmatprep.subr.mxu0 0.0
        %1883 = vmatpush1.msra.mxu0 %v1768
        %1884 = vmatprep.subr.mxu0 0.0
        %1885 = vmatpush1.msra.mxu0 %v1771
        %1886 = vmatprep.subr.mxu0 0.0
        %1887 = vmatpush1.msra.mxu0 %v1774
        %1888 = vmatprep.subr.mxu0 0.0
        %1889 = vmatpush1.msra.mxu0 %v1777
        %1890 = vmatprep.subr.mxu0 0.0
        %1891 = vmatpush1.msra.mxu0 %v1780
        %1892 = vmatprep.subr.mxu0 0.0
        %1893 = vmatpush1.msra.mxu0 %v1783
        %1894 = vmatprep.subr.mxu0 0.0
        %1895 = vmatpush1.msra.mxu0 %v1786
        %1896 = vmatprep.subr.mxu0 0.0
        %1897 = vmatpush1.msra.mxu0 %v1789
        %1898 = vmatprep.subr.mxu0 0.0
        %1899 = vmatpush1.msra.mxu0 %v1792
        %1900 = vmatprep.subr.mxu0 0.0
        %1901 = vmatpush1.msra.mxu0 %v1795
        %1902 = vmatprep.subr.mxu0 0.0
        %1903 = vmatpush1.msra.mxu0 %v1798
        %1904 = vmatprep.subr.mxu0 0.0
        %1905 = vmatpush1.msra.mxu0 %v1801
        %1906 = vmatprep.subr.mxu0 0.0
        %1907 = vmatpush1.msra.mxu0 %v1804
        %1908 = vmatprep.subr.mxu0 0.0
        %1909 = vmatpush1.msra.mxu0 0.0
        %1910 = vmatprep.subr.mxu0 0.0
        %1911 = vmatpush1.msra.mxu0 0.0
        %1912 = vmatprep.subr.mxu0 0.0
        %1913 = vmatpush1.msra.mxu0 0.0
        %1914 = vmatprep.subr.mxu0 0.0
        %1915 = vmatpush1.msra.mxu0 0.0
        %1916 = vmatprep.subr.mxu0 0.0
        %1917 = vmatpush1.msra.mxu0 0.0
        %1918 = vmatprep.subr.mxu0 0.0
        %1919 = vmatpush1.msra.mxu0 0.0
        %1920 = vmatprep.subr.mxu0 0.0
        %1921 = vmatpush1.msra.mxu0 0.0
        %1922 = vmatprep.subr.mxu0 0.0
        %1923 = vmatpush1.msra.mxu0 0.0
        %1924 = vmatprep.subr.mxu0 0.0
        %1925 = vmatpush1.msra.mxu0 0.0
        %1926 = vmatprep.subr.mxu0 0.0
        %1927 = vmatpush1.msra.mxu0 0.0
        %1928 = vmatprep.subr.mxu0 0.0
        %1929 = vmatpush1.msra.mxu0 0.0
        %1930 = vmatprep.subr.mxu0 0.0
        %1931 = vmatpush1.msra.mxu0 0.0
        %1932 = vmatprep.subr.mxu0 0.0
        %1933 = vmatpush1.msra.mxu0 0.0
        %1934 = vmatprep.subr.mxu0 0.0
        %1935 = vmatpush1.msra.mxu0 0.0
        %1936 = vmatprep.subr.mxu0 0.0
        %1937 = vmatpush1.msra.mxu0 0.0
        %1938 = vmatprep.subr.mxu0 0.0
        %1939 = vmatpush1.msra.mxu0 0.0
        %1940 = vmatprep.mubr.f32.mxu0 0.0
        %1941 = vmatmul.mubr.f32.gmra.mrb[0].mxu0 %v1745
        %v1942 = vpop.f32.mrb[0].mxu0
        %v1943 = vadd.f32 0.0, %v1942
        %v1944 = vpop.f32.mrb[0].mxu0
        %1945 = vdwg.mxu0
        %v1946 = vadd.f32 %v1754, %v1872
        %v1947 = vxor.u32 %v1946, 2147483648
        %v1948 = vmul.f32 %v1947, 1.442695
        %v1949 = vpow.pop %v1948
        %v1950 = vadd.f32 %v1949, 1.0
        %v1951 = vrcp.pop %v1950
        %v1952 = vmul.f32 1.0, %v1951
        %v1953 = vadd.f32 %v1755, %v1874
        %v1954 = vxor.u32 %v1953, 2147483648
        %v1955 = vmul.f32 %v1954, 1.442695
        %v1956 = vpow.pop %v1955
        %v1957 = vadd.f32 %v1956, 1.0
        %v1958 = vrcp.pop %v1957
        %v1959 = vmul.f32 1.0, %v1958
        %v1960 = vadd.f32 %v1943, %v415
        %v1961 = vmul.f32 %v1952, %v1960
        %v1962 = vadd.f32 %v1756, %v1961
        %v1963 = vtanh.pop %v1962
        %v1964 = vsub.f32 1.0, %v1959
        %v1965 = vmul.f32 %v1964, %v1963
        %v1966 = vmul.f32 %v1959, %v1745
        %v1967 = vadd.f32 %v1965, %v1966
        %s1968 = smul.u32 %s1750, 8
        %s1969 = scalar_lea.vmem %s375, %s1968 [#allocation4]
        %1970 = vst [vmem:[%s1969] sm:$0xff] %v1967
        %s1971 = sadd.s32 %s23, 7
        %s1972 = smul.u32 %s1971, 3
        %s1973 = smul.addr %s1972, 8
        %s1974 = scalar_lea.vmem %s347, %s1973 [#allocation3]
        %v1975 = vld [vmem:[%s1974] sm:$0xff]
        %v1976 = vld [vmem:[%s1974 + $0x8] sm:$0xff]
        %v1977 = vld [vmem:[%s1974 + $0x10] sm:$0xff]
        %v1978 = vld [vmem:[%s392] sm:$0xff]
        %v1979 = vld [vmem:[%s392 + $0x8] sm:$0xff]
        %v1980 = vld [vmem:[%s392 + $0x10] sm:$0xff]
        %v1981 = vld [vmem:[%s392 + $0x18] sm:$0xff]
        %v1982 = vld [vmem:[%s392 + $0x20] sm:$0xff]
        %v1983 = vld [vmem:[%s392 + $0x28] sm:$0xff]
        %v1984 = vld [vmem:[%s392 + $0x30] sm:$0xff]
        %v1985 = vld [vmem:[%s392 + $0x38] sm:$0xff]
        %v1986 = vld [vmem:[%s392 + $0x40] sm:$0xff]
        %v1987 = vld [vmem:[%s392 + $0x48] sm:$0xff]
        %v1988 = vld [vmem:[%s392 + $0x50] sm:$0xff]
        %v1989 = vld [vmem:[%s392 + $0x58] sm:$0xff]
        %v1990 = vld [vmem:[%s392 + $0x60] sm:$0xff]
        %v1991 = vld [vmem:[%s392 + $0x68] sm:$0xff]
        %v1992 = vld [vmem:[%s392 + $0x70] sm:$0xff]
        %v1993 = vld [vmem:[%s392 + $0x78] sm:$0xff]
        %v1994 = vld [vmem:[%s392 + $0x80] sm:$0xff]
        %v1995 = vld [vmem:[%s392 + $0x88] sm:$0xff]
        %v1996 = vld [vmem:[%s392 + $0x90] sm:$0xff]
        %v1997 = vld [vmem:[%s392 + $0x98] sm:$0xff]
        %v1998 = vld [vmem:[%s392 + $0xa0] sm:$0xff]
        %v1999 = vld [vmem:[%s392 + $0xa8] sm:$0xff]
        %v2000 = vld [vmem:[%s392 + $0xb0] sm:$0xff]
        %v2001 = vld [vmem:[%s392 + $0xb8] sm:$0xff]
        %v2002 = vld [vmem:[%s392 + $0xc0] sm:$0xff]
        %v2003 = vld [vmem:[%s392 + $0xc8] sm:$0xff]
        %v2004 = vld [vmem:[%s392 + $0xd0] sm:$0xff]
        %v2005 = vld [vmem:[%s392 + $0xd8] sm:$0xff]
        %v2006 = vld [vmem:[%s392 + $0xe0] sm:$0xff]
        %v2007 = vld [vmem:[%s392 + $0xe8] sm:$0xff]
        %v2008 = vld [vmem:[%s392 + $0xf0] sm:$0xff]
        %v2009 = vld [vmem:[%s392 + $0xf8] sm:$0xff]
        %v2010 = vld [vmem:[%s392 + $0x100] sm:$0xff]
        %v2011 = vld [vmem:[%s392 + $0x108] sm:$0xff]
        %v2012 = vld [vmem:[%s392 + $0x110] sm:$0xff]
        %v2013 = vld [vmem:[%s392 + $0x118] sm:$0xff]
        %v2014 = vld [vmem:[%s392 + $0x120] sm:$0xff]
        %v2015 = vld [vmem:[%s392 + $0x128] sm:$0xff]
        %v2016 = vld [vmem:[%s392 + $0x130] sm:$0xff]
        %v2017 = vld [vmem:[%s392 + $0x138] sm:$0xff]
        %v2018 = vld [vmem:[%s392 + $0x140] sm:$0xff]
        %v2019 = vld [vmem:[%s392 + $0x148] sm:$0xff]
        %v2020 = vld [vmem:[%s392 + $0x150] sm:$0xff]
        %v2021 = vld [vmem:[%s392 + $0x158] sm:$0xff]
        %v2022 = vld [vmem:[%s392 + $0x160] sm:$0xff]
        %v2023 = vld [vmem:[%s392 + $0x168] sm:$0xff]
        %v2024 = vld [vmem:[%s392 + $0x170] sm:$0xff]
        %v2025 = vld [vmem:[%s392 + $0x178] sm:$0xff]
        %2026 = vmatprep.subr.mxu0 %v1979
        %2027 = vmatpush1.msra.mxu0 %v1978
        %2028 = vmatprep.subr.mxu0 %v1982
        %2029 = vmatpush1.msra.mxu0 %v1981
        %2030 = vmatprep.subr.mxu0 %v1985
        %2031 = vmatpush1.msra.mxu0 %v1984
        %2032 = vmatprep.subr.mxu0 %v1988
        %2033 = vmatpush1.msra.mxu0 %v1987
        %2034 = vmatprep.subr.mxu0 %v1991
        %2035 = vmatpush1.msra.mxu0 %v1990
        %2036 = vmatprep.subr.mxu0 %v1994
        %2037 = vmatpush1.msra.mxu0 %v1993
        %2038 = vmatprep.subr.mxu0 %v1997
        %2039 = vmatpush1.msra.mxu0 %v1996
        %2040 = vmatprep.subr.mxu0 %v2000
        %2041 = vmatpush1.msra.mxu0 %v1999
        %2042 = vmatprep.subr.mxu0 %v2003
        %2043 = vmatpush1.msra.mxu0 %v2002
        %2044 = vmatprep.subr.mxu0 %v2006
        %2045 = vmatpush1.msra.mxu0 %v2005
        %2046 = vmatprep.subr.mxu0 %v2009
        %2047 = vmatpush1.msra.mxu0 %v2008
        %2048 = vmatprep.subr.mxu0 %v2012
        %2049 = vmatpush1.msra.mxu0 %v2011
        %2050 = vmatprep.subr.mxu0 %v2015
        %2051 = vmatpush1.msra.mxu0 %v2014
        %2052 = vmatprep.subr.mxu0 %v2018
        %2053 = vmatpush1.msra.mxu0 %v2017
        %2054 = vmatprep.subr.mxu0 %v2021
        %2055 = vmatpush1.msra.mxu0 %v2020
        %2056 = vmatprep.subr.mxu0 %v2024
        %2057 = vmatpush1.msra.mxu0 %v2023
        %2058 = vmatprep.subr.mxu0 0.0
        %2059 = vmatpush1.msra.mxu0 0.0
        %2060 = vmatprep.subr.mxu0 0.0
        %2061 = vmatpush1.msra.mxu0 0.0
        %2062 = vmatprep.subr.mxu0 0.0
        %2063 = vmatpush1.msra.mxu0 0.0
        %2064 = vmatprep.subr.mxu0 0.0
        %2065 = vmatpush1.msra.mxu0 0.0
        %2066 = vmatprep.subr.mxu0 0.0
        %2067 = vmatpush1.msra.mxu0 0.0
        %2068 = vmatprep.subr.mxu0 0.0
        %2069 = vmatpush1.msra.mxu0 0.0
        %2070 = vmatprep.subr.mxu0 0.0
        %2071 = vmatpush1.msra.mxu0 0.0
        %2072 = vmatprep.subr.mxu0 0.0
        %2073 = vmatpush1.msra.mxu0 0.0
        %2074 = vmatprep.subr.mxu0 0.0
        %2075 = vmatpush1.msra.mxu0 0.0
        %2076 = vmatprep.subr.mxu0 0.0
        %2077 = vmatpush1.msra.mxu0 0.0
        %2078 = vmatprep.subr.mxu0 0.0
        %2079 = vmatpush1.msra.mxu0 0.0
        %2080 = vmatprep.subr.mxu0 0.0
        %2081 = vmatpush1.msra.mxu0 0.0
        %2082 = vmatprep.subr.mxu0 0.0
        %2083 = vmatpush1.msra.mxu0 0.0
        %2084 = vmatprep.subr.mxu0 0.0
        %2085 = vmatpush1.msra.mxu0 0.0
        %2086 = vmatprep.subr.mxu0 0.0
        %2087 = vmatpush1.msra.mxu0 0.0
        %2088 = vmatprep.subr.mxu0 0.0
        %2089 = vmatpush1.msra.mxu0 0.0
        %2090 = vmatprep.mubr.f32.mxu0 0.0
        %2091 = vmatmul.mubr.f32.gmra.mrb[0].mxu0 %v1967
        %v2092 = vpop.f32.mrb[0].mxu0
        %v2093 = vadd.f32 0.0, %v2092
        %v2094 = vpop.f32.mrb[0].mxu0
        %v2095 = vadd.f32 0.0, %v2094
        %2096 = vdwg.mxu0
        %2097 = vmatprep.subr.mxu0 0.0
        %2098 = vmatpush1.msra.mxu0 %v1980
        %2099 = vmatprep.subr.mxu0 0.0
        %2100 = vmatpush1.msra.mxu0 %v1983
        %2101 = vmatprep.subr.mxu0 0.0
        %2102 = vmatpush1.msra.mxu0 %v1986
        %2103 = vmatprep.subr.mxu0 0.0
        %2104 = vmatpush1.msra.mxu0 %v1989
        %2105 = vmatprep.subr.mxu0 0.0
        %2106 = vmatpush1.msra.mxu0 %v1992
        %2107 = vmatprep.subr.mxu0 0.0
        %2108 = vmatpush1.msra.mxu0 %v1995
        %2109 = vmatprep.subr.mxu0 0.0
        %2110 = vmatpush1.msra.mxu0 %v1998
        %2111 = vmatprep.subr.mxu0 0.0
        %2112 = vmatpush1.msra.mxu0 %v2001
        %2113 = vmatprep.subr.mxu0 0.0
        %2114 = vmatpush1.msra.mxu0 %v2004
        %2115 = vmatprep.subr.mxu0 0.0
        %2116 = vmatpush1.msra.mxu0 %v2007
        %2117 = vmatprep.subr.mxu0 0.0
        %2118 = vmatpush1.msra.mxu0 %v2010
        %2119 = vmatprep.subr.mxu0 0.0
        %2120 = vmatpush1.msra.mxu0 %v2013
        %2121 = vmatprep.subr.mxu0 0.0
        %2122 = vmatpush1.msra.mxu0 %v2016
        %2123 = vmatprep.subr.mxu0 0.0
        %2124 = vmatpush1.msra.mxu0 %v2019
        %2125 = vmatprep.subr.mxu0 0.0
        %2126 = vmatpush1.msra.mxu0 %v2022
        %2127 = vmatprep.subr.mxu0 0.0
        %2128 = vmatpush1.msra.mxu0 %v2025
        %2129 = vmatprep.subr.mxu0 0.0
        %2130 = vmatpush1.msra.mxu0 0.0
        %2131 = vmatprep.subr.mxu0 0.0
        %2132 = vmatpush1.msra.mxu0 0.0
        %2133 = vmatprep.subr.mxu0 0.0
        %2134 = vmatpush1.msra.mxu0 0.0
        %2135 = vmatprep.subr.mxu0 0.0
        %2136 = vmatpush1.msra.mxu0 0.0
        %2137 = vmatprep.subr.mxu0 0.0
        %2138 = vmatpush1.msra.mxu0 0.0
        %2139 = vmatprep.subr.mxu0 0.0
        %2140 = vmatpush1.msra.mxu0 0.0
        %2141 = vmatprep.subr.mxu0 0.0
        %2142 = vmatpush1.msra.mxu0 0.0
        %2143 = vmatprep.subr.mxu0 0.0
        %2144 = vmatpush1.msra.mxu0 0.0
        %2145 = vmatprep.subr.mxu0 0.0
        %2146 = vmatpush1.msra.mxu0 0.0
        %2147 = vmatprep.subr.mxu0 0.0
        %2148 = vmatpush1.msra.mxu0 0.0
        %2149 = vmatprep.subr.mxu0 0.0
        %2150 = vmatpush1.msra.mxu0 0.0
        %2151 = vmatprep.subr.mxu0 0.0
        %2152 = vmatpush1.msra.mxu0 0.0
        %2153 = vmatprep.subr.mxu0 0.0
        %2154 = vmatpush1.msra.mxu0 0.0
        %2155 = vmatprep.subr.mxu0 0.0
        %2156 = vmatpush1.msra.mxu0 0.0
        %2157 = vmatprep.subr.mxu0 0.0
        %2158 = vmatpush1.msra.mxu0 0.0
        %2159 = vmatprep.subr.mxu0 0.0
        %2160 = vmatpush1.msra.mxu0 0.0
        %2161 = vmatprep.mubr.f32.mxu0 0.0
        %2162 = vmatmul.mubr.f32.gmra.mrb[0].mxu0 %v1967
        %v2163 = vpop.f32.mrb[0].mxu0
        %v2164 = vadd.f32 0.0, %v2163
        %v2165 = vpop.f32.mrb[0].mxu0
        %2166 = vdwg.mxu0
        %v2167 = vadd.f32 %v1975, %v2093
        %v2168 = vxor.u32 %v2167, 2147483648
        %v2169 = vmul.f32 %v2168, 1.442695
        %v2170 = vpow.pop %v2169
        %v2171 = vadd.f32 %v2170, 1.0
        %v2172 = vrcp.pop %v2171
        %v2173 = vmul.f32 1.0, %v2172
        %v2174 = vadd.f32 %v1976, %v2095
        %v2175 = vxor.u32 %v2174, 2147483648
        %v2176 = vmul.f32 %v2175, 1.442695
        %v2177 = vpow.pop %v2176
        %v2178 = vadd.f32 %v2177, 1.0
        %v2179 = vrcp.pop %v2178
        %v2180 = vmul.f32 1.0, %v2179
        %v2181 = vadd.f32 %v2164, %v415
        %v2182 = vmul.f32 %v2173, %v2181
        %v2183 = vadd.f32 %v1977, %v2182
        %v2184 = vtanh.pop %v2183
        %v2185 = vsub.f32 1.0, %v2180
        %v2186 = vmul.f32 %v2185, %v2184
        %v2187 = vmul.f32 %v2180, %v1967
        %v2188 = vadd.f32 %v2186, %v2187
        %s2189 = smul.u32 %s1971, 8
        %s2190 = scalar_lea.vmem %s375, %s2189 [#allocation4]
        %2191 = vst [vmem:[%s2190] sm:$0xff] %v2188
        %s2192 = ssub.s32 8, %s23
        %s2193 = smul.u32 %s2192, 3
        %s2194 = smul.addr %s2193, 8
        %s2195 = scalar_lea.vmem %s347, %s2194 [#allocation3]
        %v2196 = vld [vmem:[%s2195] sm:$0xff]
        %v2197 = vld [vmem:[%s2195 + $0x8] sm:$0xff]
        %v2198 = vld [vmem:[%s2195 + $0x10] sm:$0xff]
        %v2199 = vld [vmem:[%s392] sm:$0xff]
        %v2200 = vld [vmem:[%s392 + $0x8] sm:$0xff]
        %v2201 = vld [vmem:[%s392 + $0x10] sm:$0xff]
        %v2202 = vld [vmem:[%s392 + $0x18] sm:$0xff]
        %v2203 = vld [vmem:[%s392 + $0x20] sm:$0xff]
        %v2204 = vld [vmem:[%s392 + $0x28] sm:$0xff]
        %v2205 = vld [vmem:[%s392 + $0x30] sm:$0xff]
        %v2206 = vld [vmem:[%s392 + $0x38] sm:$0xff]
        %v2207 = vld [vmem:[%s392 + $0x40] sm:$0xff]
        %v2208 = vld [vmem:[%s392 + $0x48] sm:$0xff]
        %v2209 = vld [vmem:[%s392 + $0x50] sm:$0xff]
        %v2210 = vld [vmem:[%s392 + $0x58] sm:$0xff]
        %v2211 = vld [vmem:[%s392 + $0x60] sm:$0xff]
        %v2212 = vld [vmem:[%s392 + $0x68] sm:$0xff]
        %v2213 = vld [vmem:[%s392 + $0x70] sm:$0xff]
        %v2214 = vld [vmem:[%s392 + $0x78] sm:$0xff]
        %v2215 = vld [vmem:[%s392 + $0x80] sm:$0xff]
        %v2216 = vld [vmem:[%s392 + $0x88] sm:$0xff]
        %v2217 = vld [vmem:[%s392 + $0x90] sm:$0xff]
        %v2218 = vld [vmem:[%s392 + $0x98] sm:$0xff]
        %v2219 = vld [vmem:[%s392 + $0xa0] sm:$0xff]
        %v2220 = vld [vmem:[%s392 + $0xa8] sm:$0xff]
        %v2221 = vld [vmem:[%s392 + $0xb0] sm:$0xff]
        %v2222 = vld [vmem:[%s392 + $0xb8] sm:$0xff]
        %v2223 = vld [vmem:[%s392 + $0xc0] sm:$0xff]
        %v2224 = vld [vmem:[%s392 + $0xc8] sm:$0xff]
        %v2225 = vld [vmem:[%s392 + $0xd0] sm:$0xff]
        %v2226 = vld [vmem:[%s392 + $0xd8] sm:$0xff]
        %v2227 = vld [vmem:[%s392 + $0xe0] sm:$0xff]
        %v2228 = vld [vmem:[%s392 + $0xe8] sm:$0xff]
        %v2229 = vld [vmem:[%s392 + $0xf0] sm:$0xff]
        %v2230 = vld [vmem:[%s392 + $0xf8] sm:$0xff]
        %v2231 = vld [vmem:[%s392 + $0x100] sm:$0xff]
        %v2232 = vld [vmem:[%s392 + $0x108] sm:$0xff]
        %v2233 = vld [vmem:[%s392 + $0x110] sm:$0xff]
        %v2234 = vld [vmem:[%s392 + $0x118] sm:$0xff]
        %v2235 = vld [vmem:[%s392 + $0x120] sm:$0xff]
        %v2236 = vld [vmem:[%s392 + $0x128] sm:$0xff]
        %v2237 = vld [vmem:[%s392 + $0x130] sm:$0xff]
        %v2238 = vld [vmem:[%s392 + $0x138] sm:$0xff]
        %v2239 = vld [vmem:[%s392 + $0x140] sm:$0xff]
        %v2240 = vld [vmem:[%s392 + $0x148] sm:$0xff]
        %v2241 = vld [vmem:[%s392 + $0x150] sm:$0xff]
        %v2242 = vld [vmem:[%s392 + $0x158] sm:$0xff]
        %v2243 = vld [vmem:[%s392 + $0x160] sm:$0xff]
        %v2244 = vld [vmem:[%s392 + $0x168] sm:$0xff]
        %v2245 = vld [vmem:[%s392 + $0x170] sm:$0xff]
        %v2246 = vld [vmem:[%s392 + $0x178] sm:$0xff]
        %2247 = vmatprep.subr.mxu0 %v2200
        %2248 = vmatpush1.msra.mxu0 %v2199
        %2249 = vmatprep.subr.mxu0 %v2203
        %2250 = vmatpush1.msra.mxu0 %v2202
        %2251 = vmatprep.subr.mxu0 %v2206
        %2252 = vmatpush1.msra.mxu0 %v2205
        %2253 = vmatprep.subr.mxu0 %v2209
        %2254 = vmatpush1.msra.mxu0 %v2208
        %2255 = vmatprep.subr.mxu0 %v2212
        %2256 = vmatpush1.msra.mxu0 %v2211
        %2257 = vmatprep.subr.mxu0 %v2215
        %2258 = vmatpush1.msra.mxu0 %v2214
        %2259 = vmatprep.subr.mxu0 %v2218
        %2260 = vmatpush1.msra.mxu0 %v2217
        %2261 = vmatprep.subr.mxu0 %v2221
        %2262 = vmatpush1.msra.mxu0 %v2220
        %2263 = vmatprep.subr.mxu0 %v2224
        %2264 = vmatpush1.msra.mxu0 %v2223
        %2265 = vmatprep.subr.mxu0 %v2227
        %2266 = vmatpush1.msra.mxu0 %v2226
        %2267 = vmatprep.subr.mxu0 %v2230
        %2268 = vmatpush1.msra.mxu0 %v2229
        %2269 = vmatprep.subr.mxu0 %v2233
        %2270 = vmatpush1.msra.mxu0 %v2232
        %2271 = vmatprep.subr.mxu0 %v2236
        %2272 = vmatpush1.msra.mxu0 %v2235
        %2273 = vmatprep.subr.mxu0 %v2239
        %2274 = vmatpush1.msra.mxu0 %v2238
        %2275 = vmatprep.subr.mxu0 %v2242
        %2276 = vmatpush1.msra.mxu0 %v2241
        %2277 = vmatprep.subr.mxu0 %v2245
        %2278 = vmatpush1.msra.mxu0 %v2244
        %2279 = vmatprep.subr.mxu0 0.0
        %2280 = vmatpush1.msra.mxu0 0.0
        %2281 = vmatprep.subr.mxu0 0.0
        %2282 = vmatpush1.msra.mxu0 0.0
        %2283 = vmatprep.subr.mxu0 0.0
        %2284 = vmatpush1.msra.mxu0 0.0
        %2285 = vmatprep.subr.mxu0 0.0
        %2286 = vmatpush1.msra.mxu0 0.0
        %2287 = vmatprep.subr.mxu0 0.0
        %2288 = vmatpush1.msra.mxu0 0.0
        %2289 = vmatprep.subr.mxu0 0.0
        %2290 = vmatpush1.msra.mxu0 0.0
        %2291 = vmatprep.subr.mxu0 0.0
        %2292 = vmatpush1.msra.mxu0 0.0
        %2293 = vmatprep.subr.mxu0 0.0
        %2294 = vmatpush1.msra.mxu0 0.0
        %2295 = vmatprep.subr.mxu0 0.0
        %2296 = vmatpush1.msra.mxu0 0.0
        %2297 = vmatprep.subr.mxu0 0.0
        %2298 = vmatpush1.msra.mxu0 0.0
        %2299 = vmatprep.subr.mxu0 0.0
        %2300 = vmatpush1.msra.mxu0 0.0
        %2301 = vmatprep.subr.mxu0 0.0
        %2302 = vmatpush1.msra.mxu0 0.0
        %2303 = vmatprep.subr.mxu0 0.0
        %2304 = vmatpush1.msra.mxu0 0.0
        %2305 = vmatprep.subr.mxu0 0.0
        %2306 = vmatpush1.msra.mxu0 0.0
        %2307 = vmatprep.subr.mxu0 0.0
        %2308 = vmatpush1.msra.mxu0 0.0
        %2309 = vmatprep.subr.mxu0 0.0
        %2310 = vmatpush1.msra.mxu0 0.0
        %2311 = vmatprep.mubr.f32.mxu0 0.0
        %2312 = vmatmul.mubr.f32.gmra.mrb[0].mxu0 %v2188
        %v2313 = vpop.f32.mrb[0].mxu0
        %v2314 = vadd.f32 0.0, %v2313
        %v2315 = vpop.f32.mrb[0].mxu0
        %v2316 = vadd.f32 0.0, %v2315
        %2317 = vdwg.mxu0
        %2318 = vmatprep.subr.mxu0 0.0
        %2319 = vmatpush1.msra.mxu0 %v2201
        %2320 = vmatprep.subr.mxu0 0.0
        %2321 = vmatpush1.msra.mxu0 %v2204
        %2322 = vmatprep.subr.mxu0 0.0
        %2323 = vmatpush1.msra.mxu0 %v2207
        %2324 = vmatprep.subr.mxu0 0.0
        %2325 = vmatpush1.msra.mxu0 %v2210
        %2326 = vmatprep.subr.mxu0 0.0
        %2327 = vmatpush1.msra.mxu0 %v2213
        %2328 = vmatprep.subr.mxu0 0.0
        %2329 = vmatpush1.msra.mxu0 %v2216
        %2330 = vmatprep.subr.mxu0 0.0
        %2331 = vmatpush1.msra.mxu0 %v2219
        %2332 = vmatprep.subr.mxu0 0.0
        %2333 = vmatpush1.msra.mxu0 %v2222
        %2334 = vmatprep.subr.mxu0 0.0
        %2335 = vmatpush1.msra.mxu0 %v2225
        %2336 = vmatprep.subr.mxu0 0.0
        %2337 = vmatpush1.msra.mxu0 %v2228
        %2338 = vmatprep.subr.mxu0 0.0
        %2339 = vmatpush1.msra.mxu0 %v2231
        %2340 = vmatprep.subr.mxu0 0.0
        %2341 = vmatpush1.msra.mxu0 %v2234
        %2342 = vmatprep.subr.mxu0 0.0
        %2343 = vmatpush1.msra.mxu0 %v2237
        %2344 = vmatprep.subr.mxu0 0.0
        %2345 = vmatpush1.msra.mxu0 %v2240
        %2346 = vmatprep.subr.mxu0 0.0
        %2347 = vmatpush1.msra.mxu0 %v2243
        %2348 = vmatprep.subr.mxu0 0.0
        %2349 = vmatpush1.msra.mxu0 %v2246
        %2350 = vmatprep.subr.mxu0 0.0
        %2351 = vmatpush1.msra.mxu0 0.0
        %2352 = vmatprep.subr.mxu0 0.0
        %2353 = vmatpush1.msra.mxu0 0.0
        %2354 = vmatprep.subr.mxu0 0.0
        %2355 = vmatpush1.msra.mxu0 0.0
        %2356 = vmatprep.subr.mxu0 0.0
        %2357 = vmatpush1.msra.mxu0 0.0
        %2358 = vmatprep.subr.mxu0 0.0
        %2359 = vmatpush1.msra.mxu0 0.0
        %2360 = vmatprep.subr.mxu0 0.0
        %2361 = vmatpush1.msra.mxu0 0.0
        %2362 = vmatprep.subr.mxu0 0.0
        %2363 = vmatpush1.msra.mxu0 0.0
        %2364 = vmatprep.subr.mxu0 0.0
        %2365 = vmatpush1.msra.mxu0 0.0
        %2366 = vmatprep.subr.mxu0 0.0
        %2367 = vmatpush1.msra.mxu0 0.0
        %2368 = vmatprep.subr.mxu0 0.0
        %2369 = vmatpush1.msra.mxu0 0.0
        %2370 = vmatprep.subr.mxu0 0.0
        %2371 = vmatpush1.msra.mxu0 0.0
        %2372 = vmatprep.subr.mxu0 0.0
        %2373 = vmatpush1.msra.mxu0 0.0
        %2374 = vmatprep.subr.mxu0 0.0
        %2375 = vmatpush1.msra.mxu0 0.0
        %2376 = vmatprep.subr.mxu0 0.0
        %2377 = vmatpush1.msra.mxu0 0.0
        %2378 = vmatprep.subr.mxu0 0.0
        %2379 = vmatpush1.msra.mxu0 0.0
        %2380 = vmatprep.subr.mxu0 0.0
        %2381 = vmatpush1.msra.mxu0 0.0
        %2382 = vmatprep.mubr.f32.mxu0 0.0
        %2383 = vmatmul.mubr.f32.gmra.mrb[0].mxu0 %v2188
        %v2384 = vpop.f32.mrb[0].mxu0
        %v2385 = vadd.f32 0.0, %v2384
        %v2386 = vpop.f32.mrb[0].mxu0
        %2387 = vdwg.mxu0
        %v2388 = vadd.f32 %v2196, %v2314
        %v2389 = vxor.u32 %v2388, 2147483648
        %v2390 = vmul.f32 %v2389, 1.442695
        %v2391 = vpow.pop %v2390
        %v2392 = vadd.f32 %v2391, 1.0
        %v2393 = vrcp.pop %v2392
        %v2394 = vmul.f32 1.0, %v2393
        %v2395 = vadd.f32 %v2197, %v2316
        %v2396 = vxor.u32 %v2395, 2147483648
        %v2397 = vmul.f32 %v2396, 1.442695
        %v2398 = vpow.pop %v2397
        %v2399 = vadd.f32 %v2398, 1.0
        %v2400 = vrcp.pop %v2399
        %v2401 = vmul.f32 1.0, %v2400
        %v2402 = vadd.f32 %v2385, %v415
        %v2403 = vmul.f32 %v2394, %v2402
        %v2404 = vadd.f32 %v2198, %v2403
        %v2405 = vtanh.pop %v2404
        %v2406 = vsub.f32 1.0, %v2401
        %v2407 = vmul.f32 %v2406, %v2405
        %v2408 = vmul.f32 %v2401, %v2188
        %v2409 = vadd.f32 %v2407, %v2408
        %s2410 = smul.u32 %s2192, 8
        %s2411 = scalar_lea.vmem %s375, %s2410 [#allocation4]
        %2412 = vst [vmem:[%s2411] sm:$0xff] %v2409
        %s2413 = smul.u32 %s23, 4294967293
        %s2414 = sadd.s32 %s2413, 9
        %s2415 = smul.u32 %s2414, 3
        %s2416 = smul.addr %s2415, 8
        %s2417 = scalar_lea.vmem %s347, %s2416 [#allocation3]
        %v2418 = vld [vmem:[%s2417] sm:$0xff]
        %v2419 = vld [vmem:[%s2417 + $0x8] sm:$0xff]
        %v2420 = vld [vmem:[%s2417 + $0x10] sm:$0xff]
        %v2421 = vld [vmem:[%s392] sm:$0xff]
        %v2422 = vld [vmem:[%s392 + $0x8] sm:$0xff]
        %v2423 = vld [vmem:[%s392 + $0x10] sm:$0xff]
        %v2424 = vld [vmem:[%s392 + $0x18] sm:$0xff]
        %v2425 = vld [vmem:[%s392 + $0x20] sm:$0xff]
        %v2426 = vld [vmem:[%s392 + $0x28] sm:$0xff]
        %v2427 = vld [vmem:[%s392 + $0x30] sm:$0xff]
        %v2428 = vld [vmem:[%s392 + $0x38] sm:$0xff]
        %v2429 = vld [vmem:[%s392 + $0x40] sm:$0xff]
        %v2430 = vld [vmem:[%s392 + $0x48] sm:$0xff]
        %v2431 = vld [vmem:[%s392 + $0x50] sm:$0xff]
        %v2432 = vld [vmem:[%s392 + $0x58] sm:$0xff]
        %v2433 = vld [vmem:[%s392 + $0x60] sm:$0xff]
        %v2434 = vld [vmem:[%s392 + $0x68] sm:$0xff]
        %v2435 = vld [vmem:[%s392 + $0x70] sm:$0xff]
        %v2436 = vld [vmem:[%s392 + $0x78] sm:$0xff]
        %v2437 = vld [vmem:[%s392 + $0x80] sm:$0xff]
        %v2438 = vld [vmem:[%s392 + $0x88] sm:$0xff]
        %v2439 = vld [vmem:[%s392 + $0x90] sm:$0xff]
        %v2440 = vld [vmem:[%s392 + $0x98] sm:$0xff]
        %v2441 = vld [vmem:[%s392 + $0xa0] sm:$0xff]
        %v2442 = vld [vmem:[%s392 + $0xa8] sm:$0xff]
        %v2443 = vld [vmem:[%s392 + $0xb0] sm:$0xff]
        %v2444 = vld [vmem:[%s392 + $0xb8] sm:$0xff]
        %v2445 = vld [vmem:[%s392 + $0xc0] sm:$0xff]
        %v2446 = vld [vmem:[%s392 + $0xc8] sm:$0xff]
        %v2447 = vld [vmem:[%s392 + $0xd0] sm:$0xff]
        %v2448 = vld [vmem:[%s392 + $0xd8] sm:$0xff]
        %v2449 = vld [vmem:[%s392 + $0xe0] sm:$0xff]
        %v2450 = vld [vmem:[%s392 + $0xe8] sm:$0xff]
        %v2451 = vld [vmem:[%s392 + $0xf0] sm:$0xff]
        %v2452 = vld [vmem:[%s392 + $0xf8] sm:$0xff]
        %v2453 = vld [vmem:[%s392 + $0x100] sm:$0xff]
        %v2454 = vld [vmem:[%s392 + $0x108] sm:$0xff]
        %v2455 = vld [vmem:[%s392 + $0x110] sm:$0xff]
        %v2456 = vld [vmem:[%s392 + $0x118] sm:$0xff]
        %v2457 = vld [vmem:[%s392 + $0x120] sm:$0xff]
        %v2458 = vld [vmem:[%s392 + $0x128] sm:$0xff]
        %v2459 = vld [vmem:[%s392 + $0x130] sm:$0xff]
        %v2460 = vld [vmem:[%s392 + $0x138] sm:$0xff]
        %v2461 = vld [vmem:[%s392 + $0x140] sm:$0xff]
        %v2462 = vld [vmem:[%s392 + $0x148] sm:$0xff]
        %v2463 = vld [vmem:[%s392 + $0x150] sm:$0xff]
        %v2464 = vld [vmem:[%s392 + $0x158] sm:$0xff]
        %v2465 = vld [vmem:[%s392 + $0x160] sm:$0xff]
        %v2466 = vld [vmem:[%s392 + $0x168] sm:$0xff]
        %v2467 = vld [vmem:[%s392 + $0x170] sm:$0xff]
        %v2468 = vld [vmem:[%s392 + $0x178] sm:$0xff]
        %2469 = vmatprep.subr.mxu0 %v2422
        %2470 = vmatpush1.msra.mxu0 %v2421
        %2471 = vmatprep.subr.mxu0 %v2425
        %2472 = vmatpush1.msra.mxu0 %v2424
        %2473 = vmatprep.subr.mxu0 %v2428
        %2474 = vmatpush1.msra.mxu0 %v2427
        %2475 = vmatprep.subr.mxu0 %v2431
        %2476 = vmatpush1.msra.mxu0 %v2430
        %2477 = vmatprep.subr.mxu0 %v2434
        %2478 = vmatpush1.msra.mxu0 %v2433
        %2479 = vmatprep.subr.mxu0 %v2437
        %2480 = vmatpush1.msra.mxu0 %v2436
        %2481 = vmatprep.subr.mxu0 %v2440
        %2482 = vmatpush1.msra.mxu0 %v2439
        %2483 = vmatprep.subr.mxu0 %v2443
        %2484 = vmatpush1.msra.mxu0 %v2442
        %2485 = vmatprep.subr.mxu0 %v2446
        %2486 = vmatpush1.msra.mxu0 %v2445
        %2487 = vmatprep.subr.mxu0 %v2449
        %2488 = vmatpush1.msra.mxu0 %v2448
        %2489 = vmatprep.subr.mxu0 %v2452
        %2490 = vmatpush1.msra.mxu0 %v2451
        %2491 = vmatprep.subr.mxu0 %v2455
        %2492 = vmatpush1.msra.mxu0 %v2454
        %2493 = vmatprep.subr.mxu0 %v2458
        %2494 = vmatpush1.msra.mxu0 %v2457
        %2495 = vmatprep.subr.mxu0 %v2461
        %2496 = vmatpush1.msra.mxu0 %v2460
        %2497 = vmatprep.subr.mxu0 %v2464
        %2498 = vmatpush1.msra.mxu0 %v2463
        %2499 = vmatprep.subr.mxu0 %v2467
        %2500 = vmatpush1.msra.mxu0 %v2466
        %2501 = vmatprep.subr.mxu0 0.0
        %2502 = vmatpush1.msra.mxu0 0.0
        %2503 = vmatprep.subr.mxu0 0.0
        %2504 = vmatpush1.msra.mxu0 0.0
        %2505 = vmatprep.subr.mxu0 0.0
        %2506 = vmatpush1.msra.mxu0 0.0
        %2507 = vmatprep.subr.mxu0 0.0
        %2508 = vmatpush1.msra.mxu0 0.0
        %2509 = vmatprep.subr.mxu0 0.0
        %2510 = vmatpush1.msra.mxu0 0.0
        %2511 = vmatprep.subr.mxu0 0.0
        %2512 = vmatpush1.msra.mxu0 0.0
        %2513 = vmatprep.subr.mxu0 0.0
        %2514 = vmatpush1.msra.mxu0 0.0
        %2515 = vmatprep.subr.mxu0 0.0
        %2516 = vmatpush1.msra.mxu0 0.0
        %2517 = vmatprep.subr.mxu0 0.0
        %2518 = vmatpush1.msra.mxu0 0.0
        %2519 = vmatprep.subr.mxu0 0.0
        %2520 = vmatpush1.msra.mxu0 0.0
        %2521 = vmatprep.subr.mxu0 0.0
        %2522 = vmatpush1.msra.mxu0 0.0
        %2523 = vmatprep.subr.mxu0 0.0
        %2524 = vmatpush1.msra.mxu0 0.0
        %2525 = vmatprep.subr.mxu0 0.0
        %2526 = vmatpush1.msra.mxu0 0.0
        %2527 = vmatprep.subr.mxu0 0.0
        %2528 = vmatpush1.msra.mxu0 0.0
        %2529 = vmatprep.subr.mxu0 0.0
        %2530 = vmatpush1.msra.mxu0 0.0
        %2531 = vmatprep.subr.mxu0 0.0
        %2532 = vmatpush1.msra.mxu0 0.0
        %2533 = vmatprep.mubr.f32.mxu0 0.0
        %2534 = vmatmul.mubr.f32.gmra.mrb[0].mxu0 %v2409
        %v2535 = vpop.f32.mrb[0].mxu0
        %v2536 = vadd.f32 0.0, %v2535
        %v2537 = vpop.f32.mrb[0].mxu0
        %v2538 = vadd.f32 0.0, %v2537
        %2539 = vdwg.mxu0
        %2540 = vmatprep.subr.mxu0 0.0
        %2541 = vmatpush1.msra.mxu0 %v2423
        %2542 = vmatprep.subr.mxu0 0.0
        %2543 = vmatpush1.msra.mxu0 %v2426
        %2544 = vmatprep.subr.mxu0 0.0
        %2545 = vmatpush1.msra.mxu0 %v2429
        %2546 = vmatprep.subr.mxu0 0.0
        %2547 = vmatpush1.msra.mxu0 %v2432
        %2548 = vmatprep.subr.mxu0 0.0
        %2549 = vmatpush1.msra.mxu0 %v2435
        %2550 = vmatprep.subr.mxu0 0.0
        %2551 = vmatpush1.msra.mxu0 %v2438
        %2552 = vmatprep.subr.mxu0 0.0
        %2553 = vmatpush1.msra.mxu0 %v2441
        %2554 = vmatprep.subr.mxu0 0.0
        %2555 = vmatpush1.msra.mxu0 %v2444
        %2556 = vmatprep.subr.mxu0 0.0
        %2557 = vmatpush1.msra.mxu0 %v2447
        %2558 = vmatprep.subr.mxu0 0.0
        %2559 = vmatpush1.msra.mxu0 %v2450
        %2560 = vmatprep.subr.mxu0 0.0
        %2561 = vmatpush1.msra.mxu0 %v2453
        %2562 = vmatprep.subr.mxu0 0.0
        %2563 = vmatpush1.msra.mxu0 %v2456
        %2564 = vmatprep.subr.mxu0 0.0
        %2565 = vmatpush1.msra.mxu0 %v2459
        %2566 = vmatprep.subr.mxu0 0.0
        %2567 = vmatpush1.msra.mxu0 %v2462
        %2568 = vmatprep.subr.mxu0 0.0
        %2569 = vmatpush1.msra.mxu0 %v2465
        %2570 = vmatprep.subr.mxu0 0.0
        %2571 = vmatpush1.msra.mxu0 %v2468
        %2572 = vmatprep.subr.mxu0 0.0
        %2573 = vmatpush1.msra.mxu0 0.0
        %2574 = vmatprep.subr.mxu0 0.0
        %2575 = vmatpush1.msra.mxu0 0.0
        %2576 = vmatprep.subr.mxu0 0.0
        %2577 = vmatpush1.msra.mxu0 0.0
        %2578 = vmatprep.subr.mxu0 0.0
        %2579 = vmatpush1.msra.mxu0 0.0
        %2580 = vmatprep.subr.mxu0 0.0
        %2581 = vmatpush1.msra.mxu0 0.0
        %2582 = vmatprep.subr.mxu0 0.0
        %2583 = vmatpush1.msra.mxu0 0.0
        %2584 = vmatprep.subr.mxu0 0.0
        %2585 = vmatpush1.msra.mxu0 0.0
        %2586 = vmatprep.subr.mxu0 0.0
        %2587 = vmatpush1.msra.mxu0 0.0
        %2588 = vmatprep.subr.mxu0 0.0
        %2589 = vmatpush1.msra.mxu0 0.0
        %2590 = vmatprep.subr.mxu0 0.0
        %2591 = vmatpush1.msra.mxu0 0.0
        %2592 = vmatprep.subr.mxu0 0.0
        %2593 = vmatpush1.msra.mxu0 0.0
        %2594 = vmatprep.subr.mxu0 0.0
        %2595 = vmatpush1.msra.mxu0 0.0
        %2596 = vmatprep.subr.mxu0 0.0
        %2597 = vmatpush1.msra.mxu0 0.0
        %2598 = vmatprep.subr.mxu0 0.0
        %2599 = vmatpush1.msra.mxu0 0.0
        %2600 = vmatprep.subr.mxu0 0.0
        %2601 = vmatpush1.msra.mxu0 0.0
        %2602 = vmatprep.subr.mxu0 0.0
        %2603 = vmatpush1.msra.mxu0 0.0
        %2604 = vmatprep.mubr.f32.mxu0 0.0
        %2605 = vmatmul.mubr.f32.gmra.mrb[0].mxu0 %v2409
        %v2606 = vpop.f32.mrb[0].mxu0
        %v2607 = vadd.f32 0.0, %v2606
        %v2608 = vpop.f32.mrb[0].mxu0
        %2609 = vdwg.mxu0
        %v2610 = vadd.f32 %v2418, %v2536
        %v2611 = vxor.u32 %v2610, 2147483648
        %v2612 = vmul.f32 %v2611, 1.442695
        %v2613 = vpow.pop %v2612
        %v2614 = vadd.f32 %v2613, 1.0
        %v2615 = vrcp.pop %v2614
        %v2616 = vmul.f32 1.0, %v2615
        %v2617 = vadd.f32 %v2419, %v2538
        %v2618 = vxor.u32 %v2617, 2147483648
        %v2619 = vmul.f32 %v2618, 1.442695
        %v2620 = vpow.pop %v2619
        %v2621 = vadd.f32 %v2620, 1.0
        %v2622 = vrcp.pop %v2621
        %v2623 = vmul.f32 1.0, %v2622
        %v2624 = vadd.f32 %v2607, %v415
        %v2625 = vmul.f32 %v2616, %v2624
        %v2626 = vadd.f32 %v2420, %v2625
        %v2627 = vtanh.pop %v2626
        %v2628 = vsub.f32 1.0, %v2623
        %v2629 = vmul.f32 %v2628, %v2627
        %v2630 = vmul.f32 %v2623, %v2409
        %v2631 = vadd.f32 %v2629, %v2630
        %s2632 = smul.u32 %s2414, 8
        %s2633 = scalar_lea.vmem %s375, %s2632 [#allocation4]
        %2634 = vst [vmem:[%s2633] sm:$0xff] %v2631
        %s2635 = smul.u32 %s23, 4294967291
        %s2636 = sadd.s32 %s2635, 10
        %s2637 = smul.u32 %s2636, 3
        %s2638 = smul.addr %s2637, 8
        %s2639 = scalar_lea.vmem %s347, %s2638 [#allocation3]
        %v2640 = vld [vmem:[%s2639] sm:$0xff]
        %v2641 = vld [vmem:[%s2639 + $0x8] sm:$0xff]
        %v2642 = vld [vmem:[%s2639 + $0x10] sm:$0xff]
        %v2643 = vld [vmem:[%s392] sm:$0xff]
        %v2644 = vld [vmem:[%s392 + $0x8] sm:$0xff]
        %v2645 = vld [vmem:[%s392 + $0x10] sm:$0xff]
        %v2646 = vld [vmem:[%s392 + $0x18] sm:$0xff]
        %v2647 = vld [vmem:[%s392 + $0x20] sm:$0xff]
        %v2648 = vld [vmem:[%s392 + $0x28] sm:$0xff]
        %v2649 = vld [vmem:[%s392 + $0x30] sm:$0xff]
        %v2650 = vld [vmem:[%s392 + $0x38] sm:$0xff]
        %v2651 = vld [vmem:[%s392 + $0x40] sm:$0xff]
        %v2652 = vld [vmem:[%s392 + $0x48] sm:$0xff]
        %v2653 = vld [vmem:[%s392 + $0x50] sm:$0xff]
        %v2654 = vld [vmem:[%s392 + $0x58] sm:$0xff]
        %v2655 = vld [vmem:[%s392 + $0x60] sm:$0xff]
        %v2656 = vld [vmem:[%s392 + $0x68] sm:$0xff]
        %v2657 = vld [vmem:[%s392 + $0x70] sm:$0xff]
        %v2658 = vld [vmem:[%s392 + $0x78] sm:$0xff]
        %v2659 = vld [vmem:[%s392 + $0x80] sm:$0xff]
        %v2660 = vld [vmem:[%s392 + $0x88] sm:$0xff]
        %v2661 = vld [vmem:[%s392 + $0x90] sm:$0xff]
        %v2662 = vld [vmem:[%s392 + $0x98] sm:$0xff]
        %v2663 = vld [vmem:[%s392 + $0xa0] sm:$0xff]
        %v2664 = vld [vmem:[%s392 + $0xa8] sm:$0xff]
        %v2665 = vld [vmem:[%s392 + $0xb0] sm:$0xff]
        %v2666 = vld [vmem:[%s392 + $0xb8] sm:$0xff]
        %v2667 = vld [vmem:[%s392 + $0xc0] sm:$0xff]
        %v2668 = vld [vmem:[%s392 + $0xc8] sm:$0xff]
        %v2669 = vld [vmem:[%s392 + $0xd0] sm:$0xff]
        %v2670 = vld [vmem:[%s392 + $0xd8] sm:$0xff]
        %v2671 = vld [vmem:[%s392 + $0xe0] sm:$0xff]
        %v2672 = vld [vmem:[%s392 + $0xe8] sm:$0xff]
        %v2673 = vld [vmem:[%s392 + $0xf0] sm:$0xff]
        %v2674 = vld [vmem:[%s392 + $0xf8] sm:$0xff]
        %v2675 = vld [vmem:[%s392 + $0x100] sm:$0xff]
        %v2676 = vld [vmem:[%s392 + $0x108] sm:$0xff]
        %v2677 = vld [vmem:[%s392 + $0x110] sm:$0xff]
        %v2678 = vld [vmem:[%s392 + $0x118] sm:$0xff]
        %v2679 = vld [vmem:[%s392 + $0x120] sm:$0xff]
        %v2680 = vld [vmem:[%s392 + $0x128] sm:$0xff]
        %v2681 = vld [vmem:[%s392 + $0x130] sm:$0xff]
        %v2682 = vld [vmem:[%s392 + $0x138] sm:$0xff]
        %v2683 = vld [vmem:[%s392 + $0x140] sm:$0xff]
        %v2684 = vld [vmem:[%s392 + $0x148] sm:$0xff]
        %v2685 = vld [vmem:[%s392 + $0x150] sm:$0xff]
        %v2686 = vld [vmem:[%s392 + $0x158] sm:$0xff]
        %v2687 = vld [vmem:[%s392 + $0x160] sm:$0xff]
        %v2688 = vld [vmem:[%s392 + $0x168] sm:$0xff]
        %v2689 = vld [vmem:[%s392 + $0x170] sm:$0xff]
        %v2690 = vld [vmem:[%s392 + $0x178] sm:$0xff]
        %2691 = vmatprep.subr.mxu0 %v2644
        %2692 = vmatpush1.msra.mxu0 %v2643
        %2693 = vmatprep.subr.mxu0 %v2647
        %2694 = vmatpush1.msra.mxu0 %v2646
        %2695 = vmatprep.subr.mxu0 %v2650
        %2696 = vmatpush1.msra.mxu0 %v2649
        %2697 = vmatprep.subr.mxu0 %v2653
        %2698 = vmatpush1.msra.mxu0 %v2652
        %2699 = vmatprep.subr.mxu0 %v2656
        %2700 = vmatpush1.msra.mxu0 %v2655
        %2701 = vmatprep.subr.mxu0 %v2659
        %2702 = vmatpush1.msra.mxu0 %v2658
        %2703 = vmatprep.subr.mxu0 %v2662
        %2704 = vmatpush1.msra.mxu0 %v2661
        %2705 = vmatprep.subr.mxu0 %v2665
        %2706 = vmatpush1.msra.mxu0 %v2664
        %2707 = vmatprep.subr.mxu0 %v2668
        %2708 = vmatpush1.msra.mxu0 %v2667
        %2709 = vmatprep.subr.mxu0 %v2671
        %2710 = vmatpush1.msra.mxu0 %v2670
        %2711 = vmatprep.subr.mxu0 %v2674
        %2712 = vmatpush1.msra.mxu0 %v2673
        %2713 = vmatprep.subr.mxu0 %v2677
        %2714 = vmatpush1.msra.mxu0 %v2676
        %2715 = vmatprep.subr.mxu0 %v2680
        %2716 = vmatpush1.msra.mxu0 %v2679
        %2717 = vmatprep.subr.mxu0 %v2683
        %2718 = vmatpush1.msra.mxu0 %v2682
        %2719 = vmatprep.subr.mxu0 %v2686
        %2720 = vmatpush1.msra.mxu0 %v2685
        %2721 = vmatprep.subr.mxu0 %v2689
        %2722 = vmatpush1.msra.mxu0 %v2688
        %2723 = vmatprep.subr.mxu0 0.0
        %2724 = vmatpush1.msra.mxu0 0.0
        %2725 = vmatprep.subr.mxu0 0.0
        %2726 = vmatpush1.msra.mxu0 0.0
        %2727 = vmatprep.subr.mxu0 0.0
        %2728 = vmatpush1.msra.mxu0 0.0
        %2729 = vmatprep.subr.mxu0 0.0
        %2730 = vmatpush1.msra.mxu0 0.0
        %2731 = vmatprep.subr.mxu0 0.0
        %2732 = vmatpush1.msra.mxu0 0.0
        %2733 = vmatprep.subr.mxu0 0.0
        %2734 = vmatpush1.msra.mxu0 0.0
        %2735 = vmatprep.subr.mxu0 0.0
        %2736 = vmatpush1.msra.mxu0 0.0
        %2737 = vmatprep.subr.mxu0 0.0
        %2738 = vmatpush1.msra.mxu0 0.0
        %2739 = vmatprep.subr.mxu0 0.0
        %2740 = vmatpush1.msra.mxu0 0.0
        %2741 = vmatprep.subr.mxu0 0.0
        %2742 = vmatpush1.msra.mxu0 0.0
        %2743 = vmatprep.subr.mxu0 0.0
        %2744 = vmatpush1.msra.mxu0 0.0
        %2745 = vmatprep.subr.mxu0 0.0
        %2746 = vmatpush1.msra.mxu0 0.0
        %2747 = vmatprep.subr.mxu0 0.0
        %2748 = vmatpush1.msra.mxu0 0.0
        %2749 = vmatprep.subr.mxu0 0.0
        %2750 = vmatpush1.msra.mxu0 0.0
        %2751 = vmatprep.subr.mxu0 0.0
        %2752 = vmatpush1.msra.mxu0 0.0
        %2753 = vmatprep.subr.mxu0 0.0
        %2754 = vmatpush1.msra.mxu0 0.0
        %2755 = vmatprep.mubr.f32.mxu0 0.0
        %2756 = vmatmul.mubr.f32.gmra.mrb[0].mxu0 %v2631
        %v2757 = vpop.f32.mrb[0].mxu0
        %v2758 = vadd.f32 0.0, %v2757
        %v2759 = vpop.f32.mrb[0].mxu0
        %v2760 = vadd.f32 0.0, %v2759
        %2761 = vdwg.mxu0
        %2762 = vmatprep.subr.mxu0 0.0
        %2763 = vmatpush1.msra.mxu0 %v2645
        %2764 = vmatprep.subr.mxu0 0.0
        %2765 = vmatpush1.msra.mxu0 %v2648
        %2766 = vmatprep.subr.mxu0 0.0
        %2767 = vmatpush1.msra.mxu0 %v2651
        %2768 = vmatprep.subr.mxu0 0.0
        %2769 = vmatpush1.msra.mxu0 %v2654
        %2770 = vmatprep.subr.mxu0 0.0
        %2771 = vmatpush1.msra.mxu0 %v2657
        %2772 = vmatprep.subr.mxu0 0.0
        %2773 = vmatpush1.msra.mxu0 %v2660
        %2774 = vmatprep.subr.mxu0 0.0
        %2775 = vmatpush1.msra.mxu0 %v2663
        %2776 = vmatprep.subr.mxu0 0.0
        %2777 = vmatpush1.msra.mxu0 %v2666
        %2778 = vmatprep.subr.mxu0 0.0
        %2779 = vmatpush1.msra.mxu0 %v2669
        %2780 = vmatprep.subr.mxu0 0.0
        %2781 = vmatpush1.msra.mxu0 %v2672
        %2782 = vmatprep.subr.mxu0 0.0
        %2783 = vmatpush1.msra.mxu0 %v2675
        %2784 = vmatprep.subr.mxu0 0.0
        %2785 = vmatpush1.msra.mxu0 %v2678
        %2786 = vmatprep.subr.mxu0 0.0
        %2787 = vmatpush1.msra.mxu0 %v2681
        %2788 = vmatprep.subr.mxu0 0.0
        %2789 = vmatpush1.msra.mxu0 %v2684
        %2790 = vmatprep.subr.mxu0 0.0
        %2791 = vmatpush1.msra.mxu0 %v2687
        %2792 = vmatprep.subr.mxu0 0.0
        %2793 = vmatpush1.msra.mxu0 %v2690
        %2794 = vmatprep.subr.mxu0 0.0
        %2795 = vmatpush1.msra.mxu0 0.0
        %2796 = vmatprep.subr.mxu0 0.0
        %2797 = vmatpush1.msra.mxu0 0.0
        %2798 = vmatprep.subr.mxu0 0.0
        %2799 = vmatpush1.msra.mxu0 0.0
        %2800 = vmatprep.subr.mxu0 0.0
        %2801 = vmatpush1.msra.mxu0 0.0
        %2802 = vmatprep.subr.mxu0 0.0
        %2803 = vmatpush1.msra.mxu0 0.0
        %2804 = vmatprep.subr.mxu0 0.0
        %2805 = vmatpush1.msra.mxu0 0.0
        %2806 = vmatprep.subr.mxu0 0.0
        %2807 = vmatpush1.msra.mxu0 0.0
        %2808 = vmatprep.subr.mxu0 0.0
        %2809 = vmatpush1.msra.mxu0 0.0
        %2810 = vmatprep.subr.mxu0 0.0
        %2811 = vmatpush1.msra.mxu0 0.0
        %2812 = vmatprep.subr.mxu0 0.0
        %2813 = vmatpush1.msra.mxu0 0.0
        %2814 = vmatprep.subr.mxu0 0.0
        %2815 = vmatpush1.msra.mxu0 0.0
        %2816 = vmatprep.subr.mxu0 0.0
        %2817 = vmatpush1.msra.mxu0 0.0
        %2818 = vmatprep.subr.mxu0 0.0
        %2819 = vmatpush1.msra.mxu0 0.0
        %2820 = vmatprep.subr.mxu0 0.0
        %2821 = vmatpush1.msra.mxu0 0.0
        %2822 = vmatprep.subr.mxu0 0.0
        %2823 = vmatpush1.msra.mxu0 0.0
        %2824 = vmatprep.subr.mxu0 0.0
        %2825 = vmatpush1.msra.mxu0 0.0
        %2826 = vmatprep.mubr.f32.mxu0 0.0
        %2827 = vmatmul.mubr.f32.gmra.mrb[0].mxu0 %v2631
        %v2828 = vpop.f32.mrb[0].mxu0
        %v2829 = vadd.f32 0.0, %v2828
        %v2830 = vpop.f32.mrb[0].mxu0
        %2831 = vdwg.mxu0
        %v2832 = vadd.f32 %v2640, %v2758
        %v2833 = vxor.u32 %v2832, 2147483648
        %v2834 = vmul.f32 %v2833, 1.442695
        %v2835 = vpow.pop %v2834
        %v2836 = vadd.f32 %v2835, 1.0
        %v2837 = vrcp.pop %v2836
        %v2838 = vmul.f32 1.0, %v2837
        %v2839 = vadd.f32 %v2641, %v2760
        %v2840 = vxor.u32 %v2839, 2147483648
        %v2841 = vmul.f32 %v2840, 1.442695
        %v2842 = vpow.pop %v2841
        %v2843 = vadd.f32 %v2842, 1.0
        %v2844 = vrcp.pop %v2843
        %v2845 = vmul.f32 1.0, %v2844
        %v2846 = vadd.f32 %v2829, %v415
        %v2847 = vmul.f32 %v2838, %v2846
        %v2848 = vadd.f32 %v2642, %v2847
        %v2849 = vtanh.pop %v2848
        %v2850 = vsub.f32 1.0, %v2845
        %v2851 = vmul.f32 %v2850, %v2849
        %v2852 = vmul.f32 %v2845, %v2631
        %v2853 = vadd.f32 %v2851, %v2852
        %s2854 = smul.u32 %s2636, 8
        %s2855 = scalar_lea.vmem %s375, %s2854 [#allocation4]
        %2856 = vst [vmem:[%s2855] sm:$0xff] %v2853
        %s2857 = smul.u32 %s23, 4294967289
        %s2858 = sadd.s32 %s2857, 11
        %s2859 = smul.u32 %s2858, 3
        %s2860 = smul.addr %s2859, 8
        %s2861 = scalar_lea.vmem %s347, %s2860 [#allocation3]
        %v2862 = vld [vmem:[%s2861] sm:$0xff]
        %v2863 = vld [vmem:[%s2861 + $0x8] sm:$0xff]
        %v2864 = vld [vmem:[%s2861 + $0x10] sm:$0xff]
        %v2865 = vld [vmem:[%s392] sm:$0xff]
        %v2866 = vld [vmem:[%s392 + $0x8] sm:$0xff]
        %v2867 = vld [vmem:[%s392 + $0x10] sm:$0xff]
        %v2868 = vld [vmem:[%s392 + $0x18] sm:$0xff]
        %v2869 = vld [vmem:[%s392 + $0x20] sm:$0xff]
        %v2870 = vld [vmem:[%s392 + $0x28] sm:$0xff]
        %v2871 = vld [vmem:[%s392 + $0x30] sm:$0xff]
        %v2872 = vld [vmem:[%s392 + $0x38] sm:$0xff]
        %v2873 = vld [vmem:[%s392 + $0x40] sm:$0xff]
        %v2874 = vld [vmem:[%s392 + $0x48] sm:$0xff]
        %v2875 = vld [vmem:[%s392 + $0x50] sm:$0xff]
        %v2876 = vld [vmem:[%s392 + $0x58] sm:$0xff]
        %v2877 = vld [vmem:[%s392 + $0x60] sm:$0xff]
        %v2878 = vld [vmem:[%s392 + $0x68] sm:$0xff]
        %v2879 = vld [vmem:[%s392 + $0x70] sm:$0xff]
        %v2880 = vld [vmem:[%s392 + $0x78] sm:$0xff]
        %v2881 = vld [vmem:[%s392 + $0x80] sm:$0xff]
        %v2882 = vld [vmem:[%s392 + $0x88] sm:$0xff]
        %v2883 = vld [vmem:[%s392 + $0x90] sm:$0xff]
        %v2884 = vld [vmem:[%s392 + $0x98] sm:$0xff]
        %v2885 = vld [vmem:[%s392 + $0xa0] sm:$0xff]
        %v2886 = vld [vmem:[%s392 + $0xa8] sm:$0xff]
        %v2887 = vld [vmem:[%s392 + $0xb0] sm:$0xff]
        %v2888 = vld [vmem:[%s392 + $0xb8] sm:$0xff]
        %v2889 = vld [vmem:[%s392 + $0xc0] sm:$0xff]
        %v2890 = vld [vmem:[%s392 + $0xc8] sm:$0xff]
        %v2891 = vld [vmem:[%s392 + $0xd0] sm:$0xff]
        %v2892 = vld [vmem:[%s392 + $0xd8] sm:$0xff]
        %v2893 = vld [vmem:[%s392 + $0xe0] sm:$0xff]
        %v2894 = vld [vmem:[%s392 + $0xe8] sm:$0xff]
        %v2895 = vld [vmem:[%s392 + $0xf0] sm:$0xff]
        %v2896 = vld [vmem:[%s392 + $0xf8] sm:$0xff]
        %v2897 = vld [vmem:[%s392 + $0x100] sm:$0xff]
        %v2898 = vld [vmem:[%s392 + $0x108] sm:$0xff]
        %v2899 = vld [vmem:[%s392 + $0x110] sm:$0xff]
        %v2900 = vld [vmem:[%s392 + $0x118] sm:$0xff]
        %v2901 = vld [vmem:[%s392 + $0x120] sm:$0xff]
        %v2902 = vld [vmem:[%s392 + $0x128] sm:$0xff]
        %v2903 = vld [vmem:[%s392 + $0x130] sm:$0xff]
        %v2904 = vld [vmem:[%s392 + $0x138] sm:$0xff]
        %v2905 = vld [vmem:[%s392 + $0x140] sm:$0xff]
        %v2906 = vld [vmem:[%s392 + $0x148] sm:$0xff]
        %v2907 = vld [vmem:[%s392 + $0x150] sm:$0xff]
        %v2908 = vld [vmem:[%s392 + $0x158] sm:$0xff]
        %v2909 = vld [vmem:[%s392 + $0x160] sm:$0xff]
        %v2910 = vld [vmem:[%s392 + $0x168] sm:$0xff]
        %v2911 = vld [vmem:[%s392 + $0x170] sm:$0xff]
        %v2912 = vld [vmem:[%s392 + $0x178] sm:$0xff]
        %2913 = vmatprep.subr.mxu0 %v2866
        %2914 = vmatpush1.msra.mxu0 %v2865
        %2915 = vmatprep.subr.mxu0 %v2869
        %2916 = vmatpush1.msra.mxu0 %v2868
        %2917 = vmatprep.subr.mxu0 %v2872
        %2918 = vmatpush1.msra.mxu0 %v2871
        %2919 = vmatprep.subr.mxu0 %v2875
        %2920 = vmatpush1.msra.mxu0 %v2874
        %2921 = vmatprep.subr.mxu0 %v2878
        %2922 = vmatpush1.msra.mxu0 %v2877
        %2923 = vmatprep.subr.mxu0 %v2881
        %2924 = vmatpush1.msra.mxu0 %v2880
        %2925 = vmatprep.subr.mxu0 %v2884
        %2926 = vmatpush1.msra.mxu0 %v2883
        %2927 = vmatprep.subr.mxu0 %v2887
        %2928 = vmatpush1.msra.mxu0 %v2886
        %2929 = vmatprep.subr.mxu0 %v2890
        %2930 = vmatpush1.msra.mxu0 %v2889
        %2931 = vmatprep.subr.mxu0 %v2893
        %2932 = vmatpush1.msra.mxu0 %v2892
        %2933 = vmatprep.subr.mxu0 %v2896
        %2934 = vmatpush1.msra.mxu0 %v2895
        %2935 = vmatprep.subr.mxu0 %v2899
        %2936 = vmatpush1.msra.mxu0 %v2898
        %2937 = vmatprep.subr.mxu0 %v2902
        %2938 = vmatpush1.msra.mxu0 %v2901
        %2939 = vmatprep.subr.mxu0 %v2905
        %2940 = vmatpush1.msra.mxu0 %v2904
        %2941 = vmatprep.subr.mxu0 %v2908
        %2942 = vmatpush1.msra.mxu0 %v2907
        %2943 = vmatprep.subr.mxu0 %v2911
        %2944 = vmatpush1.msra.mxu0 %v2910
        %2945 = vmatprep.subr.mxu0 0.0
        %2946 = vmatpush1.msra.mxu0 0.0
        %2947 = vmatprep.subr.mxu0 0.0
        %2948 = vmatpush1.msra.mxu0 0.0
        %2949 = vmatprep.subr.mxu0 0.0
        %2950 = vmatpush1.msra.mxu0 0.0
        %2951 = vmatprep.subr.mxu0 0.0
        %2952 = vmatpush1.msra.mxu0 0.0
        %2953 = vmatprep.subr.mxu0 0.0
        %2954 = vmatpush1.msra.mxu0 0.0
        %2955 = vmatprep.subr.mxu0 0.0
        %2956 = vmatpush1.msra.mxu0 0.0
        %2957 = vmatprep.subr.mxu0 0.0
        %2958 = vmatpush1.msra.mxu0 0.0
        %2959 = vmatprep.subr.mxu0 0.0
        %2960 = vmatpush1.msra.mxu0 0.0
        %2961 = vmatprep.subr.mxu0 0.0
        %2962 = vmatpush1.msra.mxu0 0.0
        %2963 = vmatprep.subr.mxu0 0.0
        %2964 = vmatpush1.msra.mxu0 0.0
        %2965 = vmatprep.subr.mxu0 0.0
        %2966 = vmatpush1.msra.mxu0 0.0
        %2967 = vmatprep.subr.mxu0 0.0
        %2968 = vmatpush1.msra.mxu0 0.0
        %2969 = vmatprep.subr.mxu0 0.0
        %2970 = vmatpush1.msra.mxu0 0.0
        %2971 = vmatprep.subr.mxu0 0.0
        %2972 = vmatpush1.msra.mxu0 0.0
        %2973 = vmatprep.subr.mxu0 0.0
        %2974 = vmatpush1.msra.mxu0 0.0
        %2975 = vmatprep.subr.mxu0 0.0
        %2976 = vmatpush1.msra.mxu0 0.0
        %2977 = vmatprep.mubr.f32.mxu0 0.0
        %2978 = vmatmul.mubr.f32.gmra.mrb[0].mxu0 %v2853
        %v2979 = vpop.f32.mrb[0].mxu0
        %v2980 = vadd.f32 0.0, %v2979
        %v2981 = vpop.f32.mrb[0].mxu0
        %v2982 = vadd.f32 0.0, %v2981
        %2983 = vdwg.mxu0
        %2984 = vmatprep.subr.mxu0 0.0
        %2985 = vmatpush1.msra.mxu0 %v2867
        %2986 = vmatprep.subr.mxu0 0.0
        %2987 = vmatpush1.msra.mxu0 %v2870
        %2988 = vmatprep.subr.mxu0 0.0
        %2989 = vmatpush1.msra.mxu0 %v2873
        %2990 = vmatprep.subr.mxu0 0.0
        %2991 = vmatpush1.msra.mxu0 %v2876
        %2992 = vmatprep.subr.mxu0 0.0
        %2993 = vmatpush1.msra.mxu0 %v2879
        %2994 = vmatprep.subr.mxu0 0.0
        %2995 = vmatpush1.msra.mxu0 %v2882
        %2996 = vmatprep.subr.mxu0 0.0
        %2997 = vmatpush1.msra.mxu0 %v2885
        %2998 = vmatprep.subr.mxu0 0.0
        %2999 = vmatpush1.msra.mxu0 %v2888
        %3000 = vmatprep.subr.mxu0 0.0
        %3001 = vmatpush1.msra.mxu0 %v2891
        %3002 = vmatprep.subr.mxu0 0.0
        %3003 = vmatpush1.msra.mxu0 %v2894
        %3004 = vmatprep.subr.mxu0 0.0
        %3005 = vmatpush1.msra.mxu0 %v2897
        %3006 = vmatprep.subr.mxu0 0.0
        %3007 = vmatpush1.msra.mxu0 %v2900
        %3008 = vmatprep.subr.mxu0 0.0
        %3009 = vmatpush1.msra.mxu0 %v2903
        %3010 = vmatprep.subr.mxu0 0.0
        %3011 = vmatpush1.msra.mxu0 %v2906
        %3012 = vmatprep.subr.mxu0 0.0
        %3013 = vmatpush1.msra.mxu0 %v2909
        %3014 = vmatprep.subr.mxu0 0.0
        %3015 = vmatpush1.msra.mxu0 %v2912
        %3016 = vmatprep.subr.mxu0 0.0
        %3017 = vmatpush1.msra.mxu0 0.0
        %3018 = vmatprep.subr.mxu0 0.0
        %3019 = vmatpush1.msra.mxu0 0.0
        %3020 = vmatprep.subr.mxu0 0.0
        %3021 = vmatpush1.msra.mxu0 0.0
        %3022 = vmatprep.subr.mxu0 0.0
        %3023 = vmatpush1.msra.mxu0 0.0
        %3024 = vmatprep.subr.mxu0 0.0
        %3025 = vmatpush1.msra.mxu0 0.0
        %3026 = vmatprep.subr.mxu0 0.0
        %3027 = vmatpush1.msra.mxu0 0.0
        %3028 = vmatprep.subr.mxu0 0.0
        %3029 = vmatpush1.msra.mxu0 0.0
        %3030 = vmatprep.subr.mxu0 0.0
        %3031 = vmatpush1.msra.mxu0 0.0
        %3032 = vmatprep.subr.mxu0 0.0
        %3033 = vmatpush1.msra.mxu0 0.0
        %3034 = vmatprep.subr.mxu0 0.0
        %3035 = vmatpush1.msra.mxu0 0.0
        %3036 = vmatprep.subr.mxu0 0.0
        %3037 = vmatpush1.msra.mxu0 0.0
        %3038 = vmatprep.subr.mxu0 0.0
        %3039 = vmatpush1.msra.mxu0 0.0
        %3040 = vmatprep.subr.mxu0 0.0
        %3041 = vmatpush1.msra.mxu0 0.0
        %3042 = vmatprep.subr.mxu0 0.0
        %3043 = vmatpush1.msra.mxu0 0.0
        %3044 = vmatprep.subr.mxu0 0.0
        %3045 = vmatpush1.msra.mxu0 0.0
        %3046 = vmatprep.subr.mxu0 0.0
        %3047 = vmatpush1.msra.mxu0 0.0
        %3048 = vmatprep.mubr.f32.mxu0 0.0
        %3049 = vmatmul.mubr.f32.gmra.mrb[0].mxu0 %v2853
        %v3050 = vpop.f32.mrb[0].mxu0
        %v3051 = vadd.f32 0.0, %v3050
        %v3052 = vpop.f32.mrb[0].mxu0
        %3053 = vdwg.mxu0
        %v3054 = vadd.f32 %v2862, %v2980
        %v3055 = vxor.u32 %v3054, 2147483648
        %v3056 = vmul.f32 %v3055, 1.442695
        %v3057 = vpow.pop %v3056
        %v3058 = vadd.f32 %v3057, 1.0
        %v3059 = vrcp.pop %v3058
        %v3060 = vmul.f32 1.0, %v3059
        %v3061 = vadd.f32 %v2863, %v2982
        %v3062 = vxor.u32 %v3061, 2147483648
        %v3063 = vmul.f32 %v3062, 1.442695
        %v3064 = vpow.pop %v3063
        %v3065 = vadd.f32 %v3064, 1.0
        %v3066 = vrcp.pop %v3065
        %v3067 = vmul.f32 1.0, %v3066
        %v3068 = vadd.f32 %v3051, %v415
        %v3069 = vmul.f32 %v3060, %v3068
        %v3070 = vadd.f32 %v2864, %v3069
        %v3071 = vtanh.pop %v3070
        %v3072 = vsub.f32 1.0, %v3067
        %v3073 = vmul.f32 %v3072, %v3071
        %v3074 = vmul.f32 %v3067, %v2853
        %v3075 = vadd.f32 %v3073, %v3074
        %s3076 = smul.u32 %s2858, 8
        %s3077 = scalar_lea.vmem %s375, %s3076 [#allocation4]
        %3078 = vst [vmem:[%s3077] sm:$0xff] %v3075
        %s3079 = smul.u32 %s23, 4294967287
        %s3080 = sadd.s32 %s3079, 12
        %s3081 = smul.u32 %s3080, 3
        %s3082 = smul.addr %s3081, 8
        %s3083 = scalar_lea.vmem %s347, %s3082 [#allocation3]
        %v3084 = vld [vmem:[%s3083] sm:$0xff]
        %v3085 = vld [vmem:[%s3083 + $0x8] sm:$0xff]
        %v3086 = vld [vmem:[%s3083 + $0x10] sm:$0xff]
        %v3087 = vld [vmem:[%s392] sm:$0xff]
        %v3088 = vld [vmem:[%s392 + $0x8] sm:$0xff]
        %v3089 = vld [vmem:[%s392 + $0x10] sm:$0xff]
        %v3090 = vld [vmem:[%s392 + $0x18] sm:$0xff]
        %v3091 = vld [vmem:[%s392 + $0x20] sm:$0xff]
        %v3092 = vld [vmem:[%s392 + $0x28] sm:$0xff]
        %v3093 = vld [vmem:[%s392 + $0x30] sm:$0xff]
        %v3094 = vld [vmem:[%s392 + $0x38] sm:$0xff]
        %v3095 = vld [vmem:[%s392 + $0x40] sm:$0xff]
        %v3096 = vld [vmem:[%s392 + $0x48] sm:$0xff]
        %v3097 = vld [vmem:[%s392 + $0x50] sm:$0xff]
        %v3098 = vld [vmem:[%s392 + $0x58] sm:$0xff]
        %v3099 = vld [vmem:[%s392 + $0x60] sm:$0xff]
        %v3100 = vld [vmem:[%s392 + $0x68] sm:$0xff]
        %v3101 = vld [vmem:[%s392 + $0x70] sm:$0xff]
        %v3102 = vld [vmem:[%s392 + $0x78] sm:$0xff]
        %v3103 = vld [vmem:[%s392 + $0x80] sm:$0xff]
        %v3104 = vld [vmem:[%s392 + $0x88] sm:$0xff]
        %v3105 = vld [vmem:[%s392 + $0x90] sm:$0xff]
        %v3106 = vld [vmem:[%s392 + $0x98] sm:$0xff]
        %v3107 = vld [vmem:[%s392 + $0xa0] sm:$0xff]
        %v3108 = vld [vmem:[%s392 + $0xa8] sm:$0xff]
        %v3109 = vld [vmem:[%s392 + $0xb0] sm:$0xff]
        %v3110 = vld [vmem:[%s392 + $0xb8] sm:$0xff]
        %v3111 = vld [vmem:[%s392 + $0xc0] sm:$0xff]
        %v3112 = vld [vmem:[%s392 + $0xc8] sm:$0xff]
        %v3113 = vld [vmem:[%s392 + $0xd0] sm:$0xff]
        %v3114 = vld [vmem:[%s392 + $0xd8] sm:$0xff]
        %v3115 = vld [vmem:[%s392 + $0xe0] sm:$0xff]
        %v3116 = vld [vmem:[%s392 + $0xe8] sm:$0xff]
        %v3117 = vld [vmem:[%s392 + $0xf0] sm:$0xff]
        %v3118 = vld [vmem:[%s392 + $0xf8] sm:$0xff]
        %v3119 = vld [vmem:[%s392 + $0x100] sm:$0xff]
        %v3120 = vld [vmem:[%s392 + $0x108] sm:$0xff]
        %v3121 = vld [vmem:[%s392 + $0x110] sm:$0xff]
        %v3122 = vld [vmem:[%s392 + $0x118] sm:$0xff]
        %v3123 = vld [vmem:[%s392 + $0x120] sm:$0xff]
        %v3124 = vld [vmem:[%s392 + $0x128] sm:$0xff]
        %v3125 = vld [vmem:[%s392 + $0x130] sm:$0xff]
        %v3126 = vld [vmem:[%s392 + $0x138] sm:$0xff]
        %v3127 = vld [vmem:[%s392 + $0x140] sm:$0xff]
        %v3128 = vld [vmem:[%s392 + $0x148] sm:$0xff]
        %v3129 = vld [vmem:[%s392 + $0x150] sm:$0xff]
        %v3130 = vld [vmem:[%s392 + $0x158] sm:$0xff]
        %v3131 = vld [vmem:[%s392 + $0x160] sm:$0xff]
        %v3132 = vld [vmem:[%s392 + $0x168] sm:$0xff]
        %v3133 = vld [vmem:[%s392 + $0x170] sm:$0xff]
        %v3134 = vld [vmem:[%s392 + $0x178] sm:$0xff]
        %3135 = vmatprep.subr.mxu0 %v3088
        %3136 = vmatpush1.msra.mxu0 %v3087
        %3137 = vmatprep.subr.mxu0 %v3091
        %3138 = vmatpush1.msra.mxu0 %v3090
        %3139 = vmatprep.subr.mxu0 %v3094
        %3140 = vmatpush1.msra.mxu0 %v3093
        %3141 = vmatprep.subr.mxu0 %v3097
        %3142 = vmatpush1.msra.mxu0 %v3096
        %3143 = vmatprep.subr.mxu0 %v3100
        %3144 = vmatpush1.msra.mxu0 %v3099
        %3145 = vmatprep.subr.mxu0 %v3103
        %3146 = vmatpush1.msra.mxu0 %v3102
        %3147 = vmatprep.subr.mxu0 %v3106
        %3148 = vmatpush1.msra.mxu0 %v3105
        %3149 = vmatprep.subr.mxu0 %v3109
        %3150 = vmatpush1.msra.mxu0 %v3108
        %3151 = vmatprep.subr.mxu0 %v3112
        %3152 = vmatpush1.msra.mxu0 %v3111
        %3153 = vmatprep.subr.mxu0 %v3115
        %3154 = vmatpush1.msra.mxu0 %v3114
        %3155 = vmatprep.subr.mxu0 %v3118
        %3156 = vmatpush1.msra.mxu0 %v3117
        %3157 = vmatprep.subr.mxu0 %v3121
        %3158 = vmatpush1.msra.mxu0 %v3120
        %3159 = vmatprep.subr.mxu0 %v3124
        %3160 = vmatpush1.msra.mxu0 %v3123
        %3161 = vmatprep.subr.mxu0 %v3127
        %3162 = vmatpush1.msra.mxu0 %v3126
        %3163 = vmatprep.subr.mxu0 %v3130
        %3164 = vmatpush1.msra.mxu0 %v3129
        %3165 = vmatprep.subr.mxu0 %v3133
        %3166 = vmatpush1.msra.mxu0 %v3132
        %3167 = vmatprep.subr.mxu0 0.0
        %3168 = vmatpush1.msra.mxu0 0.0
        %3169 = vmatprep.subr.mxu0 0.0
        %3170 = vmatpush1.msra.mxu0 0.0
        %3171 = vmatprep.subr.mxu0 0.0
        %3172 = vmatpush1.msra.mxu0 0.0
        %3173 = vmatprep.subr.mxu0 0.0
        %3174 = vmatpush1.msra.mxu0 0.0
        %3175 = vmatprep.subr.mxu0 0.0
        %3176 = vmatpush1.msra.mxu0 0.0
        %3177 = vmatprep.subr.mxu0 0.0
        %3178 = vmatpush1.msra.mxu0 0.0
        %3179 = vmatprep.subr.mxu0 0.0
        %3180 = vmatpush1.msra.mxu0 0.0
        %3181 = vmatprep.subr.mxu0 0.0
        %3182 = vmatpush1.msra.mxu0 0.0
        %3183 = vmatprep.subr.mxu0 0.0
        %3184 = vmatpush1.msra.mxu0 0.0
        %3185 = vmatprep.subr.mxu0 0.0
        %3186 = vmatpush1.msra.mxu0 0.0
        %3187 = vmatprep.subr.mxu0 0.0
        %3188 = vmatpush1.msra.mxu0 0.0
        %3189 = vmatprep.subr.mxu0 0.0
        %3190 = vmatpush1.msra.mxu0 0.0
        %3191 = vmatprep.subr.mxu0 0.0
        %3192 = vmatpush1.msra.mxu0 0.0
        %3193 = vmatprep.subr.mxu0 0.0
        %3194 = vmatpush1.msra.mxu0 0.0
        %3195 = vmatprep.subr.mxu0 0.0
        %3196 = vmatpush1.msra.mxu0 0.0
        %3197 = vmatprep.subr.mxu0 0.0
        %3198 = vmatpush1.msra.mxu0 0.0
        %3199 = vmatprep.mubr.f32.mxu0 0.0
        %3200 = vmatmul.mubr.f32.gmra.mrb[0].mxu0 %v3075
        %v3201 = vpop.f32.mrb[0].mxu0
        %v3202 = vadd.f32 0.0, %v3201
        %v3203 = vpop.f32.mrb[0].mxu0
        %v3204 = vadd.f32 0.0, %v3203
        %3205 = vdwg.mxu0
        %3206 = vmatprep.subr.mxu0 0.0
        %3207 = vmatpush1.msra.mxu0 %v3089
        %3208 = vmatprep.subr.mxu0 0.0
        %3209 = vmatpush1.msra.mxu0 %v3092
        %3210 = vmatprep.subr.mxu0 0.0
        %3211 = vmatpush1.msra.mxu0 %v3095
        %3212 = vmatprep.subr.mxu0 0.0
        %3213 = vmatpush1.msra.mxu0 %v3098
        %3214 = vmatprep.subr.mxu0 0.0
        %3215 = vmatpush1.msra.mxu0 %v3101
        %3216 = vmatprep.subr.mxu0 0.0
        %3217 = vmatpush1.msra.mxu0 %v3104
        %3218 = vmatprep.subr.mxu0 0.0
        %3219 = vmatpush1.msra.mxu0 %v3107
        %3220 = vmatprep.subr.mxu0 0.0
        %3221 = vmatpush1.msra.mxu0 %v3110
        %3222 = vmatprep.subr.mxu0 0.0
        %3223 = vmatpush1.msra.mxu0 %v3113
        %3224 = vmatprep.subr.mxu0 0.0
        %3225 = vmatpush1.msra.mxu0 %v3116
        %3226 = vmatprep.subr.mxu0 0.0
        %3227 = vmatpush1.msra.mxu0 %v3119
        %3228 = vmatprep.subr.mxu0 0.0
        %3229 = vmatpush1.msra.mxu0 %v3122
        %3230 = vmatprep.subr.mxu0 0.0
        %3231 = vmatpush1.msra.mxu0 %v3125
        %3232 = vmatprep.subr.mxu0 0.0
        %3233 = vmatpush1.msra.mxu0 %v3128
        %3234 = vmatprep.subr.mxu0 0.0
        %3235 = vmatpush1.msra.mxu0 %v3131
        %3236 = vmatprep.subr.mxu0 0.0
        %3237 = vmatpush1.msra.mxu0 %v3134
        %3238 = vmatprep.subr.mxu0 0.0
        %3239 = vmatpush1.msra.mxu0 0.0
        %3240 = vmatprep.subr.mxu0 0.0
        %3241 = vmatpush1.msra.mxu0 0.0
        %3242 = vmatprep.subr.mxu0 0.0
        %3243 = vmatpush1.msra.mxu0 0.0
        %3244 = vmatprep.subr.mxu0 0.0
        %3245 = vmatpush1.msra.mxu0 0.0
        %3246 = vmatprep.subr.mxu0 0.0
        %3247 = vmatpush1.msra.mxu0 0.0
        %3248 = vmatprep.subr.mxu0 0.0
        %3249 = vmatpush1.msra.mxu0 0.0
        %3250 = vmatprep.subr.mxu0 0.0
        %3251 = vmatpush1.msra.mxu0 0.0
        %3252 = vmatprep.subr.mxu0 0.0
        %3253 = vmatpush1.msra.mxu0 0.0
        %3254 = vmatprep.subr.mxu0 0.0
        %3255 = vmatpush1.msra.mxu0 0.0
        %3256 = vmatprep.subr.mxu0 0.0
        %3257 = vmatpush1.msra.mxu0 0.0
        %3258 = vmatprep.subr.mxu0 0.0
        %3259 = vmatpush1.msra.mxu0 0.0
        %3260 = vmatprep.subr.mxu0 0.0
        %3261 = vmatpush1.msra.mxu0 0.0
        %3262 = vmatprep.subr.mxu0 0.0
        %3263 = vmatpush1.msra.mxu0 0.0
        %3264 = vmatprep.subr.mxu0 0.0
        %3265 = vmatpush1.msra.mxu0 0.0
        %3266 = vmatprep.subr.mxu0 0.0
        %3267 = vmatpush1.msra.mxu0 0.0
        %3268 = vmatprep.subr.mxu0 0.0
        %3269 = vmatpush1.msra.mxu0 0.0
        %3270 = vmatprep.mubr.f32.mxu0 0.0
        %3271 = vmatmul.mubr.f32.gmra.mrb[0].mxu0 %v3075
        %v3272 = vpop.f32.mrb[0].mxu0
        %v3273 = vadd.f32 0.0, %v3272
        %v3274 = vpop.f32.mrb[0].mxu0
        %3275 = vdwg.mxu0
        %v3276 = vadd.f32 %v3084, %v3202
        %v3277 = vxor.u32 %v3276, 2147483648
        %v3278 = vmul.f32 %v3277, 1.442695
        %v3279 = vpow.pop %v3278
        %v3280 = vadd.f32 %v3279, 1.0
        %v3281 = vrcp.pop %v3280
        %v3282 = vmul.f32 1.0, %v3281
        %v3283 = vadd.f32 %v3085, %v3204
        %v3284 = vxor.u32 %v3283, 2147483648
        %v3285 = vmul.f32 %v3284, 1.442695
        %v3286 = vpow.pop %v3285
        %v3287 = vadd.f32 %v3286, 1.0
        %v3288 = vrcp.pop %v3287
        %v3289 = vmul.f32 1.0, %v3288
        %v3290 = vadd.f32 %v3273, %v415
        %v3291 = vmul.f32 %v3282, %v3290
        %v3292 = vadd.f32 %v3086, %v3291
        %v3293 = vtanh.pop %v3292
        %v3294 = vsub.f32 1.0, %v3289
        %v3295 = vmul.f32 %v3294, %v3293
        %v3296 = vmul.f32 %v3289, %v3075
        %v3297 = vadd.f32 %v3295, %v3296
        %s3298 = smul.u32 %s3080, 8
        %s3299 = scalar_lea.vmem %s375, %s3298 [#allocation4]
        %3300 = vst [vmem:[%s3299] sm:$0xff] %v3297
        %s3301 = smul.u32 %s23, 4294967285
        %s3302 = sadd.s32 %s3301, 13
        %s3303 = smul.u32 %s3302, 3
        %s3304 = smul.addr %s3303, 8
        %s3305 = scalar_lea.vmem %s347, %s3304 [#allocation3]
        %v3306 = vld [vmem:[%s3305] sm:$0xff]
        %v3307 = vld [vmem:[%s3305 + $0x8] sm:$0xff]
        %v3308 = vld [vmem:[%s3305 + $0x10] sm:$0xff]
        %v3309 = vld [vmem:[%s392] sm:$0xff]
        %v3310 = vld [vmem:[%s392 + $0x8] sm:$0xff]
        %v3311 = vld [vmem:[%s392 + $0x10] sm:$0xff]
        %v3312 = vld [vmem:[%s392 + $0x18] sm:$0xff]
        %v3313 = vld [vmem:[%s392 + $0x20] sm:$0xff]
        %v3314 = vld [vmem:[%s392 + $0x28] sm:$0xff]
        %v3315 = vld [vmem:[%s392 + $0x30] sm:$0xff]
        %v3316 = vld [vmem:[%s392 + $0x38] sm:$0xff]
        %v3317 = vld [vmem:[%s392 + $0x40] sm:$0xff]
        %v3318 = vld [vmem:[%s392 + $0x48] sm:$0xff]
        %v3319 = vld [vmem:[%s392 + $0x50] sm:$0xff]
        %v3320 = vld [vmem:[%s392 + $0x58] sm:$0xff]
        %v3321 = vld [vmem:[%s392 + $0x60] sm:$0xff]
        %v3322 = vld [vmem:[%s392 + $0x68] sm:$0xff]
        %v3323 = vld [vmem:[%s392 + $0x70] sm:$0xff]
        %v3324 = vld [vmem:[%s392 + $0x78] sm:$0xff]
        %v3325 = vld [vmem:[%s392 + $0x80] sm:$0xff]
        %v3326 = vld [vmem:[%s392 + $0x88] sm:$0xff]
        %v3327 = vld [vmem:[%s392 + $0x90] sm:$0xff]
        %v3328 = vld [vmem:[%s392 + $0x98] sm:$0xff]
        %v3329 = vld [vmem:[%s392 + $0xa0] sm:$0xff]
        %v3330 = vld [vmem:[%s392 + $0xa8] sm:$0xff]
        %v3331 = vld [vmem:[%s392 + $0xb0] sm:$0xff]
        %v3332 = vld [vmem:[%s392 + $0xb8] sm:$0xff]
        %v3333 = vld [vmem:[%s392 + $0xc0] sm:$0xff]
        %v3334 = vld [vmem:[%s392 + $0xc8] sm:$0xff]
        %v3335 = vld [vmem:[%s392 + $0xd0] sm:$0xff]
        %v3336 = vld [vmem:[%s392 + $0xd8] sm:$0xff]
        %v3337 = vld [vmem:[%s392 + $0xe0] sm:$0xff]
        %v3338 = vld [vmem:[%s392 + $0xe8] sm:$0xff]
        %v3339 = vld [vmem:[%s392 + $0xf0] sm:$0xff]
        %v3340 = vld [vmem:[%s392 + $0xf8] sm:$0xff]
        %v3341 = vld [vmem:[%s392 + $0x100] sm:$0xff]
        %v3342 = vld [vmem:[%s392 + $0x108] sm:$0xff]
        %v3343 = vld [vmem:[%s392 + $0x110] sm:$0xff]
        %v3344 = vld [vmem:[%s392 + $0x118] sm:$0xff]
        %v3345 = vld [vmem:[%s392 + $0x120] sm:$0xff]
        %v3346 = vld [vmem:[%s392 + $0x128] sm:$0xff]
        %v3347 = vld [vmem:[%s392 + $0x130] sm:$0xff]
        %v3348 = vld [vmem:[%s392 + $0x138] sm:$0xff]
        %v3349 = vld [vmem:[%s392 + $0x140] sm:$0xff]
        %v3350 = vld [vmem:[%s392 + $0x148] sm:$0xff]
        %v3351 = vld [vmem:[%s392 + $0x150] sm:$0xff]
        %v3352 = vld [vmem:[%s392 + $0x158] sm:$0xff]
        %v3353 = vld [vmem:[%s392 + $0x160] sm:$0xff]
        %v3354 = vld [vmem:[%s392 + $0x168] sm:$0xff]
        %v3355 = vld [vmem:[%s392 + $0x170] sm:$0xff]
        %v3356 = vld [vmem:[%s392 + $0x178] sm:$0xff]
        %3357 = vmatprep.subr.mxu0 %v3310
        %3358 = vmatpush1.msra.mxu0 %v3309
        %3359 = vmatprep.subr.mxu0 %v3313
        %3360 = vmatpush1.msra.mxu0 %v3312
        %3361 = vmatprep.subr.mxu0 %v3316
        %3362 = vmatpush1.msra.mxu0 %v3315
        %3363 = vmatprep.subr.mxu0 %v3319
        %3364 = vmatpush1.msra.mxu0 %v3318
        %3365 = vmatprep.subr.mxu0 %v3322
        %3366 = vmatpush1.msra.mxu0 %v3321
        %3367 = vmatprep.subr.mxu0 %v3325
        %3368 = vmatpush1.msra.mxu0 %v3324
        %3369 = vmatprep.subr.mxu0 %v3328
        %3370 = vmatpush1.msra.mxu0 %v3327
        %3371 = vmatprep.subr.mxu0 %v3331
        %3372 = vmatpush1.msra.mxu0 %v3330
        %3373 = vmatprep.subr.mxu0 %v3334
        %3374 = vmatpush1.msra.mxu0 %v3333
        %3375 = vmatprep.subr.mxu0 %v3337
        %3376 = vmatpush1.msra.mxu0 %v3336
        %3377 = vmatprep.subr.mxu0 %v3340
        %3378 = vmatpush1.msra.mxu0 %v3339
        %3379 = vmatprep.subr.mxu0 %v3343
        %3380 = vmatpush1.msra.mxu0 %v3342
        %3381 = vmatprep.subr.mxu0 %v3346
        %3382 = vmatpush1.msra.mxu0 %v3345
        %3383 = vmatprep.subr.mxu0 %v3349
        %3384 = vmatpush1.msra.mxu0 %v3348
        %3385 = vmatprep.subr.mxu0 %v3352
        %3386 = vmatpush1.msra.mxu0 %v3351
        %3387 = vmatprep.subr.mxu0 %v3355
        %3388 = vmatpush1.msra.mxu0 %v3354
        %3389 = vmatprep.subr.mxu0 0.0
        %3390 = vmatpush1.msra.mxu0 0.0
        %3391 = vmatprep.subr.mxu0 0.0
        %3392 = vmatpush1.msra.mxu0 0.0
        %3393 = vmatprep.subr.mxu0 0.0
        %3394 = vmatpush1.msra.mxu0 0.0
        %3395 = vmatprep.subr.mxu0 0.0
        %3396 = vmatpush1.msra.mxu0 0.0
        %3397 = vmatprep.subr.mxu0 0.0
        %3398 = vmatpush1.msra.mxu0 0.0
        %3399 = vmatprep.subr.mxu0 0.0
        %3400 = vmatpush1.msra.mxu0 0.0
        %3401 = vmatprep.subr.mxu0 0.0
        %3402 = vmatpush1.msra.mxu0 0.0
        %3403 = vmatprep.subr.mxu0 0.0
        %3404 = vmatpush1.msra.mxu0 0.0
        %3405 = vmatprep.subr.mxu0 0.0
        %3406 = vmatpush1.msra.mxu0 0.0
        %3407 = vmatprep.subr.mxu0 0.0
        %3408 = vmatpush1.msra.mxu0 0.0
        %3409 = vmatprep.subr.mxu0 0.0
        %3410 = vmatpush1.msra.mxu0 0.0
        %3411 = vmatprep.subr.mxu0 0.0
        %3412 = vmatpush1.msra.mxu0 0.0
        %3413 = vmatprep.subr.mxu0 0.0
        %3414 = vmatpush1.msra.mxu0 0.0
        %3415 = vmatprep.subr.mxu0 0.0
        %3416 = vmatpush1.msra.mxu0 0.0
        %3417 = vmatprep.subr.mxu0 0.0
        %3418 = vmatpush1.msra.mxu0 0.0
        %3419 = vmatprep.subr.mxu0 0.0
        %3420 = vmatpush1.msra.mxu0 0.0
        %3421 = vmatprep.mubr.f32.mxu0 0.0
        %3422 = vmatmul.mubr.f32.gmra.mrb[0].mxu0 %v3297
        %v3423 = vpop.f32.mrb[0].mxu0
        %v3424 = vadd.f32 0.0, %v3423
        %v3425 = vpop.f32.mrb[0].mxu0
        %v3426 = vadd.f32 0.0, %v3425
        %3427 = vdwg.mxu0
        %3428 = vmatprep.subr.mxu0 0.0
        %3429 = vmatpush1.msra.mxu0 %v3311
        %3430 = vmatprep.subr.mxu0 0.0
        %3431 = vmatpush1.msra.mxu0 %v3314
        %3432 = vmatprep.subr.mxu0 0.0
        %3433 = vmatpush1.msra.mxu0 %v3317
        %3434 = vmatprep.subr.mxu0 0.0
        %3435 = vmatpush1.msra.mxu0 %v3320
        %3436 = vmatprep.subr.mxu0 0.0
        %3437 = vmatpush1.msra.mxu0 %v3323
        %3438 = vmatprep.subr.mxu0 0.0
        %3439 = vmatpush1.msra.mxu0 %v3326
        %3440 = vmatprep.subr.mxu0 0.0
        %3441 = vmatpush1.msra.mxu0 %v3329
        %3442 = vmatprep.subr.mxu0 0.0
        %3443 = vmatpush1.msra.mxu0 %v3332
        %3444 = vmatprep.subr.mxu0 0.0
        %3445 = vmatpush1.msra.mxu0 %v3335
        %3446 = vmatprep.subr.mxu0 0.0
        %3447 = vmatpush1.msra.mxu0 %v3338
        %3448 = vmatprep.subr.mxu0 0.0
        %3449 = vmatpush1.msra.mxu0 %v3341
        %3450 = vmatprep.subr.mxu0 0.0
        %3451 = vmatpush1.msra.mxu0 %v3344
        %3452 = vmatprep.subr.mxu0 0.0
        %3453 = vmatpush1.msra.mxu0 %v3347
        %3454 = vmatprep.subr.mxu0 0.0
        %3455 = vmatpush1.msra.mxu0 %v3350
        %3456 = vmatprep.subr.mxu0 0.0
        %3457 = vmatpush1.msra.mxu0 %v3353
        %3458 = vmatprep.subr.mxu0 0.0
        %3459 = vmatpush1.msra.mxu0 %v3356
        %3460 = vmatprep.subr.mxu0 0.0
        %3461 = vmatpush1.msra.mxu0 0.0
        %3462 = vmatprep.subr.mxu0 0.0
        %3463 = vmatpush1.msra.mxu0 0.0
        %3464 = vmatprep.subr.mxu0 0.0
        %3465 = vmatpush1.msra.mxu0 0.0
        %3466 = vmatprep.subr.mxu0 0.0
        %3467 = vmatpush1.msra.mxu0 0.0
        %3468 = vmatprep.subr.mxu0 0.0
        %3469 = vmatpush1.msra.mxu0 0.0
        %3470 = vmatprep.subr.mxu0 0.0
        %3471 = vmatpush1.msra.mxu0 0.0
        %3472 = vmatprep.subr.mxu0 0.0
        %3473 = vmatpush1.msra.mxu0 0.0
        %3474 = vmatprep.subr.mxu0 0.0
        %3475 = vmatpush1.msra.mxu0 0.0
        %3476 = vmatprep.subr.mxu0 0.0
        %3477 = vmatpush1.msra.mxu0 0.0
        %3478 = vmatprep.subr.mxu0 0.0
        %3479 = vmatpush1.msra.mxu0 0.0
        %3480 = vmatprep.subr.mxu0 0.0
        %3481 = vmatpush1.msra.mxu0 0.0
        %3482 = vmatprep.subr.mxu0 0.0
        %3483 = vmatpush1.msra.mxu0 0.0
        %3484 = vmatprep.subr.mxu0 0.0
        %3485 = vmatpush1.msra.mxu0 0.0
        %3486 = vmatprep.subr.mxu0 0.0
        %3487 = vmatpush1.msra.mxu0 0.0
        %3488 = vmatprep.subr.mxu0 0.0
        %3489 = vmatpush1.msra.mxu0 0.0
        %3490 = vmatprep.subr.mxu0 0.0
        %3491 = vmatpush1.msra.mxu0 0.0
        %3492 = vmatprep.mubr.f32.mxu0 0.0
        %3493 = vmatmul.mubr.f32.gmra.mrb[0].mxu0 %v3297
        %v3494 = vpop.f32.mrb[0].mxu0
        %v3495 = vadd.f32 0.0, %v3494
        %v3496 = vpop.f32.mrb[0].mxu0
        %3497 = vdwg.mxu0
        %v3498 = vadd.f32 %v3306, %v3424
        %v3499 = vxor.u32 %v3498, 2147483648
        %v3500 = vmul.f32 %v3499, 1.442695
        %v3501 = vpow.pop %v3500
        %v3502 = vadd.f32 %v3501, 1.0
        %v3503 = vrcp.pop %v3502
        %v3504 = vmul.f32 1.0, %v3503
        %v3505 = vadd.f32 %v3307, %v3426
        %v3506 = vxor.u32 %v3505, 2147483648
        %v3507 = vmul.f32 %v3506, 1.442695
        %v3508 = vpow.pop %v3507
        %v3509 = vadd.f32 %v3508, 1.0
        %v3510 = vrcp.pop %v3509
        %v3511 = vmul.f32 1.0, %v3510
        %v3512 = vadd.f32 %v3495, %v415
        %v3513 = vmul.f32 %v3504, %v3512
        %v3514 = vadd.f32 %v3308, %v3513
        %v3515 = vtanh.pop %v3514
        %v3516 = vsub.f32 1.0, %v3511
        %v3517 = vmul.f32 %v3516, %v3515
        %v3518 = vmul.f32 %v3511, %v3297
        %v3519 = vadd.f32 %v3517, %v3518
        %s3520 = smul.u32 %s3302, 8
        %s3521 = scalar_lea.vmem %s375, %s3520 [#allocation4]
        %3522 = vst [vmem:[%s3521] sm:$0xff] %v3519
        %s3523 = smul.u32 %s23, 4294967283
        %s3524 = sadd.s32 %s3523, 14
        %s3525 = smul.u32 %s3524, 3
        %s3526 = smul.addr %s3525, 8
        %s3527 = scalar_lea.vmem %s347, %s3526 [#allocation3]
        %v3528 = vld [vmem:[%s3527] sm:$0xff]
        %v3529 = vld [vmem:[%s3527 + $0x8] sm:$0xff]
        %v3530 = vld [vmem:[%s3527 + $0x10] sm:$0xff]
        %v3531 = vld [vmem:[%s392] sm:$0xff]
        %v3532 = vld [vmem:[%s392 + $0x8] sm:$0xff]
        %v3533 = vld [vmem:[%s392 + $0x10] sm:$0xff]
        %v3534 = vld [vmem:[%s392 + $0x18] sm:$0xff]
        %v3535 = vld [vmem:[%s392 + $0x20] sm:$0xff]
        %v3536 = vld [vmem:[%s392 + $0x28] sm:$0xff]
        %v3537 = vld [vmem:[%s392 + $0x30] sm:$0xff]
        %v3538 = vld [vmem:[%s392 + $0x38] sm:$0xff]
        %v3539 = vld [vmem:[%s392 + $0x40] sm:$0xff]
        %v3540 = vld [vmem:[%s392 + $0x48] sm:$0xff]
        %v3541 = vld [vmem:[%s392 + $0x50] sm:$0xff]
        %v3542 = vld [vmem:[%s392 + $0x58] sm:$0xff]
        %v3543 = vld [vmem:[%s392 + $0x60] sm:$0xff]
        %v3544 = vld [vmem:[%s392 + $0x68] sm:$0xff]
        %v3545 = vld [vmem:[%s392 + $0x70] sm:$0xff]
        %v3546 = vld [vmem:[%s392 + $0x78] sm:$0xff]
        %v3547 = vld [vmem:[%s392 + $0x80] sm:$0xff]
        %v3548 = vld [vmem:[%s392 + $0x88] sm:$0xff]
        %v3549 = vld [vmem:[%s392 + $0x90] sm:$0xff]
        %v3550 = vld [vmem:[%s392 + $0x98] sm:$0xff]
        %v3551 = vld [vmem:[%s392 + $0xa0] sm:$0xff]
        %v3552 = vld [vmem:[%s392 + $0xa8] sm:$0xff]
        %v3553 = vld [vmem:[%s392 + $0xb0] sm:$0xff]
        %v3554 = vld [vmem:[%s392 + $0xb8] sm:$0xff]
        %v3555 = vld [vmem:[%s392 + $0xc0] sm:$0xff]
        %v3556 = vld [vmem:[%s392 + $0xc8] sm:$0xff]
        %v3557 = vld [vmem:[%s392 + $0xd0] sm:$0xff]
        %v3558 = vld [vmem:[%s392 + $0xd8] sm:$0xff]
        %v3559 = vld [vmem:[%s392 + $0xe0] sm:$0xff]
        %v3560 = vld [vmem:[%s392 + $0xe8] sm:$0xff]
        %v3561 = vld [vmem:[%s392 + $0xf0] sm:$0xff]
        %v3562 = vld [vmem:[%s392 + $0xf8] sm:$0xff]
        %v3563 = vld [vmem:[%s392 + $0x100] sm:$0xff]
        %v3564 = vld [vmem:[%s392 + $0x108] sm:$0xff]
        %v3565 = vld [vmem:[%s392 + $0x110] sm:$0xff]
        %v3566 = vld [vmem:[%s392 + $0x118] sm:$0xff]
        %v3567 = vld [vmem:[%s392 + $0x120] sm:$0xff]
        %v3568 = vld [vmem:[%s392 + $0x128] sm:$0xff]
        %v3569 = vld [vmem:[%s392 + $0x130] sm:$0xff]
        %v3570 = vld [vmem:[%s392 + $0x138] sm:$0xff]
        %v3571 = vld [vmem:[%s392 + $0x140] sm:$0xff]
        %v3572 = vld [vmem:[%s392 + $0x148] sm:$0xff]
        %v3573 = vld [vmem:[%s392 + $0x150] sm:$0xff]
        %v3574 = vld [vmem:[%s392 + $0x158] sm:$0xff]
        %v3575 = vld [vmem:[%s392 + $0x160] sm:$0xff]
        %v3576 = vld [vmem:[%s392 + $0x168] sm:$0xff]
        %v3577 = vld [vmem:[%s392 + $0x170] sm:$0xff]
        %v3578 = vld [vmem:[%s392 + $0x178] sm:$0xff]
        %3579 = vmatprep.subr.mxu0 %v3532
        %3580 = vmatpush1.msra.mxu0 %v3531
        %3581 = vmatprep.subr.mxu0 %v3535
        %3582 = vmatpush1.msra.mxu0 %v3534
        %3583 = vmatprep.subr.mxu0 %v3538
        %3584 = vmatpush1.msra.mxu0 %v3537
        %3585 = vmatprep.subr.mxu0 %v3541
        %3586 = vmatpush1.msra.mxu0 %v3540
        %3587 = vmatprep.subr.mxu0 %v3544
        %3588 = vmatpush1.msra.mxu0 %v3543
        %3589 = vmatprep.subr.mxu0 %v3547
        %3590 = vmatpush1.msra.mxu0 %v3546
        %3591 = vmatprep.subr.mxu0 %v3550
        %3592 = vmatpush1.msra.mxu0 %v3549
        %3593 = vmatprep.subr.mxu0 %v3553
        %3594 = vmatpush1.msra.mxu0 %v3552
        %3595 = vmatprep.subr.mxu0 %v3556
        %3596 = vmatpush1.msra.mxu0 %v3555
        %3597 = vmatprep.subr.mxu0 %v3559
        %3598 = vmatpush1.msra.mxu0 %v3558
        %3599 = vmatprep.subr.mxu0 %v3562
        %3600 = vmatpush1.msra.mxu0 %v3561
        %3601 = vmatprep.subr.mxu0 %v3565
        %3602 = vmatpush1.msra.mxu0 %v3564
        %3603 = vmatprep.subr.mxu0 %v3568
        %3604 = vmatpush1.msra.mxu0 %v3567
        %3605 = vmatprep.subr.mxu0 %v3571
        %3606 = vmatpush1.msra.mxu0 %v3570
        %3607 = vmatprep.subr.mxu0 %v3574
        %3608 = vmatpush1.msra.mxu0 %v3573
        %3609 = vmatprep.subr.mxu0 %v3577
        %3610 = vmatpush1.msra.mxu0 %v3576
        %3611 = vmatprep.subr.mxu0 0.0
        %3612 = vmatpush1.msra.mxu0 0.0
        %3613 = vmatprep.subr.mxu0 0.0
        %3614 = vmatpush1.msra.mxu0 0.0
        %3615 = vmatprep.subr.mxu0 0.0
        %3616 = vmatpush1.msra.mxu0 0.0
        %3617 = vmatprep.subr.mxu0 0.0
        %3618 = vmatpush1.msra.mxu0 0.0
        %3619 = vmatprep.subr.mxu0 0.0
        %3620 = vmatpush1.msra.mxu0 0.0
        %3621 = vmatprep.subr.mxu0 0.0
        %3622 = vmatpush1.msra.mxu0 0.0
        %3623 = vmatprep.subr.mxu0 0.0
        %3624 = vmatpush1.msra.mxu0 0.0
        %3625 = vmatprep.subr.mxu0 0.0
        %3626 = vmatpush1.msra.mxu0 0.0
        %3627 = vmatprep.subr.mxu0 0.0
        %3628 = vmatpush1.msra.mxu0 0.0
        %3629 = vmatprep.subr.mxu0 0.0
        %3630 = vmatpush1.msra.mxu0 0.0
        %3631 = vmatprep.subr.mxu0 0.0
        %3632 = vmatpush1.msra.mxu0 0.0
        %3633 = vmatprep.subr.mxu0 0.0
        %3634 = vmatpush1.msra.mxu0 0.0
        %3635 = vmatprep.subr.mxu0 0.0
        %3636 = vmatpush1.msra.mxu0 0.0
        %3637 = vmatprep.subr.mxu0 0.0
        %3638 = vmatpush1.msra.mxu0 0.0
        %3639 = vmatprep.subr.mxu0 0.0
        %3640 = vmatpush1.msra.mxu0 0.0
        %3641 = vmatprep.subr.mxu0 0.0
        %3642 = vmatpush1.msra.mxu0 0.0
        %3643 = vmatprep.mubr.f32.mxu0 0.0
        %3644 = vmatmul.mubr.f32.gmra.mrb[0].mxu0 %v3519
        %v3645 = vpop.f32.mrb[0].mxu0
        %v3646 = vadd.f32 0.0, %v3645
        %v3647 = vpop.f32.mrb[0].mxu0
        %v3648 = vadd.f32 0.0, %v3647
        %3649 = vdwg.mxu0
        %3650 = vmatprep.subr.mxu0 0.0
        %3651 = vmatpush1.msra.mxu0 %v3533
        %3652 = vmatprep.subr.mxu0 0.0
        %3653 = vmatpush1.msra.mxu0 %v3536
        %3654 = vmatprep.subr.mxu0 0.0
        %3655 = vmatpush1.msra.mxu0 %v3539
        %3656 = vmatprep.subr.mxu0 0.0
        %3657 = vmatpush1.msra.mxu0 %v3542
        %3658 = vmatprep.subr.mxu0 0.0
        %3659 = vmatpush1.msra.mxu0 %v3545
        %3660 = vmatprep.subr.mxu0 0.0
        %3661 = vmatpush1.msra.mxu0 %v3548
        %3662 = vmatprep.subr.mxu0 0.0
        %3663 = vmatpush1.msra.mxu0 %v3551
        %3664 = vmatprep.subr.mxu0 0.0
        %3665 = vmatpush1.msra.mxu0 %v3554
        %3666 = vmatprep.subr.mxu0 0.0
        %3667 = vmatpush1.msra.mxu0 %v3557
        %3668 = vmatprep.subr.mxu0 0.0
        %3669 = vmatpush1.msra.mxu0 %v3560
        %3670 = vmatprep.subr.mxu0 0.0
        %3671 = vmatpush1.msra.mxu0 %v3563
        %3672 = vmatprep.subr.mxu0 0.0
        %3673 = vmatpush1.msra.mxu0 %v3566
        %3674 = vmatprep.subr.mxu0 0.0
        %3675 = vmatpush1.msra.mxu0 %v3569
        %3676 = vmatprep.subr.mxu0 0.0
        %3677 = vmatpush1.msra.mxu0 %v3572
        %3678 = vmatprep.subr.mxu0 0.0
        %3679 = vmatpush1.msra.mxu0 %v3575
        %3680 = vmatprep.subr.mxu0 0.0
        %3681 = vmatpush1.msra.mxu0 %v3578
        %3682 = vmatprep.subr.mxu0 0.0
        %3683 = vmatpush1.msra.mxu0 0.0
        %3684 = vmatprep.subr.mxu0 0.0
        %3685 = vmatpush1.msra.mxu0 0.0
        %3686 = vmatprep.subr.mxu0 0.0
        %3687 = vmatpush1.msra.mxu0 0.0
        %3688 = vmatprep.subr.mxu0 0.0
        %3689 = vmatpush1.msra.mxu0 0.0
        %3690 = vmatprep.subr.mxu0 0.0
        %3691 = vmatpush1.msra.mxu0 0.0
        %3692 = vmatprep.subr.mxu0 0.0
        %3693 = vmatpush1.msra.mxu0 0.0
        %3694 = vmatprep.subr.mxu0 0.0
        %3695 = vmatpush1.msra.mxu0 0.0
        %3696 = vmatprep.subr.mxu0 0.0
        %3697 = vmatpush1.msra.mxu0 0.0
        %3698 = vmatprep.subr.mxu0 0.0
        %3699 = vmatpush1.msra.mxu0 0.0
        %3700 = vmatprep.subr.mxu0 0.0
        %3701 = vmatpush1.msra.mxu0 0.0
        %3702 = vmatprep.subr.mxu0 0.0
        %3703 = vmatpush1.msra.mxu0 0.0
        %3704 = vmatprep.subr.mxu0 0.0
        %3705 = vmatpush1.msra.mxu0 0.0
        %3706 = vmatprep.subr.mxu0 0.0
        %3707 = vmatpush1.msra.mxu0 0.0
        %3708 = vmatprep.subr.mxu0 0.0
        %3709 = vmatpush1.msra.mxu0 0.0
        %3710 = vmatprep.subr.mxu0 0.0
        %3711 = vmatpush1.msra.mxu0 0.0
        %3712 = vmatprep.subr.mxu0 0.0
        %3713 = vmatpush1.msra.mxu0 0.0
        %3714 = vmatprep.mubr.f32.mxu0 0.0
        %3715 = vmatmul.mubr.f32.gmra.mrb[0].mxu0 %v3519
        %v3716 = vpop.f32.mrb[0].mxu0
        %v3717 = vadd.f32 0.0, %v3716
        %v3718 = vpop.f32.mrb[0].mxu0
        %3719 = vdwg.mxu0
        %v3720 = vadd.f32 %v3528, %v3646
        %v3721 = vxor.u32 %v3720, 2147483648
        %v3722 = vmul.f32 %v3721, 1.442695
        %v3723 = vpow.pop %v3722
        %v3724 = vadd.f32 %v3723, 1.0
        %v3725 = vrcp.pop %v3724
        %v3726 = vmul.f32 1.0, %v3725
        %v3727 = vadd.f32 %v3529, %v3648
        %v3728 = vxor.u32 %v3727, 2147483648
        %v3729 = vmul.f32 %v3728, 1.442695
        %v3730 = vpow.pop %v3729
        %v3731 = vadd.f32 %v3730, 1.0
        %v3732 = vrcp.pop %v3731
        %v3733 = vmul.f32 1.0, %v3732
        %v3734 = vadd.f32 %v3717, %v415
        %v3735 = vmul.f32 %v3726, %v3734
        %v3736 = vadd.f32 %v3530, %v3735
        %v3737 = vtanh.pop %v3736
        %v3738 = vsub.f32 1.0, %v3733
        %v3739 = vmul.f32 %v3738, %v3737
        %v3740 = vmul.f32 %v3733, %v3519
        %v3741 = vadd.f32 %v3739, %v3740
        %s3742 = smul.u32 %s3524, 8
        %s3743 = scalar_lea.vmem %s375, %s3742 [#allocation4]
        %3744 = vst [vmem:[%s3743] sm:$0xff] %v3741
        %s3745 = smul.u32 %s23, 4294967281
        %s3746 = sadd.s32 %s3745, 15
        %s3747 = smul.u32 %s3746, 3
        %s3748 = smul.addr %s3747, 8
        %s3749 = scalar_lea.vmem %s347, %s3748 [#allocation3]
        %v3750 = vld [vmem:[%s3749] sm:$0xff]
        %v3751 = vld [vmem:[%s3749 + $0x8] sm:$0xff]
        %v3752 = vld [vmem:[%s3749 + $0x10] sm:$0xff]
        %v3753 = vld [vmem:[%s392] sm:$0xff]
        %v3754 = vld [vmem:[%s392 + $0x8] sm:$0xff]
        %v3755 = vld [vmem:[%s392 + $0x10] sm:$0xff]
        %v3756 = vld [vmem:[%s392 + $0x18] sm:$0xff]
        %v3757 = vld [vmem:[%s392 + $0x20] sm:$0xff]
        %v3758 = vld [vmem:[%s392 + $0x28] sm:$0xff]
        %v3759 = vld [vmem:[%s392 + $0x30] sm:$0xff]
        %v3760 = vld [vmem:[%s392 + $0x38] sm:$0xff]
        %v3761 = vld [vmem:[%s392 + $0x40] sm:$0xff]
        %v3762 = vld [vmem:[%s392 + $0x48] sm:$0xff]
        %v3763 = vld [vmem:[%s392 + $0x50] sm:$0xff]
        %v3764 = vld [vmem:[%s392 + $0x58] sm:$0xff]
        %v3765 = vld [vmem:[%s392 + $0x60] sm:$0xff]
        %v3766 = vld [vmem:[%s392 + $0x68] sm:$0xff]
        %v3767 = vld [vmem:[%s392 + $0x70] sm:$0xff]
        %v3768 = vld [vmem:[%s392 + $0x78] sm:$0xff]
        %v3769 = vld [vmem:[%s392 + $0x80] sm:$0xff]
        %v3770 = vld [vmem:[%s392 + $0x88] sm:$0xff]
        %v3771 = vld [vmem:[%s392 + $0x90] sm:$0xff]
        %v3772 = vld [vmem:[%s392 + $0x98] sm:$0xff]
        %v3773 = vld [vmem:[%s392 + $0xa0] sm:$0xff]
        %v3774 = vld [vmem:[%s392 + $0xa8] sm:$0xff]
        %v3775 = vld [vmem:[%s392 + $0xb0] sm:$0xff]
        %v3776 = vld [vmem:[%s392 + $0xb8] sm:$0xff]
        %v3777 = vld [vmem:[%s392 + $0xc0] sm:$0xff]
        %v3778 = vld [vmem:[%s392 + $0xc8] sm:$0xff]
        %v3779 = vld [vmem:[%s392 + $0xd0] sm:$0xff]
        %v3780 = vld [vmem:[%s392 + $0xd8] sm:$0xff]
        %v3781 = vld [vmem:[%s392 + $0xe0] sm:$0xff]
        %v3782 = vld [vmem:[%s392 + $0xe8] sm:$0xff]
        %v3783 = vld [vmem:[%s392 + $0xf0] sm:$0xff]
        %v3784 = vld [vmem:[%s392 + $0xf8] sm:$0xff]
        %v3785 = vld [vmem:[%s392 + $0x100] sm:$0xff]
        %v3786 = vld [vmem:[%s392 + $0x108] sm:$0xff]
        %v3787 = vld [vmem:[%s392 + $0x110] sm:$0xff]
        %v3788 = vld [vmem:[%s392 + $0x118] sm:$0xff]
        %v3789 = vld [vmem:[%s392 + $0x120] sm:$0xff]
        %v3790 = vld [vmem:[%s392 + $0x128] sm:$0xff]
        %v3791 = vld [vmem:[%s392 + $0x130] sm:$0xff]
        %v3792 = vld [vmem:[%s392 + $0x138] sm:$0xff]
        %v3793 = vld [vmem:[%s392 + $0x140] sm:$0xff]
        %v3794 = vld [vmem:[%s392 + $0x148] sm:$0xff]
        %v3795 = vld [vmem:[%s392 + $0x150] sm:$0xff]
        %v3796 = vld [vmem:[%s392 + $0x158] sm:$0xff]
        %v3797 = vld [vmem:[%s392 + $0x160] sm:$0xff]
        %v3798 = vld [vmem:[%s392 + $0x168] sm:$0xff]
        %v3799 = vld [vmem:[%s392 + $0x170] sm:$0xff]
        %v3800 = vld [vmem:[%s392 + $0x178] sm:$0xff]
        %3801 = vmatprep.subr.mxu0 %v3754
        %3802 = vmatpush1.msra.mxu0 %v3753
        %3803 = vmatprep.subr.mxu0 %v3757
        %3804 = vmatpush1.msra.mxu0 %v3756
        %3805 = vmatprep.subr.mxu0 %v3760
        %3806 = vmatpush1.msra.mxu0 %v3759
        %3807 = vmatprep.subr.mxu0 %v3763
        %3808 = vmatpush1.msra.mxu0 %v3762
        %3809 = vmatprep.subr.mxu0 %v3766
        %3810 = vmatpush1.msra.mxu0 %v3765
        %3811 = vmatprep.subr.mxu0 %v3769
        %3812 = vmatpush1.msra.mxu0 %v3768
        %3813 = vmatprep.subr.mxu0 %v3772
        %3814 = vmatpush1.msra.mxu0 %v3771
        %3815 = vmatprep.subr.mxu0 %v3775
        %3816 = vmatpush1.msra.mxu0 %v3774
        %3817 = vmatprep.subr.mxu0 %v3778
        %3818 = vmatpush1.msra.mxu0 %v3777
        %3819 = vmatprep.subr.mxu0 %v3781
        %3820 = vmatpush1.msra.mxu0 %v3780
        %3821 = vmatprep.subr.mxu0 %v3784
        %3822 = vmatpush1.msra.mxu0 %v3783
        %3823 = vmatprep.subr.mxu0 %v3787
        %3824 = vmatpush1.msra.mxu0 %v3786
        %3825 = vmatprep.subr.mxu0 %v3790
        %3826 = vmatpush1.msra.mxu0 %v3789
        %3827 = vmatprep.subr.mxu0 %v3793
        %3828 = vmatpush1.msra.mxu0 %v3792
        %3829 = vmatprep.subr.mxu0 %v3796
        %3830 = vmatpush1.msra.mxu0 %v3795
        %3831 = vmatprep.subr.mxu0 %v3799
        %3832 = vmatpush1.msra.mxu0 %v3798
        %3833 = vmatprep.subr.mxu0 0.0
        %3834 = vmatpush1.msra.mxu0 0.0
        %3835 = vmatprep.subr.mxu0 0.0
        %3836 = vmatpush1.msra.mxu0 0.0
        %3837 = vmatprep.subr.mxu0 0.0
        %3838 = vmatpush1.msra.mxu0 0.0
        %3839 = vmatprep.subr.mxu0 0.0
        %3840 = vmatpush1.msra.mxu0 0.0
        %3841 = vmatprep.subr.mxu0 0.0
        %3842 = vmatpush1.msra.mxu0 0.0
        %3843 = vmatprep.subr.mxu0 0.0
        %3844 = vmatpush1.msra.mxu0 0.0
        %3845 = vmatprep.subr.mxu0 0.0
        %3846 = vmatpush1.msra.mxu0 0.0
        %3847 = vmatprep.subr.mxu0 0.0
        %3848 = vmatpush1.msra.mxu0 0.0
        %3849 = vmatprep.subr.mxu0 0.0
        %3850 = vmatpush1.msra.mxu0 0.0
        %3851 = vmatprep.subr.mxu0 0.0
        %3852 = vmatpush1.msra.mxu0 0.0
        %3853 = vmatprep.subr.mxu0 0.0
        %3854 = vmatpush1.msra.mxu0 0.0
        %3855 = vmatprep.subr.mxu0 0.0
        %3856 = vmatpush1.msra.mxu0 0.0
        %3857 = vmatprep.subr.mxu0 0.0
        %3858 = vmatpush1.msra.mxu0 0.0
        %3859 = vmatprep.subr.mxu0 0.0
        %3860 = vmatpush1.msra.mxu0 0.0
        %3861 = vmatprep.subr.mxu0 0.0
        %3862 = vmatpush1.msra.mxu0 0.0
        %3863 = vmatprep.subr.mxu0 0.0
        %3864 = vmatpush1.msra.mxu0 0.0
        %3865 = vmatprep.mubr.f32.mxu0 0.0
        %3866 = vmatmul.mubr.f32.gmra.mrb[0].mxu0 %v3741
        %v3867 = vpop.f32.mrb[0].mxu0
        %v3868 = vadd.f32 0.0, %v3867
        %v3869 = vpop.f32.mrb[0].mxu0
        %v3870 = vadd.f32 0.0, %v3869
        %3871 = vdwg.mxu0
        %3872 = vmatprep.subr.mxu0 0.0
        %3873 = vmatpush1.msra.mxu0 %v3755
        %3874 = vmatprep.subr.mxu0 0.0
        %3875 = vmatpush1.msra.mxu0 %v3758
        %3876 = vmatprep.subr.mxu0 0.0
        %3877 = vmatpush1.msra.mxu0 %v3761
        %3878 = vmatprep.subr.mxu0 0.0
        %3879 = vmatpush1.msra.mxu0 %v3764
        %3880 = vmatprep.subr.mxu0 0.0
        %3881 = vmatpush1.msra.mxu0 %v3767
        %3882 = vmatprep.subr.mxu0 0.0
        %3883 = vmatpush1.msra.mxu0 %v3770
        %3884 = vmatprep.subr.mxu0 0.0
        %3885 = vmatpush1.msra.mxu0 %v3773
        %3886 = vmatprep.subr.mxu0 0.0
        %3887 = vmatpush1.msra.mxu0 %v3776
        %3888 = vmatprep.subr.mxu0 0.0
        %3889 = vmatpush1.msra.mxu0 %v3779
        %3890 = vmatprep.subr.mxu0 0.0
        %3891 = vmatpush1.msra.mxu0 %v3782
        %3892 = vmatprep.subr.mxu0 0.0
        %3893 = vmatpush1.msra.mxu0 %v3785
        %3894 = vmatprep.subr.mxu0 0.0
        %3895 = vmatpush1.msra.mxu0 %v3788
        %3896 = vmatprep.subr.mxu0 0.0
        %3897 = vmatpush1.msra.mxu0 %v3791
        %3898 = vmatprep.subr.mxu0 0.0
        %3899 = vmatpush1.msra.mxu0 %v3794
        %3900 = vmatprep.subr.mxu0 0.0
        %3901 = vmatpush1.msra.mxu0 %v3797
        %3902 = vmatprep.subr.mxu0 0.0
        %3903 = vmatpush1.msra.mxu0 %v3800
        %3904 = vmatprep.subr.mxu0 0.0
        %3905 = vmatpush1.msra.mxu0 0.0
        %3906 = vmatprep.subr.mxu0 0.0
        %3907 = vmatpush1.msra.mxu0 0.0
        %3908 = vmatprep.subr.mxu0 0.0
        %3909 = vmatpush1.msra.mxu0 0.0
        %3910 = vmatprep.subr.mxu0 0.0
        %3911 = vmatpush1.msra.mxu0 0.0
        %3912 = vmatprep.subr.mxu0 0.0
        %3913 = vmatpush1.msra.mxu0 0.0
        %3914 = vmatprep.subr.mxu0 0.0
        %3915 = vmatpush1.msra.mxu0 0.0
        %3916 = vmatprep.subr.mxu0 0.0
        %3917 = vmatpush1.msra.mxu0 0.0
        %3918 = vmatprep.subr.mxu0 0.0
        %3919 = vmatpush1.msra.mxu0 0.0
        %3920 = vmatprep.subr.mxu0 0.0
        %3921 = vmatpush1.msra.mxu0 0.0
        %3922 = vmatprep.subr.mxu0 0.0
        %3923 = vmatpush1.msra.mxu0 0.0
        %3924 = vmatprep.subr.mxu0 0.0
        %3925 = vmatpush1.msra.mxu0 0.0
        %3926 = vmatprep.subr.mxu0 0.0
        %3927 = vmatpush1.msra.mxu0 0.0
        %3928 = vmatprep.subr.mxu0 0.0
        %3929 = vmatpush1.msra.mxu0 0.0
        %3930 = vmatprep.subr.mxu0 0.0
        %3931 = vmatpush1.msra.mxu0 0.0
        %3932 = vmatprep.subr.mxu0 0.0
        %3933 = vmatpush1.msra.mxu0 0.0
        %3934 = vmatprep.subr.mxu0 0.0
        %3935 = vmatpush1.msra.mxu0 0.0
        %3936 = vmatprep.mubr.f32.mxu0 0.0
        %3937 = vmatmul.mubr.f32.gmra.mrb[0].mxu0 %v3741
        %v3938 = vpop.f32.mrb[0].mxu0
        %v3939 = vadd.f32 0.0, %v3938
        %v3940 = vpop.f32.mrb[0].mxu0
        %3941 = vdwg.mxu0
        %v3942 = vadd.f32 %v3750, %v3868
        %v3943 = vxor.u32 %v3942, 2147483648
        %v3944 = vmul.f32 %v3943, 1.442695
        %v3945 = vpow.pop %v3944
        %v3946 = vadd.f32 %v3945, 1.0
        %v3947 = vrcp.pop %v3946
        %v3948 = vmul.f32 1.0, %v3947
        %v3949 = vadd.f32 %v3751, %v3870
        %v3950 = vxor.u32 %v3949, 2147483648
        %v3951 = vmul.f32 %v3950, 1.442695
        %v3952 = vpow.pop %v3951
        %v3953 = vadd.f32 %v3952, 1.0
        %v3954 = vrcp.pop %v3953
        %v3955 = vmul.f32 1.0, %v3954
        %v3956 = vadd.f32 %v3939, %v415
        %v3957 = vmul.f32 %v3948, %v3956
        %v3958 = vadd.f32 %v3752, %v3957
        %v3959 = vtanh.pop %v3958
        %v3960 = vsub.f32 1.0, %v3955
        %v3961 = vmul.f32 %v3960, %v3959
        %v3962 = vmul.f32 %v3955, %v3741
        %v3963 = vadd.f32 %v3961, %v3962
        %s3964 = smul.u32 %s3746, 8
        %s3965 = scalar_lea.vmem %s375, %s3964 [#allocation4]
        %3966 = vst [vmem:[%s3965] sm:$0xff] %v3963
        %3967 = vst [vmem:[#allocation2] sm:$0xff] %v3963
        %p3968 = scmp.eq.s32.totalorder %s24, 1
        // Predicated region
        $region60: #{encoder_forward.4} parent=50 // pred_check
          %p3969 = pneg %p3968
        $region61: #{encoder_forward.4} parent=50 // pred_check_branch
          %3971 = sbr.rel (%p3969) target = $region63
        $region62: #{encoder_forward.4} parent=50 // pred_region
          %3972 = vst [vmem:[%s404] sm:$0xff] %v3963
        $region63: #{encoder_forward.4} parent=50 // pred_fallthru
          _
        %s3973 = sand.u32 %s137, 1
        %s3974 = scalar_lea.sflag [#allocation5], %s3973
        %s3975 = sand.u32 %s137, 1
        %s3976 = smul.addr %s3975, 128
        %s3977 = scalar_lea.vmem [#allocation4], %s3976
        %p3978 = scmp.lt.s32.totalorder %s23, 1
        %s3979 = scalar_select %p3978, %s23, 1
        %s3980 = smul.addr %s3979, 8
        %s3981 = scalar_lea.vmem %s4, %s3980
        // Predicated region
        $region64: #{encoder_forward.4} parent=50 // pred_check
          %p3982 = pneg %p147
        $region65: #{encoder_forward.4} parent=50 // pred_check_branch
          %3984 = sbr.rel (%p3982) target = $region67
        $region66: #{encoder_forward.4} parent=50 // pred_region
          %s3985 = smul.u32 %s24, 2
          %s3986 = ssub.s32 1, %s3985
          %s3987 = smul.u32 %s23, %s3986
          %s3988 = sadd.s32 %s24, %s3987
          %s3989 = smul.u32 16, %s3988
          %s3991 = ssub.s32 2048, 2048
          %3992 = vsyncadd %s3974, %s3991
          %s3993 = smul.addr %s3989, 2
          %s3994 = sadd.s32 %s23, %s3993
          %s3995 = smul.addr %s3994, 128
          %s3996 = scalar_lea.hbm %s3, %s3995
          %s3997 = sshll.u32 %s3977, 4
          %s3998 = int_to_ptr.vmem [resolvable:$true] %s3997
          %4003 = dma.vmem_to_hbm [thread:$0]  %s3998, 2048, %s3996, %s3974, 128, 256, 8
        $region67: #{encoder_forward.4} parent=50 // pred_fallthru
          _
        // Predicated region
        $region68: #{encoder_forward.4} parent=50 // pred_check
          %p4004 = pneg %p173
        $region69: #{encoder_forward.4} parent=50 // pred_check_branch
          %4006 = sbr.rel (%p4004) target = $region71
        $region70: #{encoder_forward.4} parent=50 // pred_region
          _
        $region71: #{encoder_forward.4} parent=50 // pred_fallthru
          _
      $region51: #{encoder_forward.4} parent=5 // pred_fallthru
        _
      %p4007 = scmp.le.s32.totalorder 2, %s14
      // Predicated region
      $region72: #{encoder_forward.4} parent=5 // pred_check
        %p4008 = pneg %p4007
      $region73: #{encoder_forward.4} parent=5 // pred_check_branch
        %4010 = sbr.rel (%p4008) target = $region75
      $region74: #{encoder_forward.4} parent=5 // pred_region
        %s4011 = ssub.s32 %s14, 2
        // Predicated region
        $region76: #{encoder_forward.4} parent=74 // pred_check
          %p4012 = pneg %p153
        $region77: #{encoder_forward.4} parent=74 // pred_check_branch
          %4014 = sbr.rel (%p4012) target = $region79
        $region78: #{encoder_forward.4} parent=74 // pred_region
          %s4015 = sand.u32 %s138, 1
          %s4016 = scalar_lea.sflag [#allocation5], %s4015
          %s4017 = sand.u32 %s138, 1
          %s4018 = smul.addr %s4017, 128
          %s4019 = scalar_lea.vmem [#allocation4], %s4018
          %4020 = dma.done %s4016, 2048
        $region79: #{encoder_forward.4} parent=74 // pred_fallthru
          _
        // Predicated region
        $region80: #{encoder_forward.4} parent=74 // pred_check
          %p4021 = pneg %p179
        $region81: #{encoder_forward.4} parent=74 // pred_check_branch
          %4023 = sbr.rel (%p4021) target = $region83
        $region82: #{encoder_forward.4} parent=74 // pred_region
          %p4024 = scmp.lt.s32.totalorder %s25, 1
          %s4025 = scalar_select %p4024, %s25, 1
          %s4026 = smul.addr %s4025, 8
          %s4027 = scalar_lea.vmem %s4, %s4026
        $region83: #{encoder_forward.4} parent=74 // pred_fallthru
          _
      $region75: #{encoder_forward.4} parent=5 // pred_fallthru
        _
    $region6: #{encoder_forward.4} parent=1 // loop_footer
      %s18 = sadd.s32 1, %s14
    $region7: #{encoder_forward.4} parent=1 // loop_footer_branch
      %13 = sbr.rel target = $region3
    $region8: #{encoder_forward.4} parent=1 // loop_exit
      _
    %4028 = vsyncpa [#allocation5], 1
    %s4029 = scalar_lea.sflag [#allocation5], 1
    %4030 = vsyncpa %s4029, 1

</llo_original>
